<compile_context>
chip_gen: v7x
topology: tpu7x:2x2x1
jax: 0.10.0
libtpu: 0.0.40
codegen_flags: <defaults>
</compile_context>

<pallas_src>
from functools import partial

import jax
import jax.numpy as jnp
from jax.experimental import pallas as pl
from jax.experimental.pallas import tpu as pltpu

_EPS = 1e-5                       # nn.BatchNorm2d default eps
_TMF = 256                        # folded rows per tile in the BN-apply pass
_VMEM_LIMIT = 48 * 1024 * 1024    # v7x has 64 MiB/TC; 48 MiB leaves headroom everywhere


def _round_up(x, m):
    return (x + m - 1) // m * m


def _pad_rows(a, mult):
    m = a.shape[0]
    mp = _round_up(m, mult)
    if mp != m:
        a = jnp.pad(a, ((0, mp - m), (0, 0)))
    return a


def _pick_th(h, w):
    """Largest divisor of h giving <= ~2048 matmul rows, keeping >= 2 h-tiles."""
    best = 1
    for d in range(1, h + 1):
        if h % d == 0 and d * w <= 2048 and (h // d >= 2 or h == 1):
            best = d
    return best


# ------------------------------- Pallas kernels -------------------------------
def _conv3x3_kernel(xp_ref, w_ref, y_ref, st_ref, *, th, width, cin, cout):
    # xp_ref: (1, H+2, W+2, Cin) padded image, resident per batch element.
    # One grid step computes output rows [r0, r0+th) for one image:
    # in-register im2col (9 pl.ds taps, lane concat) + single MXU matmul,
    # then bf16 y tile + f32 per-tile BN partial sums.
    r0 = pl.program_id(1) * th
    rows = th * width
    patches = [
        xp_ref[0, pl.ds(r0 + ki, th), pl.ds(kj, width), :].reshape(rows, cin)
        for ki in range(3) for kj in range(3)
    ]
    lhs = jnp.concatenate(patches, axis=-1)                 # (rows, 9*Cin) bf16
    acc = jnp.dot(lhs, w_ref[...], preferred_element_type=jnp.float32)
    y_ref[...] = acc.reshape(1, th, width, cout).astype(y_ref.dtype)
    s = jnp.sum(acc, axis=0, keepdims=True)
    ss = jnp.sum(acc * acc, axis=0, keepdims=True)
    st_ref[...] = jnp.concatenate(
        [s, ss, jnp.zeros((6, cout), jnp.float32)], axis=0).reshape(1, 1, 8, cout)


def _tconv_kernel(xp_ref, w_ref, y_ref, st_ref, *, th, width, cin, cout):
    # ConvTranspose2d(k=3, s=2, p=1) via the 4-parity decomposition on the
    # un-dilated input.  xp_ref: (1, H+1, W+1, Cin) (zero halo bottom/right).
    # out[2j+py, 2i+px] mixes only {x[j,i], x[j,i+1], x[j+1,i], x[j+1,i+1]}.
    r0 = pl.program_id(1) * th
    rows = th * width
    x00 = xp_ref[0, pl.ds(r0, th),     pl.ds(0, width), :].reshape(rows, cin)
    x01 = xp_ref[0, pl.ds(r0, th),     pl.ds(1, width), :].reshape(rows, cin)
    x10 = xp_ref[0, pl.ds(r0 + 1, th), pl.ds(0, width), :].reshape(rows, cin)
    x11 = xp_ref[0, pl.ds(r0 + 1, th), pl.ds(1, width), :].reshape(rows, cin)

    dot = lambda a, ky, kx: jnp.dot(a, w_ref[ky, kx], preferred_element_type=jnp.float32)
    y_ee = dot(x00, 1, 1)
    y_eo = dot(x01, 1, 0) + dot(x00, 1, 2)
    y_oe = dot(x10, 0, 1) + dot(x00, 2, 1)
    y_oo = dot(x11, 0, 0) + dot(x10, 0, 2) + dot(x01, 2, 0) + dot(x00, 2, 2)

    # Per-tile BN partial sums over the full (un-cropped) interleave buffer;
    # the cropped row/col (output_padding=0) is corrected in the JAX finalize.
    parts = (y_ee, y_eo, y_oe, y_oo)
    s = sum(jnp.sum(p, axis=0, keepdims=True) for p in parts)
    ss = sum(jnp.sum(p * p, axis=0, keepdims=True) for p in parts)
    st_ref[...] = jnp.concatenate(
        [s, ss, jnp.zeros((6, cout), jnp.float32)], axis=0).reshape(1, 1, 8, cout)

    # Assemble (th, 2, w, 2*cout) so the XLA reshape to (2H, 2W, Cout) is free.
    to3 = lambda p: p.reshape(th, width, cout)
    row_e = jnp.concatenate([to3(y_ee), to3(y_eo)], axis=-1)      # (th, w, 2*cout)
    row_o = jnp.concatenate([to3(y_oe), to3(y_oo)], axis=-1)
    out = jnp.concatenate([row_e[:, None], row_o[:, None]], axis=1)
    y_ref[...] = out[None].astype(y_ref.dtype)


def _bn_relu_kernel(x_ref, scale_ref, shift_ref, o_ref):
    # Lane-dense elementwise BN-apply + ReLU: y = max(x*scale + shift, 0).
    x = x_ref[...].astype(jnp.float32)
    y = x * scale_ref[...] + shift_ref[...]
    o_ref[...] = jnp.maximum(y, 0.0).astype(o_ref.dtype)


# ------------------------------ Pallas wrappers --------------------------------
def _bn_scale_shift(s, ss, count, gamma, beta):
    # Training-mode BatchNorm statistics from f32 partial sums.  E[x^2]-E[x]^2 with
    # a clamp is adequate at these magnitudes; switch to a centered second pass if
    # |mean| >> std at much larger M.
    mean = s / count
    var = jnp.maximum(ss / count - mean * mean, 0.0)
    inv = jax.lax.rsqrt(var + _EPS)
    scale = gamma * inv
    shift = beta - mean * scale
    return scale, shift


def _bn_relu_apply(y2, scale, shift, out_dtype):
    """Lane-dense BN-apply + ReLU on y2: (M, C); rows folded so last dim == 128."""
    m, c = y2.shape
    fold = max(1, -(-128 // c))
    fc = fold * c
    mf = -(-m // fold)
    # >=2 grid steps when possible so "parallel" can shard across v7x's 2 TCs.
    tmf = min(_TMF, _round_up(-(-mf // 2), 16))
    block_rows = fold * tmf
    yp = _pad_rows(y2, block_rows)           # padded rows are dropped below
    mfp = yp.shape[0] // fold
    yf = yp.reshape(mfp, fc)
    grid = (mfp // tmf,)
    scale_f = jnp.tile(scale, fold).reshape(1, fc).astype(jnp.float32)
    shift_f = jnp.tile(shift, fold).reshape(1, fc).astype(jnp.float32)

    out = pl.pallas_call(
        _bn_relu_kernel,
        out_shape=jax.ShapeDtypeStruct((mfp, fc), out_dtype),
        grid=grid,
        in_specs=[pl.BlockSpec((tmf, fc), lambda i: (i, 0)),
                  pl.BlockSpec((1, fc), lambda i: (0, 0)),
                  pl.BlockSpec((1, fc), lambda i: (0, 0))],
        out_specs=pl.BlockSpec((tmf, fc), lambda i: (i, 0)),
        compiler_params=pltpu.CompilerParams(
            dimension_semantics=("parallel",),
            vmem_limit_bytes=_VMEM_LIMIT),
    )(yf, scale_f, shift_f)
    return out.reshape(-1, c)[:m]


def conv3x3_bn_relu(x_nhwc, w_oihw, gamma, beta, out_dtype=jnp.bfloat16):
    """Conv2d(k=3, s=1, p=1; bias cancels in BN) + BatchNorm2d(train) + ReLU."""
    n, h, w, cin = x_nhwc.shape
    cout = w_oihw.shape[0]
    th = _pick_th(h, w)
    ht = h // th
    # TODO(synk): fold this pad into the previous stage's BN-apply output.
    xp = jnp.pad(x_nhwc.astype(jnp.bfloat16), ((0, 0), (1, 1), (1, 1), (0, 0)))
    # w[co, ci, kh, kw] -> w_mat[(kh*3+kw)*Cin + ci, co]  (matches in-kernel im2col)
    w_mat = jnp.transpose(w_oihw, (2, 3, 1, 0)).reshape(9 * cin, cout).astype(jnp.bfloat16)

    y, stats = pl.pallas_call(
        partial(_conv3x3_kernel, th=th, width=w, cin=cin, cout=cout),
        out_shape=(jax.ShapeDtypeStruct((n, h, w, cout), jnp.bfloat16),
                   jax.ShapeDtypeStruct((n, ht, 8, cout), jnp.float32)),
        grid=(n, ht),
        in_specs=[pl.BlockSpec((1, h + 2, w + 2, cin), lambda i, j: (i, 0, 0, 0)),
                  pl.BlockSpec((9 * cin, cout), lambda i, j: (0, 0))],   # resident
        out_specs=(pl.BlockSpec((1, th, w, cout), lambda i, j: (i, j, 0, 0)),
                   pl.BlockSpec((1, 1, 8, cout), lambda i, j: (i, j, 0, 0))),
        compiler_params=pltpu.CompilerParams(
            dimension_semantics=("parallel", "parallel"),
            vmem_limit_bytes=_VMEM_LIMIT),
    )(xp, w_mat)

    s = stats[:, :, 0, :].sum(axis=(0, 1))
    ss = stats[:, :, 1, :].sum(axis=(0, 1))
    scale, shift = _bn_scale_shift(s, ss, n * h * w, gamma, beta)
    act = _bn_relu_apply(y.reshape(n * h * w, cout), scale, shift, out_dtype)
    return act.reshape(n, h, w, cout)


def tconv3x3_s2_bn_relu(x_nhwc, w_iohw, gamma, beta, output_padding):
    """ConvTranspose2d(k=3, s=2, p=1, output_padding=op) + BatchNorm2d(train) + ReLU."""
    n, h, w, cin = x_nhwc.shape
    cout = w_iohw.shape[1]
    th = _pick_th(h, w)
    ht = h // th
    xp = jnp.pad(x_nhwc.astype(jnp.bfloat16), ((0, 0), (0, 1), (0, 1), (0, 0)))
    wt = jnp.transpose(w_iohw, (2, 3, 0, 1)).astype(jnp.bfloat16)   # (3,3,Cin,Cout)

    y, stats = pl.pallas_call(
        partial(_tconv_kernel, th=th, width=w, cin=cin, cout=cout),
        out_shape=(jax.ShapeDtypeStruct((n, h, 2, w, 2 * cout), jnp.bfloat16),
                   jax.ShapeDtypeStruct((n, ht, 8, cout), jnp.float32)),
        grid=(n, ht),
        in_specs=[pl.BlockSpec((1, h + 1, w + 1, cin), lambda i, j: (i, 0, 0, 0)),
                  pl.BlockSpec((3, 3, cin, cout), lambda i, j: (0, 0, 0, 0))],
        out_specs=(pl.BlockSpec((1, th, 2, w, 2 * cout), lambda i, j: (i, j, 0, 0, 0)),
                   pl.BlockSpec((1, 1, 8, cout), lambda i, j: (i, j, 0, 0))),
        compiler_params=pltpu.CompilerParams(
            dimension_semantics=("parallel", "parallel"),
            vmem_limit_bytes=_VMEM_LIMIT),
    )(xp, wt)

    ho = 2 * h - 1 + output_padding
    wo = 2 * w - 1 + output_padding
    s = stats[:, :, 0, :].sum(axis=(0, 1))
    ss = stats[:, :, 1, :].sum(axis=(0, 1))
    if output_padding == 0:
        # Remove the cropped last row/col from the BN statistics (tiny edge sums).
        yf = y.reshape(n, 2 * h, 2 * w, cout).astype(jnp.float32)
        lr, lc, cr = yf[:, -1, :, :], yf[:, :, -1, :], yf[:, -1, -1, :]
        s = s - lr.sum((0, 1)) - lc.sum((0, 1)) + cr.sum(0)
        ss = ss - (lr * lr).sum((0, 1)) - (lc * lc).sum((0, 1)) + (cr * cr).sum(0)
    scale, shift = _bn_scale_shift(s, ss, n * ho * wo, gamma, beta)

    # Apply BN/ReLU on the full interleave buffer (cropped values are discarded);
    # XLA fuses the crop slice into the final concat/transpose copy.
    act = _bn_relu_apply(y.reshape(n * 2 * h * 2 * w, cout), scale, shift, jnp.float32)
    act = act.reshape(n, 2 * h, 2 * w, cout)[:, :ho, :wo, :]
    return act


# ---------------------------------- Module --------------------------------------
class UpSampleLayer:
    def __init__(self, in_ch, out_ch, key):
        mid = out_ch * 2
        ks = jax.random.split(key, 6)
        sd = 0.1
        # Conv_BN_ReLU_2 block (PyTorch Conv2d weight layout: (out, in, kh, kw)).
        self.w1 = jax.random.normal(ks[0], (mid, in_ch, 3, 3), jnp.float32) * sd
        self.b1 = jax.random.normal(ks[1], (mid,), jnp.float32) * sd   # cancels in BN
        self.g1, self.be1 = jnp.ones((mid,), jnp.float32), jnp.zeros((mid,), jnp.float32)
        self.w2 = jax.random.normal(ks[2], (mid, mid, 3, 3), jnp.float32) * sd
        self.b2 = jax.random.normal(ks[3], (mid,), jnp.float32) * sd   # cancels in BN
        self.g2, self.be2 = jnp.ones((mid,), jnp.float32), jnp.zeros((mid,), jnp.float32)
        # ConvTranspose2d weight layout: (in, out, kh, kw); `upsample` vs
        # `upsample_odd` only differ by output_padding.
        self.wt = jax.random.normal(ks[4], (mid, out_ch, 3, 3), jnp.float32) * sd
        self.bt = jax.random.normal(ks[5], (out_ch,), jnp.float32) * sd  # cancels in BN
        self.gt, self.bet = jnp.ones((out_ch,), jnp.float32), jnp.zeros((out_ch,), jnp.float32)
        self._fwd = jax.jit(self._forward)

    def _forward(self, x_nchw, out_nchw):
        x = jnp.transpose(x_nchw, (0, 2, 3, 1))                 # NCHW -> NHWC
        h = conv3x3_bn_relu(x, self.w1, self.g1, self.be1)      # bf16 intermediate
        h = conv3x3_bn_relu(h, self.w2, self.g2, self.be2)      # bf16 intermediate
        # `if x.shape[2] in [25, 50]` -> odd path uses output_padding=1
        op = 1 if x_nchw.shape[2] in (25, 50) else 0
        h = tconv3x3_s2_bn_relu(h, self.wt, self.gt, self.bet, op)   # f32
        skip = jnp.transpose(out_nchw, (0, 2, 3, 1))            # NCHW -> NHWC
        # TODO(synk): alias h into the concat buffer via input_output_aliases.
        cat = jnp.concatenate([h, skip], axis=-1)               # torch.cat(dim=1)
        return jnp.transpose(cat, (0, 3, 1, 2))                 # back to NCHW

    def __call__(self, x_nchw, out_nchw):
        return self._fwd(x_nchw, out_nchw)


# ----------------------------------- Main ----------------------------------------
if __name__ == "__main__":
    key = jax.random.PRNGKey(0)
    k_x, k_skip, k_params = jax.random.split(key, 3)

    in_ch, out_ch = 4, 4
    N, H, W = 2, 16, 16                        # H not in {25, 50} -> even branch
    # ConvTranspose2d(k=3, s=2, p=1, op=0): H_out = 2*H - 1 = 31
    Ho = 2 * H - 1

    x = jax.random.normal(k_x, (N, in_ch, H, W), jnp.float32)           # NCHW
    skip = jax.random.normal(k_skip, (N, out_ch, Ho, Ho), jnp.float32)  # NCHW

    layer = UpSampleLayer(in_ch, out_ch, k_params)
    y = layer(x, skip)
    y = jax.block_until_ready(y)

    assert y.shape == (N, out_ch * 2, Ho, Ho), y.shape
    assert bool(jnp.all(jnp.isfinite(y)))
    print("KERNEL_OK")
</pallas_src>

<mosaic_0001>
module attributes {stable_mosaic.version = 11 : i64} {
  func.func @_conv3x3_kernel(%arg0: i32, %arg1: i32, %arg2: memref<1x18x18x4xbf16, #tpu.memory_space<vmem>>, %arg3: memref<36x8xbf16, #tpu.memory_space<vmem>>, %arg4: memref<1x8x16x8xbf16, #tpu.memory_space<vmem>>, %arg5: memref<1x1x8x8xf32, #tpu.memory_space<vmem>>) attributes {dimension_semantics = [#tpu.dimension_semantics<parallel>, #tpu.dimension_semantics<parallel>], iteration_bounds = array<i64: 2, 2>, scalar_prefetch = 0 : i64, scratch_operands = 0 : i64, tpu.core_type = #tpu.core_type<tc>, window_params = [{transform_indices = @transform_0, window_bounds = array<i64: 1, 18, 18, 4>}, {pipeline_mode = #tpu.pipeline_mode<synchronous>, transform_indices = @transform_1, window_bounds = array<i64: 36, 8>}, {transform_indices = @transform_2, window_bounds = array<i64: 1, 8, 16, 8>}, {transform_indices = @transform_3, window_bounds = array<i64: 1, 1, 8, 8>}]} {
    %c8_i32 = arith.constant 8 : i32
    %0 = arith.muli %arg1, %c8_i32 : i32
    %c0_i32 = arith.constant 0 : i32
    %1 = arith.addi %0, %c0_i32 : i32
    %c0 = arith.constant 0 : index
    %2 = arith.index_cast %1 : i32 to index
    %c0_0 = arith.constant 0 : index
    %c0_1 = arith.constant 0 : index
    %3 = vector.load %arg2[%c0, %2, %c0_0, %c0_1] : memref<1x18x18x4xbf16, #tpu.memory_space<vmem>>, vector<1x8x16x4xbf16>
    %4 = vector.shape_cast %3 : vector<1x8x16x4xbf16> to vector<8x16x4xbf16>
    %5 = vector.shape_cast %4 : vector<8x16x4xbf16> to vector<128x4xbf16>
    %c0_i32_2 = arith.constant 0 : i32
    %6 = arith.addi %0, %c0_i32_2 : i32
    %c0_3 = arith.constant 0 : index
    %7 = arith.index_cast %6 : i32 to index
    %c1 = arith.constant 1 : index
    %c0_4 = arith.constant 0 : index
    %8 = vector.load %arg2[%c0_3, %7, %c1, %c0_4] : memref<1x18x18x4xbf16, #tpu.memory_space<vmem>>, vector<1x8x16x4xbf16>
    %9 = vector.shape_cast %8 : vector<1x8x16x4xbf16> to vector<8x16x4xbf16>
    %10 = vector.shape_cast %9 : vector<8x16x4xbf16> to vector<128x4xbf16>
    %c0_i32_5 = arith.constant 0 : i32
    %11 = arith.addi %0, %c0_i32_5 : i32
    %c0_6 = arith.constant 0 : index
    %12 = arith.index_cast %11 : i32 to index
    %c2 = arith.constant 2 : index
    %c0_7 = arith.constant 0 : index
    %13 = vector.load %arg2[%c0_6, %12, %c2, %c0_7] : memref<1x18x18x4xbf16, #tpu.memory_space<vmem>>, vector<1x8x16x4xbf16>
    %14 = vector.shape_cast %13 : vector<1x8x16x4xbf16> to vector<8x16x4xbf16>
    %15 = vector.shape_cast %14 : vector<8x16x4xbf16> to vector<128x4xbf16>
    %c1_i32 = arith.constant 1 : i32
    %16 = arith.addi %0, %c1_i32 : i32
    %c0_8 = arith.constant 0 : index
    %17 = arith.index_cast %16 : i32 to index
    %c0_9 = arith.constant 0 : index
    %c0_10 = arith.constant 0 : index
    %18 = vector.load %arg2[%c0_8, %17, %c0_9, %c0_10] : memref<1x18x18x4xbf16, #tpu.memory_space<vmem>>, vector<1x8x16x4xbf16>
    %19 = vector.shape_cast %18 : vector<1x8x16x4xbf16> to vector<8x16x4xbf16>
    %20 = vector.shape_cast %19 : vector<8x16x4xbf16> to vector<128x4xbf16>
    %c1_i32_11 = arith.constant 1 : i32
    %21 = arith.addi %0, %c1_i32_11 : i32
    %c0_12 = arith.constant 0 : index
    %22 = arith.index_cast %21 : i32 to index
    %c1_13 = arith.constant 1 : index
    %c0_14 = arith.constant 0 : index
    %23 = vector.load %arg2[%c0_12, %22, %c1_13, %c0_14] : memref<1x18x18x4xbf16, #tpu.memory_space<vmem>>, vector<1x8x16x4xbf16>
    %24 = vector.shape_cast %23 : vector<1x8x16x4xbf16> to vector<8x16x4xbf16>
    %25 = vector.shape_cast %24 : vector<8x16x4xbf16> to vector<128x4xbf16>
    %c1_i32_15 = arith.constant 1 : i32
    %26 = arith.addi %0, %c1_i32_15 : i32
    %c0_16 = arith.constant 0 : index
    %27 = arith.index_cast %26 : i32 to index
    %c2_17 = arith.constant 2 : index
    %c0_18 = arith.constant 0 : index
    %28 = vector.load %arg2[%c0_16, %27, %c2_17, %c0_18] : memref<1x18x18x4xbf16, #tpu.memory_space<vmem>>, vector<1x8x16x4xbf16>
    %29 = vector.shape_cast %28 : vector<1x8x16x4xbf16> to vector<8x16x4xbf16>
    %30 = vector.shape_cast %29 : vector<8x16x4xbf16> to vector<128x4xbf16>
    %c2_i32 = arith.constant 2 : i32
    %31 = arith.addi %0, %c2_i32 : i32
    %c0_19 = arith.constant 0 : index
    %32 = arith.index_cast %31 : i32 to index
    %c0_20 = arith.constant 0 : index
    %c0_21 = arith.constant 0 : index
    %33 = vector.load %arg2[%c0_19, %32, %c0_20, %c0_21] : memref<1x18x18x4xbf16, #tpu.memory_space<vmem>>, vector<1x8x16x4xbf16>
    %34 = vector.shape_cast %33 : vector<1x8x16x4xbf16> to vector<8x16x4xbf16>
    %35 = vector.shape_cast %34 : vector<8x16x4xbf16> to vector<128x4xbf16>
    %c2_i32_22 = arith.constant 2 : i32
    %36 = arith.addi %0, %c2_i32_22 : i32
    %c0_23 = arith.constant 0 : index
    %37 = arith.index_cast %36 : i32 to index
    %c1_24 = arith.constant 1 : index
    %c0_25 = arith.constant 0 : index
    %38 = vector.load %arg2[%c0_23, %37, %c1_24, %c0_25] : memref<1x18x18x4xbf16, #tpu.memory_space<vmem>>, vector<1x8x16x4xbf16>
    %39 = vector.shape_cast %38 : vector<1x8x16x4xbf16> to vector<8x16x4xbf16>
    %40 = vector.shape_cast %39 : vector<8x16x4xbf16> to vector<128x4xbf16>
    %c2_i32_26 = arith.constant 2 : i32
    %41 = arith.addi %0, %c2_i32_26 : i32
    %c0_27 = arith.constant 0 : index
    %42 = arith.index_cast %41 : i32 to index
    %c2_28 = arith.constant 2 : index
    %c0_29 = arith.constant 0 : index
    %43 = vector.load %arg2[%c0_27, %42, %c2_28, %c0_29] : memref<1x18x18x4xbf16, #tpu.memory_space<vmem>>, vector<1x8x16x4xbf16>
    %44 = vector.shape_cast %43 : vector<1x8x16x4xbf16> to vector<8x16x4xbf16>
    %45 = vector.shape_cast %44 : vector<8x16x4xbf16> to vector<128x4xbf16>
    %46 = tpu.concatenate %5, %10, %15, %20, %25, %30, %35, %40, %45 in 1 : vector<128x4xbf16>, vector<128x4xbf16>, vector<128x4xbf16>, vector<128x4xbf16>, vector<128x4xbf16>, vector<128x4xbf16>, vector<128x4xbf16>, vector<128x4xbf16>, vector<128x4xbf16> -> vector<128x36xbf16>
    %c0_30 = arith.constant 0 : index
    %c0_31 = arith.constant 0 : index
    %47 = vector.load %arg3[%c0_30, %c0_31] : memref<36x8xbf16, #tpu.memory_space<vmem>>, vector<36x8xbf16>
    %cst = arith.constant dense<0.000000e+00> : vector<128x8xf32>
    %48 = tpu.matmul %46, %47, %cst {dimension_numbers = #tpu.dot_dimension_numbers<[1], [0], [0], [1], [0, 0, 1, 1], [], []>} : vector<128x36xbf16>, vector<36x8xbf16>, vector<128x8xf32> -> vector<128x8xf32>
    %49 = vector.shape_cast %48 : vector<128x8xf32> to vector<1x8x16x8xf32>
    %50 = arith.truncf %49 : vector<1x8x16x8xf32> to vector<1x8x16x8xbf16>
    %c0_32 = arith.constant 0 : index
    %c0_33 = arith.constant 0 : index
    %c0_34 = arith.constant 0 : index
    %c0_35 = arith.constant 0 : index
    %51 = vector.load %arg4[%c0_32, %c0_33, %c0_34, %c0_35] : memref<1x8x16x8xbf16, #tpu.memory_space<vmem>>, vector<1x8x16x8xbf16>
    tpu.vector_store %arg4[%c0_32, %c0_33, %c0_34, %c0_35], %50 {strides = array<i32>} : memref<1x8x16x8xbf16, #tpu.memory_space<vmem>>, vector<1x8x16x8xbf16>,
    %cst_36 = arith.constant dense<0.000000e+00> : vector<8xf32>
    %52 = vector.multi_reduction <add>, %48, %cst_36 [0] : vector<128x8xf32> to vector<8xf32>
    %53 = vector.shape_cast %52 : vector<8xf32> to vector<1x8xf32>
    %54 = arith.mulf %48, %48 : vector<128x8xf32>
    %cst_37 = arith.constant dense<0.000000e+00> : vector<8xf32>
    %55 = vector.multi_reduction <add>, %54, %cst_37 [0] : vector<128x8xf32> to vector<8xf32>
    %56 = vector.shape_cast %55 : vector<8xf32> to vector<1x8xf32>
    %cst_38 = arith.constant 0.000000e+00 : f32
    %57 = vector.broadcast %cst_38 : f32 to vector<6x8xf32>
    %58 = tpu.concatenate %53, %56, %57 in 0 : vector<1x8xf32>, vector<1x8xf32>, vector<6x8xf32> -> vector<8x8xf32>
    %59 = vector.shape_cast %58 : vector<8x8xf32> to vector<1x1x8x8xf32>
    %c0_39 = arith.constant 0 : index
    %c0_40 = arith.constant 0 : index
    %c0_41 = arith.constant 0 : index
    %c0_42 = arith.constant 0 : index
    %60 = vector.load %arg5[%c0_39, %c0_40, %c0_41, %c0_42] : memref<1x1x8x8xf32, #tpu.memory_space<vmem>>, vector<1x1x8x8xf32>
    tpu.vector_store %arg5[%c0_39, %c0_40, %c0_41, %c0_42], %59 {strides = array<i32>} : memref<1x1x8x8xf32, #tpu.memory_space<vmem>>, vector<1x1x8x8xf32>,
    return
  }
  func.func @transform_0(%arg0: i32, %arg1: i32) -> (i32, i32, i32, i32) {
    %c0_i32 = arith.constant 0 : i32
    %c0_i32_0 = arith.constant 0 : i32
    %c0_i32_1 = arith.constant 0 : i32
    %c0_i32_2 = arith.constant 0 : i32
    return %arg0, %c0_i32, %c0_i32_0, %c0_i32_1 : i32, i32, i32, i32
  }
  func.func @transform_1(%arg0: i32, %arg1: i32) -> (i32, i32) {
    %c0_i32 = arith.constant 0 : i32
    %c0_i32_0 = arith.constant 0 : i32
    %c0_i32_1 = arith.constant 0 : i32
    return %c0_i32, %c0_i32_0 : i32, i32
  }
  func.func @transform_2(%arg0: i32, %arg1: i32) -> (i32, i32, i32, i32) {
    %c0_i32 = arith.constant 0 : i32
    %c0_i32_0 = arith.constant 0 : i32
    %c0_i32_1 = arith.constant 0 : i32
    return %arg0, %arg1, %c0_i32, %c0_i32_0 : i32, i32, i32, i32
  }
  func.func @transform_3(%arg0: i32, %arg1: i32) -> (i32, i32, i32, i32) {
    %c0_i32 = arith.constant 0 : i32
    %c0_i32_0 = arith.constant 0 : i32
    %c0_i32_1 = arith.constant 0 : i32
    return %arg0, %arg1, %c0_i32, %c0_i32_0 : i32, i32, i32, i32
  }
}

module attributes {stable_mosaic.version = 11 : i64} {
  func.func @_bn_relu_kernel(%arg0: i32, %arg1: memref<16x128xbf16, #tpu.memory_space<vmem>>, %arg2: memref<1x128xf32, #tpu.memory_space<vmem>>, %arg3: memref<1x128xf32, #tpu.memory_space<vmem>>, %arg4: memref<16x128xbf16, #tpu.memory_space<vmem>>) attributes {dimension_semantics = [#tpu.dimension_semantics<parallel>], iteration_bounds = array<i64: 2>, scalar_prefetch = 0 : i64, scratch_operands = 0 : i64, tpu.core_type = #tpu.core_type<tc>, window_params = [{transform_indices = @transform_0, window_bounds = array<i64: 16, 128>}, {pipeline_mode = #tpu.pipeline_mode<synchronous>, transform_indices = @transform_1, window_bounds = array<i64: 1, 128>}, {pipeline_mode = #tpu.pipeline_mode<synchronous>, transform_indices = @transform_2, window_bounds = array<i64: 1, 128>}, {transform_indices = @transform_3, window_bounds = array<i64: 16, 128>}]} {
    %c0 = arith.constant 0 : index
    %c0_0 = arith.constant 0 : index
    %0 = vector.load %arg1[%c0, %c0_0] : memref<16x128xbf16, #tpu.memory_space<vmem>>, vector<16x128xbf16>
    %1 = arith.extf %0 : vector<16x128xbf16> to vector<16x128xf32>
    %c0_1 = arith.constant 0 : index
    %c0_2 = arith.constant 0 : index
    %2 = vector.load %arg2[%c0_1, %c0_2] : memref<1x128xf32, #tpu.memory_space<vmem>>, vector<1x128xf32>
    %3 = vector.broadcast %2 : vector<1x128xf32> to vector<16x128xf32>
    %4 = arith.mulf %1, %3 : vector<16x128xf32>
    %c0_3 = arith.constant 0 : index
    %c0_4 = arith.constant 0 : index
    %5 = vector.load %arg3[%c0_3, %c0_4] : memref<1x128xf32, #tpu.memory_space<vmem>>, vector<1x128xf32>
    %6 = vector.broadcast %5 : vector<1x128xf32> to vector<16x128xf32>
    %7 = arith.addf %4, %6 : vector<16x128xf32>
    %cst = arith.constant 0.000000e+00 : f32
    %8 = vector.broadcast %cst : f32 to vector<16x128xf32>
    %9 = arith.maximumf %7, %8 : vector<16x128xf32>
    %10 = arith.truncf %9 : vector<16x128xf32> to vector<16x128xbf16>
    %c0_5 = arith.constant 0 : index
    %c0_6 = arith.constant 0 : index
    %11 = vector.load %arg4[%c0_5, %c0_6] : memref<16x128xbf16, #tpu.memory_space<vmem>>, vector<16x128xbf16>
    tpu.vector_store %arg4[%c0_5, %c0_6], %10 {strides = array<i32>} : memref<16x128xbf16, #tpu.memory_space<vmem>>, vector<16x128xbf16>,
    return
  }
  func.func @transform_0(%arg0: i32) -> (i32, i32) {
    %c0_i32 = arith.constant 0 : i32
    %c0_i32_0 = arith.constant 0 : i32
    return %arg0, %c0_i32 : i32, i32
  }
  func.func @transform_1(%arg0: i32) -> (i32, i32) {
    %c0_i32 = arith.constant 0 : i32
    %c0_i32_0 = arith.constant 0 : i32
    %c0_i32_1 = arith.constant 0 : i32
    return %c0_i32, %c0_i32_0 : i32, i32
  }
  func.func @transform_2(%arg0: i32) -> (i32, i32) {
    %c0_i32 = arith.constant 0 : i32
    %c0_i32_0 = arith.constant 0 : i32
    %c0_i32_1 = arith.constant 0 : i32
    return %c0_i32, %c0_i32_0 : i32, i32
  }
  func.func @transform_3(%arg0: i32) -> (i32, i32) {
    %c0_i32 = arith.constant 0 : i32
    %c0_i32_0 = arith.constant 0 : i32
    return %arg0, %c0_i32 : i32, i32
  }
}

module attributes {stable_mosaic.version = 11 : i64} {
  func.func @_conv3x3_kernel(%arg0: i32, %arg1: i32, %arg2: memref<1x18x18x8xbf16, #tpu.memory_space<vmem>>, %arg3: memref<72x8xbf16, #tpu.memory_space<vmem>>, %arg4: memref<1x8x16x8xbf16, #tpu.memory_space<vmem>>, %arg5: memref<1x1x8x8xf32, #tpu.memory_space<vmem>>) attributes {dimension_semantics = [#tpu.dimension_semantics<parallel>, #tpu.dimension_semantics<parallel>], iteration_bounds = array<i64: 2, 2>, scalar_prefetch = 0 : i64, scratch_operands = 0 : i64, tpu.core_type = #tpu.core_type<tc>, window_params = [{transform_indices = @transform_0, window_bounds = array<i64: 1, 18, 18, 8>}, {pipeline_mode = #tpu.pipeline_mode<synchronous>, transform_indices = @transform_1, window_bounds = array<i64: 72, 8>}, {transform_indices = @transform_2, window_bounds = array<i64: 1, 8, 16, 8>}, {transform_indices = @transform_3, window_bounds = array<i64: 1, 1, 8, 8>}]} {
    %c8_i32 = arith.constant 8 : i32
    %0 = arith.muli %arg1, %c8_i32 : i32
    %c0_i32 = arith.constant 0 : i32
    %1 = arith.addi %0, %c0_i32 : i32
    %c0 = arith.constant 0 : index
    %2 = arith.index_cast %1 : i32 to index
    %c0_0 = arith.constant 0 : index
    %c0_1 = arith.constant 0 : index
    %3 = vector.load %arg2[%c0, %2, %c0_0, %c0_1] : memref<1x18x18x8xbf16, #tpu.memory_space<vmem>>, vector<1x8x16x8xbf16>
    %4 = vector.shape_cast %3 : vector<1x8x16x8xbf16> to vector<8x16x8xbf16>
    %5 = vector.shape_cast %4 : vector<8x16x8xbf16> to vector<128x8xbf16>
    %c0_i32_2 = arith.constant 0 : i32
    %6 = arith.addi %0, %c0_i32_2 : i32
    %c0_3 = arith.constant 0 : index
    %7 = arith.index_cast %6 : i32 to index
    %c1 = arith.constant 1 : index
    %c0_4 = arith.constant 0 : index
    %8 = vector.load %arg2[%c0_3, %7, %c1, %c0_4] : memref<1x18x18x8xbf16, #tpu.memory_space<vmem>>, vector<1x8x16x8xbf16>
    %9 = vector.shape_cast %8 : vector<1x8x16x8xbf16> to vector<8x16x8xbf16>
    %10 = vector.shape_cast %9 : vector<8x16x8xbf16> to vector<128x8xbf16>
    %c0_i32_5 = arith.constant 0 : i32
    %11 = arith.addi %0, %c0_i32_5 : i32
    %c0_6 = arith.constant 0 : index
    %12 = arith.index_cast %11 : i32 to index
    %c2 = arith.constant 2 : index
    %c0_7 = arith.constant 0 : index
    %13 = vector.load %arg2[%c0_6, %12, %c2, %c0_7] : memref<1x18x18x8xbf16, #tpu.memory_space<vmem>>, vector<1x8x16x8xbf16>
    %14 = vector.shape_cast %13 : vector<1x8x16x8xbf16> to vector<8x16x8xbf16>
    %15 = vector.shape_cast %14 : vector<8x16x8xbf16> to vector<128x8xbf16>
    %c1_i32 = arith.constant 1 : i32
    %16 = arith.addi %0, %c1_i32 : i32
    %c0_8 = arith.constant 0 : index
    %17 = arith.index_cast %16 : i32 to index
    %c0_9 = arith.constant 0 : index
    %c0_10 = arith.constant 0 : index
    %18 = vector.load %arg2[%c0_8, %17, %c0_9, %c0_10] : memref<1x18x18x8xbf16, #tpu.memory_space<vmem>>, vector<1x8x16x8xbf16>
    %19 = vector.shape_cast %18 : vector<1x8x16x8xbf16> to vector<8x16x8xbf16>
    %20 = vector.shape_cast %19 : vector<8x16x8xbf16> to vector<128x8xbf16>
    %c1_i32_11 = arith.constant 1 : i32
    %21 = arith.addi %0, %c1_i32_11 : i32
    %c0_12 = arith.constant 0 : index
    %22 = arith.index_cast %21 : i32 to index
    %c1_13 = arith.constant 1 : index
    %c0_14 = arith.constant 0 : index
    %23 = vector.load %arg2[%c0_12, %22, %c1_13, %c0_14] : memref<1x18x18x8xbf16, #tpu.memory_space<vmem>>, vector<1x8x16x8xbf16>
    %24 = vector.shape_cast %23 : vector<1x8x16x8xbf16> to vector<8x16x8xbf16>
    %25 = vector.shape_cast %24 : vector<8x16x8xbf16> to vector<128x8xbf16>
    %c1_i32_15 = arith.constant 1 : i32
    %26 = arith.addi %0, %c1_i32_15 : i32
    %c0_16 = arith.constant 0 : index
    %27 = arith.index_cast %26 : i32 to index
    %c2_17 = arith.constant 2 : index
    %c0_18 = arith.constant 0 : index
    %28 = vector.load %arg2[%c0_16, %27, %c2_17, %c0_18] : memref<1x18x18x8xbf16, #tpu.memory_space<vmem>>, vector<1x8x16x8xbf16>
    %29 = vector.shape_cast %28 : vector<1x8x16x8xbf16> to vector<8x16x8xbf16>
    %30 = vector.shape_cast %29 : vector<8x16x8xbf16> to vector<128x8xbf16>
    %c2_i32 = arith.constant 2 : i32
    %31 = arith.addi %0, %c2_i32 : i32
    %c0_19 = arith.constant 0 : index
    %32 = arith.index_cast %31 : i32 to index
    %c0_20 = arith.constant 0 : index
    %c0_21 = arith.constant 0 : index
    %33 = vector.load %arg2[%c0_19, %32, %c0_20, %c0_21] : memref<1x18x18x8xbf16, #tpu.memory_space<vmem>>, vector<1x8x16x8xbf16>
    %34 = vector.shape_cast %33 : vector<1x8x16x8xbf16> to vector<8x16x8xbf16>
    %35 = vector.shape_cast %34 : vector<8x16x8xbf16> to vector<128x8xbf16>
    %c2_i32_22 = arith.constant 2 : i32
    %36 = arith.addi %0, %c2_i32_22 : i32
    %c0_23 = arith.constant 0 : index
    %37 = arith.index_cast %36 : i32 to index
    %c1_24 = arith.constant 1 : index
    %c0_25 = arith.constant 0 : index
    %38 = vector.load %arg2[%c0_23, %37, %c1_24, %c0_25] : memref<1x18x18x8xbf16, #tpu.memory_space<vmem>>, vector<1x8x16x8xbf16>
    %39 = vector.shape_cast %38 : vector<1x8x16x8xbf16> to vector<8x16x8xbf16>
    %40 = vector.shape_cast %39 : vector<8x16x8xbf16> to vector<128x8xbf16>
    %c2_i32_26 = arith.constant 2 : i32
    %41 = arith.addi %0, %c2_i32_26 : i32
    %c0_27 = arith.constant 0 : index
    %42 = arith.index_cast %41 : i32 to index
    %c2_28 = arith.constant 2 : index
    %c0_29 = arith.constant 0 : index
    %43 = vector.load %arg2[%c0_27, %42, %c2_28, %c0_29] : memref<1x18x18x8xbf16, #tpu.memory_space<vmem>>, vector<1x8x16x8xbf16>
    %44 = vector.shape_cast %43 : vector<1x8x16x8xbf16> to vector<8x16x8xbf16>
    %45 = vector.shape_cast %44 : vector<8x16x8xbf16> to vector<128x8xbf16>
    %46 = tpu.concatenate %5, %10, %15, %20, %25, %30, %35, %40, %45 in 1 : vector<128x8xbf16>, vector<128x8xbf16>, vector<128x8xbf16>, vector<128x8xbf16>, vector<128x8xbf16>, vector<128x8xbf16>, vector<128x8xbf16>, vector<128x8xbf16>, vector<128x8xbf16> -> vector<128x72xbf16>
    %c0_30 = arith.constant 0 : index
    %c0_31 = arith.constant 0 : index
    %47 = vector.load %arg3[%c0_30, %c0_31] : memref<72x8xbf16, #tpu.memory_space<vmem>>, vector<72x8xbf16>
    %cst = arith.constant dense<0.000000e+00> : vector<128x8xf32>
    %48 = tpu.matmul %46, %47, %cst {dimension_numbers = #tpu.dot_dimension_numbers<[1], [0], [0], [1], [0, 0, 1, 1], [], []>} : vector<128x72xbf16>, vector<72x8xbf16>, vector<128x8xf32> -> vector<128x8xf32>
    %49 = vector.shape_cast %48 : vector<128x8xf32> to vector<1x8x16x8xf32>
    %50 = arith.truncf %49 : vector<1x8x16x8xf32> to vector<1x8x16x8xbf16>
    %c0_32 = arith.constant 0 : index
    %c0_33 = arith.constant 0 : index
    %c0_34 = arith.constant 0 : index
    %c0_35 = arith.constant 0 : index
    %51 = vector.load %arg4[%c0_32, %c0_33, %c0_34, %c0_35] : memref<1x8x16x8xbf16, #tpu.memory_space<vmem>>, vector<1x8x16x8xbf16>
    tpu.vector_store %arg4[%c0_32, %c0_33, %c0_34, %c0_35], %50 {strides = array<i32>} : memref<1x8x16x8xbf16, #tpu.memory_space<vmem>>, vector<1x8x16x8xbf16>,
    %cst_36 = arith.constant dense<0.000000e+00> : vector<8xf32>
    %52 = vector.multi_reduction <add>, %48, %cst_36 [0] : vector<128x8xf32> to vector<8xf32>
    %53 = vector.shape_cast %52 : vector<8xf32> to vector<1x8xf32>
    %54 = arith.mulf %48, %48 : vector<128x8xf32>
    %cst_37 = arith.constant dense<0.000000e+00> : vector<8xf32>
    %55 = vector.multi_reduction <add>, %54, %cst_37 [0] : vector<128x8xf32> to vector<8xf32>
    %56 = vector.shape_cast %55 : vector<8xf32> to vector<1x8xf32>
    %cst_38 = arith.constant 0.000000e+00 : f32
    %57 = vector.broadcast %cst_38 : f32 to vector<6x8xf32>
    %58 = tpu.concatenate %53, %56, %57 in 0 : vector<1x8xf32>, vector<1x8xf32>, vector<6x8xf32> -> vector<8x8xf32>
    %59 = vector.shape_cast %58 : vector<8x8xf32> to vector<1x1x8x8xf32>
    %c0_39 = arith.constant 0 : index
    %c0_40 = arith.constant 0 : index
    %c0_41 = arith.constant 0 : index
    %c0_42 = arith.constant 0 : index
    %60 = vector.load %arg5[%c0_39, %c0_40, %c0_41, %c0_42] : memref<1x1x8x8xf32, #tpu.memory_space<vmem>>, vector<1x1x8x8xf32>
    tpu.vector_store %arg5[%c0_39, %c0_40, %c0_41, %c0_42], %59 {strides = array<i32>} : memref<1x1x8x8xf32, #tpu.memory_space<vmem>>, vector<1x1x8x8xf32>,
    return
  }
  func.func @transform_0(%arg0: i32, %arg1: i32) -> (i32, i32, i32, i32) {
    %c0_i32 = arith.constant 0 : i32
    %c0_i32_0 = arith.constant 0 : i32
    %c0_i32_1 = arith.constant 0 : i32
    %c0_i32_2 = arith.constant 0 : i32
    return %arg0, %c0_i32, %c0_i32_0, %c0_i32_1 : i32, i32, i32, i32
  }
  func.func @transform_1(%arg0: i32, %arg1: i32) -> (i32, i32) {
    %c0_i32 = arith.constant 0 : i32
    %c0_i32_0 = arith.constant 0 : i32
    %c0_i32_1 = arith.constant 0 : i32
    return %c0_i32, %c0_i32_0 : i32, i32
  }
  func.func @transform_2(%arg0: i32, %arg1: i32) -> (i32, i32, i32, i32) {
    %c0_i32 = arith.constant 0 : i32
    %c0_i32_0 = arith.constant 0 : i32
    %c0_i32_1 = arith.constant 0 : i32
    return %arg0, %arg1, %c0_i32, %c0_i32_0 : i32, i32, i32, i32
  }
  func.func @transform_3(%arg0: i32, %arg1: i32) -> (i32, i32, i32, i32) {
    %c0_i32 = arith.constant 0 : i32
    %c0_i32_0 = arith.constant 0 : i32
    %c0_i32_1 = arith.constant 0 : i32
    return %arg0, %arg1, %c0_i32, %c0_i32_0 : i32, i32, i32, i32
  }
}

module attributes {stable_mosaic.version = 11 : i64} {
  func.func @_tconv_kernel(%arg0: i32, %arg1: i32, %arg2: memref<1x17x17x8xbf16, #tpu.memory_space<vmem>>, %arg3: memref<3x3x8x4xbf16, #tpu.memory_space<vmem>>, %arg4: memref<1x8x2x16x8xbf16, #tpu.memory_space<vmem>>, %arg5: memref<1x1x8x4xf32, #tpu.memory_space<vmem>>) attributes {dimension_semantics = [#tpu.dimension_semantics<parallel>, #tpu.dimension_semantics<parallel>], iteration_bounds = array<i64: 2, 2>, scalar_prefetch = 0 : i64, scratch_operands = 0 : i64, tpu.core_type = #tpu.core_type<tc>, window_params = [{transform_indices = @transform_0, window_bounds = array<i64: 1, 17, 17, 8>}, {pipeline_mode = #tpu.pipeline_mode<synchronous>, transform_indices = @transform_1, window_bounds = array<i64: 3, 3, 8, 4>}, {transform_indices = @transform_2, window_bounds = array<i64: 1, 8, 2, 16, 8>}, {transform_indices = @transform_3, window_bounds = array<i64: 1, 1, 8, 4>}]} {
    %c8_i32 = arith.constant 8 : i32
    %0 = arith.muli %arg1, %c8_i32 : i32
    %c0 = arith.constant 0 : index
    %1 = arith.index_cast %0 : i32 to index
    %c0_0 = arith.constant 0 : index
    %c0_1 = arith.constant 0 : index
    %2 = vector.load %arg2[%c0, %1, %c0_0, %c0_1] : memref<1x17x17x8xbf16, #tpu.memory_space<vmem>>, vector<1x8x16x8xbf16>
    %3 = vector.shape_cast %2 : vector<1x8x16x8xbf16> to vector<8x16x8xbf16>
    %4 = vector.shape_cast %3 : vector<8x16x8xbf16> to vector<128x8xbf16>
    %c0_2 = arith.constant 0 : index
    %5 = arith.index_cast %0 : i32 to index
    %c1 = arith.constant 1 : index
    %c0_3 = arith.constant 0 : index
    %6 = vector.load %arg2[%c0_2, %5, %c1, %c0_3] : memref<1x17x17x8xbf16, #tpu.memory_space<vmem>>, vector<1x8x16x8xbf16>
    %7 = vector.shape_cast %6 : vector<1x8x16x8xbf16> to vector<8x16x8xbf16>
    %8 = vector.shape_cast %7 : vector<8x16x8xbf16> to vector<128x8xbf16>
    %c1_i32 = arith.constant 1 : i32
    %9 = arith.addi %0, %c1_i32 : i32
    %c0_4 = arith.constant 0 : index
    %10 = arith.index_cast %9 : i32 to index
    %c0_5 = arith.constant 0 : index
    %c0_6 = arith.constant 0 : index
    %11 = vector.load %arg2[%c0_4, %10, %c0_5, %c0_6] : memref<1x17x17x8xbf16, #tpu.memory_space<vmem>>, vector<1x8x16x8xbf16>
    %12 = vector.shape_cast %11 : vector<1x8x16x8xbf16> to vector<8x16x8xbf16>
    %13 = vector.shape_cast %12 : vector<8x16x8xbf16> to vector<128x8xbf16>
    %c1_i32_7 = arith.constant 1 : i32
    %14 = arith.addi %0, %c1_i32_7 : i32
    %c0_8 = arith.constant 0 : index
    %15 = arith.index_cast %14 : i32 to index
    %c1_9 = arith.constant 1 : index
    %c0_10 = arith.constant 0 : index
    %16 = vector.load %arg2[%c0_8, %15, %c1_9, %c0_10] : memref<1x17x17x8xbf16, #tpu.memory_space<vmem>>, vector<1x8x16x8xbf16>
    %17 = vector.shape_cast %16 : vector<1x8x16x8xbf16> to vector<8x16x8xbf16>
    %18 = vector.shape_cast %17 : vector<8x16x8xbf16> to vector<128x8xbf16>
    %c1_11 = arith.constant 1 : index
    %c1_12 = arith.constant 1 : index
    %c0_13 = arith.constant 0 : index
    %c0_14 = arith.constant 0 : index
    %19 = vector.load %arg3[%c1_11, %c1_12, %c0_13, %c0_14] : memref<3x3x8x4xbf16, #tpu.memory_space<vmem>>, vector<1x1x8x4xbf16>
    %20 = vector.shape_cast %19 : vector<1x1x8x4xbf16> to vector<8x4xbf16>
    %cst = arith.constant dense<0.000000e+00> : vector<128x4xf32>
    %21 = tpu.matmul %4, %20, %cst {dimension_numbers = #tpu.dot_dimension_numbers<[1], [0], [0], [1], [0, 0, 1, 1], [], []>} : vector<128x8xbf16>, vector<8x4xbf16>, vector<128x4xf32> -> vector<128x4xf32>
    %c1_15 = arith.constant 1 : index
    %c0_16 = arith.constant 0 : index
    %c0_17 = arith.constant 0 : index
    %c0_18 = arith.constant 0 : index
    %22 = vector.load %arg3[%c1_15, %c0_16, %c0_17, %c0_18] : memref<3x3x8x4xbf16, #tpu.memory_space<vmem>>, vector<1x1x8x4xbf16>
    %23 = vector.shape_cast %22 : vector<1x1x8x4xbf16> to vector<8x4xbf16>
    %cst_19 = arith.constant dense<0.000000e+00> : vector<128x4xf32>
    %24 = tpu.matmul %8, %23, %cst_19 {dimension_numbers = #tpu.dot_dimension_numbers<[1], [0], [0], [1], [0, 0, 1, 1], [], []>} : vector<128x8xbf16>, vector<8x4xbf16>, vector<128x4xf32> -> vector<128x4xf32>
    %c1_20 = arith.constant 1 : index
    %c2 = arith.constant 2 : index
    %c0_21 = arith.constant 0 : index
    %c0_22 = arith.constant 0 : index
    %25 = vector.load %arg3[%c1_20, %c2, %c0_21, %c0_22] : memref<3x3x8x4xbf16, #tpu.memory_space<vmem>>, vector<1x1x8x4xbf16>
    %26 = vector.shape_cast %25 : vector<1x1x8x4xbf16> to vector<8x4xbf16>
    %cst_23 = arith.constant dense<0.000000e+00> : vector<128x4xf32>
    %27 = tpu.matmul %4, %26, %cst_23 {dimension_numbers = #tpu.dot_dimension_numbers<[1], [0], [0], [1], [0, 0, 1, 1], [], []>} : vector<128x8xbf16>, vector<8x4xbf16>, vector<128x4xf32> -> vector<128x4xf32>
    %28 = arith.addf %24, %27 : vector<128x4xf32>
    %c0_24 = arith.constant 0 : index
    %c1_25 = arith.constant 1 : index
    %c0_26 = arith.constant 0 : index
    %c0_27 = arith.constant 0 : index
    %29 = vector.load %arg3[%c0_24, %c1_25, %c0_26, %c0_27] : memref<3x3x8x4xbf16, #tpu.memory_space<vmem>>, vector<1x1x8x4xbf16>
    %30 = vector.shape_cast %29 : vector<1x1x8x4xbf16> to vector<8x4xbf16>
    %cst_28 = arith.constant dense<0.000000e+00> : vector<128x4xf32>
    %31 = tpu.matmul %13, %30, %cst_28 {dimension_numbers = #tpu.dot_dimension_numbers<[1], [0], [0], [1], [0, 0, 1, 1], [], []>} : vector<128x8xbf16>, vector<8x4xbf16>, vector<128x4xf32> -> vector<128x4xf32>
    %c2_29 = arith.constant 2 : index
    %c1_30 = arith.constant 1 : index
    %c0_31 = arith.constant 0 : index
    %c0_32 = arith.constant 0 : index
    %32 = vector.load %arg3[%c2_29, %c1_30, %c0_31, %c0_32] : memref<3x3x8x4xbf16, #tpu.memory_space<vmem>>, vector<1x1x8x4xbf16>
    %33 = vector.shape_cast %32 : vector<1x1x8x4xbf16> to vector<8x4xbf16>
    %cst_33 = arith.constant dense<0.000000e+00> : vector<128x4xf32>
    %34 = tpu.matmul %4, %33, %cst_33 {dimension_numbers = #tpu.dot_dimension_numbers<[1], [0], [0], [1], [0, 0, 1, 1], [], []>} : vector<128x8xbf16>, vector<8x4xbf16>, vector<128x4xf32> -> vector<128x4xf32>
    %35 = arith.addf %31, %34 : vector<128x4xf32>
    %c0_34 = arith.constant 0 : index
    %c0_35 = arith.constant 0 : index
    %c0_36 = arith.constant 0 : index
    %c0_37 = arith.constant 0 : index
    %36 = vector.load %arg3[%c0_34, %c0_35, %c0_36, %c0_37] : memref<3x3x8x4xbf16, #tpu.memory_space<vmem>>, vector<1x1x8x4xbf16>
    %37 = vector.shape_cast %36 : vector<1x1x8x4xbf16> to vector<8x4xbf16>
    %cst_38 = arith.constant dense<0.000000e+00> : vector<128x4xf32>
    %38 = tpu.matmul %18, %37, %cst_38 {dimension_numbers = #tpu.dot_dimension_numbers<[1], [0], [0], [1], [0, 0, 1, 1], [], []>} : vector<128x8xbf16>, vector<8x4xbf16>, vector<128x4xf32> -> vector<128x4xf32>
    %c0_39 = arith.constant 0 : index
    %c2_40 = arith.constant 2 : index
    %c0_41 = arith.constant 0 : index
    %c0_42 = arith.constant 0 : index
    %39 = vector.load %arg3[%c0_39, %c2_40, %c0_41, %c0_42] : memref<3x3x8x4xbf16, #tpu.memory_space<vmem>>, vector<1x1x8x4xbf16>
    %40 = vector.shape_cast %39 : vector<1x1x8x4xbf16> to vector<8x4xbf16>
    %cst_43 = arith.constant dense<0.000000e+00> : vector<128x4xf32>
    %41 = tpu.matmul %13, %40, %cst_43 {dimension_numbers = #tpu.dot_dimension_numbers<[1], [0], [0], [1], [0, 0, 1, 1], [], []>} : vector<128x8xbf16>, vector<8x4xbf16>, vector<128x4xf32> -> vector<128x4xf32>
    %42 = arith.addf %38, %41 : vector<128x4xf32>
    %c2_44 = arith.constant 2 : index
    %c0_45 = arith.constant 0 : index
    %c0_46 = arith.constant 0 : index
    %c0_47 = arith.constant 0 : index
    %43 = vector.load %arg3[%c2_44, %c0_45, %c0_46, %c0_47] : memref<3x3x8x4xbf16, #tpu.memory_space<vmem>>, vector<1x1x8x4xbf16>
    %44 = vector.shape_cast %43 : vector<1x1x8x4xbf16> to vector<8x4xbf16>
    %cst_48 = arith.constant dense<0.000000e+00> : vector<128x4xf32>
    %45 = tpu.matmul %8, %44, %cst_48 {dimension_numbers = #tpu.dot_dimension_numbers<[1], [0], [0], [1], [0, 0, 1, 1], [], []>} : vector<128x8xbf16>, vector<8x4xbf16>, vector<128x4xf32> -> vector<128x4xf32>
    %46 = arith.addf %42, %45 : vector<128x4xf32>
    %c2_49 = arith.constant 2 : index
    %c2_50 = arith.constant 2 : index
    %c0_51 = arith.constant 0 : index
    %c0_52 = arith.constant 0 : index
    %47 = vector.load %arg3[%c2_49, %c2_50, %c0_51, %c0_52] : memref<3x3x8x4xbf16, #tpu.memory_space<vmem>>, vector<1x1x8x4xbf16>
    %48 = vector.shape_cast %47 : vector<1x1x8x4xbf16> to vector<8x4xbf16>
    %cst_53 = arith.constant dense<0.000000e+00> : vector<128x4xf32>
    %49 = tpu.matmul %4, %48, %cst_53 {dimension_numbers = #tpu.dot_dimension_numbers<[1], [0], [0], [1], [0, 0, 1, 1], [], []>} : vector<128x8xbf16>, vector<8x4xbf16>, vector<128x4xf32> -> vector<128x4xf32>
    %50 = arith.addf %46, %49 : vector<128x4xf32>
    %cst_54 = arith.constant dense<0.000000e+00> : vector<4xf32>
    %51 = vector.multi_reduction <add>, %21, %cst_54 [0] : vector<128x4xf32> to vector<4xf32>
    %52 = vector.shape_cast %51 : vector<4xf32> to vector<1x4xf32>
    %cst_55 = arith.constant 0.000000e+00 : f32
    %53 = vector.broadcast %cst_55 : f32 to vector<1x4xf32>
    %54 = arith.addf %53, %52 : vector<1x4xf32>
    %cst_56 = arith.constant dense<0.000000e+00> : vector<4xf32>
    %55 = vector.multi_reduction <add>, %28, %cst_56 [0] : vector<128x4xf32> to vector<4xf32>
    %56 = vector.shape_cast %55 : vector<4xf32> to vector<1x4xf32>
    %57 = arith.addf %54, %56 : vector<1x4xf32>
    %cst_57 = arith.constant dense<0.000000e+00> : vector<4xf32>
    %58 = vector.multi_reduction <add>, %35, %cst_57 [0] : vector<128x4xf32> to vector<4xf32>
    %59 = vector.shape_cast %58 : vector<4xf32> to vector<1x4xf32>
    %60 = arith.addf %57, %59 : vector<1x4xf32>
    %cst_58 = arith.constant dense<0.000000e+00> : vector<4xf32>
    %61 = vector.multi_reduction <add>, %50, %cst_58 [0] : vector<128x4xf32> to vector<4xf32>
    %62 = vector.shape_cast %61 : vector<4xf32> to vector<1x4xf32>
    %63 = arith.addf %60, %62 : vector<1x4xf32>
    %64 = arith.mulf %21, %21 : vector<128x4xf32>
    %cst_59 = arith.constant dense<0.000000e+00> : vector<4xf32>
    %65 = vector.multi_reduction <add>, %64, %cst_59 [0] : vector<128x4xf32> to vector<4xf32>
    %66 = vector.shape_cast %65 : vector<4xf32> to vector<1x4xf32>
    %cst_60 = arith.constant 0.000000e+00 : f32
    %67 = vector.broadcast %cst_60 : f32 to vector<1x4xf32>
    %68 = arith.addf %67, %66 : vector<1x4xf32>
    %69 = arith.mulf %28, %28 : vector<128x4xf32>
    %cst_61 = arith.constant dense<0.000000e+00> : vector<4xf32>
    %70 = vector.multi_reduction <add>, %69, %cst_61 [0] : vector<128x4xf32> to vector<4xf32>
    %71 = vector.shape_cast %70 : vector<4xf32> to vector<1x4xf32>
    %72 = arith.addf %68, %71 : vector<1x4xf32>
    %73 = arith.mulf %35, %35 : vector<128x4xf32>
    %cst_62 = arith.constant dense<0.000000e+00> : vector<4xf32>
    %74 = vector.multi_reduction <add>, %73, %cst_62 [0] : vector<128x4xf32> to vector<4xf32>
    %75 = vector.shape_cast %74 : vector<4xf32> to vector<1x4xf32>
    %76 = arith.addf %72, %75 : vector<1x4xf32>
    %77 = arith.mulf %50, %50 : vector<128x4xf32>
    %cst_63 = arith.constant dense<0.000000e+00> : vector<4xf32>
    %78 = vector.multi_reduction <add>, %77, %cst_63 [0] : vector<128x4xf32> to vector<4xf32>
    %79 = vector.shape_cast %78 : vector<4xf32> to vector<1x4xf32>
    %80 = arith.addf %76, %79 : vector<1x4xf32>
    %cst_64 = arith.constant 0.000000e+00 : f32
    %81 = vector.broadcast %cst_64 : f32 to vector<6x4xf32>
    %82 = tpu.concatenate %63, %80, %81 in 0 : vector<1x4xf32>, vector<1x4xf32>, vector<6x4xf32> -> vector<8x4xf32>
    %83 = vector.shape_cast %82 : vector<8x4xf32> to vector<1x1x8x4xf32>
    %c0_65 = arith.constant 0 : index
    %c0_66 = arith.constant 0 : index
    %c0_67 = arith.constant 0 : index
    %c0_68 = arith.constant 0 : index
    %84 = vector.load %arg5[%c0_65, %c0_66, %c0_67, %c0_68] : memref<1x1x8x4xf32, #tpu.memory_space<vmem>>, vector<1x1x8x4xf32>
    tpu.vector_store %arg5[%c0_65, %c0_66, %c0_67, %c0_68], %83 {strides = array<i32>} : memref<1x1x8x4xf32, #tpu.memory_space<vmem>>, vector<1x1x8x4xf32>,
    %85 = vector.shape_cast %21 : vector<128x4xf32> to vector<8x16x4xf32>
    %86 = vector.shape_cast %28 : vector<128x4xf32> to vector<8x16x4xf32>
    %87 = tpu.concatenate %85, %86 in 2 : vector<8x16x4xf32>, vector<8x16x4xf32> -> vector<8x16x8xf32>
    %88 = vector.shape_cast %35 : vector<128x4xf32> to vector<8x16x4xf32>
    %89 = vector.shape_cast %50 : vector<128x4xf32> to vector<8x16x4xf32>
    %90 = tpu.concatenate %88, %89 in 2 : vector<8x16x4xf32>, vector<8x16x4xf32> -> vector<8x16x8xf32>
    %91 = vector.shape_cast %87 : vector<8x16x8xf32> to vector<8x1x16x8xf32>
    %92 = vector.shape_cast %90 : vector<8x16x8xf32> to vector<8x1x16x8xf32>
    %93 = tpu.concatenate %91, %92 in 1 : vector<8x1x16x8xf32>, vector<8x1x16x8xf32> -> vector<8x2x16x8xf32>
    %94 = vector.shape_cast %93 : vector<8x2x16x8xf32> to vector<1x8x2x16x8xf32>
    %95 = arith.truncf %94 : vector<1x8x2x16x8xf32> to vector<1x8x2x16x8xbf16>
    %c0_69 = arith.constant 0 : index
    %c0_70 = arith.constant 0 : index
    %c0_71 = arith.constant 0 : index
    %c0_72 = arith.constant 0 : index
    %c0_73 = arith.constant 0 : index
    %96 = vector.load %arg4[%c0_69, %c0_70, %c0_71, %c0_72, %c0_73] : memref<1x8x2x16x8xbf16, #tpu.memory_space<vmem>>, vector<1x8x2x16x8xbf16>
    tpu.vector_store %arg4[%c0_69, %c0_70, %c0_71, %c0_72, %c0_73], %95 {strides = array<i32>} : memref<1x8x2x16x8xbf16, #tpu.memory_space<vmem>>, vector<1x8x2x16x8xbf16>,
    return
  }
  func.func @transform_0(%arg0: i32, %arg1: i32) -> (i32, i32, i32, i32) {
    %c0_i32 = arith.constant 0 : i32
    %c0_i32_0 = arith.constant 0 : i32
    %c0_i32_1 = arith.constant 0 : i32
    %c0_i32_2 = arith.constant 0 : i32
    return %arg0, %c0_i32, %c0_i32_0, %c0_i32_1 : i32, i32, i32, i32
  }
  func.func @transform_1(%arg0: i32, %arg1: i32) -> (i32, i32, i32, i32) {
    %c0_i32 = arith.constant 0 : i32
    %c0_i32_0 = arith.constant 0 : i32
    %c0_i32_1 = arith.constant 0 : i32
    %c0_i32_2 = arith.constant 0 : i32
    %c0_i32_3 = arith.constant 0 : i32
    return %c0_i32, %c0_i32_0, %c0_i32_1, %c0_i32_2 : i32, i32, i32, i32
  }
  func.func @transform_2(%arg0: i32, %arg1: i32) -> (i32, i32, i32, i32, i32) {
    %c0_i32 = arith.constant 0 : i32
    %c0_i32_0 = arith.constant 0 : i32
    %c0_i32_1 = arith.constant 0 : i32
    %c0_i32_2 = arith.constant 0 : i32
    return %arg0, %arg1, %c0_i32, %c0_i32_0, %c0_i32_1 : i32, i32, i32, i32, i32
  }
  func.func @transform_3(%arg0: i32, %arg1: i32) -> (i32, i32, i32, i32) {
    %c0_i32 = arith.constant 0 : i32
    %c0_i32_0 = arith.constant 0 : i32
    %c0_i32_1 = arith.constant 0 : i32
    return %arg0, %arg1, %c0_i32, %c0_i32_0 : i32, i32, i32, i32
  }
}

module attributes {stable_mosaic.version = 11 : i64} {
  func.func @_bn_relu_kernel(%arg0: i32, %arg1: memref<32x128xbf16, #tpu.memory_space<vmem>>, %arg2: memref<1x128xf32, #tpu.memory_space<vmem>>, %arg3: memref<1x128xf32, #tpu.memory_space<vmem>>, %arg4: memref<32x128xf32, #tpu.memory_space<vmem>>) attributes {dimension_semantics = [#tpu.dimension_semantics<parallel>], iteration_bounds = array<i64: 2>, scalar_prefetch = 0 : i64, scratch_operands = 0 : i64, tpu.core_type = #tpu.core_type<tc>, window_params = [{transform_indices = @transform_0, window_bounds = array<i64: 32, 128>}, {pipeline_mode = #tpu.pipeline_mode<synchronous>, transform_indices = @transform_1, window_bounds = array<i64: 1, 128>}, {pipeline_mode = #tpu.pipeline_mode<synchronous>, transform_indices = @transform_2, window_bounds = array<i64: 1, 128>}, {transform_indices = @transform_3, window_bounds = array<i64: 32, 128>}]} {
    %c0 = arith.constant 0 : index
    %c0_0 = arith.constant 0 : index
    %0 = vector.load %arg1[%c0, %c0_0] : memref<32x128xbf16, #tpu.memory_space<vmem>>, vector<32x128xbf16>
    %1 = arith.extf %0 : vector<32x128xbf16> to vector<32x128xf32>
    %c0_1 = arith.constant 0 : index
    %c0_2 = arith.constant 0 : index
    %2 = vector.load %arg2[%c0_1, %c0_2] : memref<1x128xf32, #tpu.memory_space<vmem>>, vector<1x128xf32>
    %3 = vector.broadcast %2 : vector<1x128xf32> to vector<32x128xf32>
    %4 = arith.mulf %1, %3 : vector<32x128xf32>
    %c0_3 = arith.constant 0 : index
    %c0_4 = arith.constant 0 : index
    %5 = vector.load %arg3[%c0_3, %c0_4] : memref<1x128xf32, #tpu.memory_space<vmem>>, vector<1x128xf32>
    %6 = vector.broadcast %5 : vector<1x128xf32> to vector<32x128xf32>
    %7 = arith.addf %4, %6 : vector<32x128xf32>
    %cst = arith.constant 0.000000e+00 : f32
    %8 = vector.broadcast %cst : f32 to vector<32x128xf32>
    %9 = arith.maximumf %7, %8 : vector<32x128xf32>
    %c0_5 = arith.constant 0 : index
    %c0_6 = arith.constant 0 : index
    %10 = vector.load %arg4[%c0_5, %c0_6] : memref<32x128xf32, #tpu.memory_space<vmem>>, vector<32x128xf32>
    tpu.vector_store %arg4[%c0_5, %c0_6], %9 {strides = array<i32>} : memref<32x128xf32, #tpu.memory_space<vmem>>, vector<32x128xf32>,
    return
  }
  func.func @transform_0(%arg0: i32) -> (i32, i32) {
    %c0_i32 = arith.constant 0 : i32
    %c0_i32_0 = arith.constant 0 : i32
    return %arg0, %c0_i32 : i32, i32
  }
  func.func @transform_1(%arg0: i32) -> (i32, i32) {
    %c0_i32 = arith.constant 0 : i32
    %c0_i32_0 = arith.constant 0 : i32
    %c0_i32_1 = arith.constant 0 : i32
    return %c0_i32, %c0_i32_0 : i32, i32
  }
  func.func @transform_2(%arg0: i32) -> (i32, i32) {
    %c0_i32 = arith.constant 0 : i32
    %c0_i32_0 = arith.constant 0 : i32
    %c0_i32_1 = arith.constant 0 : i32
    return %c0_i32, %c0_i32_0 : i32, i32
  }
  func.func @transform_3(%arg0: i32) -> (i32, i32) {
    %c0_i32 = arith.constant 0 : i32
    %c0_i32_0 = arith.constant 0 : i32
    return %arg0, %c0_i32 : i32, i32
  }
}

</mosaic_0001>

<llo_original>
// kernel: tile.33
$region0: #{tile.33}
  #allocation0 [shape = 's32[1]{0}', space=sflag, size = 0x4, scoped, tag = 'scoped memory for tile.33']
  %s0 = inlined_call_operand.vmem [shape: f32[8], index: 0, kind: input, shape index: {}]
  %s1 = inlined_call_operand.vmem [shape: f32[16,8], index: 1, kind: output, shape index: {}]
  // Predicated region
  $region2: #{tile.33} parent=0 // pred_check
    _
  $region3: #{tile.33} parent=0 // pred_check_branch
    %3 = sbr.rel (0) target = $region5
  $region4: #{tile.33} parent=0 // pred_region
    _
  $region5: #{tile.33} parent=0 // pred_fallthru
    _
  %v4 = vld [vmem:[%s0] ss:$0 sm:$0xff]
  %5 = vst [vmem:[%s1] sm:$0xff] %v4
  %s6 = scalar_lea.vmem %s1, 8
  %7 = vst [vmem:[%s6] sm:$0xff] %v4

// kernel: tile.34
$region0: #{tile.34}
  %s0 = inlined_call_operand.vmem [shape: f32[16,8], index: 0, kind: input, shape index: {}]
  %s1 = inlined_call_operand.vmem [shape: f32[1,128], index: 1, kind: output, shape index: {}]
  $region1: #{tile.34} parent=0
    #allocation0 [shape = 'u8[4096]{0}', space=vmem, size = 0x1000, scoped, tag = 'scoped mem for output reshape']
    %v2 = vld [vmem:[%s0] sm:$0x1]
    %vm3 = vcmask 64512
    %4 = vst.msk [vmem:[#allocation0] sm:$0x1] %vm3, %v2
    %s5 = scalar_lea.vmem %s0, 15
    %v6 = vld [vmem:[%s5] sm:$0x1]
    %7 = vrot.lane.b32.xlu0 %v6, 120
    %v8 = vpop.permute.xlu0 %7
    %vm9 = vcmask 1048512
    %10 = vst.msk [vmem:[#allocation0] sm:$0x1] %vm9, %v8
    %s11 = scalar_lea.vmem %s0, 14
    %v12 = vld [vmem:[%s11] sm:$0x1]
    %13 = vrot.lane.b32.xlu0 %v12, 112
    %v14 = vpop.permute.xlu0 %13
    %vm15 = vcmask 982912
    %16 = vst.msk [vmem:[#allocation0] sm:$0x1] %vm15, %v14
    %s17 = scalar_lea.vmem %s0, 13
    %v18 = vld [vmem:[%s17] sm:$0x1]
    %19 = vrot.lane.b32.xlu0 %v18, 104
    %v20 = vpop.permute.xlu0 %19
    %vm21 = vcmask 917312
    %22 = vst.msk [vmem:[#allocation0] sm:$0x1] %vm21, %v20
    %s23 = scalar_lea.vmem %s0, 12
    %v24 = vld [vmem:[%s23] sm:$0x1]
    %25 = vrot.lane.b32.xlu0 %v24, 96
    %v26 = vpop.permute.xlu0 %25
    %vm27 = vcmask 851712
    %28 = vst.msk [vmem:[#allocation0] sm:$0x1] %vm27, %v26
    %s29 = scalar_lea.vmem %s0, 11
    %v30 = vld [vmem:[%s29] sm:$0x1]
    %31 = vrot.lane.b32.xlu0 %v30, 88
    %v32 = vpop.permute.xlu0 %31
    %vm33 = vcmask 786112
    %34 = vst.msk [vmem:[#allocation0] sm:$0x1] %vm33, %v32
    %s35 = scalar_lea.vmem %s0, 10
    %v36 = vld [vmem:[%s35] sm:$0x1]
    %37 = vrot.lane.b32.xlu0 %v36, 80
    %v38 = vpop.permute.xlu0 %37
    %vm39 = vcmask 720512
    %40 = vst.msk [vmem:[#allocation0] sm:$0x1] %vm39, %v38
    %s41 = scalar_lea.vmem %s0, 9
    %v42 = vld [vmem:[%s41] sm:$0x1]
    %43 = vrot.lane.b32.xlu0 %v42, 72
    %v44 = vpop.permute.xlu0 %43
    %vm45 = vcmask 654912
    %46 = vst.msk [vmem:[#allocation0] sm:$0x1] %vm45, %v44
    %s47 = scalar_lea.vmem %s0, 8
    %v48 = vld [vmem:[%s47] sm:$0x1]
    %49 = vrot.lane.b32.xlu0 %v48, 64
    %v50 = vpop.permute.xlu0 %49
    %vm51 = vcmask 589312
    %52 = vst.msk [vmem:[#allocation0] sm:$0x1] %vm51, %v50
    %s53 = scalar_lea.vmem %s0, 7
    %v54 = vld [vmem:[%s53] sm:$0x1]
    %55 = vrot.lane.b32.xlu0 %v54, 56
    %v56 = vpop.permute.xlu0 %55
    %vm57 = vcmask 523712
    %58 = vst.msk [vmem:[#allocation0] sm:$0x1] %vm57, %v56
    %s59 = scalar_lea.vmem %s0, 6
    %v60 = vld [vmem:[%s59] sm:$0x1]
    %61 = vrot.lane.b32.xlu0 %v60, 48
    %v62 = vpop.permute.xlu0 %61
    %vm63 = vcmask 458112
    %64 = vst.msk [vmem:[#allocation0] sm:$0x1] %vm63, %v62
    %s65 = scalar_lea.vmem %s0, 5
    %v66 = vld [vmem:[%s65] sm:$0x1]
    %67 = vrot.lane.b32.xlu0 %v66, 40
    %v68 = vpop.permute.xlu0 %67
    %vm69 = vcmask 392512
    %70 = vst.msk [vmem:[#allocation0] sm:$0x1] %vm69, %v68
    %s71 = scalar_lea.vmem %s0, 4
    %v72 = vld [vmem:[%s71] sm:$0x1]
    %73 = vrot.lane.b32.xlu0 %v72, 32
    %v74 = vpop.permute.xlu0 %73
    %vm75 = vcmask 326912
    %76 = vst.msk [vmem:[#allocation0] sm:$0x1] %vm75, %v74
    %s77 = scalar_lea.vmem %s0, 3
    %v78 = vld [vmem:[%s77] sm:$0x1]
    %79 = vrot.lane.b32.xlu0 %v78, 24
    %v80 = vpop.permute.xlu0 %79
    %vm81 = vcmask 261312
    %82 = vst.msk [vmem:[#allocation0] sm:$0x1] %vm81, %v80
    %s83 = scalar_lea.vmem %s0, 2
    %v84 = vld [vmem:[%s83] sm:$0x1]
    %85 = vrot.lane.b32.xlu0 %v84, 16
    %v86 = vpop.permute.xlu0 %85
    %vm87 = vcmask 195712
    %88 = vst.msk [vmem:[#allocation0] sm:$0x1] %vm87, %v86
    %s89 = scalar_lea.vmem %s0, 1
    %v90 = vld [vmem:[%s89] sm:$0x1]
    %91 = vrot.lane.b32.xlu0 %v90, 8
    %v92 = vpop.permute.xlu0 %91
    %vm93 = vcmask 130112
    %94 = vst.msk [vmem:[#allocation0] sm:$0x1] %vm93, %v92
    %s96 = sshllo.u32 0, 1
    %v98 = vld [vmem:[#allocation0] sm:%s96]
    %s99 = sshllo.u32 0, 1
    %100 = vst [vmem:[%s1] sm:%s99] %v98

// kernel: _forward.7
$region0: #{_forward.7}
  #allocation0 [shape = 'u32[]', space=smem, size = 0x4, offset = 0x4, fixed_abs, tag = 'smem constant byte address 0x4 - core index']
  #allocation1 [shape = 'u32[144,128]{1,0:T(1,128)}', space=vmem, size = 0x12000, scoped, tag = 'internal scratch']
  %s0 = inlined_call_operand.vmem [shape: bf16[32,128], index: 0, kind: input, shape index: {}]
  %s1 = inlined_call_operand.vmem [shape: f32[1,128], index: 1, kind: input, shape index: {}]
  %s2 = inlined_call_operand.vmem [shape: f32[1,128], index: 2, kind: input, shape index: {}]
  %s3 = inlined_call_operand.vmem [shape: bf16[32,128], index: 3, kind: output, shape index: {}]
  %s4 = sld [smem:[#allocation0]]
  $region45: #{_forward.7} parent=0
    _
  %s6 = ssub.s32 1, %s4
  %s7 = scalar_select 0, %s6, %s4
  loop: start=0, step=1, limit=4
  $region2: #{_forward.7} parent=0 // loop_pre_header
    _
  $region3: #{_forward.7} parent=0 // loop_header
    %s9 = sphi 0, %s13
    %p10 = scmp.ge.s32.totalorder %s9, 4
    %s19 = sphi 0, %s21
    %s22 = sphi 0, %s19
    %s23 = sphi 0, %s22
    %s39 = sphi 0, %s23
    %s43 = sphi 0, %s43
    %s45 = sphi 0, %s43
    %s46 = sphi 0, %s45
    %s60 = sphi 0, %s46
    %s64 = sphi 0, %s64
    %s66 = sphi 0, %s64
    %s67 = sphi 0, %s66
    %s81 = sphi 0, %s67
    %s87 = sphi 0, %s89
    %s90 = sphi 0, %s87
    %s91 = sphi 0, %s90
    %s107 = sphi 0, %s91
  $region4: #{_forward.7} parent=0 // loop_header_branch
    %12 = sbr.rel (%p10) target = $region8
  $region5: #{_forward.7} parent=0 // loop_body
    %s14 = ssub.s32 %s9, 1
    %s15 = ssub.s32 %s9, 2
    %s16 = sadd.s32 %s9, 1
    %s17 = ssub.s32 %s9, %s16
    %p18 = scmp.eq.s32.totalorder %s17, 0
    %s20 = sadd.s32 %s19, 1
    %s21 = scalar_select %p18, %s19, %s20
    %p24 = pneg %p18
    %p25 = scmp.eq.s32.totalorder %s9, 1
    %p26 = por %p24, %p25
    %p27 = scmp.ne.s32.totalorder %s19, %s22
    %p28 = scmp.eq.s32.totalorder %s9, 0
    %p29 = por %p27, %p28
    %p30 = scmp.ne.s32.totalorder %s19, %s22
    %p31 = scmp.eq.s32.totalorder %s14, 1
    %p32 = por %p30, %p31
    %p33 = scmp.ne.s32.totalorder %s22, %s23
    %p34 = scmp.eq.s32.totalorder %s14, 0
    %p35 = por %p33, %p34
    %p36 = scmp.ne.s32.totalorder %s22, %s23
    %p37 = scmp.eq.s32.totalorder %s15, 1
    %p38 = por %p36, %p37
    %p40 = scmp.ne.s32.totalorder %s23, %s39
    %p41 = scmp.eq.s32.totalorder %s15, 0
    %p42 = por %p40, %p41
    %s44 = sadd.s32 %s43, 1
    %p47 = scmp.eq.s32.totalorder %s9, 1
    %p48 = scmp.ne.s32.totalorder %s43, %s45
    %p49 = scmp.eq.s32.totalorder %s9, 0
    %p50 = por %p48, %p49
    %p51 = scmp.ne.s32.totalorder %s43, %s45
    %p52 = scmp.eq.s32.totalorder %s14, 1
    %p53 = por %p51, %p52
    %p54 = scmp.ne.s32.totalorder %s45, %s46
    %p55 = scmp.eq.s32.totalorder %s14, 0
    %p56 = por %p54, %p55
    %p57 = scmp.ne.s32.totalorder %s45, %s46
    %p58 = scmp.eq.s32.totalorder %s15, 1
    %p59 = por %p57, %p58
    %p61 = scmp.ne.s32.totalorder %s46, %s60
    %p62 = scmp.eq.s32.totalorder %s15, 0
    %p63 = por %p61, %p62
    %s65 = sadd.s32 %s64, 1
    %p68 = scmp.eq.s32.totalorder %s9, 1
    %p69 = scmp.ne.s32.totalorder %s64, %s66
    %p70 = scmp.eq.s32.totalorder %s9, 0
    %p71 = por %p69, %p70
    %p72 = scmp.ne.s32.totalorder %s64, %s66
    %p73 = scmp.eq.s32.totalorder %s14, 1
    %p74 = por %p72, %p73
    %p75 = scmp.ne.s32.totalorder %s66, %s67
    %p76 = scmp.eq.s32.totalorder %s14, 0
    %p77 = por %p75, %p76
    %p78 = scmp.ne.s32.totalorder %s66, %s67
    %p79 = scmp.eq.s32.totalorder %s15, 1
    %p80 = por %p78, %p79
    %p82 = scmp.ne.s32.totalorder %s67, %s81
    %p83 = scmp.eq.s32.totalorder %s15, 0
    %p84 = por %p82, %p83
    %s85 = ssub.s32 %s9, %s16
    %p86 = scmp.eq.s32.totalorder %s85, 0
    %s88 = sadd.s32 %s87, 1
    %s89 = scalar_select %p86, %s87, %s88
    %p92 = pneg %p86
    %p93 = scmp.eq.s32.totalorder %s9, 1
    %p94 = por %p92, %p93
    %p95 = scmp.ne.s32.totalorder %s87, %s90
    %p96 = scmp.eq.s32.totalorder %s9, 0
    %p97 = por %p95, %p96
    %p98 = scmp.ne.s32.totalorder %s87, %s90
    %p99 = scmp.eq.s32.totalorder %s14, 1
    %p100 = por %p98, %p99
    %p101 = scmp.ne.s32.totalorder %s90, %s91
    %p102 = scmp.eq.s32.totalorder %s14, 0
    %p103 = por %p101, %p102
    %p104 = scmp.ne.s32.totalorder %s90, %s91
    %p105 = scmp.eq.s32.totalorder %s15, 1
    %p106 = por %p104, %p105
    %p108 = scmp.ne.s32.totalorder %s91, %s107
    %p109 = scmp.eq.s32.totalorder %s15, 0
    %p110 = por %p108, %p109
    %p111 = scmp.le.s32.totalorder 1, %s9
    %p112 = scmp.lt.s32.totalorder %s9, 3
    %p113 = pnand %p111, %p112
    %p114 = pneg %p113
    // Predicated region
    $region9: #{_forward.7} parent=5 // pred_check
      _
    $region10: #{_forward.7} parent=5 // pred_check_branch
      %116 = sbr.rel (%p113) target = $region12
    $region11: #{_forward.7} parent=5 // pred_region
      %s117 = ssub.s32 %s9, 1
      // Predicated region
      $region13: #{_forward.7} parent=11 // pred_check
        %p118 = pneg %p56
      $region14: #{_forward.7} parent=11 // pred_check_branch
        %120 = sbr.rel (%p118) target = $region16
      $region15: #{_forward.7} parent=11 // pred_region
        _
      $region16: #{_forward.7} parent=11 // pred_fallthru
        _
      // Predicated region
      $region17: #{_forward.7} parent=11 // pred_check
        %p121 = pneg %p77
      $region18: #{_forward.7} parent=11 // pred_check_branch
        %123 = sbr.rel (%p121) target = $region20
      $region19: #{_forward.7} parent=11 // pred_region
        _
      $region20: #{_forward.7} parent=11 // pred_fallthru
        _
    $region12: #{_forward.7} parent=5 // pred_fallthru
      _
    %p124 = scmp.lt.s32.totalorder %s9, 2
    // Predicated region
    $region21: #{_forward.7} parent=5 // pred_check
      %p125 = pneg %p124
    $region22: #{_forward.7} parent=5 // pred_check_branch
      %127 = sbr.rel (%p125) target = $region24
    $region23: #{_forward.7} parent=5 // pred_region
      // Predicated region
      $region25: #{_forward.7} parent=23 // pred_check
        %p128 = pneg %p29
      $region26: #{_forward.7} parent=23 // pred_check_branch
        %130 = sbr.rel (%p128) target = $region28
      $region27: #{_forward.7} parent=23 // pred_region
        %s131 = smul.u32 2, %s9
        %p132 = scmp.lt.s32.totalorder %s131, 3
        %s133 = scalar_select %p132, %s131, 3
        %s134 = smul.addr %s133, 4
        %s135 = scalar_lea.vmem %s0, %s134
        %s136 = smul.u32 2, %s9
      $region28: #{_forward.7} parent=23 // pred_fallthru
        _
    $region24: #{_forward.7} parent=5 // pred_fallthru
      _
    %p137 = scmp.le.s32.totalorder 1, %s9
    %p138 = scmp.lt.s32.totalorder %s9, 3
    %p139 = pnand %p137, %p138
    %p140 = pneg %p139
    // Predicated region
    $region29: #{_forward.7} parent=5 // pred_check
      _
    $region30: #{_forward.7} parent=5 // pred_check_branch
      %142 = sbr.rel (%p139) target = $region32
    $region31: #{_forward.7} parent=5 // pred_region
      %s143 = ssub.s32 %s9, 1
      %s144 = smul.u32 2, %s14
      %p145 = scmp.lt.s32.totalorder %s144, 3
      %s146 = scalar_select %p145, %s144, 3
      %s147 = smul.addr %s146, 4
      %s148 = scalar_lea.vmem %s0, %s147
      %p149 = pneg %p35
      %p150 = pneg %p32
      %p151 = pneg %p56
      %p152 = pneg %p53
      %p153 = pneg %p77
      %p154 = pneg %p74
      %p155 = pneg %p103
      %p156 = pneg %p100
      %s157 = smul.u32 2, %s14
      %p158 = scmp.lt.s32.totalorder %s157, 3
      %s159 = scalar_select %p158, %s157, 3
      %s160 = smul.addr %s159, 4
      %s161 = scalar_lea.vmem %s3, %s160
      %s162 = smul.u32 2, %s14
      %p163 = scmp.lt.s32.totalorder %s162, 3
      %s164 = scalar_select %p163, %s162, 3
      %s165 = smul.addr %s164, 4
      %s166 = scalar_lea.vmem %s0, %s165
      %s167 = smul.u32 2, %s14
      %s168 = smul.u32 2, %s14
      %p169 = scmp.lt.s32.totalorder %s168, 3
      %s170 = scalar_select %p169, %s168, 3
      %s171 = smul.addr %s170, 4
      %s172 = scalar_lea.vmem %s3, %s171
      %s173 = smul.u32 2, %s14
      %v174 = vld [vmem:[%s166] sm:$0xf]
      %v175 = vld [vmem:[%s166 + $0x4] sm:$0xf]
      %v176 = vunpack.c.l.bf16 %v174
      %v177 = vunpack.c.l.bf16 %v175
      %v178 = vld [vmem:[%s1] sm:$0x1]
      %v180 = vlaneseq
      %v181 = vshrl.u32 %v180, 7
      %v182 = vsub.s32 0, %v181
      %v183 = vrot.slane %v178, %v182
      %v185 = vmul.f32 %v176, %v183
      %v186 = vmul.f32 %v177, %v183
      %v187 = vld [vmem:[%s2] sm:$0x1]
      %v189 = vlaneseq
      %v190 = vshrl.u32 %v189, 7
      %v191 = vsub.s32 0, %v190
      %v192 = vrot.slane %v187, %v191
      %v194 = vadd.f32 %v185, %v192
      %v195 = vadd.f32 %v186, %v192
      %v196 = vmax.f32 %v194, 0.0
      %v197 = vmax.f32 %v195, 0.0
      %v198 = vpack.c.bf16 %v197, %v196
      %v200 = vunpack.c.l.b16 %v198
      %v201 = vunpack.c.h.b16 %v198
      %v202 = vpack.c.b16 %v200, %v200
      %v203 = vpack.c.b16 %v201, %v201
      %206 = vst [vmem:[%s172] sm:$0xf] %v202
      %207 = vst [vmem:[%s172 + $0x4] sm:$0xf] %v203
      %s208 = smul.u32 2, %s14
      %p209 = scmp.lt.s32.totalorder %s208, 3
      %s210 = scalar_select %p209, %s208, 3
      %s211 = smul.addr %s210, 4
      %s212 = scalar_lea.vmem %s3, %s211
      // Predicated region
      $region33: #{_forward.7} parent=31 // pred_check
        %p213 = pneg %p100
      $region34: #{_forward.7} parent=31 // pred_check_branch
        %215 = sbr.rel (%p213) target = $region36
      $region35: #{_forward.7} parent=31 // pred_region
        %s216 = smul.u32 2, %s14
      $region36: #{_forward.7} parent=31 // pred_fallthru
        _
    $region32: #{_forward.7} parent=5 // pred_fallthru
      _
    %p217 = scmp.le.s32.totalorder 2, %s9
    // Predicated region
    $region37: #{_forward.7} parent=5 // pred_check
      %p218 = pneg %p217
    $region38: #{_forward.7} parent=5 // pred_check_branch
      %220 = sbr.rel (%p218) target = $region40
    $region39: #{_forward.7} parent=5 // pred_region
      %s221 = ssub.s32 %s9, 2
      // Predicated region
      $region41: #{_forward.7} parent=39 // pred_check
        %p222 = pneg %p106
      $region42: #{_forward.7} parent=39 // pred_check_branch
        %224 = sbr.rel (%p222) target = $region44
      $region43: #{_forward.7} parent=39 // pred_region
        %s225 = smul.u32 2, %s15
        %p226 = scmp.lt.s32.totalorder %s225, 3
        %s227 = scalar_select %p226, %s225, 3
        %s228 = smul.addr %s227, 4
        %s229 = scalar_lea.vmem %s3, %s228
      $region44: #{_forward.7} parent=39 // pred_fallthru
        _
    $region40: #{_forward.7} parent=5 // pred_fallthru
      _
  $region6: #{_forward.7} parent=0 // loop_footer
    %s13 = sadd.s32 1, %s9
  $region7: #{_forward.7} parent=0 // loop_footer_branch
    %8 = sbr.rel target = $region3
  $region8: #{_forward.7} parent=0 // loop_exit
    _

// kernel: _forward.6
$region0: #{_forward.6}
  #allocation0 [shape = 'u32[]', space=smem, size = 0x4, offset = 0x4, fixed_abs, tag = 'smem constant byte address 0x4 - core index']
  #allocation1 [shape = 'u32[144,128]{1,0:T(1,128)}', space=vmem, size = 0x12000, scoped, tag = 'internal scratch']
  %s0 = inlined_call_operand.vmem [shape: bf16[2,18,18,4], index: 0, kind: input, shape index: {}]
  %s1 = inlined_call_operand.vmem [shape: bf16[36,8], index: 1, kind: input, shape index: {}]
  %s2 = inlined_call_operand.vmem [shape: bf16[2,16,16,8], index: 2, kind: output, shape index: {0}]
  %s3 = inlined_call_operand.vmem [shape: f32[2,2,8,8], index: 3, kind: output, shape index: {1}]
  %4 = xla_tuple %s2, %s3
  %s5 = sld [smem:[#allocation0]]
  $region49: #{_forward.6} parent=0
    _
  %s7 = ssub.s32 1, %s5
  %s8 = scalar_select 0, %s7, %s5
  loop: start=0, step=1, limit=6
  $region2: #{_forward.6} parent=0 // loop_pre_header
    _
  $region3: #{_forward.6} parent=0 // loop_header
    %s10 = sphi 0, %s14
    %p11 = scmp.ge.s32.totalorder %s10, 6
    %s17 = sphi 0, %s29
    %s18 = sphi 0, %s25
    %s19 = sphi 0, %s17
    %s20 = sphi 0, %s18
    %s21 = sphi 0, %s19
    %s22 = sphi 0, %s20
    %s32 = sphi 0, %s34
    %s35 = sphi 0, %s32
    %s36 = sphi 0, %s35
    %s52 = sphi 0, %s36
    %s56 = sphi 0, %s56
    %s58 = sphi 0, %s56
    %s59 = sphi 0, %s58
    %s73 = sphi 0, %s59
    %s81 = sphi 0, %s83
    %s84 = sphi 0, %s81
    %s85 = sphi 0, %s84
    %s101 = sphi 0, %s85
    %s109 = sphi 0, %s111
    %s112 = sphi 0, %s109
    %s113 = sphi 0, %s112
    %s129 = sphi 0, %s113
  $region4: #{_forward.6} parent=0 // loop_header_branch
    %13 = sbr.rel (%p11) target = $region8
  $region5: #{_forward.6} parent=0 // loop_body
    %s15 = ssub.s32 %s10, 1
    %s16 = ssub.s32 %s10, 2
    %s23 = sadd.s32 1, %s18
    %p24 = scmp.ge.s32.totalorder %s23, 2
    %s25 = scalar_select %p24, 0, %s23
    %s26 = sadd.s32 1, %s17
    %s27 = scalar_select %p24, %s26, %s17
    %p28 = scmp.ge.s32.totalorder %s27, 2
    %s29 = scalar_select %p28, 0, %s27
    %s30 = ssub.s32 %s17, %s29
    %p31 = scmp.eq.s32.totalorder %s30, 0
    %s33 = sadd.s32 %s32, 1
    %s34 = scalar_select %p31, %s32, %s33
    %p37 = pneg %p31
    %p38 = scmp.eq.s32.totalorder %s10, 3
    %p39 = por %p37, %p38
    %p40 = scmp.ne.s32.totalorder %s32, %s35
    %p41 = scmp.eq.s32.totalorder %s10, 0
    %p42 = por %p40, %p41
    %p43 = scmp.ne.s32.totalorder %s32, %s35
    %p44 = scmp.eq.s32.totalorder %s15, 3
    %p45 = por %p43, %p44
    %p46 = scmp.ne.s32.totalorder %s35, %s36
    %p47 = scmp.eq.s32.totalorder %s15, 0
    %p48 = por %p46, %p47
    %p49 = scmp.ne.s32.totalorder %s35, %s36
    %p50 = scmp.eq.s32.totalorder %s16, 3
    %p51 = por %p49, %p50
    %p53 = scmp.ne.s32.totalorder %s36, %s52
    %p54 = scmp.eq.s32.totalorder %s16, 0
    %p55 = por %p53, %p54
    %s57 = sadd.s32 %s56, 1
    %p60 = scmp.eq.s32.totalorder %s10, 3
    %p61 = scmp.ne.s32.totalorder %s56, %s58
    %p62 = scmp.eq.s32.totalorder %s10, 0
    %p63 = por %p61, %p62
    %p64 = scmp.ne.s32.totalorder %s56, %s58
    %p65 = scmp.eq.s32.totalorder %s15, 3
    %p66 = por %p64, %p65
    %p67 = scmp.ne.s32.totalorder %s58, %s59
    %p68 = scmp.eq.s32.totalorder %s15, 0
    %p69 = por %p67, %p68
    %p70 = scmp.ne.s32.totalorder %s58, %s59
    %p71 = scmp.eq.s32.totalorder %s16, 3
    %p72 = por %p70, %p71
    %p74 = scmp.ne.s32.totalorder %s59, %s73
    %p75 = scmp.eq.s32.totalorder %s16, 0
    %p76 = por %p74, %p75
    %s77 = ssub.s32 %s17, %s29
    %s78 = ssub.s32 %s18, %s25
    %s79 = sor.u32 %s77, %s78
    %p80 = scmp.eq.s32.totalorder %s79, 0
    %s82 = sadd.s32 %s81, 1
    %s83 = scalar_select %p80, %s81, %s82
    %p86 = pneg %p80
    %p87 = scmp.eq.s32.totalorder %s10, 3
    %p88 = por %p86, %p87
    %p89 = scmp.ne.s32.totalorder %s81, %s84
    %p90 = scmp.eq.s32.totalorder %s10, 0
    %p91 = por %p89, %p90
    %p92 = scmp.ne.s32.totalorder %s81, %s84
    %p93 = scmp.eq.s32.totalorder %s15, 3
    %p94 = por %p92, %p93
    %p95 = scmp.ne.s32.totalorder %s84, %s85
    %p96 = scmp.eq.s32.totalorder %s15, 0
    %p97 = por %p95, %p96
    %p98 = scmp.ne.s32.totalorder %s84, %s85
    %p99 = scmp.eq.s32.totalorder %s16, 3
    %p100 = por %p98, %p99
    %p102 = scmp.ne.s32.totalorder %s85, %s101
    %p103 = scmp.eq.s32.totalorder %s16, 0
    %p104 = por %p102, %p103
    %s105 = ssub.s32 %s17, %s29
    %s106 = ssub.s32 %s18, %s25
    %s107 = sor.u32 %s105, %s106
    %p108 = scmp.eq.s32.totalorder %s107, 0
    %s110 = sadd.s32 %s109, 1
    %s111 = scalar_select %p108, %s109, %s110
    %p114 = pneg %p108
    %p115 = scmp.eq.s32.totalorder %s10, 3
    %p116 = por %p114, %p115
    %p117 = scmp.ne.s32.totalorder %s109, %s112
    %p118 = scmp.eq.s32.totalorder %s10, 0
    %p119 = por %p117, %p118
    %p120 = scmp.ne.s32.totalorder %s109, %s112
    %p121 = scmp.eq.s32.totalorder %s15, 3
    %p122 = por %p120, %p121
    %p123 = scmp.ne.s32.totalorder %s112, %s113
    %p124 = scmp.eq.s32.totalorder %s15, 0
    %p125 = por %p123, %p124
    %p126 = scmp.ne.s32.totalorder %s112, %s113
    %p127 = scmp.eq.s32.totalorder %s16, 3
    %p128 = por %p126, %p127
    %p130 = scmp.ne.s32.totalorder %s113, %s129
    %p131 = scmp.eq.s32.totalorder %s16, 0
    %p132 = por %p130, %p131
    %p133 = scmp.le.s32.totalorder 1, %s10
    %p134 = scmp.lt.s32.totalorder %s10, 5
    %p135 = pnand %p133, %p134
    %p136 = pneg %p135
    // Predicated region
    $region9: #{_forward.6} parent=5 // pred_check
      _
    $region10: #{_forward.6} parent=5 // pred_check_branch
      %138 = sbr.rel (%p135) target = $region12
    $region11: #{_forward.6} parent=5 // pred_region
      %s139 = ssub.s32 %s10, 1
      // Predicated region
      $region13: #{_forward.6} parent=11 // pred_check
        %p140 = pneg %p69
      $region14: #{_forward.6} parent=11 // pred_check_branch
        %142 = sbr.rel (%p140) target = $region16
      $region15: #{_forward.6} parent=11 // pred_region
        _
      $region16: #{_forward.6} parent=11 // pred_fallthru
        _
    $region12: #{_forward.6} parent=5 // pred_fallthru
      _
    %p143 = scmp.lt.s32.totalorder %s10, 4
    // Predicated region
    $region17: #{_forward.6} parent=5 // pred_check
      %p144 = pneg %p143
    $region18: #{_forward.6} parent=5 // pred_check_branch
      %146 = sbr.rel (%p144) target = $region20
    $region19: #{_forward.6} parent=5 // pred_region
      // Predicated region
      $region21: #{_forward.6} parent=19 // pred_check
        %p147 = pneg %p42
      $region22: #{_forward.6} parent=19 // pred_check_branch
        %149 = sbr.rel (%p147) target = $region24
      $region23: #{_forward.6} parent=19 // pred_region
        %p150 = scmp.lt.s32.totalorder %s17, 1
        %s151 = scalar_select %p150, %s17, 1
        %s152 = smul.addr %s151, 54
        %s153 = smul.addr %s152, 4
        %s154 = scalar_lea.vmem %s0, %s153
      $region24: #{_forward.6} parent=19 // pred_fallthru
        _
    $region20: #{_forward.6} parent=5 // pred_fallthru
      _
    %p155 = scmp.le.s32.totalorder 1, %s10
    %p156 = scmp.lt.s32.totalorder %s10, 5
    %p157 = pnand %p155, %p156
    %p158 = pneg %p157
    // Predicated region
    $region25: #{_forward.6} parent=5 // pred_check
      _
    $region26: #{_forward.6} parent=5 // pred_check_branch
      %160 = sbr.rel (%p157) target = $region28
    $region27: #{_forward.6} parent=5 // pred_region
      %s161 = ssub.s32 %s10, 1
      %p162 = scmp.lt.s32.totalorder %s19, 1
      %s163 = scalar_select %p162, %s19, 1
      %s164 = smul.addr %s163, 54
      %s165 = smul.addr %s164, 4
      %s166 = scalar_lea.vmem %s0, %s165
      %p167 = pneg %p48
      %p168 = pneg %p45
      %p169 = pneg %p69
      %p170 = pneg %p66
      %p171 = pneg %p97
      %p172 = pneg %p94
      %s173 = smul.u32 8, %s20
      %p174 = scmp.lt.s32.totalorder %s19, 1
      %s175 = scalar_select %p174, %s19, 1
      %p176 = scmp.lt.s32.totalorder %s173, 15
      %s177 = scalar_select %p176, %s173, 15
      %s178 = smul.addr %s177, 2
      %s179 = smul.addr %s175, 32
      %s180 = sadd.s32 %s178, %s179
      %s181 = smul.addr %s180, 4
      %s182 = scalar_lea.vmem %s2, %s181
      %p183 = pneg %p125
      %p184 = pneg %p122
      %p185 = scmp.lt.s32.totalorder %s19, 1
      %s186 = scalar_select %p185, %s19, 1
      %p187 = scmp.lt.s32.totalorder %s20, 1
      %s188 = scalar_select %p187, %s20, 1
      %s189 = smul.addr %s186, 2
      %s190 = sadd.s32 %s188, %s189
      %s191 = smul.addr %s190, 8
      %s192 = scalar_lea.vmem %s3, %s191
      %p193 = scmp.lt.s32.totalorder %s19, 1
      %s194 = scalar_select %p193, %s19, 1
      %s195 = smul.addr %s194, 54
      %s196 = smul.addr %s195, 4
      %s197 = scalar_lea.vmem %s0, %s196
      %s198 = smul.u32 8, %s20
      %p199 = scmp.lt.s32.totalorder %s19, 1
      %s200 = scalar_select %p199, %s19, 1
      %p201 = scmp.lt.s32.totalorder %s198, 15
      %s202 = scalar_select %p201, %s198, 15
      %s203 = smul.addr %s202, 2
      %s204 = smul.addr %s200, 32
      %s205 = sadd.s32 %s203, %s204
      %s206 = smul.addr %s205, 4
      %s207 = scalar_lea.vmem %s2, %s206
      %s208 = smul.u32 8, %s20
      %p209 = scmp.lt.s32.totalorder %s19, 1
      %s210 = scalar_select %p209, %s19, 1
      %p211 = scmp.lt.s32.totalorder %s20, 1
      %s212 = scalar_select %p211, %s20, 1
      %s213 = smul.addr %s210, 2
      %s214 = sadd.s32 %s212, %s213
      %s215 = smul.addr %s214, 8
      %s216 = scalar_lea.vmem %s3, %s215
      %s218 = smul.u32 %s20, 8
      %s219 = smul.u32 %s218, 3
      %s220 = smul.addr %s219, 4
      %s221 = scalar_lea.vmem %s197, %s220
      %v222 = vld [vmem:[%s221] sm:$0xf]
      %v223 = vld [vmem:[%s221 + $0x4] sm:$0xf]
      %v224 = vld [vmem:[%s221 + $0xc] sm:$0xf]
      %v225 = vld [vmem:[%s221 + $0x10] sm:$0xf]
      %v226 = vld [vmem:[%s221 + $0x18] sm:$0xf]
      %v227 = vld [vmem:[%s221 + $0x1c] sm:$0xf]
      %v228 = vld [vmem:[%s221 + $0x24] sm:$0xf]
      %v229 = vld [vmem:[%s221 + $0x28] sm:$0xf]
      %v230 = vld [vmem:[%s221 + $0x30] sm:$0xf]
      %v231 = vld [vmem:[%s221 + $0x34] sm:$0xf]
      %v232 = vld [vmem:[%s221 + $0x3c] sm:$0xf]
      %v233 = vld [vmem:[%s221 + $0x40] sm:$0xf]
      %v234 = vld [vmem:[%s221 + $0x48] sm:$0xf]
      %v235 = vld [vmem:[%s221 + $0x4c] sm:$0xf]
      %v236 = vld [vmem:[%s221 + $0x54] sm:$0xf]
      %v237 = vld [vmem:[%s221 + $0x58] sm:$0xf]
      %v238 = vld [vmem:[%s221 + $0x8] sm:$0x1]
      %v239 = vld [vmem:[%s221 + $0x14] sm:$0x1]
      %v240 = vld [vmem:[%s221 + $0x20] sm:$0x1]
      %v241 = vld [vmem:[%s221 + $0x2c] sm:$0x1]
      %v242 = vld [vmem:[%s221 + $0x38] sm:$0x1]
      %v243 = vld [vmem:[%s221 + $0x44] sm:$0x1]
      %v244 = vld [vmem:[%s221 + $0x50] sm:$0x1]
      %v245 = vld [vmem:[%s221 + $0x5c] sm:$0x1]
      %vm246 = vsmask.f32 3328
      %vm247 = vsmask.f32 7440
      %vm248 = vmor %vm246, %vm247
      %v250 = vshrl.u32 %v222, 16
      %v252 = vrot.slane %v250, 4
      %v253 = vshll.u32 %v222, 16
      %v255 = vrot.slane %v253, 5
      %v256 = vor.u32 %v252, %v255
      %v257 = vrot.slane %v256, 4
      %v259 = vshll.u32 %v223, 16
      %v261 = vrot.slane %v259, 5
      %v262 = vsel %vm248, %v257, %v261
      %v263 = vshrl.u32 %v223, 16
      %v265 = vrot.slane %v263, 4
      %v266 = vor.u32 %v265, %v261
      %v267 = vrot.slane %v266, 4
      %v269 = vshll.u32 %v238, 16
      %v271 = vrot.slane %v269, 5
      %v272 = vsel %vm248, %v267, %v271
      %v274 = vshrl.u32 %v224, 16
      %v276 = vrot.slane %v274, 4
      %v277 = vshll.u32 %v224, 16
      %v279 = vrot.slane %v277, 5
      %v280 = vor.u32 %v276, %v279
      %v281 = vrot.slane %v280, 4
      %v283 = vshll.u32 %v225, 16
      %v285 = vrot.slane %v283, 5
      %v286 = vsel %vm248, %v281, %v285
      %v287 = vshrl.u32 %v225, 16
      %v289 = vrot.slane %v287, 4
      %v290 = vor.u32 %v289, %v285
      %v291 = vrot.slane %v290, 4
      %v293 = vshll.u32 %v239, 16
      %v295 = vrot.slane %v293, 5
      %v296 = vsel %vm248, %v291, %v295
      %v298 = vshrl.u32 %v226, 16
      %v300 = vrot.slane %v298, 4
      %v301 = vshll.u32 %v226, 16
      %v303 = vrot.slane %v301, 5
      %v304 = vor.u32 %v300, %v303
      %v305 = vrot.slane %v304, 4
      %v307 = vshll.u32 %v227, 16
      %v309 = vrot.slane %v307, 5
      %v310 = vsel %vm248, %v305, %v309
      %v311 = vshrl.u32 %v227, 16
      %v313 = vrot.slane %v311, 4
      %v314 = vor.u32 %v313, %v309
      %v315 = vrot.slane %v314, 4
      %v317 = vshll.u32 %v240, 16
      %v319 = vrot.slane %v317, 5
      %v320 = vsel %vm248, %v315, %v319
      %v322 = vshrl.u32 %v228, 16
      %v324 = vrot.slane %v322, 4
      %v325 = vshll.u32 %v228, 16
      %v327 = vrot.slane %v325, 5
      %v328 = vor.u32 %v324, %v327
      %v329 = vrot.slane %v328, 4
      %v331 = vshll.u32 %v229, 16
      %v333 = vrot.slane %v331, 5
      %v334 = vsel %vm248, %v329, %v333
      %v335 = vshrl.u32 %v229, 16
      %v337 = vrot.slane %v335, 4
      %v338 = vor.u32 %v337, %v333
      %v339 = vrot.slane %v338, 4
      %v341 = vshll.u32 %v241, 16
      %v343 = vrot.slane %v341, 5
      %v344 = vsel %vm248, %v339, %v343
      %v346 = vshrl.u32 %v230, 16
      %v348 = vrot.slane %v346, 4
      %v349 = vshll.u32 %v230, 16
      %v351 = vrot.slane %v349, 5
      %v352 = vor.u32 %v348, %v351
      %v353 = vrot.slane %v352, 4
      %v355 = vshll.u32 %v231, 16
      %v357 = vrot.slane %v355, 5
      %v358 = vsel %vm248, %v353, %v357
      %v359 = vshrl.u32 %v231, 16
      %v361 = vrot.slane %v359, 4
      %v362 = vor.u32 %v361, %v357
      %v363 = vrot.slane %v362, 4
      %v365 = vshll.u32 %v242, 16
      %v367 = vrot.slane %v365, 5
      %v368 = vsel %vm248, %v363, %v367
      %v370 = vshrl.u32 %v232, 16
      %v372 = vrot.slane %v370, 4
      %v373 = vshll.u32 %v232, 16
      %v375 = vrot.slane %v373, 5
      %v376 = vor.u32 %v372, %v375
      %v377 = vrot.slane %v376, 4
      %v379 = vshll.u32 %v233, 16
      %v381 = vrot.slane %v379, 5
      %v382 = vsel %vm248, %v377, %v381
      %v383 = vshrl.u32 %v233, 16
      %v385 = vrot.slane %v383, 4
      %v386 = vor.u32 %v385, %v381
      %v387 = vrot.slane %v386, 4
      %v389 = vshll.u32 %v243, 16
      %v391 = vrot.slane %v389, 5
      %v392 = vsel %vm248, %v387, %v391
      %v394 = vshrl.u32 %v234, 16
      %v396 = vrot.slane %v394, 4
      %v397 = vshll.u32 %v234, 16
      %v399 = vrot.slane %v397, 5
      %v400 = vor.u32 %v396, %v399
      %v401 = vrot.slane %v400, 4
      %v403 = vshll.u32 %v235, 16
      %v405 = vrot.slane %v403, 5
      %v406 = vsel %vm248, %v401, %v405
      %v407 = vshrl.u32 %v235, 16
      %v409 = vrot.slane %v407, 4
      %v410 = vor.u32 %v409, %v405
      %v411 = vrot.slane %v410, 4
      %v413 = vshll.u32 %v244, 16
      %v415 = vrot.slane %v413, 5
      %v416 = vsel %vm248, %v411, %v415
      %v418 = vshrl.u32 %v236, 16
      %v420 = vrot.slane %v418, 4
      %v421 = vshll.u32 %v236, 16
      %v423 = vrot.slane %v421, 5
      %v424 = vor.u32 %v420, %v423
      %v425 = vrot.slane %v424, 4
      %v427 = vshll.u32 %v237, 16
      %v429 = vrot.slane %v427, 5
      %v430 = vsel %vm248, %v425, %v429
      %v431 = vshrl.u32 %v237, 16
      %v433 = vrot.slane %v431, 4
      %v434 = vor.u32 %v433, %v429
      %v435 = vrot.slane %v434, 4
      %v437 = vshll.u32 %v245, 16
      %v439 = vrot.slane %v437, 5
      %v440 = vsel %vm248, %v435, %v439
      %v441 = vld [vmem:[%s221] sm:$0xe]
      %v442 = vld [vmem:[%s221 + $0xc] sm:$0xe]
      %v443 = vld [vmem:[%s221 + $0x18] sm:$0xe]
      %v444 = vld [vmem:[%s221 + $0x24] sm:$0xe]
      %v445 = vld [vmem:[%s221 + $0x30] sm:$0xe]
      %v446 = vld [vmem:[%s221 + $0x3c] sm:$0xe]
      %v447 = vld [vmem:[%s221 + $0x48] sm:$0xe]
      %v448 = vld [vmem:[%s221 + $0x54] sm:$0xe]
      %vm473 = vcmask 1042432
      %vm474 = vcmask 1046532
      %vm475 = vmor %vm473, %vm474
      %v476 = vrot.slane %v441, 5
      %v477 = vrot.slane %v476, 4
      %v478 = vrot.slane %v223, 5
      %v479 = vsel %vm475, %v477, %v478
      %v480 = vrot.slane %v478, 4
      %v481 = vrot.slane %v238, 5
      %v482 = vsel %vm475, %v480, %v481
      %v483 = vrot.slane %v442, 5
      %v484 = vrot.slane %v483, 4
      %v485 = vrot.slane %v225, 5
      %v486 = vsel %vm475, %v484, %v485
      %v487 = vrot.slane %v485, 4
      %v488 = vrot.slane %v239, 5
      %v489 = vsel %vm475, %v487, %v488
      %v490 = vrot.slane %v443, 5
      %v491 = vrot.slane %v490, 4
      %v492 = vrot.slane %v227, 5
      %v493 = vsel %vm475, %v491, %v492
      %v494 = vrot.slane %v492, 4
      %v495 = vrot.slane %v240, 5
      %v496 = vsel %vm475, %v494, %v495
      %v497 = vrot.slane %v444, 5
      %v498 = vrot.slane %v497, 4
      %v499 = vrot.slane %v229, 5
      %v500 = vsel %vm475, %v498, %v499
      %v501 = vrot.slane %v499, 4
      %v502 = vrot.slane %v241, 5
      %v503 = vsel %vm475, %v501, %v502
      %v504 = vrot.slane %v445, 5
      %v505 = vrot.slane %v504, 4
      %v506 = vrot.slane %v231, 5
      %v507 = vsel %vm475, %v505, %v506
      %v508 = vrot.slane %v506, 4
      %v509 = vrot.slane %v242, 5
      %v510 = vsel %vm475, %v508, %v509
      %v511 = vrot.slane %v446, 5
      %v512 = vrot.slane %v511, 4
      %v513 = vrot.slane %v233, 5
      %v514 = vsel %vm475, %v512, %v513
      %v515 = vrot.slane %v513, 4
      %v516 = vrot.slane %v243, 5
      %v517 = vsel %vm475, %v515, %v516
      %v518 = vrot.slane %v447, 5
      %v519 = vrot.slane %v518, 4
      %v520 = vrot.slane %v235, 5
      %v521 = vsel %vm475, %v519, %v520
      %v522 = vrot.slane %v520, 4
      %v523 = vrot.slane %v244, 5
      %v524 = vsel %vm475, %v522, %v523
      %v525 = vrot.slane %v448, 5
      %v526 = vrot.slane %v525, 4
      %v527 = vrot.slane %v237, 5
      %v528 = vsel %vm475, %v526, %v527
      %v529 = vrot.slane %v527, 4
      %v530 = vrot.slane %v245, 5
      %v531 = vsel %vm475, %v529, %v530
      %s532 = sadd.s32 %s218, 1
      %s533 = smul.u32 %s532, 3
      %s534 = smul.addr %s533, 4
      %s535 = scalar_lea.vmem %s197, %s534
      %v536 = vld [vmem:[%s535] sm:$0xf]
      %v537 = vld [vmem:[%s535 + $0x4] sm:$0xf]
      %v538 = vld [vmem:[%s535 + $0xc] sm:$0xf]
      %v539 = vld [vmem:[%s535 + $0x10] sm:$0xf]
      %v540 = vld [vmem:[%s535 + $0x18] sm:$0xf]
      %v541 = vld [vmem:[%s535 + $0x1c] sm:$0xf]
      %v542 = vld [vmem:[%s535 + $0x24] sm:$0xf]
      %v543 = vld [vmem:[%s535 + $0x28] sm:$0xf]
      %v544 = vld [vmem:[%s535 + $0x30] sm:$0xf]
      %v545 = vld [vmem:[%s535 + $0x34] sm:$0xf]
      %v546 = vld [vmem:[%s535 + $0x3c] sm:$0xf]
      %v547 = vld [vmem:[%s535 + $0x40] sm:$0xf]
      %v548 = vld [vmem:[%s535 + $0x48] sm:$0xf]
      %v549 = vld [vmem:[%s535 + $0x4c] sm:$0xf]
      %v550 = vld [vmem:[%s535 + $0x54] sm:$0xf]
      %v551 = vld [vmem:[%s535 + $0x58] sm:$0xf]
      %v552 = vld [vmem:[%s535 + $0x8] sm:$0x1]
      %v553 = vld [vmem:[%s535 + $0x14] sm:$0x1]
      %v554 = vld [vmem:[%s535 + $0x20] sm:$0x1]
      %v555 = vld [vmem:[%s535 + $0x2c] sm:$0x1]
      %v556 = vld [vmem:[%s535 + $0x38] sm:$0x1]
      %v557 = vld [vmem:[%s535 + $0x44] sm:$0x1]
      %v558 = vld [vmem:[%s535 + $0x50] sm:$0x1]
      %v559 = vld [vmem:[%s535 + $0x5c] sm:$0x1]
      %v561 = vshrl.u32 %v536, 16
      %v563 = vrot.slane %v561, 4
      %v564 = vshll.u32 %v536, 16
      %v566 = vrot.slane %v564, 5
      %v567 = vor.u32 %v563, %v566
      %v568 = vrot.slane %v567, 4
      %v570 = vshll.u32 %v537, 16
      %v572 = vrot.slane %v570, 5
      %v573 = vsel %vm248, %v568, %v572
      %v574 = vshrl.u32 %v537, 16
      %v576 = vrot.slane %v574, 4
      %v577 = vor.u32 %v576, %v572
      %v578 = vrot.slane %v577, 4
      %v580 = vshll.u32 %v552, 16
      %v582 = vrot.slane %v580, 5
      %v583 = vsel %vm248, %v578, %v582
      %v585 = vshrl.u32 %v538, 16
      %v587 = vrot.slane %v585, 4
      %v588 = vshll.u32 %v538, 16
      %v590 = vrot.slane %v588, 5
      %v591 = vor.u32 %v587, %v590
      %v592 = vrot.slane %v591, 4
      %v594 = vshll.u32 %v539, 16
      %v596 = vrot.slane %v594, 5
      %v597 = vsel %vm248, %v592, %v596
      %v598 = vshrl.u32 %v539, 16
      %v600 = vrot.slane %v598, 4
      %v601 = vor.u32 %v600, %v596
      %v602 = vrot.slane %v601, 4
      %v604 = vshll.u32 %v553, 16
      %v606 = vrot.slane %v604, 5
      %v607 = vsel %vm248, %v602, %v606
      %v609 = vshrl.u32 %v540, 16
      %v611 = vrot.slane %v609, 4
      %v612 = vshll.u32 %v540, 16
      %v614 = vrot.slane %v612, 5
      %v615 = vor.u32 %v611, %v614
      %v616 = vrot.slane %v615, 4
      %v618 = vshll.u32 %v541, 16
      %v620 = vrot.slane %v618, 5
      %v621 = vsel %vm248, %v616, %v620
      %v622 = vshrl.u32 %v541, 16
      %v624 = vrot.slane %v622, 4
      %v625 = vor.u32 %v624, %v620
      %v626 = vrot.slane %v625, 4
      %v628 = vshll.u32 %v554, 16
      %v630 = vrot.slane %v628, 5
      %v631 = vsel %vm248, %v626, %v630
      %v633 = vshrl.u32 %v542, 16
      %v635 = vrot.slane %v633, 4
      %v636 = vshll.u32 %v542, 16
      %v638 = vrot.slane %v636, 5
      %v639 = vor.u32 %v635, %v638
      %v640 = vrot.slane %v639, 4
      %v642 = vshll.u32 %v543, 16
      %v644 = vrot.slane %v642, 5
      %v645 = vsel %vm248, %v640, %v644
      %v646 = vshrl.u32 %v543, 16
      %v648 = vrot.slane %v646, 4
      %v649 = vor.u32 %v648, %v644
      %v650 = vrot.slane %v649, 4
      %v652 = vshll.u32 %v555, 16
      %v654 = vrot.slane %v652, 5
      %v655 = vsel %vm248, %v650, %v654
      %v657 = vshrl.u32 %v544, 16
      %v659 = vrot.slane %v657, 4
      %v660 = vshll.u32 %v544, 16
      %v662 = vrot.slane %v660, 5
      %v663 = vor.u32 %v659, %v662
      %v664 = vrot.slane %v663, 4
      %v666 = vshll.u32 %v545, 16
      %v668 = vrot.slane %v666, 5
      %v669 = vsel %vm248, %v664, %v668
      %v670 = vshrl.u32 %v545, 16
      %v672 = vrot.slane %v670, 4
      %v673 = vor.u32 %v672, %v668
      %v674 = vrot.slane %v673, 4
      %v676 = vshll.u32 %v556, 16
      %v678 = vrot.slane %v676, 5
      %v679 = vsel %vm248, %v674, %v678
      %v681 = vshrl.u32 %v546, 16
      %v683 = vrot.slane %v681, 4
      %v684 = vshll.u32 %v546, 16
      %v686 = vrot.slane %v684, 5
      %v687 = vor.u32 %v683, %v686
      %v688 = vrot.slane %v687, 4
      %v690 = vshll.u32 %v547, 16
      %v692 = vrot.slane %v690, 5
      %v693 = vsel %vm248, %v688, %v692
      %v694 = vshrl.u32 %v547, 16
      %v696 = vrot.slane %v694, 4
      %v697 = vor.u32 %v696, %v692
      %v698 = vrot.slane %v697, 4
      %v700 = vshll.u32 %v557, 16
      %v702 = vrot.slane %v700, 5
      %v703 = vsel %vm248, %v698, %v702
      %v705 = vshrl.u32 %v548, 16
      %v707 = vrot.slane %v705, 4
      %v708 = vshll.u32 %v548, 16
      %v710 = vrot.slane %v708, 5
      %v711 = vor.u32 %v707, %v710
      %v712 = vrot.slane %v711, 4
      %v714 = vshll.u32 %v549, 16
      %v716 = vrot.slane %v714, 5
      %v717 = vsel %vm248, %v712, %v716
      %v718 = vshrl.u32 %v549, 16
      %v720 = vrot.slane %v718, 4
      %v721 = vor.u32 %v720, %v716
      %v722 = vrot.slane %v721, 4
      %v724 = vshll.u32 %v558, 16
      %v726 = vrot.slane %v724, 5
      %v727 = vsel %vm248, %v722, %v726
      %v729 = vshrl.u32 %v550, 16
      %v731 = vrot.slane %v729, 4
      %v732 = vshll.u32 %v550, 16
      %v734 = vrot.slane %v732, 5
      %v735 = vor.u32 %v731, %v734
      %v736 = vrot.slane %v735, 4
      %v738 = vshll.u32 %v551, 16
      %v740 = vrot.slane %v738, 5
      %v741 = vsel %vm248, %v736, %v740
      %v742 = vshrl.u32 %v551, 16
      %v744 = vrot.slane %v742, 4
      %v745 = vor.u32 %v744, %v740
      %v746 = vrot.slane %v745, 4
      %v748 = vshll.u32 %v559, 16
      %v750 = vrot.slane %v748, 5
      %v751 = vsel %vm248, %v746, %v750
      %v752 = vld [vmem:[%s535] sm:$0xe]
      %v753 = vld [vmem:[%s535 + $0xc] sm:$0xe]
      %v754 = vld [vmem:[%s535 + $0x18] sm:$0xe]
      %v755 = vld [vmem:[%s535 + $0x24] sm:$0xe]
      %v756 = vld [vmem:[%s535 + $0x30] sm:$0xe]
      %v757 = vld [vmem:[%s535 + $0x3c] sm:$0xe]
      %v758 = vld [vmem:[%s535 + $0x48] sm:$0xe]
      %v759 = vld [vmem:[%s535 + $0x54] sm:$0xe]
      %v784 = vrot.slane %v752, 5
      %v785 = vrot.slane %v784, 4
      %v786 = vrot.slane %v537, 5
      %v787 = vsel %vm475, %v785, %v786
      %v788 = vrot.slane %v786, 4
      %v789 = vrot.slane %v552, 5
      %v790 = vsel %vm475, %v788, %v789
      %v791 = vrot.slane %v753, 5
      %v792 = vrot.slane %v791, 4
      %v793 = vrot.slane %v539, 5
      %v794 = vsel %vm475, %v792, %v793
      %v795 = vrot.slane %v793, 4
      %v796 = vrot.slane %v553, 5
      %v797 = vsel %vm475, %v795, %v796
      %v798 = vrot.slane %v754, 5
      %v799 = vrot.slane %v798, 4
      %v800 = vrot.slane %v541, 5
      %v801 = vsel %vm475, %v799, %v800
      %v802 = vrot.slane %v800, 4
      %v803 = vrot.slane %v554, 5
      %v804 = vsel %vm475, %v802, %v803
      %v805 = vrot.slane %v755, 5
      %v806 = vrot.slane %v805, 4
      %v807 = vrot.slane %v543, 5
      %v808 = vsel %vm475, %v806, %v807
      %v809 = vrot.slane %v807, 4
      %v810 = vrot.slane %v555, 5
      %v811 = vsel %vm475, %v809, %v810
      %v812 = vrot.slane %v756, 5
      %v813 = vrot.slane %v812, 4
      %v814 = vrot.slane %v545, 5
      %v815 = vsel %vm475, %v813, %v814
      %v816 = vrot.slane %v814, 4
      %v817 = vrot.slane %v556, 5
      %v818 = vsel %vm475, %v816, %v817
      %v819 = vrot.slane %v757, 5
      %v820 = vrot.slane %v819, 4
      %v821 = vrot.slane %v547, 5
      %v822 = vsel %vm475, %v820, %v821
      %v823 = vrot.slane %v821, 4
      %v824 = vrot.slane %v557, 5
      %v825 = vsel %vm475, %v823, %v824
      %v826 = vrot.slane %v758, 5
      %v827 = vrot.slane %v826, 4
      %v828 = vrot.slane %v549, 5
      %v829 = vsel %vm475, %v827, %v828
      %v830 = vrot.slane %v828, 4
      %v831 = vrot.slane %v558, 5
      %v832 = vsel %vm475, %v830, %v831
      %v833 = vrot.slane %v759, 5
      %v834 = vrot.slane %v833, 4
      %v835 = vrot.slane %v551, 5
      %v836 = vsel %vm475, %v834, %v835
      %v837 = vrot.slane %v835, 4
      %v838 = vrot.slane %v559, 5
      %v839 = vsel %vm475, %v837, %v838
      %s840 = sadd.s32 %s218, 2
      %s841 = smul.u32 %s840, 3
      %s842 = smul.addr %s841, 4
      %s843 = scalar_lea.vmem %s197, %s842
      %v844 = vld [vmem:[%s843] sm:$0xf]
      %v845 = vld [vmem:[%s843 + $0x4] sm:$0xf]
      %v846 = vld [vmem:[%s843 + $0xc] sm:$0xf]
      %v847 = vld [vmem:[%s843 + $0x10] sm:$0xf]
      %v848 = vld [vmem:[%s843 + $0x18] sm:$0xf]
      %v849 = vld [vmem:[%s843 + $0x1c] sm:$0xf]
      %v850 = vld [vmem:[%s843 + $0x24] sm:$0xf]
      %v851 = vld [vmem:[%s843 + $0x28] sm:$0xf]
      %v852 = vld [vmem:[%s843 + $0x30] sm:$0xf]
      %v853 = vld [vmem:[%s843 + $0x34] sm:$0xf]
      %v854 = vld [vmem:[%s843 + $0x3c] sm:$0xf]
      %v855 = vld [vmem:[%s843 + $0x40] sm:$0xf]
      %v856 = vld [vmem:[%s843 + $0x48] sm:$0xf]
      %v857 = vld [vmem:[%s843 + $0x4c] sm:$0xf]
      %v858 = vld [vmem:[%s843 + $0x54] sm:$0xf]
      %v859 = vld [vmem:[%s843 + $0x58] sm:$0xf]
      %v860 = vld [vmem:[%s843 + $0x8] sm:$0x1]
      %v861 = vld [vmem:[%s843 + $0x14] sm:$0x1]
      %v862 = vld [vmem:[%s843 + $0x20] sm:$0x1]
      %v863 = vld [vmem:[%s843 + $0x2c] sm:$0x1]
      %v864 = vld [vmem:[%s843 + $0x38] sm:$0x1]
      %v865 = vld [vmem:[%s843 + $0x44] sm:$0x1]
      %v866 = vld [vmem:[%s843 + $0x50] sm:$0x1]
      %v867 = vld [vmem:[%s843 + $0x5c] sm:$0x1]
      %v869 = vshrl.u32 %v844, 16
      %v871 = vrot.slane %v869, 4
      %v872 = vshll.u32 %v844, 16
      %v874 = vrot.slane %v872, 5
      %v875 = vor.u32 %v871, %v874
      %v876 = vrot.slane %v875, 4
      %v878 = vshll.u32 %v845, 16
      %v880 = vrot.slane %v878, 5
      %v881 = vsel %vm248, %v876, %v880
      %v882 = vshrl.u32 %v845, 16
      %v884 = vrot.slane %v882, 4
      %v885 = vor.u32 %v884, %v880
      %v886 = vrot.slane %v885, 4
      %v888 = vshll.u32 %v860, 16
      %v890 = vrot.slane %v888, 5
      %v891 = vsel %vm248, %v886, %v890
      %v893 = vshrl.u32 %v846, 16
      %v895 = vrot.slane %v893, 4
      %v896 = vshll.u32 %v846, 16
      %v898 = vrot.slane %v896, 5
      %v899 = vor.u32 %v895, %v898
      %v900 = vrot.slane %v899, 4
      %v902 = vshll.u32 %v847, 16
      %v904 = vrot.slane %v902, 5
      %v905 = vsel %vm248, %v900, %v904
      %v906 = vshrl.u32 %v847, 16
      %v908 = vrot.slane %v906, 4
      %v909 = vor.u32 %v908, %v904
      %v910 = vrot.slane %v909, 4
      %v912 = vshll.u32 %v861, 16
      %v914 = vrot.slane %v912, 5
      %v915 = vsel %vm248, %v910, %v914
      %v917 = vshrl.u32 %v848, 16
      %v919 = vrot.slane %v917, 4
      %v920 = vshll.u32 %v848, 16
      %v922 = vrot.slane %v920, 5
      %v923 = vor.u32 %v919, %v922
      %v924 = vrot.slane %v923, 4
      %v926 = vshll.u32 %v849, 16
      %v928 = vrot.slane %v926, 5
      %v929 = vsel %vm248, %v924, %v928
      %v930 = vshrl.u32 %v849, 16
      %v932 = vrot.slane %v930, 4
      %v933 = vor.u32 %v932, %v928
      %v934 = vrot.slane %v933, 4
      %v936 = vshll.u32 %v862, 16
      %v938 = vrot.slane %v936, 5
      %v939 = vsel %vm248, %v934, %v938
      %v941 = vshrl.u32 %v850, 16
      %v943 = vrot.slane %v941, 4
      %v944 = vshll.u32 %v850, 16
      %v946 = vrot.slane %v944, 5
      %v947 = vor.u32 %v943, %v946
      %v948 = vrot.slane %v947, 4
      %v950 = vshll.u32 %v851, 16
      %v952 = vrot.slane %v950, 5
      %v953 = vsel %vm248, %v948, %v952
      %v954 = vshrl.u32 %v851, 16
      %v956 = vrot.slane %v954, 4
      %v957 = vor.u32 %v956, %v952
      %v958 = vrot.slane %v957, 4
      %v960 = vshll.u32 %v863, 16
      %v962 = vrot.slane %v960, 5
      %v963 = vsel %vm248, %v958, %v962
      %v965 = vshrl.u32 %v852, 16
      %v967 = vrot.slane %v965, 4
      %v968 = vshll.u32 %v852, 16
      %v970 = vrot.slane %v968, 5
      %v971 = vor.u32 %v967, %v970
      %v972 = vrot.slane %v971, 4
      %v974 = vshll.u32 %v853, 16
      %v976 = vrot.slane %v974, 5
      %v977 = vsel %vm248, %v972, %v976
      %v978 = vshrl.u32 %v853, 16
      %v980 = vrot.slane %v978, 4
      %v981 = vor.u32 %v980, %v976
      %v982 = vrot.slane %v981, 4
      %v984 = vshll.u32 %v864, 16
      %v986 = vrot.slane %v984, 5
      %v987 = vsel %vm248, %v982, %v986
      %v989 = vshrl.u32 %v854, 16
      %v991 = vrot.slane %v989, 4
      %v992 = vshll.u32 %v854, 16
      %v994 = vrot.slane %v992, 5
      %v995 = vor.u32 %v991, %v994
      %v996 = vrot.slane %v995, 4
      %v998 = vshll.u32 %v855, 16
      %v1000 = vrot.slane %v998, 5
      %v1001 = vsel %vm248, %v996, %v1000
      %v1002 = vshrl.u32 %v855, 16
      %v1004 = vrot.slane %v1002, 4
      %v1005 = vor.u32 %v1004, %v1000
      %v1006 = vrot.slane %v1005, 4
      %v1008 = vshll.u32 %v865, 16
      %v1010 = vrot.slane %v1008, 5
      %v1011 = vsel %vm248, %v1006, %v1010
      %v1013 = vshrl.u32 %v856, 16
      %v1015 = vrot.slane %v1013, 4
      %v1016 = vshll.u32 %v856, 16
      %v1018 = vrot.slane %v1016, 5
      %v1019 = vor.u32 %v1015, %v1018
      %v1020 = vrot.slane %v1019, 4
      %v1022 = vshll.u32 %v857, 16
      %v1024 = vrot.slane %v1022, 5
      %v1025 = vsel %vm248, %v1020, %v1024
      %v1026 = vshrl.u32 %v857, 16
      %v1028 = vrot.slane %v1026, 4
      %v1029 = vor.u32 %v1028, %v1024
      %v1030 = vrot.slane %v1029, 4
      %v1032 = vshll.u32 %v866, 16
      %v1034 = vrot.slane %v1032, 5
      %v1035 = vsel %vm248, %v1030, %v1034
      %v1037 = vshrl.u32 %v858, 16
      %v1039 = vrot.slane %v1037, 4
      %v1040 = vshll.u32 %v858, 16
      %v1042 = vrot.slane %v1040, 5
      %v1043 = vor.u32 %v1039, %v1042
      %v1044 = vrot.slane %v1043, 4
      %v1046 = vshll.u32 %v859, 16
      %v1048 = vrot.slane %v1046, 5
      %v1049 = vsel %vm248, %v1044, %v1048
      %v1050 = vshrl.u32 %v859, 16
      %v1052 = vrot.slane %v1050, 4
      %v1053 = vor.u32 %v1052, %v1048
      %v1054 = vrot.slane %v1053, 4
      %v1056 = vshll.u32 %v867, 16
      %v1058 = vrot.slane %v1056, 5
      %v1059 = vsel %vm248, %v1054, %v1058
      %v1060 = vld [vmem:[%s843] sm:$0xe]
      %v1061 = vld [vmem:[%s843 + $0xc] sm:$0xe]
      %v1062 = vld [vmem:[%s843 + $0x18] sm:$0xe]
      %v1063 = vld [vmem:[%s843 + $0x24] sm:$0xe]
      %v1064 = vld [vmem:[%s843 + $0x30] sm:$0xe]
      %v1065 = vld [vmem:[%s843 + $0x3c] sm:$0xe]
      %v1066 = vld [vmem:[%s843 + $0x48] sm:$0xe]
      %v1067 = vld [vmem:[%s843 + $0x54] sm:$0xe]
      %v1092 = vrot.slane %v1060, 5
      %v1093 = vrot.slane %v1092, 4
      %v1094 = vrot.slane %v845, 5
      %v1095 = vsel %vm475, %v1093, %v1094
      %v1096 = vrot.slane %v1094, 4
      %v1097 = vrot.slane %v860, 5
      %v1098 = vsel %vm475, %v1096, %v1097
      %v1099 = vrot.slane %v1061, 5
      %v1100 = vrot.slane %v1099, 4
      %v1101 = vrot.slane %v847, 5
      %v1102 = vsel %vm475, %v1100, %v1101
      %v1103 = vrot.slane %v1101, 4
      %v1104 = vrot.slane %v861, 5
      %v1105 = vsel %vm475, %v1103, %v1104
      %v1106 = vrot.slane %v1062, 5
      %v1107 = vrot.slane %v1106, 4
      %v1108 = vrot.slane %v849, 5
      %v1109 = vsel %vm475, %v1107, %v1108
      %v1110 = vrot.slane %v1108, 4
      %v1111 = vrot.slane %v862, 5
      %v1112 = vsel %vm475, %v1110, %v1111
      %v1113 = vrot.slane %v1063, 5
      %v1114 = vrot.slane %v1113, 4
      %v1115 = vrot.slane %v851, 5
      %v1116 = vsel %vm475, %v1114, %v1115
      %v1117 = vrot.slane %v1115, 4
      %v1118 = vrot.slane %v863, 5
      %v1119 = vsel %vm475, %v1117, %v1118
      %v1120 = vrot.slane %v1064, 5
      %v1121 = vrot.slane %v1120, 4
      %v1122 = vrot.slane %v853, 5
      %v1123 = vsel %vm475, %v1121, %v1122
      %v1124 = vrot.slane %v1122, 4
      %v1125 = vrot.slane %v864, 5
      %v1126 = vsel %vm475, %v1124, %v1125
      %v1127 = vrot.slane %v1065, 5
      %v1128 = vrot.slane %v1127, 4
      %v1129 = vrot.slane %v855, 5
      %v1130 = vsel %vm475, %v1128, %v1129
      %v1131 = vrot.slane %v1129, 4
      %v1132 = vrot.slane %v865, 5
      %v1133 = vsel %vm475, %v1131, %v1132
      %v1134 = vrot.slane %v1066, 5
      %v1135 = vrot.slane %v1134, 4
      %v1136 = vrot.slane %v857, 5
      %v1137 = vsel %vm475, %v1135, %v1136
      %v1138 = vrot.slane %v1136, 4
      %v1139 = vrot.slane %v866, 5
      %v1140 = vsel %vm475, %v1138, %v1139
      %v1141 = vrot.slane %v1067, 5
      %v1142 = vrot.slane %v1141, 4
      %v1143 = vrot.slane %v859, 5
      %v1144 = vsel %vm475, %v1142, %v1143
      %v1145 = vrot.slane %v1143, 4
      %v1146 = vrot.slane %v867, 5
      %v1147 = vsel %vm475, %v1145, %v1146
      %v1156 = vunpack.c.l.b16 %v222
      %v1157 = vunpack.c.l.b16 %v223
      %v1158 = vunpack.c.l.b16 %v224
      %v1159 = vunpack.c.l.b16 %v225
      %v1160 = vunpack.c.l.b16 %v226
      %v1161 = vunpack.c.l.b16 %v227
      %v1162 = vunpack.c.l.b16 %v228
      %v1163 = vunpack.c.l.b16 %v229
      %v1164 = vunpack.c.l.b16 %v230
      %v1165 = vunpack.c.l.b16 %v231
      %v1166 = vunpack.c.l.b16 %v232
      %v1167 = vunpack.c.l.b16 %v233
      %v1168 = vunpack.c.l.b16 %v234
      %v1169 = vunpack.c.l.b16 %v235
      %v1170 = vunpack.c.l.b16 %v236
      %v1171 = vunpack.c.l.b16 %v237
      %v1172 = vpack.c.b16 %v1157, %v1156
      %v1173 = vpack.c.b16 %v1159, %v1158
      %v1174 = vpack.c.b16 %v1161, %v1160
      %v1175 = vpack.c.b16 %v1163, %v1162
      %v1176 = vpack.c.b16 %v1165, %v1164
      %v1177 = vpack.c.b16 %v1167, %v1166
      %v1178 = vpack.c.b16 %v1169, %v1168
      %v1179 = vpack.c.b16 %v1171, %v1170
      %v1180 = vunpack.c.l.b16 %v262
      %v1181 = vunpack.c.l.b16 %v272
      %v1182 = vunpack.c.l.b16 %v286
      %v1183 = vunpack.c.l.b16 %v296
      %v1184 = vunpack.c.l.b16 %v310
      %v1185 = vunpack.c.l.b16 %v320
      %v1186 = vunpack.c.l.b16 %v334
      %v1187 = vunpack.c.l.b16 %v344
      %v1188 = vunpack.c.l.b16 %v358
      %v1189 = vunpack.c.l.b16 %v368
      %v1190 = vunpack.c.l.b16 %v382
      %v1191 = vunpack.c.l.b16 %v392
      %v1192 = vunpack.c.l.b16 %v406
      %v1193 = vunpack.c.l.b16 %v416
      %v1194 = vunpack.c.l.b16 %v430
      %v1195 = vunpack.c.l.b16 %v440
      %v1196 = vpack.c.b16 %v1181, %v1180
      %v1197 = vpack.c.b16 %v1183, %v1182
      %v1198 = vpack.c.b16 %v1185, %v1184
      %v1199 = vpack.c.b16 %v1187, %v1186
      %v1200 = vpack.c.b16 %v1189, %v1188
      %v1201 = vpack.c.b16 %v1191, %v1190
      %v1202 = vpack.c.b16 %v1193, %v1192
      %v1203 = vpack.c.b16 %v1195, %v1194
      %1204 = vrot.lane.b32.xlu0 %v1196, 4
      %v1205 = vpop.permute.xlu0 %1204
      %1206 = vrot.lane.b32.xlu0 %v1197, 4
      %v1207 = vpop.permute.xlu0 %1206
      %1208 = vrot.lane.b32.xlu0 %v1198, 4
      %v1209 = vpop.permute.xlu0 %1208
      %1210 = vrot.lane.b32.xlu0 %v1199, 4
      %v1211 = vpop.permute.xlu0 %1210
      %1212 = vrot.lane.b32.xlu0 %v1200, 4
      %v1213 = vpop.permute.xlu0 %1212
      %1214 = vrot.lane.b32.xlu0 %v1201, 4
      %v1215 = vpop.permute.xlu0 %1214
      %1216 = vrot.lane.b32.xlu0 %v1202, 4
      %v1217 = vpop.permute.xlu0 %1216
      %1218 = vrot.lane.b32.xlu0 %v1203, 4
      %v1219 = vpop.permute.xlu0 %1218
      %v1220 = vunpack.c.l.b16 %v479
      %v1221 = vunpack.c.l.b16 %v482
      %v1222 = vunpack.c.l.b16 %v486
      %v1223 = vunpack.c.l.b16 %v489
      %v1224 = vunpack.c.l.b16 %v493
      %v1225 = vunpack.c.l.b16 %v496
      %v1226 = vunpack.c.l.b16 %v500
      %v1227 = vunpack.c.l.b16 %v503
      %v1228 = vunpack.c.l.b16 %v507
      %v1229 = vunpack.c.l.b16 %v510
      %v1230 = vunpack.c.l.b16 %v514
      %v1231 = vunpack.c.l.b16 %v517
      %v1232 = vunpack.c.l.b16 %v521
      %v1233 = vunpack.c.l.b16 %v524
      %v1234 = vunpack.c.l.b16 %v528
      %v1235 = vunpack.c.l.b16 %v531
      %v1236 = vpack.c.b16 %v1221, %v1220
      %v1237 = vpack.c.b16 %v1223, %v1222
      %v1238 = vpack.c.b16 %v1225, %v1224
      %v1239 = vpack.c.b16 %v1227, %v1226
      %v1240 = vpack.c.b16 %v1229, %v1228
      %v1241 = vpack.c.b16 %v1231, %v1230
      %v1242 = vpack.c.b16 %v1233, %v1232
      %v1243 = vpack.c.b16 %v1235, %v1234
      %1244 = vrot.lane.b32.xlu0 %v1236, 8
      %v1245 = vpop.permute.xlu0 %1244
      %1246 = vrot.lane.b32.xlu0 %v1237, 8
      %v1247 = vpop.permute.xlu0 %1246
      %1248 = vrot.lane.b32.xlu0 %v1238, 8
      %v1249 = vpop.permute.xlu0 %1248
      %1250 = vrot.lane.b32.xlu0 %v1239, 8
      %v1251 = vpop.permute.xlu0 %1250
      %1252 = vrot.lane.b32.xlu0 %v1240, 8
      %v1253 = vpop.permute.xlu0 %1252
      %1254 = vrot.lane.b32.xlu0 %v1241, 8
      %v1255 = vpop.permute.xlu0 %1254
      %1256 = vrot.lane.b32.xlu0 %v1242, 8
      %v1257 = vpop.permute.xlu0 %1256
      %1258 = vrot.lane.b32.xlu0 %v1243, 8
      %v1259 = vpop.permute.xlu0 %1258
      %v1268 = vunpack.c.l.b16 %v536
      %v1269 = vunpack.c.l.b16 %v537
      %v1270 = vunpack.c.l.b16 %v538
      %v1271 = vunpack.c.l.b16 %v539
      %v1272 = vunpack.c.l.b16 %v540
      %v1273 = vunpack.c.l.b16 %v541
      %v1274 = vunpack.c.l.b16 %v542
      %v1275 = vunpack.c.l.b16 %v543
      %v1276 = vunpack.c.l.b16 %v544
      %v1277 = vunpack.c.l.b16 %v545
      %v1278 = vunpack.c.l.b16 %v546
      %v1279 = vunpack.c.l.b16 %v547
      %v1280 = vunpack.c.l.b16 %v548
      %v1281 = vunpack.c.l.b16 %v549
      %v1282 = vunpack.c.l.b16 %v550
      %v1283 = vunpack.c.l.b16 %v551
      %v1284 = vpack.c.b16 %v1269, %v1268
      %v1285 = vpack.c.b16 %v1271, %v1270
      %v1286 = vpack.c.b16 %v1273, %v1272
      %v1287 = vpack.c.b16 %v1275, %v1274
      %v1288 = vpack.c.b16 %v1277, %v1276
      %v1289 = vpack.c.b16 %v1279, %v1278
      %v1290 = vpack.c.b16 %v1281, %v1280
      %v1291 = vpack.c.b16 %v1283, %v1282
      %1292 = vrot.lane.b32.xlu0 %v1284, 12
      %v1293 = vpop.permute.xlu0 %1292
      %1294 = vrot.lane.b32.xlu0 %v1285, 12
      %v1295 = vpop.permute.xlu0 %1294
      %1296 = vrot.lane.b32.xlu0 %v1286, 12
      %v1297 = vpop.permute.xlu0 %1296
      %1298 = vrot.lane.b32.xlu0 %v1287, 12
      %v1299 = vpop.permute.xlu0 %1298
      %1300 = vrot.lane.b32.xlu0 %v1288, 12
      %v1301 = vpop.permute.xlu0 %1300
      %1302 = vrot.lane.b32.xlu0 %v1289, 12
      %v1303 = vpop.permute.xlu0 %1302
      %1304 = vrot.lane.b32.xlu0 %v1290, 12
      %v1305 = vpop.permute.xlu0 %1304
      %1306 = vrot.lane.b32.xlu0 %v1291, 12
      %v1307 = vpop.permute.xlu0 %1306
      %v1308 = vunpack.c.l.b16 %v573
      %v1309 = vunpack.c.l.b16 %v583
      %v1310 = vunpack.c.l.b16 %v597
      %v1311 = vunpack.c.l.b16 %v607
      %v1312 = vunpack.c.l.b16 %v621
      %v1313 = vunpack.c.l.b16 %v631
      %v1314 = vunpack.c.l.b16 %v645
      %v1315 = vunpack.c.l.b16 %v655
      %v1316 = vunpack.c.l.b16 %v669
      %v1317 = vunpack.c.l.b16 %v679
      %v1318 = vunpack.c.l.b16 %v693
      %v1319 = vunpack.c.l.b16 %v703
      %v1320 = vunpack.c.l.b16 %v717
      %v1321 = vunpack.c.l.b16 %v727
      %v1322 = vunpack.c.l.b16 %v741
      %v1323 = vunpack.c.l.b16 %v751
      %v1324 = vpack.c.b16 %v1309, %v1308
      %v1325 = vpack.c.b16 %v1311, %v1310
      %v1326 = vpack.c.b16 %v1313, %v1312
      %v1327 = vpack.c.b16 %v1315, %v1314
      %v1328 = vpack.c.b16 %v1317, %v1316
      %v1329 = vpack.c.b16 %v1319, %v1318
      %v1330 = vpack.c.b16 %v1321, %v1320
      %v1331 = vpack.c.b16 %v1323, %v1322
      %1332 = vrot.lane.b32.xlu0 %v1324, 16
      %v1333 = vpop.permute.xlu0 %1332
      %1334 = vrot.lane.b32.xlu0 %v1325, 16
      %v1335 = vpop.permute.xlu0 %1334
      %1336 = vrot.lane.b32.xlu0 %v1326, 16
      %v1337 = vpop.permute.xlu0 %1336
      %1338 = vrot.lane.b32.xlu0 %v1327, 16
      %v1339 = vpop.permute.xlu0 %1338
      %1340 = vrot.lane.b32.xlu0 %v1328, 16
      %v1341 = vpop.permute.xlu0 %1340
      %1342 = vrot.lane.b32.xlu0 %v1329, 16
      %v1343 = vpop.permute.xlu0 %1342
      %1344 = vrot.lane.b32.xlu0 %v1330, 16
      %v1345 = vpop.permute.xlu0 %1344
      %1346 = vrot.lane.b32.xlu0 %v1331, 16
      %v1347 = vpop.permute.xlu0 %1346
      %v1348 = vunpack.c.l.b16 %v787
      %v1349 = vunpack.c.l.b16 %v790
      %v1350 = vunpack.c.l.b16 %v794
      %v1351 = vunpack.c.l.b16 %v797
      %v1352 = vunpack.c.l.b16 %v801
      %v1353 = vunpack.c.l.b16 %v804
      %v1354 = vunpack.c.l.b16 %v808
      %v1355 = vunpack.c.l.b16 %v811
      %v1356 = vunpack.c.l.b16 %v815
      %v1357 = vunpack.c.l.b16 %v818
      %v1358 = vunpack.c.l.b16 %v822
      %v1359 = vunpack.c.l.b16 %v825
      %v1360 = vunpack.c.l.b16 %v829
      %v1361 = vunpack.c.l.b16 %v832
      %v1362 = vunpack.c.l.b16 %v836
      %v1363 = vunpack.c.l.b16 %v839
      %v1364 = vpack.c.b16 %v1349, %v1348
      %v1365 = vpack.c.b16 %v1351, %v1350
      %v1366 = vpack.c.b16 %v1353, %v1352
      %v1367 = vpack.c.b16 %v1355, %v1354
      %v1368 = vpack.c.b16 %v1357, %v1356
      %v1369 = vpack.c.b16 %v1359, %v1358
      %v1370 = vpack.c.b16 %v1361, %v1360
      %v1371 = vpack.c.b16 %v1363, %v1362
      %1372 = vrot.lane.b32.xlu0 %v1364, 20
      %v1373 = vpop.permute.xlu0 %1372
      %1374 = vrot.lane.b32.xlu0 %v1365, 20
      %v1375 = vpop.permute.xlu0 %1374
      %1376 = vrot.lane.b32.xlu0 %v1366, 20
      %v1377 = vpop.permute.xlu0 %1376
      %1378 = vrot.lane.b32.xlu0 %v1367, 20
      %v1379 = vpop.permute.xlu0 %1378
      %1380 = vrot.lane.b32.xlu0 %v1368, 20
      %v1381 = vpop.permute.xlu0 %1380
      %1382 = vrot.lane.b32.xlu0 %v1369, 20
      %v1383 = vpop.permute.xlu0 %1382
      %1384 = vrot.lane.b32.xlu0 %v1370, 20
      %v1385 = vpop.permute.xlu0 %1384
      %1386 = vrot.lane.b32.xlu0 %v1371, 20
      %v1387 = vpop.permute.xlu0 %1386
      %v1396 = vunpack.c.l.b16 %v844
      %v1397 = vunpack.c.l.b16 %v845
      %v1398 = vunpack.c.l.b16 %v846
      %v1399 = vunpack.c.l.b16 %v847
      %v1400 = vunpack.c.l.b16 %v848
      %v1401 = vunpack.c.l.b16 %v849
      %v1402 = vunpack.c.l.b16 %v850
      %v1403 = vunpack.c.l.b16 %v851
      %v1404 = vunpack.c.l.b16 %v852
      %v1405 = vunpack.c.l.b16 %v853
      %v1406 = vunpack.c.l.b16 %v854
      %v1407 = vunpack.c.l.b16 %v855
      %v1408 = vunpack.c.l.b16 %v856
      %v1409 = vunpack.c.l.b16 %v857
      %v1410 = vunpack.c.l.b16 %v858
      %v1411 = vunpack.c.l.b16 %v859
      %v1412 = vpack.c.b16 %v1397, %v1396
      %v1413 = vpack.c.b16 %v1399, %v1398
      %v1414 = vpack.c.b16 %v1401, %v1400
      %v1415 = vpack.c.b16 %v1403, %v1402
      %v1416 = vpack.c.b16 %v1405, %v1404
      %v1417 = vpack.c.b16 %v1407, %v1406
      %v1418 = vpack.c.b16 %v1409, %v1408
      %v1419 = vpack.c.b16 %v1411, %v1410
      %1420 = vrot.lane.b32.xlu0 %v1412, 24
      %v1421 = vpop.permute.xlu0 %1420
      %1422 = vrot.lane.b32.xlu0 %v1413, 24
      %v1423 = vpop.permute.xlu0 %1422
      %1424 = vrot.lane.b32.xlu0 %v1414, 24
      %v1425 = vpop.permute.xlu0 %1424
      %1426 = vrot.lane.b32.xlu0 %v1415, 24
      %v1427 = vpop.permute.xlu0 %1426
      %1428 = vrot.lane.b32.xlu0 %v1416, 24
      %v1429 = vpop.permute.xlu0 %1428
      %1430 = vrot.lane.b32.xlu0 %v1417, 24
      %v1431 = vpop.permute.xlu0 %1430
      %1432 = vrot.lane.b32.xlu0 %v1418, 24
      %v1433 = vpop.permute.xlu0 %1432
      %1434 = vrot.lane.b32.xlu0 %v1419, 24
      %v1435 = vpop.permute.xlu0 %1434
      %v1436 = vunpack.c.l.b16 %v881
      %v1437 = vunpack.c.l.b16 %v891
      %v1438 = vunpack.c.l.b16 %v905
      %v1439 = vunpack.c.l.b16 %v915
      %v1440 = vunpack.c.l.b16 %v929
      %v1441 = vunpack.c.l.b16 %v939
      %v1442 = vunpack.c.l.b16 %v953
      %v1443 = vunpack.c.l.b16 %v963
      %v1444 = vunpack.c.l.b16 %v977
      %v1445 = vunpack.c.l.b16 %v987
      %v1446 = vunpack.c.l.b16 %v1001
      %v1447 = vunpack.c.l.b16 %v1011
      %v1448 = vunpack.c.l.b16 %v1025
      %v1449 = vunpack.c.l.b16 %v1035
      %v1450 = vunpack.c.l.b16 %v1049
      %v1451 = vunpack.c.l.b16 %v1059
      %v1452 = vpack.c.b16 %v1437, %v1436
      %v1453 = vpack.c.b16 %v1439, %v1438
      %v1454 = vpack.c.b16 %v1441, %v1440
      %v1455 = vpack.c.b16 %v1443, %v1442
      %v1456 = vpack.c.b16 %v1445, %v1444
      %v1457 = vpack.c.b16 %v1447, %v1446
      %v1458 = vpack.c.b16 %v1449, %v1448
      %v1459 = vpack.c.b16 %v1451, %v1450
      %1460 = vrot.lane.b32.xlu0 %v1452, 28
      %v1461 = vpop.permute.xlu0 %1460
      %1462 = vrot.lane.b32.xlu0 %v1453, 28
      %v1463 = vpop.permute.xlu0 %1462
      %1464 = vrot.lane.b32.xlu0 %v1454, 28
      %v1465 = vpop.permute.xlu0 %1464
      %1466 = vrot.lane.b32.xlu0 %v1455, 28
      %v1467 = vpop.permute.xlu0 %1466
      %1468 = vrot.lane.b32.xlu0 %v1456, 28
      %v1469 = vpop.permute.xlu0 %1468
      %1470 = vrot.lane.b32.xlu0 %v1457, 28
      %v1471 = vpop.permute.xlu0 %1470
      %1472 = vrot.lane.b32.xlu0 %v1458, 28
      %v1473 = vpop.permute.xlu0 %1472
      %1474 = vrot.lane.b32.xlu0 %v1459, 28
      %v1475 = vpop.permute.xlu0 %1474
      %v1476 = vunpack.c.l.b16 %v1095
      %v1477 = vunpack.c.l.b16 %v1098
      %v1478 = vunpack.c.l.b16 %v1102
      %v1479 = vunpack.c.l.b16 %v1105
      %v1480 = vunpack.c.l.b16 %v1109
      %v1481 = vunpack.c.l.b16 %v1112
      %v1482 = vunpack.c.l.b16 %v1116
      %v1483 = vunpack.c.l.b16 %v1119
      %v1484 = vunpack.c.l.b16 %v1123
      %v1485 = vunpack.c.l.b16 %v1126
      %v1486 = vunpack.c.l.b16 %v1130
      %v1487 = vunpack.c.l.b16 %v1133
      %v1488 = vunpack.c.l.b16 %v1137
      %v1489 = vunpack.c.l.b16 %v1140
      %v1490 = vunpack.c.l.b16 %v1144
      %v1491 = vunpack.c.l.b16 %v1147
      %v1492 = vpack.c.b16 %v1477, %v1476
      %v1493 = vpack.c.b16 %v1479, %v1478
      %v1494 = vpack.c.b16 %v1481, %v1480
      %v1495 = vpack.c.b16 %v1483, %v1482
      %v1496 = vpack.c.b16 %v1485, %v1484
      %v1497 = vpack.c.b16 %v1487, %v1486
      %v1498 = vpack.c.b16 %v1489, %v1488
      %v1499 = vpack.c.b16 %v1491, %v1490
      %1500 = vrot.lane.b32.xlu0 %v1492, 32
      %v1501 = vpop.permute.xlu0 %1500
      %1502 = vrot.lane.b32.xlu0 %v1493, 32
      %v1503 = vpop.permute.xlu0 %1502
      %1504 = vrot.lane.b32.xlu0 %v1494, 32
      %v1505 = vpop.permute.xlu0 %1504
      %1506 = vrot.lane.b32.xlu0 %v1495, 32
      %v1507 = vpop.permute.xlu0 %1506
      %1508 = vrot.lane.b32.xlu0 %v1496, 32
      %v1509 = vpop.permute.xlu0 %1508
      %1510 = vrot.lane.b32.xlu0 %v1497, 32
      %v1511 = vpop.permute.xlu0 %1510
      %1512 = vrot.lane.b32.xlu0 %v1498, 32
      %v1513 = vpop.permute.xlu0 %1512
      %1514 = vrot.lane.b32.xlu0 %v1499, 32
      %v1515 = vpop.permute.xlu0 %1514
      %vm1516 = vcmask 31744
      %v1519 = vsel %vm1516, %v1172, %v1205
      %v1522 = vsel %vm1516, %v1173, %v1207
      %v1525 = vsel %vm1516, %v1174, %v1209
      %v1528 = vsel %vm1516, %v1175, %v1211
      %v1531 = vsel %vm1516, %v1176, %v1213
      %v1534 = vsel %vm1516, %v1177, %v1215
      %v1537 = vsel %vm1516, %v1178, %v1217
      %v1540 = vsel %vm1516, %v1179, %v1219
      %vm1541 = vcmask 64512
      %v1543 = vsel %vm1541, %v1519, %v1245
      %v1545 = vsel %vm1541, %v1522, %v1247
      %v1547 = vsel %vm1541, %v1525, %v1249
      %v1549 = vsel %vm1541, %v1528, %v1251
      %v1551 = vsel %vm1541, %v1531, %v1253
      %v1553 = vsel %vm1541, %v1534, %v1255
      %v1555 = vsel %vm1541, %v1537, %v1257
      %v1557 = vsel %vm1541, %v1540, %v1259
      %vm1558 = vcmask 97280
      %v1560 = vsel %vm1558, %v1543, %v1293
      %v1562 = vsel %vm1558, %v1545, %v1295
      %v1564 = vsel %vm1558, %v1547, %v1297
      %v1566 = vsel %vm1558, %v1549, %v1299
      %v1568 = vsel %vm1558, %v1551, %v1301
      %v1570 = vsel %vm1558, %v1553, %v1303
      %v1572 = vsel %vm1558, %v1555, %v1305
      %v1574 = vsel %vm1558, %v1557, %v1307
      %vm1575 = vcmask 130048
      %v1577 = vsel %vm1575, %v1560, %v1333
      %v1579 = vsel %vm1575, %v1562, %v1335
      %v1581 = vsel %vm1575, %v1564, %v1337
      %v1583 = vsel %vm1575, %v1566, %v1339
      %v1585 = vsel %vm1575, %v1568, %v1341
      %v1587 = vsel %vm1575, %v1570, %v1343
      %v1589 = vsel %vm1575, %v1572, %v1345
      %v1591 = vsel %vm1575, %v1574, %v1347
      %vm1592 = vcmask 162816
      %v1594 = vsel %vm1592, %v1577, %v1373
      %v1596 = vsel %vm1592, %v1579, %v1375
      %v1598 = vsel %vm1592, %v1581, %v1377
      %v1600 = vsel %vm1592, %v1583, %v1379
      %v1602 = vsel %vm1592, %v1585, %v1381
      %v1604 = vsel %vm1592, %v1587, %v1383
      %v1606 = vsel %vm1592, %v1589, %v1385
      %v1608 = vsel %vm1592, %v1591, %v1387
      %vm1609 = vcmask 195584
      %v1611 = vsel %vm1609, %v1594, %v1421
      %v1613 = vsel %vm1609, %v1596, %v1423
      %v1615 = vsel %vm1609, %v1598, %v1425
      %v1617 = vsel %vm1609, %v1600, %v1427
      %v1619 = vsel %vm1609, %v1602, %v1429
      %v1621 = vsel %vm1609, %v1604, %v1431
      %v1623 = vsel %vm1609, %v1606, %v1433
      %v1625 = vsel %vm1609, %v1608, %v1435
      %vm1626 = vcmask 228352
      %v1628 = vsel %vm1626, %v1611, %v1461
      %v1630 = vsel %vm1626, %v1613, %v1463
      %v1632 = vsel %vm1626, %v1615, %v1465
      %v1634 = vsel %vm1626, %v1617, %v1467
      %v1636 = vsel %vm1626, %v1619, %v1469
      %v1638 = vsel %vm1626, %v1621, %v1471
      %v1640 = vsel %vm1626, %v1623, %v1473
      %v1642 = vsel %vm1626, %v1625, %v1475
      %vm1643 = vcmask 261120
      %v1645 = vsel %vm1643, %v1628, %v1501
      %v1647 = vsel %vm1643, %v1630, %v1503
      %v1649 = vsel %vm1643, %v1632, %v1505
      %v1651 = vsel %vm1643, %v1634, %v1507
      %v1653 = vsel %vm1643, %v1636, %v1509
      %v1655 = vsel %vm1643, %v1638, %v1511
      %v1657 = vsel %vm1643, %v1640, %v1513
      %v1659 = vsel %vm1643, %v1642, %v1515
      %v1660 = vld [vmem:[%s1] sm:$0xf]
      %v1661 = vld [vmem:[%s1 + $0x4] sm:$0xf]
      %v1662 = vld [vmem:[%s1 + $0x8] sm:$0xf]
      %v1663 = vld [vmem:[%s1 + $0xc] sm:$0xf]
      %v1664 = vld [vmem:[%s1 + $0x10] sm:$0x3]
      %v1670 = vunpack.c.l.b16 %v1660
      %v1671 = vunpack.c.l.b16 %v1661
      %v1672 = vunpack.c.l.b16 %v1662
      %v1673 = vunpack.c.l.b16 %v1663
      %v1674 = vunpack.c.l.b16 %v1664
      %v1675 = vpack.c.b16 %v1671, %v1670
      %v1676 = vpack.c.b16 %v1673, %v1672
      %v1677 = vpack.c.b16 %v1674, %v1674
      %vm1680 = vcmask 293888
      %v1681 = vsel %vm1680, %v1645, 0
      %v1683 = vsel %vm1680, %v1647, 0
      %v1685 = vsel %vm1680, %v1649, 0
      %v1687 = vsel %vm1680, %v1651, 0
      %v1689 = vsel %vm1680, %v1653, 0
      %v1691 = vsel %vm1680, %v1655, 0
      %v1693 = vsel %vm1680, %v1657, 0
      %v1695 = vsel %vm1680, %v1659, 0
      %vm1697 = vcmask 1041408
      %v1699 = vsel %vm1697, %v1677, 0
      %1701 = vmatprep.subr.bf16.mxu0 0
      %1702 = vmatpush1.bf16.msra.mxu0 %v1675
      %1703 = vmatprep.subr.bf16.mxu0 0
      %1704 = vmatpush1.bf16.msra.mxu0 %v1676
      %1705 = vmatprep.subr.bf16.mxu0 0
      %1706 = vmatpush1.bf16.msra.mxu0 %v1699
      %1707 = vmatprep.subr.bf16.mxu0 0
      %1708 = vmatpush1.bf16.msra.mxu0 0
      %1709 = vmatprep.subr.bf16.mxu0 0
      %1710 = vmatpush1.bf16.msra.mxu0 0
      %1711 = vmatprep.subr.bf16.mxu0 0
      %1712 = vmatpush1.bf16.msra.mxu0 0
      %1713 = vmatprep.subr.bf16.mxu0 0
      %1714 = vmatpush1.bf16.msra.mxu0 0
      %1715 = vmatprep.subr.bf16.mxu0 0
      %1716 = vmatpush1.bf16.msra.mxu0 0
      %1717 = vmatprep.subr.bf16.mxu0 0
      %1718 = vmatpush1.bf16.msra.mxu0 0
      %1719 = vmatprep.subr.bf16.mxu0 0
      %1720 = vmatpush1.bf16.msra.mxu0 0
      %1721 = vmatprep.subr.bf16.mxu0 0
      %1722 = vmatpush1.bf16.msra.mxu0 0
      %1723 = vmatprep.subr.bf16.mxu0 0
      %1724 = vmatpush1.bf16.msra.mxu0 0
      %1725 = vmatprep.subr.bf16.mxu0 0
      %1726 = vmatpush1.bf16.msra.mxu0 0
      %1727 = vmatprep.subr.bf16.mxu0 0
      %1728 = vmatpush1.bf16.msra.mxu0 0
      %1729 = vmatprep.subr.bf16.mxu0 0
      %1730 = vmatpush1.bf16.msra.mxu0 0
      %1731 = vmatprep.subr.bf16.mxu0 0
      %1732 = vmatpush1.bf16.msra.mxu0 0
      %1733 = vmatprep.mubr.bf16.mxu0 0
      %1734 = vmatmul.mubr.bf16.gmra.mrb[0].mxu0 %v1681
      %v1735 = vpop.f32.mrb[0].mxu0
      %v1736 = vadd.f32 0.0, %v1735
      %v1737 = vpop.f32.mrb[0].mxu0
      %v1738 = vpop.f32.mrb[0].mxu0
      %v1739 = vadd.f32 0.0, %v1738
      %v1740 = vpop.f32.mrb[0].mxu0
      %1741 = vmatprep.mubr.bf16.mxu0 0
      %1742 = vmatmul.mubr.bf16.gmra.mrb[0].mxu0 %v1683
      %v1743 = vpop.f32.mrb[0].mxu0
      %v1744 = vadd.f32 0.0, %v1743
      %v1745 = vpop.f32.mrb[0].mxu0
      %v1746 = vpop.f32.mrb[0].mxu0
      %v1747 = vadd.f32 0.0, %v1746
      %v1748 = vpop.f32.mrb[0].mxu0
      %1749 = vmatprep.mubr.bf16.mxu0 0
      %1750 = vmatmul.mubr.bf16.gmra.mrb[0].mxu0 %v1685
      %v1751 = vpop.f32.mrb[0].mxu0
      %v1752 = vadd.f32 0.0, %v1751
      %v1753 = vpop.f32.mrb[0].mxu0
      %v1754 = vpop.f32.mrb[0].mxu0
      %v1755 = vadd.f32 0.0, %v1754
      %v1756 = vpop.f32.mrb[0].mxu0
      %1757 = vmatprep.mubr.bf16.mxu0 0
      %1758 = vmatmul.mubr.bf16.gmra.mrb[0].mxu0 %v1687
      %v1759 = vpop.f32.mrb[0].mxu0
      %v1760 = vadd.f32 0.0, %v1759
      %v1761 = vpop.f32.mrb[0].mxu0
      %v1762 = vpop.f32.mrb[0].mxu0
      %v1763 = vadd.f32 0.0, %v1762
      %v1764 = vpop.f32.mrb[0].mxu0
      %1765 = vmatprep.mubr.bf16.mxu0 0
      %1766 = vmatmul.mubr.bf16.gmra.mrb[0].mxu0 %v1689
      %v1767 = vpop.f32.mrb[0].mxu0
      %v1768 = vadd.f32 0.0, %v1767
      %v1769 = vpop.f32.mrb[0].mxu0
      %v1770 = vpop.f32.mrb[0].mxu0
      %v1771 = vadd.f32 0.0, %v1770
      %v1772 = vpop.f32.mrb[0].mxu0
      %1773 = vmatprep.mubr.bf16.mxu0 0
      %1774 = vmatmul.mubr.bf16.gmra.mrb[0].mxu0 %v1691
      %v1775 = vpop.f32.mrb[0].mxu0
      %v1776 = vadd.f32 0.0, %v1775
      %v1777 = vpop.f32.mrb[0].mxu0
      %v1778 = vpop.f32.mrb[0].mxu0
      %v1779 = vadd.f32 0.0, %v1778
      %v1780 = vpop.f32.mrb[0].mxu0
      %1781 = vmatprep.mubr.bf16.mxu0 0
      %1782 = vmatmul.mubr.bf16.gmra.mrb[0].mxu0 %v1693
      %v1783 = vpop.f32.mrb[0].mxu0
      %v1784 = vadd.f32 0.0, %v1783
      %v1785 = vpop.f32.mrb[0].mxu0
      %v1786 = vpop.f32.mrb[0].mxu0
      %v1787 = vadd.f32 0.0, %v1786
      %v1788 = vpop.f32.mrb[0].mxu0
      %1789 = vmatprep.mubr.bf16.mxu0 0
      %1790 = vmatmul.mubr.bf16.gmra.mrb[0].mxu0 %v1695
      %v1791 = vpop.f32.mrb[0].mxu0
      %v1792 = vadd.f32 0.0, %v1791
      %v1793 = vpop.f32.mrb[0].mxu0
      %v1794 = vpop.f32.mrb[0].mxu0
      %v1795 = vadd.f32 0.0, %v1794
      %v1796 = vpop.f32.mrb[0].mxu0
      %1797 = vdwg.mxu0
      %v1798 = vpack.c.bf16 %v1739, %v1736
      %v1799 = vpack.c.bf16 %v1747, %v1744
      %v1800 = vpack.c.bf16 %v1755, %v1752
      %v1801 = vpack.c.bf16 %v1763, %v1760
      %v1802 = vpack.c.bf16 %v1771, %v1768
      %v1803 = vpack.c.bf16 %v1779, %v1776
      %v1804 = vpack.c.bf16 %v1787, %v1784
      %v1805 = vpack.c.bf16 %v1795, %v1792
      %v1814 = vunpack.c.l.b16 %v1798
      %v1815 = vunpack.c.h.b16 %v1798
      %v1816 = vunpack.c.l.b16 %v1799
      %v1817 = vunpack.c.h.b16 %v1799
      %v1818 = vunpack.c.l.b16 %v1800
      %v1819 = vunpack.c.h.b16 %v1800
      %v1820 = vunpack.c.l.b16 %v1801
      %v1821 = vunpack.c.h.b16 %v1801
      %v1822 = vunpack.c.l.b16 %v1802
      %v1823 = vunpack.c.h.b16 %v1802
      %v1824 = vunpack.c.l.b16 %v1803
      %v1825 = vunpack.c.h.b16 %v1803
      %v1826 = vunpack.c.l.b16 %v1804
      %v1827 = vunpack.c.h.b16 %v1804
      %v1828 = vunpack.c.l.b16 %v1805
      %v1829 = vunpack.c.h.b16 %v1805
      %v1830 = vpack.c.b16 %v1814, %v1814
      %v1831 = vpack.c.b16 %v1815, %v1815
      %v1832 = vpack.c.b16 %v1816, %v1816
      %v1833 = vpack.c.b16 %v1817, %v1817
      %v1834 = vpack.c.b16 %v1818, %v1818
      %v1835 = vpack.c.b16 %v1819, %v1819
      %v1836 = vpack.c.b16 %v1820, %v1820
      %v1837 = vpack.c.b16 %v1821, %v1821
      %v1838 = vpack.c.b16 %v1822, %v1822
      %v1839 = vpack.c.b16 %v1823, %v1823
      %v1840 = vpack.c.b16 %v1824, %v1824
      %v1841 = vpack.c.b16 %v1825, %v1825
      %v1842 = vpack.c.b16 %v1826, %v1826
      %v1843 = vpack.c.b16 %v1827, %v1827
      %v1844 = vpack.c.b16 %v1828, %v1828
      %v1845 = vpack.c.b16 %v1829, %v1829
      %vm1862 = vcmask 60416
      %1863 = vst.msk [vmem:[%s207] sm:$0xf] %vm1862, %v1830
      %1864 = vst.msk [vmem:[%s207 + $0x4] sm:$0xf] %vm1862, %v1831
      %1865 = vst.msk [vmem:[%s207 + $0x8] sm:$0xf] %vm1862, %v1832
      %1866 = vst.msk [vmem:[%s207 + $0xc] sm:$0xf] %vm1862, %v1833
      %1867 = vst.msk [vmem:[%s207 + $0x10] sm:$0xf] %vm1862, %v1834
      %1868 = vst.msk [vmem:[%s207 + $0x14] sm:$0xf] %vm1862, %v1835
      %1869 = vst.msk [vmem:[%s207 + $0x18] sm:$0xf] %vm1862, %v1836
      %1870 = vst.msk [vmem:[%s207 + $0x1c] sm:$0xf] %vm1862, %v1837
      %1871 = vst.msk [vmem:[%s207 + $0x20] sm:$0xf] %vm1862, %v1838
      %1872 = vst.msk [vmem:[%s207 + $0x24] sm:$0xf] %vm1862, %v1839
      %1873 = vst.msk [vmem:[%s207 + $0x28] sm:$0xf] %vm1862, %v1840
      %1874 = vst.msk [vmem:[%s207 + $0x2c] sm:$0xf] %vm1862, %v1841
      %1875 = vst.msk [vmem:[%s207 + $0x30] sm:$0xf] %vm1862, %v1842
      %1876 = vst.msk [vmem:[%s207 + $0x34] sm:$0xf] %vm1862, %v1843
      %1877 = vst.msk [vmem:[%s207 + $0x38] sm:$0xf] %vm1862, %v1844
      %1878 = vst.msk [vmem:[%s207 + $0x3c] sm:$0xf] %vm1862, %v1845
      %v1879 = vsel %vm1541, %v1736, 0.0
      %v1880 = vsel %vm1541, %v1739, 0.0
      %v1881 = vadd.f32 %v1879, %v1880
      %v1882 = vsel %vm1541, %v1744, 0.0
      %v1883 = vadd.f32 %v1881, %v1882
      %v1884 = vsel %vm1541, %v1747, 0.0
      %v1885 = vadd.f32 %v1883, %v1884
      %v1886 = vsel %vm1541, %v1752, 0.0
      %v1887 = vadd.f32 %v1885, %v1886
      %v1888 = vsel %vm1541, %v1755, 0.0
      %v1889 = vadd.f32 %v1887, %v1888
      %v1890 = vsel %vm1541, %v1760, 0.0
      %v1891 = vadd.f32 %v1889, %v1890
      %v1892 = vsel %vm1541, %v1763, 0.0
      %v1893 = vadd.f32 %v1891, %v1892
      %v1894 = vsel %vm1541, %v1768, 0.0
      %v1895 = vadd.f32 %v1893, %v1894
      %v1896 = vsel %vm1541, %v1771, 0.0
      %v1897 = vadd.f32 %v1895, %v1896
      %v1898 = vsel %vm1541, %v1776, 0.0
      %v1899 = vadd.f32 %v1897, %v1898
      %v1900 = vsel %vm1541, %v1779, 0.0
      %v1901 = vadd.f32 %v1899, %v1900
      %v1902 = vsel %vm1541, %v1784, 0.0
      %v1903 = vadd.f32 %v1901, %v1902
      %v1904 = vsel %vm1541, %v1787, 0.0
      %v1905 = vadd.f32 %v1903, %v1904
      %v1906 = vsel %vm1541, %v1792, 0.0
      %v1907 = vadd.f32 %v1905, %v1906
      %v1908 = vsel %vm1541, %v1795, 0.0
      %v1909 = vadd.f32 %v1907, %v1908
      %v1910 = vrot.slane %v1909, 4
      %v1911 = vadd.f32 %v1909, %v1910
      %v1912 = vrot.slane %v1911, 2
      %v1913 = vadd.f32 %v1911, %v1912
      %v1914 = vrot.slane %v1913, 1
      %v1915 = vadd.f32 %v1913, %v1914
      %v1916 = vmul.f32 %v1736, %v1736
      %v1917 = vmul.f32 %v1739, %v1739
      %v1918 = vmul.f32 %v1744, %v1744
      %v1919 = vmul.f32 %v1747, %v1747
      %v1920 = vmul.f32 %v1752, %v1752
      %v1921 = vmul.f32 %v1755, %v1755
      %v1922 = vmul.f32 %v1760, %v1760
      %v1923 = vmul.f32 %v1763, %v1763
      %v1924 = vmul.f32 %v1768, %v1768
      %v1925 = vmul.f32 %v1771, %v1771
      %v1926 = vmul.f32 %v1776, %v1776
      %v1927 = vmul.f32 %v1779, %v1779
      %v1928 = vmul.f32 %v1784, %v1784
      %v1929 = vmul.f32 %v1787, %v1787
      %v1930 = vmul.f32 %v1792, %v1792
      %v1931 = vmul.f32 %v1795, %v1795
      %v1932 = vsel %vm1541, %v1916, 0.0
      %v1933 = vsel %vm1541, %v1917, 0.0
      %v1934 = vadd.f32 %v1932, %v1933
      %v1935 = vsel %vm1541, %v1918, 0.0
      %v1936 = vadd.f32 %v1934, %v1935
      %v1937 = vsel %vm1541, %v1919, 0.0
      %v1938 = vadd.f32 %v1936, %v1937
      %v1939 = vsel %vm1541, %v1920, 0.0
      %v1940 = vadd.f32 %v1938, %v1939
      %v1941 = vsel %vm1541, %v1921, 0.0
      %v1942 = vadd.f32 %v1940, %v1941
      %v1943 = vsel %vm1541, %v1922, 0.0
      %v1944 = vadd.f32 %v1942, %v1943
      %v1945 = vsel %vm1541, %v1923, 0.0
      %v1946 = vadd.f32 %v1944, %v1945
      %v1947 = vsel %vm1541, %v1924, 0.0
      %v1948 = vadd.f32 %v1946, %v1947
      %v1949 = vsel %vm1541, %v1925, 0.0
      %v1950 = vadd.f32 %v1948, %v1949
      %v1951 = vsel %vm1541, %v1926, 0.0
      %v1952 = vadd.f32 %v1950, %v1951
      %v1953 = vsel %vm1541, %v1927, 0.0
      %v1954 = vadd.f32 %v1952, %v1953
      %v1955 = vsel %vm1541, %v1928, 0.0
      %v1956 = vadd.f32 %v1954, %v1955
      %v1957 = vsel %vm1541, %v1929, 0.0
      %v1958 = vadd.f32 %v1956, %v1957
      %v1959 = vsel %vm1541, %v1930, 0.0
      %v1960 = vadd.f32 %v1958, %v1959
      %v1961 = vsel %vm1541, %v1931, 0.0
      %v1962 = vadd.f32 %v1960, %v1961
      %v1963 = vrot.slane %v1962, 4
      %v1964 = vadd.f32 %v1962, %v1963
      %v1965 = vrot.slane %v1964, 2
      %v1966 = vadd.f32 %v1964, %v1965
      %v1967 = vrot.slane %v1966, 1
      %v1968 = vadd.f32 %v1966, %v1967
      %vm1969 = vcmask 1040384
      %v1970 = vsel %vm1969, %v1915, %v1968
      %v1971 = vsel %vm1697, %v1970, 0.0
      %1972 = vst.msk [vmem:[%s216] sm:$0xff] %vm1541, %v1971
      %s1973 = smul.u32 8, %s20
      %p1974 = scmp.lt.s32.totalorder %s19, 1
      %s1975 = scalar_select %p1974, %s19, 1
      %p1976 = scmp.lt.s32.totalorder %s1973, 15
      %s1977 = scalar_select %p1976, %s1973, 15
      %s1978 = smul.addr %s1977, 2
      %s1979 = smul.addr %s1975, 32
      %s1980 = sadd.s32 %s1978, %s1979
      %s1981 = smul.addr %s1980, 4
      %s1982 = scalar_lea.vmem %s2, %s1981
      %p1983 = scmp.lt.s32.totalorder %s19, 1
      %s1984 = scalar_select %p1983, %s19, 1
      %p1985 = scmp.lt.s32.totalorder %s20, 1
      %s1986 = scalar_select %p1985, %s20, 1
      %s1987 = smul.addr %s1984, 2
      %s1988 = sadd.s32 %s1986, %s1987
      %s1989 = smul.addr %s1988, 8
      %s1990 = scalar_lea.vmem %s3, %s1989
      // Predicated region
      $region29: #{_forward.6} parent=27 // pred_check
        %p1991 = pneg %p94
      $region30: #{_forward.6} parent=27 // pred_check_branch
        %1993 = sbr.rel (%p1991) target = $region32
      $region31: #{_forward.6} parent=27 // pred_region
        %s1994 = smul.u32 8, %s20
      $region32: #{_forward.6} parent=27 // pred_fallthru
        _
      // Predicated region
      $region33: #{_forward.6} parent=27 // pred_check
        %p1995 = pneg %p122
      $region34: #{_forward.6} parent=27 // pred_check_branch
        %1997 = sbr.rel (%p1995) target = $region36
      $region35: #{_forward.6} parent=27 // pred_region
        _
      $region36: #{_forward.6} parent=27 // pred_fallthru
        _
    $region28: #{_forward.6} parent=5 // pred_fallthru
      _
    %p1998 = scmp.le.s32.totalorder 2, %s10
    // Predicated region
    $region37: #{_forward.6} parent=5 // pred_check
      %p1999 = pneg %p1998
    $region38: #{_forward.6} parent=5 // pred_check_branch
      %2001 = sbr.rel (%p1999) target = $region40
    $region39: #{_forward.6} parent=5 // pred_region
      %s2002 = ssub.s32 %s10, 2
      // Predicated region
      $region41: #{_forward.6} parent=39 // pred_check
        %p2003 = pneg %p100
      $region42: #{_forward.6} parent=39 // pred_check_branch
        %2005 = sbr.rel (%p2003) target = $region44
      $region43: #{_forward.6} parent=39 // pred_region
        %s2006 = smul.u32 8, %s22
        %p2007 = scmp.lt.s32.totalorder %s21, 1
        %s2008 = scalar_select %p2007, %s21, 1
        %p2009 = scmp.lt.s32.totalorder %s2006, 15
        %s2010 = scalar_select %p2009, %s2006, 15
        %s2011 = smul.addr %s2010, 2
        %s2012 = smul.addr %s2008, 32
        %s2013 = sadd.s32 %s2011, %s2012
        %s2014 = smul.addr %s2013, 4
        %s2015 = scalar_lea.vmem %s2, %s2014
      $region44: #{_forward.6} parent=39 // pred_fallthru
        _
      // Predicated region
      $region45: #{_forward.6} parent=39 // pred_check
        %p2016 = pneg %p128
      $region46: #{_forward.6} parent=39 // pred_check_branch
        %2018 = sbr.rel (%p2016) target = $region48
      $region47: #{_forward.6} parent=39 // pred_region
        %p2019 = scmp.lt.s32.totalorder %s21, 1
        %s2020 = scalar_select %p2019, %s21, 1
        %p2021 = scmp.lt.s32.totalorder %s22, 1
        %s2022 = scalar_select %p2021, %s22, 1
        %s2023 = smul.addr %s2020, 2
        %s2024 = sadd.s32 %s2022, %s2023
        %s2025 = smul.addr %s2024, 8
        %s2026 = scalar_lea.vmem %s3, %s2025
      $region48: #{_forward.6} parent=39 // pred_fallthru
        _
    $region40: #{_forward.6} parent=5 // pred_fallthru
      _
  $region6: #{_forward.6} parent=0 // loop_footer
    %s14 = sadd.s32 1, %s10
  $region7: #{_forward.6} parent=0 // loop_footer_branch
    %9 = sbr.rel target = $region3
  $region8: #{_forward.6} parent=0 // loop_exit
    _

// kernel: _forward.8
$region0: #{_forward.8}
  #allocation0 [shape = 'u32[]', space=smem, size = 0x4, offset = 0x4, fixed_abs, tag = 'smem constant byte address 0x4 - core index']
  #allocation1 [shape = 'u32[144,128]{1,0:T(1,128)}', space=vmem, size = 0x12000, scoped, tag = 'internal scratch']
  %s0 = inlined_call_operand.vmem [shape: bf16[2,18,18,8], index: 0, kind: input, shape index: {}]
  %s1 = inlined_call_operand.vmem [shape: bf16[72,8], index: 1, kind: input, shape index: {}]
  %s2 = inlined_call_operand.vmem [shape: bf16[2,16,16,8], index: 2, kind: output, shape index: {0}]
  %s3 = inlined_call_operand.vmem [shape: f32[2,2,8,8], index: 3, kind: output, shape index: {1}]
  %4 = xla_tuple %s2, %s3
  %s5 = sld [smem:[#allocation0]]
  $region49: #{_forward.8} parent=0
    _
  %s7 = ssub.s32 1, %s5
  %s8 = scalar_select 0, %s7, %s5
  loop: start=0, step=1, limit=6
  $region2: #{_forward.8} parent=0 // loop_pre_header
    _
  $region3: #{_forward.8} parent=0 // loop_header
    %s10 = sphi 0, %s14
    %p11 = scmp.ge.s32.totalorder %s10, 6
    %s17 = sphi 0, %s29
    %s18 = sphi 0, %s25
    %s19 = sphi 0, %s17
    %s20 = sphi 0, %s18
    %s21 = sphi 0, %s19
    %s22 = sphi 0, %s20
    %s32 = sphi 0, %s34
    %s35 = sphi 0, %s32
    %s36 = sphi 0, %s35
    %s52 = sphi 0, %s36
    %s56 = sphi 0, %s56
    %s58 = sphi 0, %s56
    %s59 = sphi 0, %s58
    %s73 = sphi 0, %s59
    %s81 = sphi 0, %s83
    %s84 = sphi 0, %s81
    %s85 = sphi 0, %s84
    %s101 = sphi 0, %s85
    %s109 = sphi 0, %s111
    %s112 = sphi 0, %s109
    %s113 = sphi 0, %s112
    %s129 = sphi 0, %s113
  $region4: #{_forward.8} parent=0 // loop_header_branch
    %13 = sbr.rel (%p11) target = $region8
  $region5: #{_forward.8} parent=0 // loop_body
    %s15 = ssub.s32 %s10, 1
    %s16 = ssub.s32 %s10, 2
    %s23 = sadd.s32 1, %s18
    %p24 = scmp.ge.s32.totalorder %s23, 2
    %s25 = scalar_select %p24, 0, %s23
    %s26 = sadd.s32 1, %s17
    %s27 = scalar_select %p24, %s26, %s17
    %p28 = scmp.ge.s32.totalorder %s27, 2
    %s29 = scalar_select %p28, 0, %s27
    %s30 = ssub.s32 %s17, %s29
    %p31 = scmp.eq.s32.totalorder %s30, 0
    %s33 = sadd.s32 %s32, 1
    %s34 = scalar_select %p31, %s32, %s33
    %p37 = pneg %p31
    %p38 = scmp.eq.s32.totalorder %s10, 3
    %p39 = por %p37, %p38
    %p40 = scmp.ne.s32.totalorder %s32, %s35
    %p41 = scmp.eq.s32.totalorder %s10, 0
    %p42 = por %p40, %p41
    %p43 = scmp.ne.s32.totalorder %s32, %s35
    %p44 = scmp.eq.s32.totalorder %s15, 3
    %p45 = por %p43, %p44
    %p46 = scmp.ne.s32.totalorder %s35, %s36
    %p47 = scmp.eq.s32.totalorder %s15, 0
    %p48 = por %p46, %p47
    %p49 = scmp.ne.s32.totalorder %s35, %s36
    %p50 = scmp.eq.s32.totalorder %s16, 3
    %p51 = por %p49, %p50
    %p53 = scmp.ne.s32.totalorder %s36, %s52
    %p54 = scmp.eq.s32.totalorder %s16, 0
    %p55 = por %p53, %p54
    %s57 = sadd.s32 %s56, 1
    %p60 = scmp.eq.s32.totalorder %s10, 3
    %p61 = scmp.ne.s32.totalorder %s56, %s58
    %p62 = scmp.eq.s32.totalorder %s10, 0
    %p63 = por %p61, %p62
    %p64 = scmp.ne.s32.totalorder %s56, %s58
    %p65 = scmp.eq.s32.totalorder %s15, 3
    %p66 = por %p64, %p65
    %p67 = scmp.ne.s32.totalorder %s58, %s59
    %p68 = scmp.eq.s32.totalorder %s15, 0
    %p69 = por %p67, %p68
    %p70 = scmp.ne.s32.totalorder %s58, %s59
    %p71 = scmp.eq.s32.totalorder %s16, 3
    %p72 = por %p70, %p71
    %p74 = scmp.ne.s32.totalorder %s59, %s73
    %p75 = scmp.eq.s32.totalorder %s16, 0
    %p76 = por %p74, %p75
    %s77 = ssub.s32 %s17, %s29
    %s78 = ssub.s32 %s18, %s25
    %s79 = sor.u32 %s77, %s78
    %p80 = scmp.eq.s32.totalorder %s79, 0
    %s82 = sadd.s32 %s81, 1
    %s83 = scalar_select %p80, %s81, %s82
    %p86 = pneg %p80
    %p87 = scmp.eq.s32.totalorder %s10, 3
    %p88 = por %p86, %p87
    %p89 = scmp.ne.s32.totalorder %s81, %s84
    %p90 = scmp.eq.s32.totalorder %s10, 0
    %p91 = por %p89, %p90
    %p92 = scmp.ne.s32.totalorder %s81, %s84
    %p93 = scmp.eq.s32.totalorder %s15, 3
    %p94 = por %p92, %p93
    %p95 = scmp.ne.s32.totalorder %s84, %s85
    %p96 = scmp.eq.s32.totalorder %s15, 0
    %p97 = por %p95, %p96
    %p98 = scmp.ne.s32.totalorder %s84, %s85
    %p99 = scmp.eq.s32.totalorder %s16, 3
    %p100 = por %p98, %p99
    %p102 = scmp.ne.s32.totalorder %s85, %s101
    %p103 = scmp.eq.s32.totalorder %s16, 0
    %p104 = por %p102, %p103
    %s105 = ssub.s32 %s17, %s29
    %s106 = ssub.s32 %s18, %s25
    %s107 = sor.u32 %s105, %s106
    %p108 = scmp.eq.s32.totalorder %s107, 0
    %s110 = sadd.s32 %s109, 1
    %s111 = scalar_select %p108, %s109, %s110
    %p114 = pneg %p108
    %p115 = scmp.eq.s32.totalorder %s10, 3
    %p116 = por %p114, %p115
    %p117 = scmp.ne.s32.totalorder %s109, %s112
    %p118 = scmp.eq.s32.totalorder %s10, 0
    %p119 = por %p117, %p118
    %p120 = scmp.ne.s32.totalorder %s109, %s112
    %p121 = scmp.eq.s32.totalorder %s15, 3
    %p122 = por %p120, %p121
    %p123 = scmp.ne.s32.totalorder %s112, %s113
    %p124 = scmp.eq.s32.totalorder %s15, 0
    %p125 = por %p123, %p124
    %p126 = scmp.ne.s32.totalorder %s112, %s113
    %p127 = scmp.eq.s32.totalorder %s16, 3
    %p128 = por %p126, %p127
    %p130 = scmp.ne.s32.totalorder %s113, %s129
    %p131 = scmp.eq.s32.totalorder %s16, 0
    %p132 = por %p130, %p131
    %p133 = scmp.le.s32.totalorder 1, %s10
    %p134 = scmp.lt.s32.totalorder %s10, 5
    %p135 = pnand %p133, %p134
    %p136 = pneg %p135
    // Predicated region
    $region9: #{_forward.8} parent=5 // pred_check
      _
    $region10: #{_forward.8} parent=5 // pred_check_branch
      %138 = sbr.rel (%p135) target = $region12
    $region11: #{_forward.8} parent=5 // pred_region
      %s139 = ssub.s32 %s10, 1
      // Predicated region
      $region13: #{_forward.8} parent=11 // pred_check
        %p140 = pneg %p69
      $region14: #{_forward.8} parent=11 // pred_check_branch
        %142 = sbr.rel (%p140) target = $region16
      $region15: #{_forward.8} parent=11 // pred_region
        _
      $region16: #{_forward.8} parent=11 // pred_fallthru
        _
    $region12: #{_forward.8} parent=5 // pred_fallthru
      _
    %p143 = scmp.lt.s32.totalorder %s10, 4
    // Predicated region
    $region17: #{_forward.8} parent=5 // pred_check
      %p144 = pneg %p143
    $region18: #{_forward.8} parent=5 // pred_check_branch
      %146 = sbr.rel (%p144) target = $region20
    $region19: #{_forward.8} parent=5 // pred_region
      // Predicated region
      $region21: #{_forward.8} parent=19 // pred_check
        %p147 = pneg %p42
      $region22: #{_forward.8} parent=19 // pred_check_branch
        %149 = sbr.rel (%p147) target = $region24
      $region23: #{_forward.8} parent=19 // pred_region
        %p150 = scmp.lt.s32.totalorder %s17, 1
        %s151 = scalar_select %p150, %s17, 1
        %s152 = smul.addr %s151, 54
        %s153 = smul.addr %s152, 4
        %s154 = scalar_lea.vmem %s0, %s153
      $region24: #{_forward.8} parent=19 // pred_fallthru
        _
    $region20: #{_forward.8} parent=5 // pred_fallthru
      _
    %p155 = scmp.le.s32.totalorder 1, %s10
    %p156 = scmp.lt.s32.totalorder %s10, 5
    %p157 = pnand %p155, %p156
    %p158 = pneg %p157
    // Predicated region
    $region25: #{_forward.8} parent=5 // pred_check
      _
    $region26: #{_forward.8} parent=5 // pred_check_branch
      %160 = sbr.rel (%p157) target = $region28
    $region27: #{_forward.8} parent=5 // pred_region
      %s161 = ssub.s32 %s10, 1
      %p162 = scmp.lt.s32.totalorder %s19, 1
      %s163 = scalar_select %p162, %s19, 1
      %s164 = smul.addr %s163, 54
      %s165 = smul.addr %s164, 4
      %s166 = scalar_lea.vmem %s0, %s165
      %p167 = pneg %p48
      %p168 = pneg %p45
      %p169 = pneg %p69
      %p170 = pneg %p66
      %p171 = pneg %p97
      %p172 = pneg %p94
      %s173 = smul.u32 8, %s20
      %p174 = scmp.lt.s32.totalorder %s19, 1
      %s175 = scalar_select %p174, %s19, 1
      %p176 = scmp.lt.s32.totalorder %s173, 15
      %s177 = scalar_select %p176, %s173, 15
      %s178 = smul.addr %s177, 2
      %s179 = smul.addr %s175, 32
      %s180 = sadd.s32 %s178, %s179
      %s181 = smul.addr %s180, 4
      %s182 = scalar_lea.vmem %s2, %s181
      %p183 = pneg %p125
      %p184 = pneg %p122
      %p185 = scmp.lt.s32.totalorder %s19, 1
      %s186 = scalar_select %p185, %s19, 1
      %p187 = scmp.lt.s32.totalorder %s20, 1
      %s188 = scalar_select %p187, %s20, 1
      %s189 = smul.addr %s186, 2
      %s190 = sadd.s32 %s188, %s189
      %s191 = smul.addr %s190, 8
      %s192 = scalar_lea.vmem %s3, %s191
      %p193 = scmp.lt.s32.totalorder %s19, 1
      %s194 = scalar_select %p193, %s19, 1
      %s195 = smul.addr %s194, 54
      %s196 = smul.addr %s195, 4
      %s197 = scalar_lea.vmem %s0, %s196
      %s198 = smul.u32 8, %s20
      %p199 = scmp.lt.s32.totalorder %s19, 1
      %s200 = scalar_select %p199, %s19, 1
      %p201 = scmp.lt.s32.totalorder %s198, 15
      %s202 = scalar_select %p201, %s198, 15
      %s203 = smul.addr %s202, 2
      %s204 = smul.addr %s200, 32
      %s205 = sadd.s32 %s203, %s204
      %s206 = smul.addr %s205, 4
      %s207 = scalar_lea.vmem %s2, %s206
      %s208 = smul.u32 8, %s20
      %p209 = scmp.lt.s32.totalorder %s19, 1
      %s210 = scalar_select %p209, %s19, 1
      %p211 = scmp.lt.s32.totalorder %s20, 1
      %s212 = scalar_select %p211, %s20, 1
      %s213 = smul.addr %s210, 2
      %s214 = sadd.s32 %s212, %s213
      %s215 = smul.addr %s214, 8
      %s216 = scalar_lea.vmem %s3, %s215
      %s218 = smul.u32 %s20, 8
      %s219 = smul.u32 %s218, 3
      %s220 = smul.addr %s219, 4
      %s221 = scalar_lea.vmem %s197, %s220
      %v222 = vld [vmem:[%s221] sm:$0xf]
      %v223 = vld [vmem:[%s221 + $0x4] sm:$0xf]
      %v224 = vld [vmem:[%s221 + $0xc] sm:$0xf]
      %v225 = vld [vmem:[%s221 + $0x10] sm:$0xf]
      %v226 = vld [vmem:[%s221 + $0x18] sm:$0xf]
      %v227 = vld [vmem:[%s221 + $0x1c] sm:$0xf]
      %v228 = vld [vmem:[%s221 + $0x24] sm:$0xf]
      %v229 = vld [vmem:[%s221 + $0x28] sm:$0xf]
      %v230 = vld [vmem:[%s221 + $0x30] sm:$0xf]
      %v231 = vld [vmem:[%s221 + $0x34] sm:$0xf]
      %v232 = vld [vmem:[%s221 + $0x3c] sm:$0xf]
      %v233 = vld [vmem:[%s221 + $0x40] sm:$0xf]
      %v234 = vld [vmem:[%s221 + $0x48] sm:$0xf]
      %v235 = vld [vmem:[%s221 + $0x4c] sm:$0xf]
      %v236 = vld [vmem:[%s221 + $0x54] sm:$0xf]
      %v237 = vld [vmem:[%s221 + $0x58] sm:$0xf]
      %v238 = vld [vmem:[%s221 + $0x8] sm:$0x1]
      %v239 = vld [vmem:[%s221 + $0x14] sm:$0x1]
      %v240 = vld [vmem:[%s221 + $0x20] sm:$0x1]
      %v241 = vld [vmem:[%s221 + $0x2c] sm:$0x1]
      %v242 = vld [vmem:[%s221 + $0x38] sm:$0x1]
      %v243 = vld [vmem:[%s221 + $0x44] sm:$0x1]
      %v244 = vld [vmem:[%s221 + $0x50] sm:$0x1]
      %v245 = vld [vmem:[%s221 + $0x5c] sm:$0x1]
      %vm246 = vsmask.f32 3328
      %vm247 = vsmask.f32 7440
      %vm248 = vmor %vm246, %vm247
      %v250 = vshrl.u32 %v222, 16
      %v252 = vrot.slane %v250, 4
      %v253 = vshll.u32 %v222, 16
      %v255 = vrot.slane %v253, 5
      %v256 = vor.u32 %v252, %v255
      %v257 = vrot.slane %v256, 4
      %v259 = vshll.u32 %v223, 16
      %v261 = vrot.slane %v259, 5
      %v262 = vsel %vm248, %v257, %v261
      %v263 = vshrl.u32 %v223, 16
      %v265 = vrot.slane %v263, 4
      %v266 = vor.u32 %v265, %v261
      %v267 = vrot.slane %v266, 4
      %v269 = vshll.u32 %v238, 16
      %v271 = vrot.slane %v269, 5
      %v272 = vsel %vm248, %v267, %v271
      %v274 = vshrl.u32 %v224, 16
      %v276 = vrot.slane %v274, 4
      %v277 = vshll.u32 %v224, 16
      %v279 = vrot.slane %v277, 5
      %v280 = vor.u32 %v276, %v279
      %v281 = vrot.slane %v280, 4
      %v283 = vshll.u32 %v225, 16
      %v285 = vrot.slane %v283, 5
      %v286 = vsel %vm248, %v281, %v285
      %v287 = vshrl.u32 %v225, 16
      %v289 = vrot.slane %v287, 4
      %v290 = vor.u32 %v289, %v285
      %v291 = vrot.slane %v290, 4
      %v293 = vshll.u32 %v239, 16
      %v295 = vrot.slane %v293, 5
      %v296 = vsel %vm248, %v291, %v295
      %v298 = vshrl.u32 %v226, 16
      %v300 = vrot.slane %v298, 4
      %v301 = vshll.u32 %v226, 16
      %v303 = vrot.slane %v301, 5
      %v304 = vor.u32 %v300, %v303
      %v305 = vrot.slane %v304, 4
      %v307 = vshll.u32 %v227, 16
      %v309 = vrot.slane %v307, 5
      %v310 = vsel %vm248, %v305, %v309
      %v311 = vshrl.u32 %v227, 16
      %v313 = vrot.slane %v311, 4
      %v314 = vor.u32 %v313, %v309
      %v315 = vrot.slane %v314, 4
      %v317 = vshll.u32 %v240, 16
      %v319 = vrot.slane %v317, 5
      %v320 = vsel %vm248, %v315, %v319
      %v322 = vshrl.u32 %v228, 16
      %v324 = vrot.slane %v322, 4
      %v325 = vshll.u32 %v228, 16
      %v327 = vrot.slane %v325, 5
      %v328 = vor.u32 %v324, %v327
      %v329 = vrot.slane %v328, 4
      %v331 = vshll.u32 %v229, 16
      %v333 = vrot.slane %v331, 5
      %v334 = vsel %vm248, %v329, %v333
      %v335 = vshrl.u32 %v229, 16
      %v337 = vrot.slane %v335, 4
      %v338 = vor.u32 %v337, %v333
      %v339 = vrot.slane %v338, 4
      %v341 = vshll.u32 %v241, 16
      %v343 = vrot.slane %v341, 5
      %v344 = vsel %vm248, %v339, %v343
      %v346 = vshrl.u32 %v230, 16
      %v348 = vrot.slane %v346, 4
      %v349 = vshll.u32 %v230, 16
      %v351 = vrot.slane %v349, 5
      %v352 = vor.u32 %v348, %v351
      %v353 = vrot.slane %v352, 4
      %v355 = vshll.u32 %v231, 16
      %v357 = vrot.slane %v355, 5
      %v358 = vsel %vm248, %v353, %v357
      %v359 = vshrl.u32 %v231, 16
      %v361 = vrot.slane %v359, 4
      %v362 = vor.u32 %v361, %v357
      %v363 = vrot.slane %v362, 4
      %v365 = vshll.u32 %v242, 16
      %v367 = vrot.slane %v365, 5
      %v368 = vsel %vm248, %v363, %v367
      %v370 = vshrl.u32 %v232, 16
      %v372 = vrot.slane %v370, 4
      %v373 = vshll.u32 %v232, 16
      %v375 = vrot.slane %v373, 5
      %v376 = vor.u32 %v372, %v375
      %v377 = vrot.slane %v376, 4
      %v379 = vshll.u32 %v233, 16
      %v381 = vrot.slane %v379, 5
      %v382 = vsel %vm248, %v377, %v381
      %v383 = vshrl.u32 %v233, 16
      %v385 = vrot.slane %v383, 4
      %v386 = vor.u32 %v385, %v381
      %v387 = vrot.slane %v386, 4
      %v389 = vshll.u32 %v243, 16
      %v391 = vrot.slane %v389, 5
      %v392 = vsel %vm248, %v387, %v391
      %v394 = vshrl.u32 %v234, 16
      %v396 = vrot.slane %v394, 4
      %v397 = vshll.u32 %v234, 16
      %v399 = vrot.slane %v397, 5
      %v400 = vor.u32 %v396, %v399
      %v401 = vrot.slane %v400, 4
      %v403 = vshll.u32 %v235, 16
      %v405 = vrot.slane %v403, 5
      %v406 = vsel %vm248, %v401, %v405
      %v407 = vshrl.u32 %v235, 16
      %v409 = vrot.slane %v407, 4
      %v410 = vor.u32 %v409, %v405
      %v411 = vrot.slane %v410, 4
      %v413 = vshll.u32 %v244, 16
      %v415 = vrot.slane %v413, 5
      %v416 = vsel %vm248, %v411, %v415
      %v418 = vshrl.u32 %v236, 16
      %v420 = vrot.slane %v418, 4
      %v421 = vshll.u32 %v236, 16
      %v423 = vrot.slane %v421, 5
      %v424 = vor.u32 %v420, %v423
      %v425 = vrot.slane %v424, 4
      %v427 = vshll.u32 %v237, 16
      %v429 = vrot.slane %v427, 5
      %v430 = vsel %vm248, %v425, %v429
      %v431 = vshrl.u32 %v237, 16
      %v433 = vrot.slane %v431, 4
      %v434 = vor.u32 %v433, %v429
      %v435 = vrot.slane %v434, 4
      %v437 = vshll.u32 %v245, 16
      %v439 = vrot.slane %v437, 5
      %v440 = vsel %vm248, %v435, %v439
      %v441 = vld [vmem:[%s221] sm:$0xe]
      %v442 = vld [vmem:[%s221 + $0xc] sm:$0xe]
      %v443 = vld [vmem:[%s221 + $0x18] sm:$0xe]
      %v444 = vld [vmem:[%s221 + $0x24] sm:$0xe]
      %v445 = vld [vmem:[%s221 + $0x30] sm:$0xe]
      %v446 = vld [vmem:[%s221 + $0x3c] sm:$0xe]
      %v447 = vld [vmem:[%s221 + $0x48] sm:$0xe]
      %v448 = vld [vmem:[%s221 + $0x54] sm:$0xe]
      %vm473 = vcmask 1042432
      %vm474 = vcmask 1046532
      %vm475 = vmor %vm473, %vm474
      %v476 = vrot.slane %v441, 5
      %v477 = vrot.slane %v476, 4
      %v478 = vrot.slane %v223, 5
      %v479 = vsel %vm475, %v477, %v478
      %v480 = vrot.slane %v478, 4
      %v481 = vrot.slane %v238, 5
      %v482 = vsel %vm475, %v480, %v481
      %v483 = vrot.slane %v442, 5
      %v484 = vrot.slane %v483, 4
      %v485 = vrot.slane %v225, 5
      %v486 = vsel %vm475, %v484, %v485
      %v487 = vrot.slane %v485, 4
      %v488 = vrot.slane %v239, 5
      %v489 = vsel %vm475, %v487, %v488
      %v490 = vrot.slane %v443, 5
      %v491 = vrot.slane %v490, 4
      %v492 = vrot.slane %v227, 5
      %v493 = vsel %vm475, %v491, %v492
      %v494 = vrot.slane %v492, 4
      %v495 = vrot.slane %v240, 5
      %v496 = vsel %vm475, %v494, %v495
      %v497 = vrot.slane %v444, 5
      %v498 = vrot.slane %v497, 4
      %v499 = vrot.slane %v229, 5
      %v500 = vsel %vm475, %v498, %v499
      %v501 = vrot.slane %v499, 4
      %v502 = vrot.slane %v241, 5
      %v503 = vsel %vm475, %v501, %v502
      %v504 = vrot.slane %v445, 5
      %v505 = vrot.slane %v504, 4
      %v506 = vrot.slane %v231, 5
      %v507 = vsel %vm475, %v505, %v506
      %v508 = vrot.slane %v506, 4
      %v509 = vrot.slane %v242, 5
      %v510 = vsel %vm475, %v508, %v509
      %v511 = vrot.slane %v446, 5
      %v512 = vrot.slane %v511, 4
      %v513 = vrot.slane %v233, 5
      %v514 = vsel %vm475, %v512, %v513
      %v515 = vrot.slane %v513, 4
      %v516 = vrot.slane %v243, 5
      %v517 = vsel %vm475, %v515, %v516
      %v518 = vrot.slane %v447, 5
      %v519 = vrot.slane %v518, 4
      %v520 = vrot.slane %v235, 5
      %v521 = vsel %vm475, %v519, %v520
      %v522 = vrot.slane %v520, 4
      %v523 = vrot.slane %v244, 5
      %v524 = vsel %vm475, %v522, %v523
      %v525 = vrot.slane %v448, 5
      %v526 = vrot.slane %v525, 4
      %v527 = vrot.slane %v237, 5
      %v528 = vsel %vm475, %v526, %v527
      %v529 = vrot.slane %v527, 4
      %v530 = vrot.slane %v245, 5
      %v531 = vsel %vm475, %v529, %v530
      %s532 = sadd.s32 %s218, 1
      %s533 = smul.u32 %s532, 3
      %s534 = smul.addr %s533, 4
      %s535 = scalar_lea.vmem %s197, %s534
      %v536 = vld [vmem:[%s535] sm:$0xf]
      %v537 = vld [vmem:[%s535 + $0x4] sm:$0xf]
      %v538 = vld [vmem:[%s535 + $0xc] sm:$0xf]
      %v539 = vld [vmem:[%s535 + $0x10] sm:$0xf]
      %v540 = vld [vmem:[%s535 + $0x18] sm:$0xf]
      %v541 = vld [vmem:[%s535 + $0x1c] sm:$0xf]
      %v542 = vld [vmem:[%s535 + $0x24] sm:$0xf]
      %v543 = vld [vmem:[%s535 + $0x28] sm:$0xf]
      %v544 = vld [vmem:[%s535 + $0x30] sm:$0xf]
      %v545 = vld [vmem:[%s535 + $0x34] sm:$0xf]
      %v546 = vld [vmem:[%s535 + $0x3c] sm:$0xf]
      %v547 = vld [vmem:[%s535 + $0x40] sm:$0xf]
      %v548 = vld [vmem:[%s535 + $0x48] sm:$0xf]
      %v549 = vld [vmem:[%s535 + $0x4c] sm:$0xf]
      %v550 = vld [vmem:[%s535 + $0x54] sm:$0xf]
      %v551 = vld [vmem:[%s535 + $0x58] sm:$0xf]
      %v552 = vld [vmem:[%s535 + $0x8] sm:$0x1]
      %v553 = vld [vmem:[%s535 + $0x14] sm:$0x1]
      %v554 = vld [vmem:[%s535 + $0x20] sm:$0x1]
      %v555 = vld [vmem:[%s535 + $0x2c] sm:$0x1]
      %v556 = vld [vmem:[%s535 + $0x38] sm:$0x1]
      %v557 = vld [vmem:[%s535 + $0x44] sm:$0x1]
      %v558 = vld [vmem:[%s535 + $0x50] sm:$0x1]
      %v559 = vld [vmem:[%s535 + $0x5c] sm:$0x1]
      %v561 = vshrl.u32 %v536, 16
      %v563 = vrot.slane %v561, 4
      %v564 = vshll.u32 %v536, 16
      %v566 = vrot.slane %v564, 5
      %v567 = vor.u32 %v563, %v566
      %v568 = vrot.slane %v567, 4
      %v570 = vshll.u32 %v537, 16
      %v572 = vrot.slane %v570, 5
      %v573 = vsel %vm248, %v568, %v572
      %v574 = vshrl.u32 %v537, 16
      %v576 = vrot.slane %v574, 4
      %v577 = vor.u32 %v576, %v572
      %v578 = vrot.slane %v577, 4
      %v580 = vshll.u32 %v552, 16
      %v582 = vrot.slane %v580, 5
      %v583 = vsel %vm248, %v578, %v582
      %v585 = vshrl.u32 %v538, 16
      %v587 = vrot.slane %v585, 4
      %v588 = vshll.u32 %v538, 16
      %v590 = vrot.slane %v588, 5
      %v591 = vor.u32 %v587, %v590
      %v592 = vrot.slane %v591, 4
      %v594 = vshll.u32 %v539, 16
      %v596 = vrot.slane %v594, 5
      %v597 = vsel %vm248, %v592, %v596
      %v598 = vshrl.u32 %v539, 16
      %v600 = vrot.slane %v598, 4
      %v601 = vor.u32 %v600, %v596
      %v602 = vrot.slane %v601, 4
      %v604 = vshll.u32 %v553, 16
      %v606 = vrot.slane %v604, 5
      %v607 = vsel %vm248, %v602, %v606
      %v609 = vshrl.u32 %v540, 16
      %v611 = vrot.slane %v609, 4
      %v612 = vshll.u32 %v540, 16
      %v614 = vrot.slane %v612, 5
      %v615 = vor.u32 %v611, %v614
      %v616 = vrot.slane %v615, 4
      %v618 = vshll.u32 %v541, 16
      %v620 = vrot.slane %v618, 5
      %v621 = vsel %vm248, %v616, %v620
      %v622 = vshrl.u32 %v541, 16
      %v624 = vrot.slane %v622, 4
      %v625 = vor.u32 %v624, %v620
      %v626 = vrot.slane %v625, 4
      %v628 = vshll.u32 %v554, 16
      %v630 = vrot.slane %v628, 5
      %v631 = vsel %vm248, %v626, %v630
      %v633 = vshrl.u32 %v542, 16
      %v635 = vrot.slane %v633, 4
      %v636 = vshll.u32 %v542, 16
      %v638 = vrot.slane %v636, 5
      %v639 = vor.u32 %v635, %v638
      %v640 = vrot.slane %v639, 4
      %v642 = vshll.u32 %v543, 16
      %v644 = vrot.slane %v642, 5
      %v645 = vsel %vm248, %v640, %v644
      %v646 = vshrl.u32 %v543, 16
      %v648 = vrot.slane %v646, 4
      %v649 = vor.u32 %v648, %v644
      %v650 = vrot.slane %v649, 4
      %v652 = vshll.u32 %v555, 16
      %v654 = vrot.slane %v652, 5
      %v655 = vsel %vm248, %v650, %v654
      %v657 = vshrl.u32 %v544, 16
      %v659 = vrot.slane %v657, 4
      %v660 = vshll.u32 %v544, 16
      %v662 = vrot.slane %v660, 5
      %v663 = vor.u32 %v659, %v662
      %v664 = vrot.slane %v663, 4
      %v666 = vshll.u32 %v545, 16
      %v668 = vrot.slane %v666, 5
      %v669 = vsel %vm248, %v664, %v668
      %v670 = vshrl.u32 %v545, 16
      %v672 = vrot.slane %v670, 4
      %v673 = vor.u32 %v672, %v668
      %v674 = vrot.slane %v673, 4
      %v676 = vshll.u32 %v556, 16
      %v678 = vrot.slane %v676, 5
      %v679 = vsel %vm248, %v674, %v678
      %v681 = vshrl.u32 %v546, 16
      %v683 = vrot.slane %v681, 4
      %v684 = vshll.u32 %v546, 16
      %v686 = vrot.slane %v684, 5
      %v687 = vor.u32 %v683, %v686
      %v688 = vrot.slane %v687, 4
      %v690 = vshll.u32 %v547, 16
      %v692 = vrot.slane %v690, 5
      %v693 = vsel %vm248, %v688, %v692
      %v694 = vshrl.u32 %v547, 16
      %v696 = vrot.slane %v694, 4
      %v697 = vor.u32 %v696, %v692
      %v698 = vrot.slane %v697, 4
      %v700 = vshll.u32 %v557, 16
      %v702 = vrot.slane %v700, 5
      %v703 = vsel %vm248, %v698, %v702
      %v705 = vshrl.u32 %v548, 16
      %v707 = vrot.slane %v705, 4
      %v708 = vshll.u32 %v548, 16
      %v710 = vrot.slane %v708, 5
      %v711 = vor.u32 %v707, %v710
      %v712 = vrot.slane %v711, 4
      %v714 = vshll.u32 %v549, 16
      %v716 = vrot.slane %v714, 5
      %v717 = vsel %vm248, %v712, %v716
      %v718 = vshrl.u32 %v549, 16
      %v720 = vrot.slane %v718, 4
      %v721 = vor.u32 %v720, %v716
      %v722 = vrot.slane %v721, 4
      %v724 = vshll.u32 %v558, 16
      %v726 = vrot.slane %v724, 5
      %v727 = vsel %vm248, %v722, %v726
      %v729 = vshrl.u32 %v550, 16
      %v731 = vrot.slane %v729, 4
      %v732 = vshll.u32 %v550, 16
      %v734 = vrot.slane %v732, 5
      %v735 = vor.u32 %v731, %v734
      %v736 = vrot.slane %v735, 4
      %v738 = vshll.u32 %v551, 16
      %v740 = vrot.slane %v738, 5
      %v741 = vsel %vm248, %v736, %v740
      %v742 = vshrl.u32 %v551, 16
      %v744 = vrot.slane %v742, 4
      %v745 = vor.u32 %v744, %v740
      %v746 = vrot.slane %v745, 4
      %v748 = vshll.u32 %v559, 16
      %v750 = vrot.slane %v748, 5
      %v751 = vsel %vm248, %v746, %v750
      %v752 = vld [vmem:[%s535] sm:$0xe]
      %v753 = vld [vmem:[%s535 + $0xc] sm:$0xe]
      %v754 = vld [vmem:[%s535 + $0x18] sm:$0xe]
      %v755 = vld [vmem:[%s535 + $0x24] sm:$0xe]
      %v756 = vld [vmem:[%s535 + $0x30] sm:$0xe]
      %v757 = vld [vmem:[%s535 + $0x3c] sm:$0xe]
      %v758 = vld [vmem:[%s535 + $0x48] sm:$0xe]
      %v759 = vld [vmem:[%s535 + $0x54] sm:$0xe]
      %v784 = vrot.slane %v752, 5
      %v785 = vrot.slane %v784, 4
      %v786 = vrot.slane %v537, 5
      %v787 = vsel %vm475, %v785, %v786
      %v788 = vrot.slane %v786, 4
      %v789 = vrot.slane %v552, 5
      %v790 = vsel %vm475, %v788, %v789
      %v791 = vrot.slane %v753, 5
      %v792 = vrot.slane %v791, 4
      %v793 = vrot.slane %v539, 5
      %v794 = vsel %vm475, %v792, %v793
      %v795 = vrot.slane %v793, 4
      %v796 = vrot.slane %v553, 5
      %v797 = vsel %vm475, %v795, %v796
      %v798 = vrot.slane %v754, 5
      %v799 = vrot.slane %v798, 4
      %v800 = vrot.slane %v541, 5
      %v801 = vsel %vm475, %v799, %v800
      %v802 = vrot.slane %v800, 4
      %v803 = vrot.slane %v554, 5
      %v804 = vsel %vm475, %v802, %v803
      %v805 = vrot.slane %v755, 5
      %v806 = vrot.slane %v805, 4
      %v807 = vrot.slane %v543, 5
      %v808 = vsel %vm475, %v806, %v807
      %v809 = vrot.slane %v807, 4
      %v810 = vrot.slane %v555, 5
      %v811 = vsel %vm475, %v809, %v810
      %v812 = vrot.slane %v756, 5
      %v813 = vrot.slane %v812, 4
      %v814 = vrot.slane %v545, 5
      %v815 = vsel %vm475, %v813, %v814
      %v816 = vrot.slane %v814, 4
      %v817 = vrot.slane %v556, 5
      %v818 = vsel %vm475, %v816, %v817
      %v819 = vrot.slane %v757, 5
      %v820 = vrot.slane %v819, 4
      %v821 = vrot.slane %v547, 5
      %v822 = vsel %vm475, %v820, %v821
      %v823 = vrot.slane %v821, 4
      %v824 = vrot.slane %v557, 5
      %v825 = vsel %vm475, %v823, %v824
      %v826 = vrot.slane %v758, 5
      %v827 = vrot.slane %v826, 4
      %v828 = vrot.slane %v549, 5
      %v829 = vsel %vm475, %v827, %v828
      %v830 = vrot.slane %v828, 4
      %v831 = vrot.slane %v558, 5
      %v832 = vsel %vm475, %v830, %v831
      %v833 = vrot.slane %v759, 5
      %v834 = vrot.slane %v833, 4
      %v835 = vrot.slane %v551, 5
      %v836 = vsel %vm475, %v834, %v835
      %v837 = vrot.slane %v835, 4
      %v838 = vrot.slane %v559, 5
      %v839 = vsel %vm475, %v837, %v838
      %s840 = sadd.s32 %s218, 2
      %s841 = smul.u32 %s840, 3
      %s842 = smul.addr %s841, 4
      %s843 = scalar_lea.vmem %s197, %s842
      %v844 = vld [vmem:[%s843] sm:$0xf]
      %v845 = vld [vmem:[%s843 + $0x4] sm:$0xf]
      %v846 = vld [vmem:[%s843 + $0xc] sm:$0xf]
      %v847 = vld [vmem:[%s843 + $0x10] sm:$0xf]
      %v848 = vld [vmem:[%s843 + $0x18] sm:$0xf]
      %v849 = vld [vmem:[%s843 + $0x1c] sm:$0xf]
      %v850 = vld [vmem:[%s843 + $0x24] sm:$0xf]
      %v851 = vld [vmem:[%s843 + $0x28] sm:$0xf]
      %v852 = vld [vmem:[%s843 + $0x30] sm:$0xf]
      %v853 = vld [vmem:[%s843 + $0x34] sm:$0xf]
      %v854 = vld [vmem:[%s843 + $0x3c] sm:$0xf]
      %v855 = vld [vmem:[%s843 + $0x40] sm:$0xf]
      %v856 = vld [vmem:[%s843 + $0x48] sm:$0xf]
      %v857 = vld [vmem:[%s843 + $0x4c] sm:$0xf]
      %v858 = vld [vmem:[%s843 + $0x54] sm:$0xf]
      %v859 = vld [vmem:[%s843 + $0x58] sm:$0xf]
      %v860 = vld [vmem:[%s843 + $0x8] sm:$0x1]
      %v861 = vld [vmem:[%s843 + $0x14] sm:$0x1]
      %v862 = vld [vmem:[%s843 + $0x20] sm:$0x1]
      %v863 = vld [vmem:[%s843 + $0x2c] sm:$0x1]
      %v864 = vld [vmem:[%s843 + $0x38] sm:$0x1]
      %v865 = vld [vmem:[%s843 + $0x44] sm:$0x1]
      %v866 = vld [vmem:[%s843 + $0x50] sm:$0x1]
      %v867 = vld [vmem:[%s843 + $0x5c] sm:$0x1]
      %v869 = vshrl.u32 %v844, 16
      %v871 = vrot.slane %v869, 4
      %v872 = vshll.u32 %v844, 16
      %v874 = vrot.slane %v872, 5
      %v875 = vor.u32 %v871, %v874
      %v876 = vrot.slane %v875, 4
      %v878 = vshll.u32 %v845, 16
      %v880 = vrot.slane %v878, 5
      %v881 = vsel %vm248, %v876, %v880
      %v882 = vshrl.u32 %v845, 16
      %v884 = vrot.slane %v882, 4
      %v885 = vor.u32 %v884, %v880
      %v886 = vrot.slane %v885, 4
      %v888 = vshll.u32 %v860, 16
      %v890 = vrot.slane %v888, 5
      %v891 = vsel %vm248, %v886, %v890
      %v893 = vshrl.u32 %v846, 16
      %v895 = vrot.slane %v893, 4
      %v896 = vshll.u32 %v846, 16
      %v898 = vrot.slane %v896, 5
      %v899 = vor.u32 %v895, %v898
      %v900 = vrot.slane %v899, 4
      %v902 = vshll.u32 %v847, 16
      %v904 = vrot.slane %v902, 5
      %v905 = vsel %vm248, %v900, %v904
      %v906 = vshrl.u32 %v847, 16
      %v908 = vrot.slane %v906, 4
      %v909 = vor.u32 %v908, %v904
      %v910 = vrot.slane %v909, 4
      %v912 = vshll.u32 %v861, 16
      %v914 = vrot.slane %v912, 5
      %v915 = vsel %vm248, %v910, %v914
      %v917 = vshrl.u32 %v848, 16
      %v919 = vrot.slane %v917, 4
      %v920 = vshll.u32 %v848, 16
      %v922 = vrot.slane %v920, 5
      %v923 = vor.u32 %v919, %v922
      %v924 = vrot.slane %v923, 4
      %v926 = vshll.u32 %v849, 16
      %v928 = vrot.slane %v926, 5
      %v929 = vsel %vm248, %v924, %v928
      %v930 = vshrl.u32 %v849, 16
      %v932 = vrot.slane %v930, 4
      %v933 = vor.u32 %v932, %v928
      %v934 = vrot.slane %v933, 4
      %v936 = vshll.u32 %v862, 16
      %v938 = vrot.slane %v936, 5
      %v939 = vsel %vm248, %v934, %v938
      %v941 = vshrl.u32 %v850, 16
      %v943 = vrot.slane %v941, 4
      %v944 = vshll.u32 %v850, 16
      %v946 = vrot.slane %v944, 5
      %v947 = vor.u32 %v943, %v946
      %v948 = vrot.slane %v947, 4
      %v950 = vshll.u32 %v851, 16
      %v952 = vrot.slane %v950, 5
      %v953 = vsel %vm248, %v948, %v952
      %v954 = vshrl.u32 %v851, 16
      %v956 = vrot.slane %v954, 4
      %v957 = vor.u32 %v956, %v952
      %v958 = vrot.slane %v957, 4
      %v960 = vshll.u32 %v863, 16
      %v962 = vrot.slane %v960, 5
      %v963 = vsel %vm248, %v958, %v962
      %v965 = vshrl.u32 %v852, 16
      %v967 = vrot.slane %v965, 4
      %v968 = vshll.u32 %v852, 16
      %v970 = vrot.slane %v968, 5
      %v971 = vor.u32 %v967, %v970
      %v972 = vrot.slane %v971, 4
      %v974 = vshll.u32 %v853, 16
      %v976 = vrot.slane %v974, 5
      %v977 = vsel %vm248, %v972, %v976
      %v978 = vshrl.u32 %v853, 16
      %v980 = vrot.slane %v978, 4
      %v981 = vor.u32 %v980, %v976
      %v982 = vrot.slane %v981, 4
      %v984 = vshll.u32 %v864, 16
      %v986 = vrot.slane %v984, 5
      %v987 = vsel %vm248, %v982, %v986
      %v989 = vshrl.u32 %v854, 16
      %v991 = vrot.slane %v989, 4
      %v992 = vshll.u32 %v854, 16
      %v994 = vrot.slane %v992, 5
      %v995 = vor.u32 %v991, %v994
      %v996 = vrot.slane %v995, 4
      %v998 = vshll.u32 %v855, 16
      %v1000 = vrot.slane %v998, 5
      %v1001 = vsel %vm248, %v996, %v1000
      %v1002 = vshrl.u32 %v855, 16
      %v1004 = vrot.slane %v1002, 4
      %v1005 = vor.u32 %v1004, %v1000
      %v1006 = vrot.slane %v1005, 4
      %v1008 = vshll.u32 %v865, 16
      %v1010 = vrot.slane %v1008, 5
      %v1011 = vsel %vm248, %v1006, %v1010
      %v1013 = vshrl.u32 %v856, 16
      %v1015 = vrot.slane %v1013, 4
      %v1016 = vshll.u32 %v856, 16
      %v1018 = vrot.slane %v1016, 5
      %v1019 = vor.u32 %v1015, %v1018
      %v1020 = vrot.slane %v1019, 4
      %v1022 = vshll.u32 %v857, 16
      %v1024 = vrot.slane %v1022, 5
      %v1025 = vsel %vm248, %v1020, %v1024
      %v1026 = vshrl.u32 %v857, 16
      %v1028 = vrot.slane %v1026, 4
      %v1029 = vor.u32 %v1028, %v1024
      %v1030 = vrot.slane %v1029, 4
      %v1032 = vshll.u32 %v866, 16
      %v1034 = vrot.slane %v1032, 5
      %v1035 = vsel %vm248, %v1030, %v1034
      %v1037 = vshrl.u32 %v858, 16
      %v1039 = vrot.slane %v1037, 4
      %v1040 = vshll.u32 %v858, 16
      %v1042 = vrot.slane %v1040, 5
      %v1043 = vor.u32 %v1039, %v1042
      %v1044 = vrot.slane %v1043, 4
      %v1046 = vshll.u32 %v859, 16
      %v1048 = vrot.slane %v1046, 5
      %v1049 = vsel %vm248, %v1044, %v1048
      %v1050 = vshrl.u32 %v859, 16
      %v1052 = vrot.slane %v1050, 4
      %v1053 = vor.u32 %v1052, %v1048
      %v1054 = vrot.slane %v1053, 4
      %v1056 = vshll.u32 %v867, 16
      %v1058 = vrot.slane %v1056, 5
      %v1059 = vsel %vm248, %v1054, %v1058
      %v1060 = vld [vmem:[%s843] sm:$0xe]
      %v1061 = vld [vmem:[%s843 + $0xc] sm:$0xe]
      %v1062 = vld [vmem:[%s843 + $0x18] sm:$0xe]
      %v1063 = vld [vmem:[%s843 + $0x24] sm:$0xe]
      %v1064 = vld [vmem:[%s843 + $0x30] sm:$0xe]
      %v1065 = vld [vmem:[%s843 + $0x3c] sm:$0xe]
      %v1066 = vld [vmem:[%s843 + $0x48] sm:$0xe]
      %v1067 = vld [vmem:[%s843 + $0x54] sm:$0xe]
      %v1092 = vrot.slane %v1060, 5
      %v1093 = vrot.slane %v1092, 4
      %v1094 = vrot.slane %v845, 5
      %v1095 = vsel %vm475, %v1093, %v1094
      %v1096 = vrot.slane %v1094, 4
      %v1097 = vrot.slane %v860, 5
      %v1098 = vsel %vm475, %v1096, %v1097
      %v1099 = vrot.slane %v1061, 5
      %v1100 = vrot.slane %v1099, 4
      %v1101 = vrot.slane %v847, 5
      %v1102 = vsel %vm475, %v1100, %v1101
      %v1103 = vrot.slane %v1101, 4
      %v1104 = vrot.slane %v861, 5
      %v1105 = vsel %vm475, %v1103, %v1104
      %v1106 = vrot.slane %v1062, 5
      %v1107 = vrot.slane %v1106, 4
      %v1108 = vrot.slane %v849, 5
      %v1109 = vsel %vm475, %v1107, %v1108
      %v1110 = vrot.slane %v1108, 4
      %v1111 = vrot.slane %v862, 5
      %v1112 = vsel %vm475, %v1110, %v1111
      %v1113 = vrot.slane %v1063, 5
      %v1114 = vrot.slane %v1113, 4
      %v1115 = vrot.slane %v851, 5
      %v1116 = vsel %vm475, %v1114, %v1115
      %v1117 = vrot.slane %v1115, 4
      %v1118 = vrot.slane %v863, 5
      %v1119 = vsel %vm475, %v1117, %v1118
      %v1120 = vrot.slane %v1064, 5
      %v1121 = vrot.slane %v1120, 4
      %v1122 = vrot.slane %v853, 5
      %v1123 = vsel %vm475, %v1121, %v1122
      %v1124 = vrot.slane %v1122, 4
      %v1125 = vrot.slane %v864, 5
      %v1126 = vsel %vm475, %v1124, %v1125
      %v1127 = vrot.slane %v1065, 5
      %v1128 = vrot.slane %v1127, 4
      %v1129 = vrot.slane %v855, 5
      %v1130 = vsel %vm475, %v1128, %v1129
      %v1131 = vrot.slane %v1129, 4
      %v1132 = vrot.slane %v865, 5
      %v1133 = vsel %vm475, %v1131, %v1132
      %v1134 = vrot.slane %v1066, 5
      %v1135 = vrot.slane %v1134, 4
      %v1136 = vrot.slane %v857, 5
      %v1137 = vsel %vm475, %v1135, %v1136
      %v1138 = vrot.slane %v1136, 4
      %v1139 = vrot.slane %v866, 5
      %v1140 = vsel %vm475, %v1138, %v1139
      %v1141 = vrot.slane %v1067, 5
      %v1142 = vrot.slane %v1141, 4
      %v1143 = vrot.slane %v859, 5
      %v1144 = vsel %vm475, %v1142, %v1143
      %v1145 = vrot.slane %v1143, 4
      %v1146 = vrot.slane %v867, 5
      %v1147 = vsel %vm475, %v1145, %v1146
      %v1156 = vunpack.c.l.b16 %v222
      %v1157 = vunpack.c.l.b16 %v223
      %v1158 = vunpack.c.l.b16 %v224
      %v1159 = vunpack.c.l.b16 %v225
      %v1160 = vunpack.c.l.b16 %v226
      %v1161 = vunpack.c.l.b16 %v227
      %v1162 = vunpack.c.l.b16 %v228
      %v1163 = vunpack.c.l.b16 %v229
      %v1164 = vunpack.c.l.b16 %v230
      %v1165 = vunpack.c.l.b16 %v231
      %v1166 = vunpack.c.l.b16 %v232
      %v1167 = vunpack.c.l.b16 %v233
      %v1168 = vunpack.c.l.b16 %v234
      %v1169 = vunpack.c.l.b16 %v235
      %v1170 = vunpack.c.l.b16 %v236
      %v1171 = vunpack.c.l.b16 %v237
      %v1172 = vpack.c.b16 %v1157, %v1156
      %v1173 = vpack.c.b16 %v1159, %v1158
      %v1174 = vpack.c.b16 %v1161, %v1160
      %v1175 = vpack.c.b16 %v1163, %v1162
      %v1176 = vpack.c.b16 %v1165, %v1164
      %v1177 = vpack.c.b16 %v1167, %v1166
      %v1178 = vpack.c.b16 %v1169, %v1168
      %v1179 = vpack.c.b16 %v1171, %v1170
      %v1180 = vunpack.c.l.b16 %v262
      %v1181 = vunpack.c.l.b16 %v272
      %v1182 = vunpack.c.l.b16 %v286
      %v1183 = vunpack.c.l.b16 %v296
      %v1184 = vunpack.c.l.b16 %v310
      %v1185 = vunpack.c.l.b16 %v320
      %v1186 = vunpack.c.l.b16 %v334
      %v1187 = vunpack.c.l.b16 %v344
      %v1188 = vunpack.c.l.b16 %v358
      %v1189 = vunpack.c.l.b16 %v368
      %v1190 = vunpack.c.l.b16 %v382
      %v1191 = vunpack.c.l.b16 %v392
      %v1192 = vunpack.c.l.b16 %v406
      %v1193 = vunpack.c.l.b16 %v416
      %v1194 = vunpack.c.l.b16 %v430
      %v1195 = vunpack.c.l.b16 %v440
      %v1196 = vpack.c.b16 %v1181, %v1180
      %v1197 = vpack.c.b16 %v1183, %v1182
      %v1198 = vpack.c.b16 %v1185, %v1184
      %v1199 = vpack.c.b16 %v1187, %v1186
      %v1200 = vpack.c.b16 %v1189, %v1188
      %v1201 = vpack.c.b16 %v1191, %v1190
      %v1202 = vpack.c.b16 %v1193, %v1192
      %v1203 = vpack.c.b16 %v1195, %v1194
      %1204 = vrot.lane.b32.xlu0 %v1196, 8
      %v1205 = vpop.permute.xlu0 %1204
      %1206 = vrot.lane.b32.xlu0 %v1197, 8
      %v1207 = vpop.permute.xlu0 %1206
      %1208 = vrot.lane.b32.xlu0 %v1198, 8
      %v1209 = vpop.permute.xlu0 %1208
      %1210 = vrot.lane.b32.xlu0 %v1199, 8
      %v1211 = vpop.permute.xlu0 %1210
      %1212 = vrot.lane.b32.xlu0 %v1200, 8
      %v1213 = vpop.permute.xlu0 %1212
      %1214 = vrot.lane.b32.xlu0 %v1201, 8
      %v1215 = vpop.permute.xlu0 %1214
      %1216 = vrot.lane.b32.xlu0 %v1202, 8
      %v1217 = vpop.permute.xlu0 %1216
      %1218 = vrot.lane.b32.xlu0 %v1203, 8
      %v1219 = vpop.permute.xlu0 %1218
      %v1220 = vunpack.c.l.b16 %v479
      %v1221 = vunpack.c.l.b16 %v482
      %v1222 = vunpack.c.l.b16 %v486
      %v1223 = vunpack.c.l.b16 %v489
      %v1224 = vunpack.c.l.b16 %v493
      %v1225 = vunpack.c.l.b16 %v496
      %v1226 = vunpack.c.l.b16 %v500
      %v1227 = vunpack.c.l.b16 %v503
      %v1228 = vunpack.c.l.b16 %v507
      %v1229 = vunpack.c.l.b16 %v510
      %v1230 = vunpack.c.l.b16 %v514
      %v1231 = vunpack.c.l.b16 %v517
      %v1232 = vunpack.c.l.b16 %v521
      %v1233 = vunpack.c.l.b16 %v524
      %v1234 = vunpack.c.l.b16 %v528
      %v1235 = vunpack.c.l.b16 %v531
      %v1236 = vpack.c.b16 %v1221, %v1220
      %v1237 = vpack.c.b16 %v1223, %v1222
      %v1238 = vpack.c.b16 %v1225, %v1224
      %v1239 = vpack.c.b16 %v1227, %v1226
      %v1240 = vpack.c.b16 %v1229, %v1228
      %v1241 = vpack.c.b16 %v1231, %v1230
      %v1242 = vpack.c.b16 %v1233, %v1232
      %v1243 = vpack.c.b16 %v1235, %v1234
      %1244 = vrot.lane.b32.xlu0 %v1236, 16
      %v1245 = vpop.permute.xlu0 %1244
      %1246 = vrot.lane.b32.xlu0 %v1237, 16
      %v1247 = vpop.permute.xlu0 %1246
      %1248 = vrot.lane.b32.xlu0 %v1238, 16
      %v1249 = vpop.permute.xlu0 %1248
      %1250 = vrot.lane.b32.xlu0 %v1239, 16
      %v1251 = vpop.permute.xlu0 %1250
      %1252 = vrot.lane.b32.xlu0 %v1240, 16
      %v1253 = vpop.permute.xlu0 %1252
      %1254 = vrot.lane.b32.xlu0 %v1241, 16
      %v1255 = vpop.permute.xlu0 %1254
      %1256 = vrot.lane.b32.xlu0 %v1242, 16
      %v1257 = vpop.permute.xlu0 %1256
      %1258 = vrot.lane.b32.xlu0 %v1243, 16
      %v1259 = vpop.permute.xlu0 %1258
      %v1268 = vunpack.c.l.b16 %v536
      %v1269 = vunpack.c.l.b16 %v537
      %v1270 = vunpack.c.l.b16 %v538
      %v1271 = vunpack.c.l.b16 %v539
      %v1272 = vunpack.c.l.b16 %v540
      %v1273 = vunpack.c.l.b16 %v541
      %v1274 = vunpack.c.l.b16 %v542
      %v1275 = vunpack.c.l.b16 %v543
      %v1276 = vunpack.c.l.b16 %v544
      %v1277 = vunpack.c.l.b16 %v545
      %v1278 = vunpack.c.l.b16 %v546
      %v1279 = vunpack.c.l.b16 %v547
      %v1280 = vunpack.c.l.b16 %v548
      %v1281 = vunpack.c.l.b16 %v549
      %v1282 = vunpack.c.l.b16 %v550
      %v1283 = vunpack.c.l.b16 %v551
      %v1284 = vpack.c.b16 %v1269, %v1268
      %v1285 = vpack.c.b16 %v1271, %v1270
      %v1286 = vpack.c.b16 %v1273, %v1272
      %v1287 = vpack.c.b16 %v1275, %v1274
      %v1288 = vpack.c.b16 %v1277, %v1276
      %v1289 = vpack.c.b16 %v1279, %v1278
      %v1290 = vpack.c.b16 %v1281, %v1280
      %v1291 = vpack.c.b16 %v1283, %v1282
      %1292 = vrot.lane.b32.xlu0 %v1284, 24
      %v1293 = vpop.permute.xlu0 %1292
      %1294 = vrot.lane.b32.xlu0 %v1285, 24
      %v1295 = vpop.permute.xlu0 %1294
      %1296 = vrot.lane.b32.xlu0 %v1286, 24
      %v1297 = vpop.permute.xlu0 %1296
      %1298 = vrot.lane.b32.xlu0 %v1287, 24
      %v1299 = vpop.permute.xlu0 %1298
      %1300 = vrot.lane.b32.xlu0 %v1288, 24
      %v1301 = vpop.permute.xlu0 %1300
      %1302 = vrot.lane.b32.xlu0 %v1289, 24
      %v1303 = vpop.permute.xlu0 %1302
      %1304 = vrot.lane.b32.xlu0 %v1290, 24
      %v1305 = vpop.permute.xlu0 %1304
      %1306 = vrot.lane.b32.xlu0 %v1291, 24
      %v1307 = vpop.permute.xlu0 %1306
      %v1308 = vunpack.c.l.b16 %v573
      %v1309 = vunpack.c.l.b16 %v583
      %v1310 = vunpack.c.l.b16 %v597
      %v1311 = vunpack.c.l.b16 %v607
      %v1312 = vunpack.c.l.b16 %v621
      %v1313 = vunpack.c.l.b16 %v631
      %v1314 = vunpack.c.l.b16 %v645
      %v1315 = vunpack.c.l.b16 %v655
      %v1316 = vunpack.c.l.b16 %v669
      %v1317 = vunpack.c.l.b16 %v679
      %v1318 = vunpack.c.l.b16 %v693
      %v1319 = vunpack.c.l.b16 %v703
      %v1320 = vunpack.c.l.b16 %v717
      %v1321 = vunpack.c.l.b16 %v727
      %v1322 = vunpack.c.l.b16 %v741
      %v1323 = vunpack.c.l.b16 %v751
      %v1324 = vpack.c.b16 %v1309, %v1308
      %v1325 = vpack.c.b16 %v1311, %v1310
      %v1326 = vpack.c.b16 %v1313, %v1312
      %v1327 = vpack.c.b16 %v1315, %v1314
      %v1328 = vpack.c.b16 %v1317, %v1316
      %v1329 = vpack.c.b16 %v1319, %v1318
      %v1330 = vpack.c.b16 %v1321, %v1320
      %v1331 = vpack.c.b16 %v1323, %v1322
      %1332 = vrot.lane.b32.xlu0 %v1324, 32
      %v1333 = vpop.permute.xlu0 %1332
      %1334 = vrot.lane.b32.xlu0 %v1325, 32
      %v1335 = vpop.permute.xlu0 %1334
      %1336 = vrot.lane.b32.xlu0 %v1326, 32
      %v1337 = vpop.permute.xlu0 %1336
      %1338 = vrot.lane.b32.xlu0 %v1327, 32
      %v1339 = vpop.permute.xlu0 %1338
      %1340 = vrot.lane.b32.xlu0 %v1328, 32
      %v1341 = vpop.permute.xlu0 %1340
      %1342 = vrot.lane.b32.xlu0 %v1329, 32
      %v1343 = vpop.permute.xlu0 %1342
      %1344 = vrot.lane.b32.xlu0 %v1330, 32
      %v1345 = vpop.permute.xlu0 %1344
      %1346 = vrot.lane.b32.xlu0 %v1331, 32
      %v1347 = vpop.permute.xlu0 %1346
      %v1348 = vunpack.c.l.b16 %v787
      %v1349 = vunpack.c.l.b16 %v790
      %v1350 = vunpack.c.l.b16 %v794
      %v1351 = vunpack.c.l.b16 %v797
      %v1352 = vunpack.c.l.b16 %v801
      %v1353 = vunpack.c.l.b16 %v804
      %v1354 = vunpack.c.l.b16 %v808
      %v1355 = vunpack.c.l.b16 %v811
      %v1356 = vunpack.c.l.b16 %v815
      %v1357 = vunpack.c.l.b16 %v818
      %v1358 = vunpack.c.l.b16 %v822
      %v1359 = vunpack.c.l.b16 %v825
      %v1360 = vunpack.c.l.b16 %v829
      %v1361 = vunpack.c.l.b16 %v832
      %v1362 = vunpack.c.l.b16 %v836
      %v1363 = vunpack.c.l.b16 %v839
      %v1364 = vpack.c.b16 %v1349, %v1348
      %v1365 = vpack.c.b16 %v1351, %v1350
      %v1366 = vpack.c.b16 %v1353, %v1352
      %v1367 = vpack.c.b16 %v1355, %v1354
      %v1368 = vpack.c.b16 %v1357, %v1356
      %v1369 = vpack.c.b16 %v1359, %v1358
      %v1370 = vpack.c.b16 %v1361, %v1360
      %v1371 = vpack.c.b16 %v1363, %v1362
      %1372 = vrot.lane.b32.xlu0 %v1364, 40
      %v1373 = vpop.permute.xlu0 %1372
      %1374 = vrot.lane.b32.xlu0 %v1365, 40
      %v1375 = vpop.permute.xlu0 %1374
      %1376 = vrot.lane.b32.xlu0 %v1366, 40
      %v1377 = vpop.permute.xlu0 %1376
      %1378 = vrot.lane.b32.xlu0 %v1367, 40
      %v1379 = vpop.permute.xlu0 %1378
      %1380 = vrot.lane.b32.xlu0 %v1368, 40
      %v1381 = vpop.permute.xlu0 %1380
      %1382 = vrot.lane.b32.xlu0 %v1369, 40
      %v1383 = vpop.permute.xlu0 %1382
      %1384 = vrot.lane.b32.xlu0 %v1370, 40
      %v1385 = vpop.permute.xlu0 %1384
      %1386 = vrot.lane.b32.xlu0 %v1371, 40
      %v1387 = vpop.permute.xlu0 %1386
      %v1396 = vunpack.c.l.b16 %v844
      %v1397 = vunpack.c.l.b16 %v845
      %v1398 = vunpack.c.l.b16 %v846
      %v1399 = vunpack.c.l.b16 %v847
      %v1400 = vunpack.c.l.b16 %v848
      %v1401 = vunpack.c.l.b16 %v849
      %v1402 = vunpack.c.l.b16 %v850
      %v1403 = vunpack.c.l.b16 %v851
      %v1404 = vunpack.c.l.b16 %v852
      %v1405 = vunpack.c.l.b16 %v853
      %v1406 = vunpack.c.l.b16 %v854
      %v1407 = vunpack.c.l.b16 %v855
      %v1408 = vunpack.c.l.b16 %v856
      %v1409 = vunpack.c.l.b16 %v857
      %v1410 = vunpack.c.l.b16 %v858
      %v1411 = vunpack.c.l.b16 %v859
      %v1412 = vpack.c.b16 %v1397, %v1396
      %v1413 = vpack.c.b16 %v1399, %v1398
      %v1414 = vpack.c.b16 %v1401, %v1400
      %v1415 = vpack.c.b16 %v1403, %v1402
      %v1416 = vpack.c.b16 %v1405, %v1404
      %v1417 = vpack.c.b16 %v1407, %v1406
      %v1418 = vpack.c.b16 %v1409, %v1408
      %v1419 = vpack.c.b16 %v1411, %v1410
      %1420 = vrot.lane.b32.xlu0 %v1412, 48
      %v1421 = vpop.permute.xlu0 %1420
      %1422 = vrot.lane.b32.xlu0 %v1413, 48
      %v1423 = vpop.permute.xlu0 %1422
      %1424 = vrot.lane.b32.xlu0 %v1414, 48
      %v1425 = vpop.permute.xlu0 %1424
      %1426 = vrot.lane.b32.xlu0 %v1415, 48
      %v1427 = vpop.permute.xlu0 %1426
      %1428 = vrot.lane.b32.xlu0 %v1416, 48
      %v1429 = vpop.permute.xlu0 %1428
      %1430 = vrot.lane.b32.xlu0 %v1417, 48
      %v1431 = vpop.permute.xlu0 %1430
      %1432 = vrot.lane.b32.xlu0 %v1418, 48
      %v1433 = vpop.permute.xlu0 %1432
      %1434 = vrot.lane.b32.xlu0 %v1419, 48
      %v1435 = vpop.permute.xlu0 %1434
      %v1436 = vunpack.c.l.b16 %v881
      %v1437 = vunpack.c.l.b16 %v891
      %v1438 = vunpack.c.l.b16 %v905
      %v1439 = vunpack.c.l.b16 %v915
      %v1440 = vunpack.c.l.b16 %v929
      %v1441 = vunpack.c.l.b16 %v939
      %v1442 = vunpack.c.l.b16 %v953
      %v1443 = vunpack.c.l.b16 %v963
      %v1444 = vunpack.c.l.b16 %v977
      %v1445 = vunpack.c.l.b16 %v987
      %v1446 = vunpack.c.l.b16 %v1001
      %v1447 = vunpack.c.l.b16 %v1011
      %v1448 = vunpack.c.l.b16 %v1025
      %v1449 = vunpack.c.l.b16 %v1035
      %v1450 = vunpack.c.l.b16 %v1049
      %v1451 = vunpack.c.l.b16 %v1059
      %v1452 = vpack.c.b16 %v1437, %v1436
      %v1453 = vpack.c.b16 %v1439, %v1438
      %v1454 = vpack.c.b16 %v1441, %v1440
      %v1455 = vpack.c.b16 %v1443, %v1442
      %v1456 = vpack.c.b16 %v1445, %v1444
      %v1457 = vpack.c.b16 %v1447, %v1446
      %v1458 = vpack.c.b16 %v1449, %v1448
      %v1459 = vpack.c.b16 %v1451, %v1450
      %1460 = vrot.lane.b32.xlu0 %v1452, 56
      %v1461 = vpop.permute.xlu0 %1460
      %1462 = vrot.lane.b32.xlu0 %v1453, 56
      %v1463 = vpop.permute.xlu0 %1462
      %1464 = vrot.lane.b32.xlu0 %v1454, 56
      %v1465 = vpop.permute.xlu0 %1464
      %1466 = vrot.lane.b32.xlu0 %v1455, 56
      %v1467 = vpop.permute.xlu0 %1466
      %1468 = vrot.lane.b32.xlu0 %v1456, 56
      %v1469 = vpop.permute.xlu0 %1468
      %1470 = vrot.lane.b32.xlu0 %v1457, 56
      %v1471 = vpop.permute.xlu0 %1470
      %1472 = vrot.lane.b32.xlu0 %v1458, 56
      %v1473 = vpop.permute.xlu0 %1472
      %1474 = vrot.lane.b32.xlu0 %v1459, 56
      %v1475 = vpop.permute.xlu0 %1474
      %v1476 = vunpack.c.l.b16 %v1095
      %v1477 = vunpack.c.l.b16 %v1098
      %v1478 = vunpack.c.l.b16 %v1102
      %v1479 = vunpack.c.l.b16 %v1105
      %v1480 = vunpack.c.l.b16 %v1109
      %v1481 = vunpack.c.l.b16 %v1112
      %v1482 = vunpack.c.l.b16 %v1116
      %v1483 = vunpack.c.l.b16 %v1119
      %v1484 = vunpack.c.l.b16 %v1123
      %v1485 = vunpack.c.l.b16 %v1126
      %v1486 = vunpack.c.l.b16 %v1130
      %v1487 = vunpack.c.l.b16 %v1133
      %v1488 = vunpack.c.l.b16 %v1137
      %v1489 = vunpack.c.l.b16 %v1140
      %v1490 = vunpack.c.l.b16 %v1144
      %v1491 = vunpack.c.l.b16 %v1147
      %v1492 = vpack.c.b16 %v1477, %v1476
      %v1493 = vpack.c.b16 %v1479, %v1478
      %v1494 = vpack.c.b16 %v1481, %v1480
      %v1495 = vpack.c.b16 %v1483, %v1482
      %v1496 = vpack.c.b16 %v1485, %v1484
      %v1497 = vpack.c.b16 %v1487, %v1486
      %v1498 = vpack.c.b16 %v1489, %v1488
      %v1499 = vpack.c.b16 %v1491, %v1490
      %1500 = vrot.lane.b32.xlu0 %v1492, 64
      %v1501 = vpop.permute.xlu0 %1500
      %1502 = vrot.lane.b32.xlu0 %v1493, 64
      %v1503 = vpop.permute.xlu0 %1502
      %1504 = vrot.lane.b32.xlu0 %v1494, 64
      %v1505 = vpop.permute.xlu0 %1504
      %1506 = vrot.lane.b32.xlu0 %v1495, 64
      %v1507 = vpop.permute.xlu0 %1506
      %1508 = vrot.lane.b32.xlu0 %v1496, 64
      %v1509 = vpop.permute.xlu0 %1508
      %1510 = vrot.lane.b32.xlu0 %v1497, 64
      %v1511 = vpop.permute.xlu0 %1510
      %1512 = vrot.lane.b32.xlu0 %v1498, 64
      %v1513 = vpop.permute.xlu0 %1512
      %1514 = vrot.lane.b32.xlu0 %v1499, 64
      %v1515 = vpop.permute.xlu0 %1514
      %vm1516 = vcmask 64512
      %v1519 = vsel %vm1516, %v1172, %v1205
      %v1522 = vsel %vm1516, %v1173, %v1207
      %v1525 = vsel %vm1516, %v1174, %v1209
      %v1528 = vsel %vm1516, %v1175, %v1211
      %v1531 = vsel %vm1516, %v1176, %v1213
      %v1534 = vsel %vm1516, %v1177, %v1215
      %v1537 = vsel %vm1516, %v1178, %v1217
      %v1540 = vsel %vm1516, %v1179, %v1219
      %vm1541 = vcmask 130048
      %v1543 = vsel %vm1541, %v1519, %v1245
      %v1545 = vsel %vm1541, %v1522, %v1247
      %v1547 = vsel %vm1541, %v1525, %v1249
      %v1549 = vsel %vm1541, %v1528, %v1251
      %v1551 = vsel %vm1541, %v1531, %v1253
      %v1553 = vsel %vm1541, %v1534, %v1255
      %v1555 = vsel %vm1541, %v1537, %v1257
      %v1557 = vsel %vm1541, %v1540, %v1259
      %vm1558 = vcmask 195584
      %v1560 = vsel %vm1558, %v1543, %v1293
      %v1562 = vsel %vm1558, %v1545, %v1295
      %v1564 = vsel %vm1558, %v1547, %v1297
      %v1566 = vsel %vm1558, %v1549, %v1299
      %v1568 = vsel %vm1558, %v1551, %v1301
      %v1570 = vsel %vm1558, %v1553, %v1303
      %v1572 = vsel %vm1558, %v1555, %v1305
      %v1574 = vsel %vm1558, %v1557, %v1307
      %vm1575 = vcmask 261120
      %v1577 = vsel %vm1575, %v1560, %v1333
      %v1579 = vsel %vm1575, %v1562, %v1335
      %v1581 = vsel %vm1575, %v1564, %v1337
      %v1583 = vsel %vm1575, %v1566, %v1339
      %v1585 = vsel %vm1575, %v1568, %v1341
      %v1587 = vsel %vm1575, %v1570, %v1343
      %v1589 = vsel %vm1575, %v1572, %v1345
      %v1591 = vsel %vm1575, %v1574, %v1347
      %vm1592 = vcmask 326656
      %v1594 = vsel %vm1592, %v1577, %v1373
      %v1596 = vsel %vm1592, %v1579, %v1375
      %v1598 = vsel %vm1592, %v1581, %v1377
      %v1600 = vsel %vm1592, %v1583, %v1379
      %v1602 = vsel %vm1592, %v1585, %v1381
      %v1604 = vsel %vm1592, %v1587, %v1383
      %v1606 = vsel %vm1592, %v1589, %v1385
      %v1608 = vsel %vm1592, %v1591, %v1387
      %vm1609 = vcmask 392192
      %v1611 = vsel %vm1609, %v1594, %v1421
      %v1613 = vsel %vm1609, %v1596, %v1423
      %v1615 = vsel %vm1609, %v1598, %v1425
      %v1617 = vsel %vm1609, %v1600, %v1427
      %v1619 = vsel %vm1609, %v1602, %v1429
      %v1621 = vsel %vm1609, %v1604, %v1431
      %v1623 = vsel %vm1609, %v1606, %v1433
      %v1625 = vsel %vm1609, %v1608, %v1435
      %vm1626 = vcmask 457728
      %v1628 = vsel %vm1626, %v1611, %v1461
      %v1630 = vsel %vm1626, %v1613, %v1463
      %v1632 = vsel %vm1626, %v1615, %v1465
      %v1634 = vsel %vm1626, %v1617, %v1467
      %v1636 = vsel %vm1626, %v1619, %v1469
      %v1638 = vsel %vm1626, %v1621, %v1471
      %v1640 = vsel %vm1626, %v1623, %v1473
      %v1642 = vsel %vm1626, %v1625, %v1475
      %vm1643 = vcmask 523264
      %v1645 = vsel %vm1643, %v1628, %v1501
      %v1647 = vsel %vm1643, %v1630, %v1503
      %v1649 = vsel %vm1643, %v1632, %v1505
      %v1651 = vsel %vm1643, %v1634, %v1507
      %v1653 = vsel %vm1643, %v1636, %v1509
      %v1655 = vsel %vm1643, %v1638, %v1511
      %v1657 = vsel %vm1643, %v1640, %v1513
      %v1659 = vsel %vm1643, %v1642, %v1515
      %v1660 = vld [vmem:[%s1] sm:$0xf]
      %v1661 = vld [vmem:[%s1 + $0x4] sm:$0xf]
      %v1662 = vld [vmem:[%s1 + $0x8] sm:$0xf]
      %v1663 = vld [vmem:[%s1 + $0xc] sm:$0xf]
      %v1664 = vld [vmem:[%s1 + $0x10] sm:$0xf]
      %v1665 = vld [vmem:[%s1 + $0x14] sm:$0xf]
      %v1666 = vld [vmem:[%s1 + $0x18] sm:$0xf]
      %v1667 = vld [vmem:[%s1 + $0x1c] sm:$0xf]
      %v1668 = vld [vmem:[%s1 + $0x20] sm:$0xf]
      %v1678 = vunpack.c.l.b16 %v1660
      %v1679 = vunpack.c.l.b16 %v1661
      %v1680 = vunpack.c.l.b16 %v1662
      %v1681 = vunpack.c.l.b16 %v1663
      %v1682 = vunpack.c.l.b16 %v1664
      %v1683 = vunpack.c.l.b16 %v1665
      %v1684 = vunpack.c.l.b16 %v1666
      %v1685 = vunpack.c.l.b16 %v1667
      %v1686 = vunpack.c.l.b16 %v1668
      %v1687 = vpack.c.b16 %v1679, %v1678
      %v1688 = vpack.c.b16 %v1681, %v1680
      %v1689 = vpack.c.b16 %v1683, %v1682
      %v1690 = vpack.c.b16 %v1685, %v1684
      %v1691 = vpack.c.b16 %v1686, %v1686
      %vm1696 = vcmask 588800
      %v1697 = vsel %vm1696, %v1645, 0
      %v1699 = vsel %vm1696, %v1647, 0
      %v1701 = vsel %vm1696, %v1649, 0
      %v1703 = vsel %vm1696, %v1651, 0
      %v1705 = vsel %vm1696, %v1653, 0
      %v1707 = vsel %vm1696, %v1655, 0
      %v1709 = vsel %vm1696, %v1657, 0
      %v1711 = vsel %vm1696, %v1659, 0
      %vm1713 = vcmask 1043456
      %v1715 = vsel %vm1713, %v1691, 0
      %1717 = vmatprep.subr.bf16.mxu0 0
      %1718 = vmatpush1.bf16.msra.mxu0 %v1687
      %1719 = vmatprep.subr.bf16.mxu0 0
      %1720 = vmatpush1.bf16.msra.mxu0 %v1688
      %1721 = vmatprep.subr.bf16.mxu0 0
      %1722 = vmatpush1.bf16.msra.mxu0 %v1689
      %1723 = vmatprep.subr.bf16.mxu0 0
      %1724 = vmatpush1.bf16.msra.mxu0 %v1690
      %1725 = vmatprep.subr.bf16.mxu0 0
      %1726 = vmatpush1.bf16.msra.mxu0 %v1715
      %1727 = vmatprep.subr.bf16.mxu0 0
      %1728 = vmatpush1.bf16.msra.mxu0 0
      %1729 = vmatprep.subr.bf16.mxu0 0
      %1730 = vmatpush1.bf16.msra.mxu0 0
      %1731 = vmatprep.subr.bf16.mxu0 0
      %1732 = vmatpush1.bf16.msra.mxu0 0
      %1733 = vmatprep.subr.bf16.mxu0 0
      %1734 = vmatpush1.bf16.msra.mxu0 0
      %1735 = vmatprep.subr.bf16.mxu0 0
      %1736 = vmatpush1.bf16.msra.mxu0 0
      %1737 = vmatprep.subr.bf16.mxu0 0
      %1738 = vmatpush1.bf16.msra.mxu0 0
      %1739 = vmatprep.subr.bf16.mxu0 0
      %1740 = vmatpush1.bf16.msra.mxu0 0
      %1741 = vmatprep.subr.bf16.mxu0 0
      %1742 = vmatpush1.bf16.msra.mxu0 0
      %1743 = vmatprep.subr.bf16.mxu0 0
      %1744 = vmatpush1.bf16.msra.mxu0 0
      %1745 = vmatprep.subr.bf16.mxu0 0
      %1746 = vmatpush1.bf16.msra.mxu0 0
      %1747 = vmatprep.subr.bf16.mxu0 0
      %1748 = vmatpush1.bf16.msra.mxu0 0
      %1749 = vmatprep.mubr.bf16.mxu0 0
      %1750 = vmatmul.mubr.bf16.gmra.mrb[0].mxu0 %v1697
      %v1751 = vpop.f32.mrb[0].mxu0
      %v1752 = vadd.f32 0.0, %v1751
      %v1753 = vpop.f32.mrb[0].mxu0
      %v1754 = vpop.f32.mrb[0].mxu0
      %v1755 = vadd.f32 0.0, %v1754
      %v1756 = vpop.f32.mrb[0].mxu0
      %1757 = vmatprep.mubr.bf16.mxu0 0
      %1758 = vmatmul.mubr.bf16.gmra.mrb[0].mxu0 %v1699
      %v1759 = vpop.f32.mrb[0].mxu0
      %v1760 = vadd.f32 0.0, %v1759
      %v1761 = vpop.f32.mrb[0].mxu0
      %v1762 = vpop.f32.mrb[0].mxu0
      %v1763 = vadd.f32 0.0, %v1762
      %v1764 = vpop.f32.mrb[0].mxu0
      %1765 = vmatprep.mubr.bf16.mxu0 0
      %1766 = vmatmul.mubr.bf16.gmra.mrb[0].mxu0 %v1701
      %v1767 = vpop.f32.mrb[0].mxu0
      %v1768 = vadd.f32 0.0, %v1767
      %v1769 = vpop.f32.mrb[0].mxu0
      %v1770 = vpop.f32.mrb[0].mxu0
      %v1771 = vadd.f32 0.0, %v1770
      %v1772 = vpop.f32.mrb[0].mxu0
      %1773 = vmatprep.mubr.bf16.mxu0 0
      %1774 = vmatmul.mubr.bf16.gmra.mrb[0].mxu0 %v1703
      %v1775 = vpop.f32.mrb[0].mxu0
      %v1776 = vadd.f32 0.0, %v1775
      %v1777 = vpop.f32.mrb[0].mxu0
      %v1778 = vpop.f32.mrb[0].mxu0
      %v1779 = vadd.f32 0.0, %v1778
      %v1780 = vpop.f32.mrb[0].mxu0
      %1781 = vmatprep.mubr.bf16.mxu0 0
      %1782 = vmatmul.mubr.bf16.gmra.mrb[0].mxu0 %v1705
      %v1783 = vpop.f32.mrb[0].mxu0
      %v1784 = vadd.f32 0.0, %v1783
      %v1785 = vpop.f32.mrb[0].mxu0
      %v1786 = vpop.f32.mrb[0].mxu0
      %v1787 = vadd.f32 0.0, %v1786
      %v1788 = vpop.f32.mrb[0].mxu0
      %1789 = vmatprep.mubr.bf16.mxu0 0
      %1790 = vmatmul.mubr.bf16.gmra.mrb[0].mxu0 %v1707
      %v1791 = vpop.f32.mrb[0].mxu0
      %v1792 = vadd.f32 0.0, %v1791
      %v1793 = vpop.f32.mrb[0].mxu0
      %v1794 = vpop.f32.mrb[0].mxu0
      %v1795 = vadd.f32 0.0, %v1794
      %v1796 = vpop.f32.mrb[0].mxu0
      %1797 = vmatprep.mubr.bf16.mxu0 0
      %1798 = vmatmul.mubr.bf16.gmra.mrb[0].mxu0 %v1709
      %v1799 = vpop.f32.mrb[0].mxu0
      %v1800 = vadd.f32 0.0, %v1799
      %v1801 = vpop.f32.mrb[0].mxu0
      %v1802 = vpop.f32.mrb[0].mxu0
      %v1803 = vadd.f32 0.0, %v1802
      %v1804 = vpop.f32.mrb[0].mxu0
      %1805 = vmatprep.mubr.bf16.mxu0 0
      %1806 = vmatmul.mubr.bf16.gmra.mrb[0].mxu0 %v1711
      %v1807 = vpop.f32.mrb[0].mxu0
      %v1808 = vadd.f32 0.0, %v1807
      %v1809 = vpop.f32.mrb[0].mxu0
      %v1810 = vpop.f32.mrb[0].mxu0
      %v1811 = vadd.f32 0.0, %v1810
      %v1812 = vpop.f32.mrb[0].mxu0
      %1813 = vdwg.mxu0
      %v1814 = vpack.c.bf16 %v1755, %v1752
      %v1815 = vpack.c.bf16 %v1763, %v1760
      %v1816 = vpack.c.bf16 %v1771, %v1768
      %v1817 = vpack.c.bf16 %v1779, %v1776
      %v1818 = vpack.c.bf16 %v1787, %v1784
      %v1819 = vpack.c.bf16 %v1795, %v1792
      %v1820 = vpack.c.bf16 %v1803, %v1800
      %v1821 = vpack.c.bf16 %v1811, %v1808
      %v1830 = vunpack.c.l.b16 %v1814
      %v1831 = vunpack.c.h.b16 %v1814
      %v1832 = vunpack.c.l.b16 %v1815
      %v1833 = vunpack.c.h.b16 %v1815
      %v1834 = vunpack.c.l.b16 %v1816
      %v1835 = vunpack.c.h.b16 %v1816
      %v1836 = vunpack.c.l.b16 %v1817
      %v1837 = vunpack.c.h.b16 %v1817
      %v1838 = vunpack.c.l.b16 %v1818
      %v1839 = vunpack.c.h.b16 %v1818
      %v1840 = vunpack.c.l.b16 %v1819
      %v1841 = vunpack.c.h.b16 %v1819
      %v1842 = vunpack.c.l.b16 %v1820
      %v1843 = vunpack.c.h.b16 %v1820
      %v1844 = vunpack.c.l.b16 %v1821
      %v1845 = vunpack.c.h.b16 %v1821
      %v1846 = vpack.c.b16 %v1830, %v1830
      %v1847 = vpack.c.b16 %v1831, %v1831
      %v1848 = vpack.c.b16 %v1832, %v1832
      %v1849 = vpack.c.b16 %v1833, %v1833
      %v1850 = vpack.c.b16 %v1834, %v1834
      %v1851 = vpack.c.b16 %v1835, %v1835
      %v1852 = vpack.c.b16 %v1836, %v1836
      %v1853 = vpack.c.b16 %v1837, %v1837
      %v1854 = vpack.c.b16 %v1838, %v1838
      %v1855 = vpack.c.b16 %v1839, %v1839
      %v1856 = vpack.c.b16 %v1840, %v1840
      %v1857 = vpack.c.b16 %v1841, %v1841
      %v1858 = vpack.c.b16 %v1842, %v1842
      %v1859 = vpack.c.b16 %v1843, %v1843
      %v1860 = vpack.c.b16 %v1844, %v1844
      %v1861 = vpack.c.b16 %v1845, %v1845
      %vm1878 = vcmask 60416
      %1879 = vst.msk [vmem:[%s207] sm:$0xf] %vm1878, %v1846
      %1880 = vst.msk [vmem:[%s207 + $0x4] sm:$0xf] %vm1878, %v1847
      %1881 = vst.msk [vmem:[%s207 + $0x8] sm:$0xf] %vm1878, %v1848
      %1882 = vst.msk [vmem:[%s207 + $0xc] sm:$0xf] %vm1878, %v1849
      %1883 = vst.msk [vmem:[%s207 + $0x10] sm:$0xf] %vm1878, %v1850
      %1884 = vst.msk [vmem:[%s207 + $0x14] sm:$0xf] %vm1878, %v1851
      %1885 = vst.msk [vmem:[%s207 + $0x18] sm:$0xf] %vm1878, %v1852
      %1886 = vst.msk [vmem:[%s207 + $0x1c] sm:$0xf] %vm1878, %v1853
      %1887 = vst.msk [vmem:[%s207 + $0x20] sm:$0xf] %vm1878, %v1854
      %1888 = vst.msk [vmem:[%s207 + $0x24] sm:$0xf] %vm1878, %v1855
      %1889 = vst.msk [vmem:[%s207 + $0x28] sm:$0xf] %vm1878, %v1856
      %1890 = vst.msk [vmem:[%s207 + $0x2c] sm:$0xf] %vm1878, %v1857
      %1891 = vst.msk [vmem:[%s207 + $0x30] sm:$0xf] %vm1878, %v1858
      %1892 = vst.msk [vmem:[%s207 + $0x34] sm:$0xf] %vm1878, %v1859
      %1893 = vst.msk [vmem:[%s207 + $0x38] sm:$0xf] %vm1878, %v1860
      %1894 = vst.msk [vmem:[%s207 + $0x3c] sm:$0xf] %vm1878, %v1861
      %v1895 = vsel %vm1516, %v1752, 0.0
      %v1896 = vsel %vm1516, %v1755, 0.0
      %v1897 = vadd.f32 %v1895, %v1896
      %v1898 = vsel %vm1516, %v1760, 0.0
      %v1899 = vadd.f32 %v1897, %v1898
      %v1900 = vsel %vm1516, %v1763, 0.0
      %v1901 = vadd.f32 %v1899, %v1900
      %v1902 = vsel %vm1516, %v1768, 0.0
      %v1903 = vadd.f32 %v1901, %v1902
      %v1904 = vsel %vm1516, %v1771, 0.0
      %v1905 = vadd.f32 %v1903, %v1904
      %v1906 = vsel %vm1516, %v1776, 0.0
      %v1907 = vadd.f32 %v1905, %v1906
      %v1908 = vsel %vm1516, %v1779, 0.0
      %v1909 = vadd.f32 %v1907, %v1908
      %v1910 = vsel %vm1516, %v1784, 0.0
      %v1911 = vadd.f32 %v1909, %v1910
      %v1912 = vsel %vm1516, %v1787, 0.0
      %v1913 = vadd.f32 %v1911, %v1912
      %v1914 = vsel %vm1516, %v1792, 0.0
      %v1915 = vadd.f32 %v1913, %v1914
      %v1916 = vsel %vm1516, %v1795, 0.0
      %v1917 = vadd.f32 %v1915, %v1916
      %v1918 = vsel %vm1516, %v1800, 0.0
      %v1919 = vadd.f32 %v1917, %v1918
      %v1920 = vsel %vm1516, %v1803, 0.0
      %v1921 = vadd.f32 %v1919, %v1920
      %v1922 = vsel %vm1516, %v1808, 0.0
      %v1923 = vadd.f32 %v1921, %v1922
      %v1924 = vsel %vm1516, %v1811, 0.0
      %v1925 = vadd.f32 %v1923, %v1924
      %v1926 = vrot.slane %v1925, 4
      %v1927 = vadd.f32 %v1925, %v1926
      %v1928 = vrot.slane %v1927, 2
      %v1929 = vadd.f32 %v1927, %v1928
      %v1930 = vrot.slane %v1929, 1
      %v1931 = vadd.f32 %v1929, %v1930
      %v1932 = vmul.f32 %v1752, %v1752
      %v1933 = vmul.f32 %v1755, %v1755
      %v1934 = vmul.f32 %v1760, %v1760
      %v1935 = vmul.f32 %v1763, %v1763
      %v1936 = vmul.f32 %v1768, %v1768
      %v1937 = vmul.f32 %v1771, %v1771
      %v1938 = vmul.f32 %v1776, %v1776
      %v1939 = vmul.f32 %v1779, %v1779
      %v1940 = vmul.f32 %v1784, %v1784
      %v1941 = vmul.f32 %v1787, %v1787
      %v1942 = vmul.f32 %v1792, %v1792
      %v1943 = vmul.f32 %v1795, %v1795
      %v1944 = vmul.f32 %v1800, %v1800
      %v1945 = vmul.f32 %v1803, %v1803
      %v1946 = vmul.f32 %v1808, %v1808
      %v1947 = vmul.f32 %v1811, %v1811
      %v1948 = vsel %vm1516, %v1932, 0.0
      %v1949 = vsel %vm1516, %v1933, 0.0
      %v1950 = vadd.f32 %v1948, %v1949
      %v1951 = vsel %vm1516, %v1934, 0.0
      %v1952 = vadd.f32 %v1950, %v1951
      %v1953 = vsel %vm1516, %v1935, 0.0
      %v1954 = vadd.f32 %v1952, %v1953
      %v1955 = vsel %vm1516, %v1936, 0.0
      %v1956 = vadd.f32 %v1954, %v1955
      %v1957 = vsel %vm1516, %v1937, 0.0
      %v1958 = vadd.f32 %v1956, %v1957
      %v1959 = vsel %vm1516, %v1938, 0.0
      %v1960 = vadd.f32 %v1958, %v1959
      %v1961 = vsel %vm1516, %v1939, 0.0
      %v1962 = vadd.f32 %v1960, %v1961
      %v1963 = vsel %vm1516, %v1940, 0.0
      %v1964 = vadd.f32 %v1962, %v1963
      %v1965 = vsel %vm1516, %v1941, 0.0
      %v1966 = vadd.f32 %v1964, %v1965
      %v1967 = vsel %vm1516, %v1942, 0.0
      %v1968 = vadd.f32 %v1966, %v1967
      %v1969 = vsel %vm1516, %v1943, 0.0
      %v1970 = vadd.f32 %v1968, %v1969
      %v1971 = vsel %vm1516, %v1944, 0.0
      %v1972 = vadd.f32 %v1970, %v1971
      %v1973 = vsel %vm1516, %v1945, 0.0
      %v1974 = vadd.f32 %v1972, %v1973
      %v1975 = vsel %vm1516, %v1946, 0.0
      %v1976 = vadd.f32 %v1974, %v1975
      %v1977 = vsel %vm1516, %v1947, 0.0
      %v1978 = vadd.f32 %v1976, %v1977
      %v1979 = vrot.slane %v1978, 4
      %v1980 = vadd.f32 %v1978, %v1979
      %v1981 = vrot.slane %v1980, 2
      %v1982 = vadd.f32 %v1980, %v1981
      %v1983 = vrot.slane %v1982, 1
      %v1984 = vadd.f32 %v1982, %v1983
      %vm1985 = vcmask 1040384
      %v1986 = vsel %vm1985, %v1931, %v1984
      %vm1987 = vcmask 1041408
      %v1988 = vsel %vm1987, %v1986, 0.0
      %1989 = vst.msk [vmem:[%s216] sm:$0xff] %vm1516, %v1988
      %s1990 = smul.u32 8, %s20
      %p1991 = scmp.lt.s32.totalorder %s19, 1
      %s1992 = scalar_select %p1991, %s19, 1
      %p1993 = scmp.lt.s32.totalorder %s1990, 15
      %s1994 = scalar_select %p1993, %s1990, 15
      %s1995 = smul.addr %s1994, 2
      %s1996 = smul.addr %s1992, 32
      %s1997 = sadd.s32 %s1995, %s1996
      %s1998 = smul.addr %s1997, 4
      %s1999 = scalar_lea.vmem %s2, %s1998
      %p2000 = scmp.lt.s32.totalorder %s19, 1
      %s2001 = scalar_select %p2000, %s19, 1
      %p2002 = scmp.lt.s32.totalorder %s20, 1
      %s2003 = scalar_select %p2002, %s20, 1
      %s2004 = smul.addr %s2001, 2
      %s2005 = sadd.s32 %s2003, %s2004
      %s2006 = smul.addr %s2005, 8
      %s2007 = scalar_lea.vmem %s3, %s2006
      // Predicated region
      $region29: #{_forward.8} parent=27 // pred_check
        %p2008 = pneg %p94
      $region30: #{_forward.8} parent=27 // pred_check_branch
        %2010 = sbr.rel (%p2008) target = $region32
      $region31: #{_forward.8} parent=27 // pred_region
        %s2011 = smul.u32 8, %s20
      $region32: #{_forward.8} parent=27 // pred_fallthru
        _
      // Predicated region
      $region33: #{_forward.8} parent=27 // pred_check
        %p2012 = pneg %p122
      $region34: #{_forward.8} parent=27 // pred_check_branch
        %2014 = sbr.rel (%p2012) target = $region36
      $region35: #{_forward.8} parent=27 // pred_region
        _
      $region36: #{_forward.8} parent=27 // pred_fallthru
        _
    $region28: #{_forward.8} parent=5 // pred_fallthru
      _
    %p2015 = scmp.le.s32.totalorder 2, %s10
    // Predicated region
    $region37: #{_forward.8} parent=5 // pred_check
      %p2016 = pneg %p2015
    $region38: #{_forward.8} parent=5 // pred_check_branch
      %2018 = sbr.rel (%p2016) target = $region40
    $region39: #{_forward.8} parent=5 // pred_region
      %s2019 = ssub.s32 %s10, 2
      // Predicated region
      $region41: #{_forward.8} parent=39 // pred_check
        %p2020 = pneg %p100
      $region42: #{_forward.8} parent=39 // pred_check_branch
        %2022 = sbr.rel (%p2020) target = $region44
      $region43: #{_forward.8} parent=39 // pred_region
        %s2023 = smul.u32 8, %s22
        %p2024 = scmp.lt.s32.totalorder %s21, 1
        %s2025 = scalar_select %p2024, %s21, 1
        %p2026 = scmp.lt.s32.totalorder %s2023, 15
        %s2027 = scalar_select %p2026, %s2023, 15
        %s2028 = smul.addr %s2027, 2
        %s2029 = smul.addr %s2025, 32
        %s2030 = sadd.s32 %s2028, %s2029
        %s2031 = smul.addr %s2030, 4
        %s2032 = scalar_lea.vmem %s2, %s2031
      $region44: #{_forward.8} parent=39 // pred_fallthru
        _
      // Predicated region
      $region45: #{_forward.8} parent=39 // pred_check
        %p2033 = pneg %p128
      $region46: #{_forward.8} parent=39 // pred_check_branch
        %2035 = sbr.rel (%p2033) target = $region48
      $region47: #{_forward.8} parent=39 // pred_region
        %p2036 = scmp.lt.s32.totalorder %s21, 1
        %s2037 = scalar_select %p2036, %s21, 1
        %p2038 = scmp.lt.s32.totalorder %s22, 1
        %s2039 = scalar_select %p2038, %s22, 1
        %s2040 = smul.addr %s2037, 2
        %s2041 = sadd.s32 %s2039, %s2040
        %s2042 = smul.addr %s2041, 8
        %s2043 = scalar_lea.vmem %s3, %s2042
      $region48: #{_forward.8} parent=39 // pred_fallthru
        _
    $region40: #{_forward.8} parent=5 // pred_fallthru
      _
  $region6: #{_forward.8} parent=0 // loop_footer
    %s14 = sadd.s32 1, %s10
  $region7: #{_forward.8} parent=0 // loop_footer_branch
    %9 = sbr.rel target = $region3
  $region8: #{_forward.8} parent=0 // loop_exit
    _

// kernel: tile.53
$region0: #{tile.53}
  #allocation0 [shape = 's32[1]{0}', space=sflag, size = 0x4, scoped, tag = 'scoped memory for tile.53']
  %s0 = inlined_call_operand.vmem [shape: f32[4], index: 0, kind: input, shape index: {}]
  %s1 = inlined_call_operand.vmem [shape: f32[32,4], index: 1, kind: output, shape index: {}]
  // Predicated region
  $region2: #{tile.53} parent=0 // pred_check
    _
  $region3: #{tile.53} parent=0 // pred_check_branch
    %3 = sbr.rel (0) target = $region5
  $region4: #{tile.53} parent=0 // pred_region
    _
  $region5: #{tile.53} parent=0 // pred_fallthru
    _
  %v4 = vld [vmem:[%s0] ss:$0 sm:$0xff]
  %5 = vst [vmem:[%s1] sm:$0xff] %v4
  %s6 = scalar_lea.vmem %s1, 8
  %7 = vst [vmem:[%s6] sm:$0xff] %v4
  %s8 = scalar_lea.vmem %s1, 16
  %9 = vst [vmem:[%s8] sm:$0xff] %v4
  %s10 = scalar_lea.vmem %s1, 24
  %11 = vst [vmem:[%s10] sm:$0xff] %v4

// kernel: tile.54
$region0: #{tile.54}
  %s0 = inlined_call_operand.vmem [shape: f32[32,4], index: 0, kind: input, shape index: {}]
  %s1 = inlined_call_operand.vmem [shape: f32[1,128], index: 1, kind: output, shape index: {}]
  $region1: #{tile.54} parent=0
    #allocation0 [shape = 'u8[4096]{0}', space=vmem, size = 0x1000, scoped, tag = 'scoped mem for output reshape']
    %v2 = vld [vmem:[%s0] sm:$0x1]
    %vm3 = vcmask 31744
    %4 = vst.msk [vmem:[#allocation0] sm:$0x1] %vm3, %v2
    %s5 = scalar_lea.vmem %s0, 31
    %v6 = vld [vmem:[%s5] sm:$0x1]
    %7 = vrot.lane.b32.xlu0 %v6, 124
    %v8 = vpop.permute.xlu0 %7
    %vm9 = vcmask 1048544
    %10 = vst.msk [vmem:[#allocation0] sm:$0x1] %vm9, %v8
    %s11 = scalar_lea.vmem %s0, 30
    %v12 = vld [vmem:[%s11] sm:$0x1]
    %13 = vrot.lane.b32.xlu0 %v12, 120
    %v14 = vpop.permute.xlu0 %13
    %vm15 = vcmask 1015744
    %16 = vst.msk [vmem:[#allocation0] sm:$0x1] %vm15, %v14
    %s17 = scalar_lea.vmem %s0, 29
    %v18 = vld [vmem:[%s17] sm:$0x1]
    %19 = vrot.lane.b32.xlu0 %v18, 116
    %v20 = vpop.permute.xlu0 %19
    %vm21 = vcmask 982944
    %22 = vst.msk [vmem:[#allocation0] sm:$0x1] %vm21, %v20
    %s23 = scalar_lea.vmem %s0, 28
    %v24 = vld [vmem:[%s23] sm:$0x1]
    %25 = vrot.lane.b32.xlu0 %v24, 112
    %v26 = vpop.permute.xlu0 %25
    %vm27 = vcmask 950144
    %28 = vst.msk [vmem:[#allocation0] sm:$0x1] %vm27, %v26
    %s29 = scalar_lea.vmem %s0, 27
    %v30 = vld [vmem:[%s29] sm:$0x1]
    %31 = vrot.lane.b32.xlu0 %v30, 108
    %v32 = vpop.permute.xlu0 %31
    %vm33 = vcmask 917344
    %34 = vst.msk [vmem:[#allocation0] sm:$0x1] %vm33, %v32
    %s35 = scalar_lea.vmem %s0, 26
    %v36 = vld [vmem:[%s35] sm:$0x1]
    %37 = vrot.lane.b32.xlu0 %v36, 104
    %v38 = vpop.permute.xlu0 %37
    %vm39 = vcmask 884544
    %40 = vst.msk [vmem:[#allocation0] sm:$0x1] %vm39, %v38
    %s41 = scalar_lea.vmem %s0, 25
    %v42 = vld [vmem:[%s41] sm:$0x1]
    %43 = vrot.lane.b32.xlu0 %v42, 100
    %v44 = vpop.permute.xlu0 %43
    %vm45 = vcmask 851744
    %46 = vst.msk [vmem:[#allocation0] sm:$0x1] %vm45, %v44
    %s47 = scalar_lea.vmem %s0, 24
    %v48 = vld [vmem:[%s47] sm:$0x1]
    %49 = vrot.lane.b32.xlu0 %v48, 96
    %v50 = vpop.permute.xlu0 %49
    %vm51 = vcmask 818944
    %52 = vst.msk [vmem:[#allocation0] sm:$0x1] %vm51, %v50
    %s53 = scalar_lea.vmem %s0, 23
    %v54 = vld [vmem:[%s53] sm:$0x1]
    %55 = vrot.lane.b32.xlu0 %v54, 92
    %v56 = vpop.permute.xlu0 %55
    %vm57 = vcmask 786144
    %58 = vst.msk [vmem:[#allocation0] sm:$0x1] %vm57, %v56
    %s59 = scalar_lea.vmem %s0, 22
    %v60 = vld [vmem:[%s59] sm:$0x1]
    %61 = vrot.lane.b32.xlu0 %v60, 88
    %v62 = vpop.permute.xlu0 %61
    %vm63 = vcmask 753344
    %64 = vst.msk [vmem:[#allocation0] sm:$0x1] %vm63, %v62
    %s65 = scalar_lea.vmem %s0, 21
    %v66 = vld [vmem:[%s65] sm:$0x1]
    %67 = vrot.lane.b32.xlu0 %v66, 84
    %v68 = vpop.permute.xlu0 %67
    %vm69 = vcmask 720544
    %70 = vst.msk [vmem:[#allocation0] sm:$0x1] %vm69, %v68
    %s71 = scalar_lea.vmem %s0, 20
    %v72 = vld [vmem:[%s71] sm:$0x1]
    %73 = vrot.lane.b32.xlu0 %v72, 80
    %v74 = vpop.permute.xlu0 %73
    %vm75 = vcmask 687744
    %76 = vst.msk [vmem:[#allocation0] sm:$0x1] %vm75, %v74
    %s77 = scalar_lea.vmem %s0, 19
    %v78 = vld [vmem:[%s77] sm:$0x1]
    %79 = vrot.lane.b32.xlu0 %v78, 76
    %v80 = vpop.permute.xlu0 %79
    %vm81 = vcmask 654944
    %82 = vst.msk [vmem:[#allocation0] sm:$0x1] %vm81, %v80
    %s83 = scalar_lea.vmem %s0, 18
    %v84 = vld [vmem:[%s83] sm:$0x1]
    %85 = vrot.lane.b32.xlu0 %v84, 72
    %v86 = vpop.permute.xlu0 %85
    %vm87 = vcmask 622144
    %88 = vst.msk [vmem:[#allocation0] sm:$0x1] %vm87, %v86
    %s89 = scalar_lea.vmem %s0, 17
    %v90 = vld [vmem:[%s89] sm:$0x1]
    %91 = vrot.lane.b32.xlu0 %v90, 68
    %v92 = vpop.permute.xlu0 %91
    %vm93 = vcmask 589344
    %94 = vst.msk [vmem:[#allocation0] sm:$0x1] %vm93, %v92
    %s95 = scalar_lea.vmem %s0, 16
    %v96 = vld [vmem:[%s95] sm:$0x1]
    %97 = vrot.lane.b32.xlu0 %v96, 64
    %v98 = vpop.permute.xlu0 %97
    %vm99 = vcmask 556544
    %100 = vst.msk [vmem:[#allocation0] sm:$0x1] %vm99, %v98
    %s101 = scalar_lea.vmem %s0, 15
    %v102 = vld [vmem:[%s101] sm:$0x1]
    %103 = vrot.lane.b32.xlu0 %v102, 60
    %v104 = vpop.permute.xlu0 %103
    %vm105 = vcmask 523744
    %106 = vst.msk [vmem:[#allocation0] sm:$0x1] %vm105, %v104
    %s107 = scalar_lea.vmem %s0, 14
    %v108 = vld [vmem:[%s107] sm:$0x1]
    %109 = vrot.lane.b32.xlu0 %v108, 56
    %v110 = vpop.permute.xlu0 %109
    %vm111 = vcmask 490944
    %112 = vst.msk [vmem:[#allocation0] sm:$0x1] %vm111, %v110
    %s113 = scalar_lea.vmem %s0, 13
    %v114 = vld [vmem:[%s113] sm:$0x1]
    %115 = vrot.lane.b32.xlu0 %v114, 52
    %v116 = vpop.permute.xlu0 %115
    %vm117 = vcmask 458144
    %118 = vst.msk [vmem:[#allocation0] sm:$0x1] %vm117, %v116
    %s119 = scalar_lea.vmem %s0, 12
    %v120 = vld [vmem:[%s119] sm:$0x1]
    %121 = vrot.lane.b32.xlu0 %v120, 48
    %v122 = vpop.permute.xlu0 %121
    %vm123 = vcmask 425344
    %124 = vst.msk [vmem:[#allocation0] sm:$0x1] %vm123, %v122
    %s125 = scalar_lea.vmem %s0, 11
    %v126 = vld [vmem:[%s125] sm:$0x1]
    %127 = vrot.lane.b32.xlu0 %v126, 44
    %v128 = vpop.permute.xlu0 %127
    %vm129 = vcmask 392544
    %130 = vst.msk [vmem:[#allocation0] sm:$0x1] %vm129, %v128
    %s131 = scalar_lea.vmem %s0, 10
    %v132 = vld [vmem:[%s131] sm:$0x1]
    %133 = vrot.lane.b32.xlu0 %v132, 40
    %v134 = vpop.permute.xlu0 %133
    %vm135 = vcmask 359744
    %136 = vst.msk [vmem:[#allocation0] sm:$0x1] %vm135, %v134
    %s137 = scalar_lea.vmem %s0, 9
    %v138 = vld [vmem:[%s137] sm:$0x1]
    %139 = vrot.lane.b32.xlu0 %v138, 36
    %v140 = vpop.permute.xlu0 %139
    %vm141 = vcmask 326944
    %142 = vst.msk [vmem:[#allocation0] sm:$0x1] %vm141, %v140
    %s143 = scalar_lea.vmem %s0, 8
    %v144 = vld [vmem:[%s143] sm:$0x1]
    %145 = vrot.lane.b32.xlu0 %v144, 32
    %v146 = vpop.permute.xlu0 %145
    %vm147 = vcmask 294144
    %148 = vst.msk [vmem:[#allocation0] sm:$0x1] %vm147, %v146
    %s149 = scalar_lea.vmem %s0, 7
    %v150 = vld [vmem:[%s149] sm:$0x1]
    %151 = vrot.lane.b32.xlu0 %v150, 28
    %v152 = vpop.permute.xlu0 %151
    %vm153 = vcmask 261344
    %154 = vst.msk [vmem:[#allocation0] sm:$0x1] %vm153, %v152
    %s155 = scalar_lea.vmem %s0, 6
    %v156 = vld [vmem:[%s155] sm:$0x1]
    %157 = vrot.lane.b32.xlu0 %v156, 24
    %v158 = vpop.permute.xlu0 %157
    %vm159 = vcmask 228544
    %160 = vst.msk [vmem:[#allocation0] sm:$0x1] %vm159, %v158
    %s161 = scalar_lea.vmem %s0, 5
    %v162 = vld [vmem:[%s161] sm:$0x1]
    %163 = vrot.lane.b32.xlu0 %v162, 20
    %v164 = vpop.permute.xlu0 %163
    %vm165 = vcmask 195744
    %166 = vst.msk [vmem:[#allocation0] sm:$0x1] %vm165, %v164
    %s167 = scalar_lea.vmem %s0, 4
    %v168 = vld [vmem:[%s167] sm:$0x1]
    %169 = vrot.lane.b32.xlu0 %v168, 16
    %v170 = vpop.permute.xlu0 %169
    %vm171 = vcmask 162944
    %172 = vst.msk [vmem:[#allocation0] sm:$0x1] %vm171, %v170
    %s173 = scalar_lea.vmem %s0, 3
    %v174 = vld [vmem:[%s173] sm:$0x1]
    %175 = vrot.lane.b32.xlu0 %v174, 12
    %v176 = vpop.permute.xlu0 %175
    %vm177 = vcmask 130144
    %178 = vst.msk [vmem:[#allocation0] sm:$0x1] %vm177, %v176
    %s179 = scalar_lea.vmem %s0, 2
    %v180 = vld [vmem:[%s179] sm:$0x1]
    %181 = vrot.lane.b32.xlu0 %v180, 8
    %v182 = vpop.permute.xlu0 %181
    %vm183 = vcmask 97344
    %184 = vst.msk [vmem:[#allocation0] sm:$0x1] %vm183, %v182
    %s185 = scalar_lea.vmem %s0, 1
    %v186 = vld [vmem:[%s185] sm:$0x1]
    %187 = vrot.lane.b32.xlu0 %v186, 4
    %v188 = vpop.permute.xlu0 %187
    %vm189 = vcmask 64544
    %190 = vst.msk [vmem:[#allocation0] sm:$0x1] %vm189, %v188
    %s192 = sshllo.u32 0, 1
    %v194 = vld [vmem:[#allocation0] sm:%s192]
    %s195 = sshllo.u32 0, 1
    %196 = vst [vmem:[%s1] sm:%s195] %v194

// kernel: _forward.10
$region0: #{_forward.10}
  #allocation0 [shape = 'u32[]', space=smem, size = 0x4, offset = 0x4, fixed_abs, tag = 'smem constant byte address 0x4 - core index']
  #allocation1 [shape = 'u32[144,128]{1,0:T(1,128)}', space=vmem, size = 0x12000, scoped, tag = 'internal scratch']
  %s0 = inlined_call_operand.vmem [shape: bf16[2,17,17,8], index: 0, kind: input, shape index: {}]
  %s1 = inlined_call_operand.vmem [shape: bf16[3,3,8,4], index: 1, kind: input, shape index: {}]
  %s2 = inlined_call_operand.vmem [shape: bf16[2,16,2,16,8], index: 2, kind: output, shape index: {0}]
  %s3 = inlined_call_operand.vmem [shape: f32[2,2,8,4], index: 3, kind: output, shape index: {1}]
  %4 = xla_tuple %s2, %s3
  %s5 = sld [smem:[#allocation0]]
  $region49: #{_forward.10} parent=0
    _
  %s7 = ssub.s32 1, %s5
  %s8 = scalar_select 0, %s7, %s5
  loop: start=0, step=1, limit=6
  $region2: #{_forward.10} parent=0 // loop_pre_header
    _
  $region3: #{_forward.10} parent=0 // loop_header
    %s10 = sphi 0, %s14
    %p11 = scmp.ge.s32.totalorder %s10, 6
    %s17 = sphi 0, %s29
    %s18 = sphi 0, %s25
    %s19 = sphi 0, %s17
    %s20 = sphi 0, %s18
    %s21 = sphi 0, %s19
    %s22 = sphi 0, %s20
    %s32 = sphi 0, %s34
    %s35 = sphi 0, %s32
    %s36 = sphi 0, %s35
    %s52 = sphi 0, %s36
    %s56 = sphi 0, %s56
    %s58 = sphi 0, %s56
    %s59 = sphi 0, %s58
    %s73 = sphi 0, %s59
    %s81 = sphi 0, %s83
    %s84 = sphi 0, %s81
    %s85 = sphi 0, %s84
    %s101 = sphi 0, %s85
    %s109 = sphi 0, %s111
    %s112 = sphi 0, %s109
    %s113 = sphi 0, %s112
    %s129 = sphi 0, %s113
  $region4: #{_forward.10} parent=0 // loop_header_branch
    %13 = sbr.rel (%p11) target = $region8
  $region5: #{_forward.10} parent=0 // loop_body
    %s15 = ssub.s32 %s10, 1
    %s16 = ssub.s32 %s10, 2
    %s23 = sadd.s32 1, %s18
    %p24 = scmp.ge.s32.totalorder %s23, 2
    %s25 = scalar_select %p24, 0, %s23
    %s26 = sadd.s32 1, %s17
    %s27 = scalar_select %p24, %s26, %s17
    %p28 = scmp.ge.s32.totalorder %s27, 2
    %s29 = scalar_select %p28, 0, %s27
    %s30 = ssub.s32 %s17, %s29
    %p31 = scmp.eq.s32.totalorder %s30, 0
    %s33 = sadd.s32 %s32, 1
    %s34 = scalar_select %p31, %s32, %s33
    %p37 = pneg %p31
    %p38 = scmp.eq.s32.totalorder %s10, 3
    %p39 = por %p37, %p38
    %p40 = scmp.ne.s32.totalorder %s32, %s35
    %p41 = scmp.eq.s32.totalorder %s10, 0
    %p42 = por %p40, %p41
    %p43 = scmp.ne.s32.totalorder %s32, %s35
    %p44 = scmp.eq.s32.totalorder %s15, 3
    %p45 = por %p43, %p44
    %p46 = scmp.ne.s32.totalorder %s35, %s36
    %p47 = scmp.eq.s32.totalorder %s15, 0
    %p48 = por %p46, %p47
    %p49 = scmp.ne.s32.totalorder %s35, %s36
    %p50 = scmp.eq.s32.totalorder %s16, 3
    %p51 = por %p49, %p50
    %p53 = scmp.ne.s32.totalorder %s36, %s52
    %p54 = scmp.eq.s32.totalorder %s16, 0
    %p55 = por %p53, %p54
    %s57 = sadd.s32 %s56, 1
    %p60 = scmp.eq.s32.totalorder %s10, 3
    %p61 = scmp.ne.s32.totalorder %s56, %s58
    %p62 = scmp.eq.s32.totalorder %s10, 0
    %p63 = por %p61, %p62
    %p64 = scmp.ne.s32.totalorder %s56, %s58
    %p65 = scmp.eq.s32.totalorder %s15, 3
    %p66 = por %p64, %p65
    %p67 = scmp.ne.s32.totalorder %s58, %s59
    %p68 = scmp.eq.s32.totalorder %s15, 0
    %p69 = por %p67, %p68
    %p70 = scmp.ne.s32.totalorder %s58, %s59
    %p71 = scmp.eq.s32.totalorder %s16, 3
    %p72 = por %p70, %p71
    %p74 = scmp.ne.s32.totalorder %s59, %s73
    %p75 = scmp.eq.s32.totalorder %s16, 0
    %p76 = por %p74, %p75
    %s77 = ssub.s32 %s17, %s29
    %s78 = ssub.s32 %s18, %s25
    %s79 = sor.u32 %s77, %s78
    %p80 = scmp.eq.s32.totalorder %s79, 0
    %s82 = sadd.s32 %s81, 1
    %s83 = scalar_select %p80, %s81, %s82
    %p86 = pneg %p80
    %p87 = scmp.eq.s32.totalorder %s10, 3
    %p88 = por %p86, %p87
    %p89 = scmp.ne.s32.totalorder %s81, %s84
    %p90 = scmp.eq.s32.totalorder %s10, 0
    %p91 = por %p89, %p90
    %p92 = scmp.ne.s32.totalorder %s81, %s84
    %p93 = scmp.eq.s32.totalorder %s15, 3
    %p94 = por %p92, %p93
    %p95 = scmp.ne.s32.totalorder %s84, %s85
    %p96 = scmp.eq.s32.totalorder %s15, 0
    %p97 = por %p95, %p96
    %p98 = scmp.ne.s32.totalorder %s84, %s85
    %p99 = scmp.eq.s32.totalorder %s16, 3
    %p100 = por %p98, %p99
    %p102 = scmp.ne.s32.totalorder %s85, %s101
    %p103 = scmp.eq.s32.totalorder %s16, 0
    %p104 = por %p102, %p103
    %s105 = ssub.s32 %s17, %s29
    %s106 = ssub.s32 %s18, %s25
    %s107 = sor.u32 %s105, %s106
    %p108 = scmp.eq.s32.totalorder %s107, 0
    %s110 = sadd.s32 %s109, 1
    %s111 = scalar_select %p108, %s109, %s110
    %p114 = pneg %p108
    %p115 = scmp.eq.s32.totalorder %s10, 3
    %p116 = por %p114, %p115
    %p117 = scmp.ne.s32.totalorder %s109, %s112
    %p118 = scmp.eq.s32.totalorder %s10, 0
    %p119 = por %p117, %p118
    %p120 = scmp.ne.s32.totalorder %s109, %s112
    %p121 = scmp.eq.s32.totalorder %s15, 3
    %p122 = por %p120, %p121
    %p123 = scmp.ne.s32.totalorder %s112, %s113
    %p124 = scmp.eq.s32.totalorder %s15, 0
    %p125 = por %p123, %p124
    %p126 = scmp.ne.s32.totalorder %s112, %s113
    %p127 = scmp.eq.s32.totalorder %s16, 3
    %p128 = por %p126, %p127
    %p130 = scmp.ne.s32.totalorder %s113, %s129
    %p131 = scmp.eq.s32.totalorder %s16, 0
    %p132 = por %p130, %p131
    %p133 = scmp.le.s32.totalorder 1, %s10
    %p134 = scmp.lt.s32.totalorder %s10, 5
    %p135 = pnand %p133, %p134
    %p136 = pneg %p135
    // Predicated region
    $region9: #{_forward.10} parent=5 // pred_check
      _
    $region10: #{_forward.10} parent=5 // pred_check_branch
      %138 = sbr.rel (%p135) target = $region12
    $region11: #{_forward.10} parent=5 // pred_region
      %s139 = ssub.s32 %s10, 1
      // Predicated region
      $region13: #{_forward.10} parent=11 // pred_check
        %p140 = pneg %p69
      $region14: #{_forward.10} parent=11 // pred_check_branch
        %142 = sbr.rel (%p140) target = $region16
      $region15: #{_forward.10} parent=11 // pred_region
        _
      $region16: #{_forward.10} parent=11 // pred_fallthru
        _
    $region12: #{_forward.10} parent=5 // pred_fallthru
      _
    %p143 = scmp.lt.s32.totalorder %s10, 4
    // Predicated region
    $region17: #{_forward.10} parent=5 // pred_check
      %p144 = pneg %p143
    $region18: #{_forward.10} parent=5 // pred_check_branch
      %146 = sbr.rel (%p144) target = $region20
    $region19: #{_forward.10} parent=5 // pred_region
      // Predicated region
      $region21: #{_forward.10} parent=19 // pred_check
        %p147 = pneg %p42
      $region22: #{_forward.10} parent=19 // pred_check_branch
        %149 = sbr.rel (%p147) target = $region24
      $region23: #{_forward.10} parent=19 // pred_region
        %p150 = scmp.lt.s32.totalorder %s17, 1
        %s151 = scalar_select %p150, %s17, 1
        %s152 = smul.addr %s151, 51
        %s153 = smul.addr %s152, 4
        %s154 = scalar_lea.vmem %s0, %s153
      $region24: #{_forward.10} parent=19 // pred_fallthru
        _
    $region20: #{_forward.10} parent=5 // pred_fallthru
      _
    %p155 = scmp.le.s32.totalorder 1, %s10
    %p156 = scmp.lt.s32.totalorder %s10, 5
    %p157 = pnand %p155, %p156
    %p158 = pneg %p157
    // Predicated region
    $region25: #{_forward.10} parent=5 // pred_check
      _
    $region26: #{_forward.10} parent=5 // pred_check_branch
      %160 = sbr.rel (%p157) target = $region28
    $region27: #{_forward.10} parent=5 // pred_region
      %s161 = ssub.s32 %s10, 1
      %p162 = scmp.lt.s32.totalorder %s19, 1
      %s163 = scalar_select %p162, %s19, 1
      %s164 = smul.addr %s163, 51
      %s165 = smul.addr %s164, 4
      %s166 = scalar_lea.vmem %s0, %s165
      %p167 = pneg %p48
      %p168 = pneg %p45
      %p169 = pneg %p69
      %p170 = pneg %p66
      %p171 = pneg %p97
      %p172 = pneg %p94
      %s173 = smul.u32 8, %s20
      %p174 = scmp.lt.s32.totalorder %s19, 1
      %s175 = scalar_select %p174, %s19, 1
      %p176 = scmp.lt.s32.totalorder %s173, 15
      %s177 = scalar_select %p176, %s173, 15
      %s178 = smul.addr %s177, 4
      %s179 = smul.addr %s175, 64
      %s180 = sadd.s32 %s178, %s179
      %s181 = smul.addr %s180, 4
      %s182 = scalar_lea.vmem %s2, %s181
      %p183 = pneg %p125
      %p184 = pneg %p122
      %p185 = scmp.lt.s32.totalorder %s19, 1
      %s186 = scalar_select %p185, %s19, 1
      %p187 = scmp.lt.s32.totalorder %s20, 1
      %s188 = scalar_select %p187, %s20, 1
      %s189 = smul.addr %s186, 2
      %s190 = sadd.s32 %s188, %s189
      %s191 = smul.addr %s190, 8
      %s192 = scalar_lea.vmem %s3, %s191
      %p193 = scmp.lt.s32.totalorder %s19, 1
      %s194 = scalar_select %p193, %s19, 1
      %s195 = smul.addr %s194, 51
      %s196 = smul.addr %s195, 4
      %s197 = scalar_lea.vmem %s0, %s196
      %s198 = smul.u32 8, %s20
      %p199 = scmp.lt.s32.totalorder %s19, 1
      %s200 = scalar_select %p199, %s19, 1
      %p201 = scmp.lt.s32.totalorder %s198, 15
      %s202 = scalar_select %p201, %s198, 15
      %s203 = smul.addr %s202, 4
      %s204 = smul.addr %s200, 64
      %s205 = sadd.s32 %s203, %s204
      %s206 = smul.addr %s205, 4
      %s207 = scalar_lea.vmem %s2, %s206
      %s208 = smul.u32 8, %s20
      %p209 = scmp.lt.s32.totalorder %s19, 1
      %s210 = scalar_select %p209, %s19, 1
      %p211 = scmp.lt.s32.totalorder %s20, 1
      %s212 = scalar_select %p211, %s20, 1
      %s213 = smul.addr %s210, 2
      %s214 = sadd.s32 %s212, %s213
      %s215 = smul.addr %s214, 8
      %s216 = scalar_lea.vmem %s3, %s215
      %s218 = smul.u32 %s20, 8
      %s219 = smul.u32 %s218, 3
      %s220 = smul.addr %s219, 4
      %s221 = scalar_lea.vmem %s197, %s220
      %v222 = vld [vmem:[%s221] sm:$0xf]
      %v223 = vld [vmem:[%s221 + $0x4] sm:$0xf]
      %v224 = vld [vmem:[%s221 + $0xc] sm:$0xf]
      %v225 = vld [vmem:[%s221 + $0x10] sm:$0xf]
      %v226 = vld [vmem:[%s221 + $0x18] sm:$0xf]
      %v227 = vld [vmem:[%s221 + $0x1c] sm:$0xf]
      %v228 = vld [vmem:[%s221 + $0x24] sm:$0xf]
      %v229 = vld [vmem:[%s221 + $0x28] sm:$0xf]
      %v230 = vld [vmem:[%s221 + $0x30] sm:$0xf]
      %v231 = vld [vmem:[%s221 + $0x34] sm:$0xf]
      %v232 = vld [vmem:[%s221 + $0x3c] sm:$0xf]
      %v233 = vld [vmem:[%s221 + $0x40] sm:$0xf]
      %v234 = vld [vmem:[%s221 + $0x48] sm:$0xf]
      %v235 = vld [vmem:[%s221 + $0x4c] sm:$0xf]
      %v236 = vld [vmem:[%s221 + $0x54] sm:$0xf]
      %v237 = vld [vmem:[%s221 + $0x58] sm:$0xf]
      %v238 = vld [vmem:[%s221 + $0x8] sm:$0x1]
      %v239 = vld [vmem:[%s221 + $0x14] sm:$0x1]
      %v240 = vld [vmem:[%s221 + $0x20] sm:$0x1]
      %v241 = vld [vmem:[%s221 + $0x2c] sm:$0x1]
      %v242 = vld [vmem:[%s221 + $0x38] sm:$0x1]
      %v243 = vld [vmem:[%s221 + $0x44] sm:$0x1]
      %v244 = vld [vmem:[%s221 + $0x50] sm:$0x1]
      %v245 = vld [vmem:[%s221 + $0x5c] sm:$0x1]
      %vm246 = vsmask.f32 3328
      %vm247 = vsmask.f32 7440
      %vm248 = vmor %vm246, %vm247
      %v250 = vshrl.u32 %v222, 16
      %v252 = vrot.slane %v250, 4
      %v253 = vshll.u32 %v222, 16
      %v255 = vrot.slane %v253, 5
      %v256 = vor.u32 %v252, %v255
      %v257 = vrot.slane %v256, 4
      %v259 = vshll.u32 %v223, 16
      %v261 = vrot.slane %v259, 5
      %v262 = vsel %vm248, %v257, %v261
      %v263 = vshrl.u32 %v223, 16
      %v265 = vrot.slane %v263, 4
      %v266 = vor.u32 %v265, %v261
      %v267 = vrot.slane %v266, 4
      %v269 = vshll.u32 %v238, 16
      %v271 = vrot.slane %v269, 5
      %v272 = vsel %vm248, %v267, %v271
      %v274 = vshrl.u32 %v224, 16
      %v276 = vrot.slane %v274, 4
      %v277 = vshll.u32 %v224, 16
      %v279 = vrot.slane %v277, 5
      %v280 = vor.u32 %v276, %v279
      %v281 = vrot.slane %v280, 4
      %v283 = vshll.u32 %v225, 16
      %v285 = vrot.slane %v283, 5
      %v286 = vsel %vm248, %v281, %v285
      %v287 = vshrl.u32 %v225, 16
      %v289 = vrot.slane %v287, 4
      %v290 = vor.u32 %v289, %v285
      %v291 = vrot.slane %v290, 4
      %v293 = vshll.u32 %v239, 16
      %v295 = vrot.slane %v293, 5
      %v296 = vsel %vm248, %v291, %v295
      %v298 = vshrl.u32 %v226, 16
      %v300 = vrot.slane %v298, 4
      %v301 = vshll.u32 %v226, 16
      %v303 = vrot.slane %v301, 5
      %v304 = vor.u32 %v300, %v303
      %v305 = vrot.slane %v304, 4
      %v307 = vshll.u32 %v227, 16
      %v309 = vrot.slane %v307, 5
      %v310 = vsel %vm248, %v305, %v309
      %v311 = vshrl.u32 %v227, 16
      %v313 = vrot.slane %v311, 4
      %v314 = vor.u32 %v313, %v309
      %v315 = vrot.slane %v314, 4
      %v317 = vshll.u32 %v240, 16
      %v319 = vrot.slane %v317, 5
      %v320 = vsel %vm248, %v315, %v319
      %v322 = vshrl.u32 %v228, 16
      %v324 = vrot.slane %v322, 4
      %v325 = vshll.u32 %v228, 16
      %v327 = vrot.slane %v325, 5
      %v328 = vor.u32 %v324, %v327
      %v329 = vrot.slane %v328, 4
      %v331 = vshll.u32 %v229, 16
      %v333 = vrot.slane %v331, 5
      %v334 = vsel %vm248, %v329, %v333
      %v335 = vshrl.u32 %v229, 16
      %v337 = vrot.slane %v335, 4
      %v338 = vor.u32 %v337, %v333
      %v339 = vrot.slane %v338, 4
      %v341 = vshll.u32 %v241, 16
      %v343 = vrot.slane %v341, 5
      %v344 = vsel %vm248, %v339, %v343
      %v346 = vshrl.u32 %v230, 16
      %v348 = vrot.slane %v346, 4
      %v349 = vshll.u32 %v230, 16
      %v351 = vrot.slane %v349, 5
      %v352 = vor.u32 %v348, %v351
      %v353 = vrot.slane %v352, 4
      %v355 = vshll.u32 %v231, 16
      %v357 = vrot.slane %v355, 5
      %v358 = vsel %vm248, %v353, %v357
      %v359 = vshrl.u32 %v231, 16
      %v361 = vrot.slane %v359, 4
      %v362 = vor.u32 %v361, %v357
      %v363 = vrot.slane %v362, 4
      %v365 = vshll.u32 %v242, 16
      %v367 = vrot.slane %v365, 5
      %v368 = vsel %vm248, %v363, %v367
      %v370 = vshrl.u32 %v232, 16
      %v372 = vrot.slane %v370, 4
      %v373 = vshll.u32 %v232, 16
      %v375 = vrot.slane %v373, 5
      %v376 = vor.u32 %v372, %v375
      %v377 = vrot.slane %v376, 4
      %v379 = vshll.u32 %v233, 16
      %v381 = vrot.slane %v379, 5
      %v382 = vsel %vm248, %v377, %v381
      %v383 = vshrl.u32 %v233, 16
      %v385 = vrot.slane %v383, 4
      %v386 = vor.u32 %v385, %v381
      %v387 = vrot.slane %v386, 4
      %v389 = vshll.u32 %v243, 16
      %v391 = vrot.slane %v389, 5
      %v392 = vsel %vm248, %v387, %v391
      %v394 = vshrl.u32 %v234, 16
      %v396 = vrot.slane %v394, 4
      %v397 = vshll.u32 %v234, 16
      %v399 = vrot.slane %v397, 5
      %v400 = vor.u32 %v396, %v399
      %v401 = vrot.slane %v400, 4
      %v403 = vshll.u32 %v235, 16
      %v405 = vrot.slane %v403, 5
      %v406 = vsel %vm248, %v401, %v405
      %v407 = vshrl.u32 %v235, 16
      %v409 = vrot.slane %v407, 4
      %v410 = vor.u32 %v409, %v405
      %v411 = vrot.slane %v410, 4
      %v413 = vshll.u32 %v244, 16
      %v415 = vrot.slane %v413, 5
      %v416 = vsel %vm248, %v411, %v415
      %v418 = vshrl.u32 %v236, 16
      %v420 = vrot.slane %v418, 4
      %v421 = vshll.u32 %v236, 16
      %v423 = vrot.slane %v421, 5
      %v424 = vor.u32 %v420, %v423
      %v425 = vrot.slane %v424, 4
      %v427 = vshll.u32 %v237, 16
      %v429 = vrot.slane %v427, 5
      %v430 = vsel %vm248, %v425, %v429
      %v431 = vshrl.u32 %v237, 16
      %v433 = vrot.slane %v431, 4
      %v434 = vor.u32 %v433, %v429
      %v435 = vrot.slane %v434, 4
      %v437 = vshll.u32 %v245, 16
      %v439 = vrot.slane %v437, 5
      %v440 = vsel %vm248, %v435, %v439
      %s441 = sadd.s32 %s218, 1
      %s442 = smul.u32 %s441, 3
      %s443 = smul.addr %s442, 4
      %s444 = scalar_lea.vmem %s197, %s443
      %v445 = vld [vmem:[%s444] sm:$0xf]
      %v446 = vld [vmem:[%s444 + $0x4] sm:$0xf]
      %v447 = vld [vmem:[%s444 + $0xc] sm:$0xf]
      %v448 = vld [vmem:[%s444 + $0x10] sm:$0xf]
      %v449 = vld [vmem:[%s444 + $0x18] sm:$0xf]
      %v450 = vld [vmem:[%s444 + $0x1c] sm:$0xf]
      %v451 = vld [vmem:[%s444 + $0x24] sm:$0xf]
      %v452 = vld [vmem:[%s444 + $0x28] sm:$0xf]
      %v453 = vld [vmem:[%s444 + $0x30] sm:$0xf]
      %v454 = vld [vmem:[%s444 + $0x34] sm:$0xf]
      %v455 = vld [vmem:[%s444 + $0x3c] sm:$0xf]
      %v456 = vld [vmem:[%s444 + $0x40] sm:$0xf]
      %v457 = vld [vmem:[%s444 + $0x48] sm:$0xf]
      %v458 = vld [vmem:[%s444 + $0x4c] sm:$0xf]
      %v459 = vld [vmem:[%s444 + $0x54] sm:$0xf]
      %v460 = vld [vmem:[%s444 + $0x58] sm:$0xf]
      %v461 = vld [vmem:[%s444 + $0x8] sm:$0x1]
      %v462 = vld [vmem:[%s444 + $0x14] sm:$0x1]
      %v463 = vld [vmem:[%s444 + $0x20] sm:$0x1]
      %v464 = vld [vmem:[%s444 + $0x2c] sm:$0x1]
      %v465 = vld [vmem:[%s444 + $0x38] sm:$0x1]
      %v466 = vld [vmem:[%s444 + $0x44] sm:$0x1]
      %v467 = vld [vmem:[%s444 + $0x50] sm:$0x1]
      %v468 = vld [vmem:[%s444 + $0x5c] sm:$0x1]
      %v470 = vshrl.u32 %v445, 16
      %v472 = vrot.slane %v470, 4
      %v473 = vshll.u32 %v445, 16
      %v475 = vrot.slane %v473, 5
      %v476 = vor.u32 %v472, %v475
      %v477 = vrot.slane %v476, 4
      %v479 = vshll.u32 %v446, 16
      %v481 = vrot.slane %v479, 5
      %v482 = vsel %vm248, %v477, %v481
      %v483 = vshrl.u32 %v446, 16
      %v485 = vrot.slane %v483, 4
      %v486 = vor.u32 %v485, %v481
      %v487 = vrot.slane %v486, 4
      %v489 = vshll.u32 %v461, 16
      %v491 = vrot.slane %v489, 5
      %v492 = vsel %vm248, %v487, %v491
      %v494 = vshrl.u32 %v447, 16
      %v496 = vrot.slane %v494, 4
      %v497 = vshll.u32 %v447, 16
      %v499 = vrot.slane %v497, 5
      %v500 = vor.u32 %v496, %v499
      %v501 = vrot.slane %v500, 4
      %v503 = vshll.u32 %v448, 16
      %v505 = vrot.slane %v503, 5
      %v506 = vsel %vm248, %v501, %v505
      %v507 = vshrl.u32 %v448, 16
      %v509 = vrot.slane %v507, 4
      %v510 = vor.u32 %v509, %v505
      %v511 = vrot.slane %v510, 4
      %v513 = vshll.u32 %v462, 16
      %v515 = vrot.slane %v513, 5
      %v516 = vsel %vm248, %v511, %v515
      %v518 = vshrl.u32 %v449, 16
      %v520 = vrot.slane %v518, 4
      %v521 = vshll.u32 %v449, 16
      %v523 = vrot.slane %v521, 5
      %v524 = vor.u32 %v520, %v523
      %v525 = vrot.slane %v524, 4
      %v527 = vshll.u32 %v450, 16
      %v529 = vrot.slane %v527, 5
      %v530 = vsel %vm248, %v525, %v529
      %v531 = vshrl.u32 %v450, 16
      %v533 = vrot.slane %v531, 4
      %v534 = vor.u32 %v533, %v529
      %v535 = vrot.slane %v534, 4
      %v537 = vshll.u32 %v463, 16
      %v539 = vrot.slane %v537, 5
      %v540 = vsel %vm248, %v535, %v539
      %v542 = vshrl.u32 %v451, 16
      %v544 = vrot.slane %v542, 4
      %v545 = vshll.u32 %v451, 16
      %v547 = vrot.slane %v545, 5
      %v548 = vor.u32 %v544, %v547
      %v549 = vrot.slane %v548, 4
      %v551 = vshll.u32 %v452, 16
      %v553 = vrot.slane %v551, 5
      %v554 = vsel %vm248, %v549, %v553
      %v555 = vshrl.u32 %v452, 16
      %v557 = vrot.slane %v555, 4
      %v558 = vor.u32 %v557, %v553
      %v559 = vrot.slane %v558, 4
      %v561 = vshll.u32 %v464, 16
      %v563 = vrot.slane %v561, 5
      %v564 = vsel %vm248, %v559, %v563
      %v566 = vshrl.u32 %v453, 16
      %v568 = vrot.slane %v566, 4
      %v569 = vshll.u32 %v453, 16
      %v571 = vrot.slane %v569, 5
      %v572 = vor.u32 %v568, %v571
      %v573 = vrot.slane %v572, 4
      %v575 = vshll.u32 %v454, 16
      %v577 = vrot.slane %v575, 5
      %v578 = vsel %vm248, %v573, %v577
      %v579 = vshrl.u32 %v454, 16
      %v581 = vrot.slane %v579, 4
      %v582 = vor.u32 %v581, %v577
      %v583 = vrot.slane %v582, 4
      %v585 = vshll.u32 %v465, 16
      %v587 = vrot.slane %v585, 5
      %v588 = vsel %vm248, %v583, %v587
      %v590 = vshrl.u32 %v455, 16
      %v592 = vrot.slane %v590, 4
      %v593 = vshll.u32 %v455, 16
      %v595 = vrot.slane %v593, 5
      %v596 = vor.u32 %v592, %v595
      %v597 = vrot.slane %v596, 4
      %v599 = vshll.u32 %v456, 16
      %v601 = vrot.slane %v599, 5
      %v602 = vsel %vm248, %v597, %v601
      %v603 = vshrl.u32 %v456, 16
      %v605 = vrot.slane %v603, 4
      %v606 = vor.u32 %v605, %v601
      %v607 = vrot.slane %v606, 4
      %v609 = vshll.u32 %v466, 16
      %v611 = vrot.slane %v609, 5
      %v612 = vsel %vm248, %v607, %v611
      %v614 = vshrl.u32 %v457, 16
      %v616 = vrot.slane %v614, 4
      %v617 = vshll.u32 %v457, 16
      %v619 = vrot.slane %v617, 5
      %v620 = vor.u32 %v616, %v619
      %v621 = vrot.slane %v620, 4
      %v623 = vshll.u32 %v458, 16
      %v625 = vrot.slane %v623, 5
      %v626 = vsel %vm248, %v621, %v625
      %v627 = vshrl.u32 %v458, 16
      %v629 = vrot.slane %v627, 4
      %v630 = vor.u32 %v629, %v625
      %v631 = vrot.slane %v630, 4
      %v633 = vshll.u32 %v467, 16
      %v635 = vrot.slane %v633, 5
      %v636 = vsel %vm248, %v631, %v635
      %v638 = vshrl.u32 %v459, 16
      %v640 = vrot.slane %v638, 4
      %v641 = vshll.u32 %v459, 16
      %v643 = vrot.slane %v641, 5
      %v644 = vor.u32 %v640, %v643
      %v645 = vrot.slane %v644, 4
      %v647 = vshll.u32 %v460, 16
      %v649 = vrot.slane %v647, 5
      %v650 = vsel %vm248, %v645, %v649
      %v651 = vshrl.u32 %v460, 16
      %v653 = vrot.slane %v651, 4
      %v654 = vor.u32 %v653, %v649
      %v655 = vrot.slane %v654, 4
      %v657 = vshll.u32 %v468, 16
      %v659 = vrot.slane %v657, 5
      %v660 = vsel %vm248, %v655, %v659
      %s661 = scalar_lea.vmem %s1, 16
      %v662 = vld [vmem:[%s661] sm:$0xf]
      %v679 = vunpack.c.l.b16 %v222
      %v680 = vunpack.c.l.b16 %v223
      %v681 = vunpack.c.l.b16 %v224
      %v682 = vunpack.c.l.b16 %v225
      %v683 = vunpack.c.l.b16 %v226
      %v684 = vunpack.c.l.b16 %v227
      %v685 = vunpack.c.l.b16 %v228
      %v686 = vunpack.c.l.b16 %v229
      %v687 = vunpack.c.l.b16 %v230
      %v688 = vunpack.c.l.b16 %v231
      %v689 = vunpack.c.l.b16 %v232
      %v690 = vunpack.c.l.b16 %v233
      %v691 = vunpack.c.l.b16 %v234
      %v692 = vunpack.c.l.b16 %v235
      %v693 = vunpack.c.l.b16 %v236
      %v694 = vunpack.c.l.b16 %v237
      %v695 = vpack.c.b16 %v680, %v679
      %v696 = vpack.c.b16 %v682, %v681
      %v697 = vpack.c.b16 %v684, %v683
      %v698 = vpack.c.b16 %v686, %v685
      %v699 = vpack.c.b16 %v688, %v687
      %v700 = vpack.c.b16 %v690, %v689
      %v701 = vpack.c.b16 %v692, %v691
      %v702 = vpack.c.b16 %v694, %v693
      %vm703 = vcmask 64512
      %v705 = vsel %vm703, %v695, 0
      %v708 = vsel %vm703, %v696, 0
      %v711 = vsel %vm703, %v697, 0
      %v714 = vsel %vm703, %v698, 0
      %v717 = vsel %vm703, %v699, 0
      %v720 = vsel %vm703, %v700, 0
      %v723 = vsel %vm703, %v701, 0
      %v726 = vsel %vm703, %v702, 0
      %vm728 = vcmask 1043456
      %v730 = vsel %vm728, %v662, 0
      %732 = vmatprep.subr.bf16.mxu0 0
      %733 = vmatpush1.bf16.msra.mxu0 %v730
      %734 = vmatprep.subr.bf16.mxu0 0
      %735 = vmatpush1.bf16.msra.mxu0 0
      %736 = vmatprep.subr.bf16.mxu0 0
      %737 = vmatpush1.bf16.msra.mxu0 0
      %738 = vmatprep.subr.bf16.mxu0 0
      %739 = vmatpush1.bf16.msra.mxu0 0
      %740 = vmatprep.subr.bf16.mxu0 0
      %741 = vmatpush1.bf16.msra.mxu0 0
      %742 = vmatprep.subr.bf16.mxu0 0
      %743 = vmatpush1.bf16.msra.mxu0 0
      %744 = vmatprep.subr.bf16.mxu0 0
      %745 = vmatpush1.bf16.msra.mxu0 0
      %746 = vmatprep.subr.bf16.mxu0 0
      %747 = vmatpush1.bf16.msra.mxu0 0
      %748 = vmatprep.subr.bf16.mxu0 0
      %749 = vmatpush1.bf16.msra.mxu0 0
      %750 = vmatprep.subr.bf16.mxu0 0
      %751 = vmatpush1.bf16.msra.mxu0 0
      %752 = vmatprep.subr.bf16.mxu0 0
      %753 = vmatpush1.bf16.msra.mxu0 0
      %754 = vmatprep.subr.bf16.mxu0 0
      %755 = vmatpush1.bf16.msra.mxu0 0
      %756 = vmatprep.subr.bf16.mxu0 0
      %757 = vmatpush1.bf16.msra.mxu0 0
      %758 = vmatprep.subr.bf16.mxu0 0
      %759 = vmatpush1.bf16.msra.mxu0 0
      %760 = vmatprep.subr.bf16.mxu0 0
      %761 = vmatpush1.bf16.msra.mxu0 0
      %762 = vmatprep.subr.bf16.mxu0 0
      %763 = vmatpush1.bf16.msra.mxu0 0
      %764 = vmatprep.mubr.bf16.mxu0 0
      %765 = vmatmul.mubr.bf16.gmra.mrb[0].mxu0 %v705
      %v766 = vpop.f32.mrb[0].mxu0
      %v767 = vadd.f32 0.0, %v766
      %v768 = vpop.f32.mrb[0].mxu0
      %v769 = vpop.f32.mrb[0].mxu0
      %v770 = vadd.f32 0.0, %v769
      %v771 = vpop.f32.mrb[0].mxu0
      %772 = vmatprep.mubr.bf16.mxu0 0
      %773 = vmatmul.mubr.bf16.gmra.mrb[0].mxu0 %v708
      %v774 = vpop.f32.mrb[0].mxu0
      %v775 = vadd.f32 0.0, %v774
      %v776 = vpop.f32.mrb[0].mxu0
      %v777 = vpop.f32.mrb[0].mxu0
      %v778 = vadd.f32 0.0, %v777
      %v779 = vpop.f32.mrb[0].mxu0
      %780 = vmatprep.mubr.bf16.mxu0 0
      %781 = vmatmul.mubr.bf16.gmra.mrb[0].mxu0 %v711
      %v782 = vpop.f32.mrb[0].mxu0
      %v783 = vadd.f32 0.0, %v782
      %v784 = vpop.f32.mrb[0].mxu0
      %v785 = vpop.f32.mrb[0].mxu0
      %v786 = vadd.f32 0.0, %v785
      %v787 = vpop.f32.mrb[0].mxu0
      %788 = vmatprep.mubr.bf16.mxu0 0
      %789 = vmatmul.mubr.bf16.gmra.mrb[0].mxu0 %v714
      %v790 = vpop.f32.mrb[0].mxu0
      %v791 = vadd.f32 0.0, %v790
      %v792 = vpop.f32.mrb[0].mxu0
      %v793 = vpop.f32.mrb[0].mxu0
      %v794 = vadd.f32 0.0, %v793
      %v795 = vpop.f32.mrb[0].mxu0
      %796 = vmatprep.mubr.bf16.mxu0 0
      %797 = vmatmul.mubr.bf16.gmra.mrb[0].mxu0 %v717
      %v798 = vpop.f32.mrb[0].mxu0
      %v799 = vadd.f32 0.0, %v798
      %v800 = vpop.f32.mrb[0].mxu0
      %v801 = vpop.f32.mrb[0].mxu0
      %v802 = vadd.f32 0.0, %v801
      %v803 = vpop.f32.mrb[0].mxu0
      %804 = vmatprep.mubr.bf16.mxu0 0
      %805 = vmatmul.mubr.bf16.gmra.mrb[0].mxu0 %v720
      %v806 = vpop.f32.mrb[0].mxu0
      %v807 = vadd.f32 0.0, %v806
      %v808 = vpop.f32.mrb[0].mxu0
      %v809 = vpop.f32.mrb[0].mxu0
      %v810 = vadd.f32 0.0, %v809
      %v811 = vpop.f32.mrb[0].mxu0
      %812 = vmatprep.mubr.bf16.mxu0 0
      %813 = vmatmul.mubr.bf16.gmra.mrb[0].mxu0 %v723
      %v814 = vpop.f32.mrb[0].mxu0
      %v815 = vadd.f32 0.0, %v814
      %v816 = vpop.f32.mrb[0].mxu0
      %v817 = vpop.f32.mrb[0].mxu0
      %v818 = vadd.f32 0.0, %v817
      %v819 = vpop.f32.mrb[0].mxu0
      %820 = vmatprep.mubr.bf16.mxu0 0
      %821 = vmatmul.mubr.bf16.gmra.mrb[0].mxu0 %v726
      %v822 = vpop.f32.mrb[0].mxu0
      %v823 = vadd.f32 0.0, %v822
      %v824 = vpop.f32.mrb[0].mxu0
      %v825 = vpop.f32.mrb[0].mxu0
      %v826 = vadd.f32 0.0, %v825
      %v827 = vpop.f32.mrb[0].mxu0
      %828 = vdwg.mxu0
      %s829 = scalar_lea.vmem %s1, 12
      %v830 = vld [vmem:[%s829] sm:$0xf]
      %s831 = scalar_lea.vmem %s1, 20
      %v832 = vld [vmem:[%s831] sm:$0xf]
      %v834 = vsel %vm728, %v832, 0
      %836 = vmatprep.subr.bf16.mxu0 0
      %837 = vmatpush1.bf16.msra.mxu0 %v834
      %838 = vmatprep.subr.bf16.mxu0 0
      %839 = vmatpush1.bf16.msra.mxu0 0
      %840 = vmatprep.subr.bf16.mxu0 0
      %841 = vmatpush1.bf16.msra.mxu0 0
      %842 = vmatprep.subr.bf16.mxu0 0
      %843 = vmatpush1.bf16.msra.mxu0 0
      %844 = vmatprep.subr.bf16.mxu0 0
      %845 = vmatpush1.bf16.msra.mxu0 0
      %846 = vmatprep.subr.bf16.mxu0 0
      %847 = vmatpush1.bf16.msra.mxu0 0
      %848 = vmatprep.subr.bf16.mxu0 0
      %849 = vmatpush1.bf16.msra.mxu0 0
      %850 = vmatprep.subr.bf16.mxu0 0
      %851 = vmatpush1.bf16.msra.mxu0 0
      %852 = vmatprep.subr.bf16.mxu0 0
      %853 = vmatpush1.bf16.msra.mxu0 0
      %854 = vmatprep.subr.bf16.mxu0 0
      %855 = vmatpush1.bf16.msra.mxu0 0
      %856 = vmatprep.subr.bf16.mxu0 0
      %857 = vmatpush1.bf16.msra.mxu0 0
      %858 = vmatprep.subr.bf16.mxu0 0
      %859 = vmatpush1.bf16.msra.mxu0 0
      %860 = vmatprep.subr.bf16.mxu0 0
      %861 = vmatpush1.bf16.msra.mxu0 0
      %862 = vmatprep.subr.bf16.mxu0 0
      %863 = vmatpush1.bf16.msra.mxu0 0
      %864 = vmatprep.subr.bf16.mxu0 0
      %865 = vmatpush1.bf16.msra.mxu0 0
      %866 = vmatprep.subr.bf16.mxu0 0
      %867 = vmatpush1.bf16.msra.mxu0 0
      %868 = vmatprep.mubr.bf16.mxu0 0
      %869 = vmatmul.mubr.bf16.gmra.mrb[0].mxu0 %v705
      %v870 = vpop.f32.mrb[0].mxu0
      %v871 = vadd.f32 0.0, %v870
      %v872 = vpop.f32.mrb[0].mxu0
      %v873 = vpop.f32.mrb[0].mxu0
      %v874 = vadd.f32 0.0, %v873
      %v875 = vpop.f32.mrb[0].mxu0
      %876 = vmatprep.mubr.bf16.mxu0 0
      %877 = vmatmul.mubr.bf16.gmra.mrb[0].mxu0 %v708
      %v878 = vpop.f32.mrb[0].mxu0
      %v879 = vadd.f32 0.0, %v878
      %v880 = vpop.f32.mrb[0].mxu0
      %v881 = vpop.f32.mrb[0].mxu0
      %v882 = vadd.f32 0.0, %v881
      %v883 = vpop.f32.mrb[0].mxu0
      %884 = vmatprep.mubr.bf16.mxu0 0
      %885 = vmatmul.mubr.bf16.gmra.mrb[0].mxu0 %v711
      %v886 = vpop.f32.mrb[0].mxu0
      %v887 = vadd.f32 0.0, %v886
      %v888 = vpop.f32.mrb[0].mxu0
      %v889 = vpop.f32.mrb[0].mxu0
      %v890 = vadd.f32 0.0, %v889
      %v891 = vpop.f32.mrb[0].mxu0
      %892 = vmatprep.mubr.bf16.mxu0 0
      %893 = vmatmul.mubr.bf16.gmra.mrb[0].mxu0 %v714
      %v894 = vpop.f32.mrb[0].mxu0
      %v895 = vadd.f32 0.0, %v894
      %v896 = vpop.f32.mrb[0].mxu0
      %v897 = vpop.f32.mrb[0].mxu0
      %v898 = vadd.f32 0.0, %v897
      %v899 = vpop.f32.mrb[0].mxu0
      %900 = vmatprep.mubr.bf16.mxu0 0
      %901 = vmatmul.mubr.bf16.gmra.mrb[0].mxu0 %v717
      %v902 = vpop.f32.mrb[0].mxu0
      %v903 = vadd.f32 0.0, %v902
      %v904 = vpop.f32.mrb[0].mxu0
      %v905 = vpop.f32.mrb[0].mxu0
      %v906 = vadd.f32 0.0, %v905
      %v907 = vpop.f32.mrb[0].mxu0
      %908 = vmatprep.mubr.bf16.mxu0 0
      %909 = vmatmul.mubr.bf16.gmra.mrb[0].mxu0 %v720
      %v910 = vpop.f32.mrb[0].mxu0
      %v911 = vadd.f32 0.0, %v910
      %v912 = vpop.f32.mrb[0].mxu0
      %v913 = vpop.f32.mrb[0].mxu0
      %v914 = vadd.f32 0.0, %v913
      %v915 = vpop.f32.mrb[0].mxu0
      %916 = vmatprep.mubr.bf16.mxu0 0
      %917 = vmatmul.mubr.bf16.gmra.mrb[0].mxu0 %v723
      %v918 = vpop.f32.mrb[0].mxu0
      %v919 = vadd.f32 0.0, %v918
      %v920 = vpop.f32.mrb[0].mxu0
      %v921 = vpop.f32.mrb[0].mxu0
      %v922 = vadd.f32 0.0, %v921
      %v923 = vpop.f32.mrb[0].mxu0
      %924 = vmatprep.mubr.bf16.mxu0 0
      %925 = vmatmul.mubr.bf16.gmra.mrb[0].mxu0 %v726
      %v926 = vpop.f32.mrb[0].mxu0
      %v927 = vadd.f32 0.0, %v926
      %v928 = vpop.f32.mrb[0].mxu0
      %v929 = vpop.f32.mrb[0].mxu0
      %v930 = vadd.f32 0.0, %v929
      %v931 = vpop.f32.mrb[0].mxu0
      %932 = vdwg.mxu0
      %v933 = vunpack.c.l.b16 %v262
      %v934 = vunpack.c.l.b16 %v272
      %v935 = vunpack.c.l.b16 %v286
      %v936 = vunpack.c.l.b16 %v296
      %v937 = vunpack.c.l.b16 %v310
      %v938 = vunpack.c.l.b16 %v320
      %v939 = vunpack.c.l.b16 %v334
      %v940 = vunpack.c.l.b16 %v344
      %v941 = vunpack.c.l.b16 %v358
      %v942 = vunpack.c.l.b16 %v368
      %v943 = vunpack.c.l.b16 %v382
      %v944 = vunpack.c.l.b16 %v392
      %v945 = vunpack.c.l.b16 %v406
      %v946 = vunpack.c.l.b16 %v416
      %v947 = vunpack.c.l.b16 %v430
      %v948 = vunpack.c.l.b16 %v440
      %v949 = vpack.c.b16 %v934, %v933
      %v950 = vpack.c.b16 %v936, %v935
      %v951 = vpack.c.b16 %v938, %v937
      %v952 = vpack.c.b16 %v940, %v939
      %v953 = vpack.c.b16 %v942, %v941
      %v954 = vpack.c.b16 %v944, %v943
      %v955 = vpack.c.b16 %v946, %v945
      %v956 = vpack.c.b16 %v948, %v947
      %v958 = vsel %vm703, %v949, 0
      %v961 = vsel %vm703, %v950, 0
      %v964 = vsel %vm703, %v951, 0
      %v967 = vsel %vm703, %v952, 0
      %v970 = vsel %vm703, %v953, 0
      %v973 = vsel %vm703, %v954, 0
      %v976 = vsel %vm703, %v955, 0
      %v979 = vsel %vm703, %v956, 0
      %v982 = vsel %vm728, %v830, 0
      %984 = vmatprep.subr.bf16.mxu0 0
      %985 = vmatpush1.bf16.msra.mxu0 %v982
      %986 = vmatprep.subr.bf16.mxu0 0
      %987 = vmatpush1.bf16.msra.mxu0 0
      %988 = vmatprep.subr.bf16.mxu0 0
      %989 = vmatpush1.bf16.msra.mxu0 0
      %990 = vmatprep.subr.bf16.mxu0 0
      %991 = vmatpush1.bf16.msra.mxu0 0
      %992 = vmatprep.subr.bf16.mxu0 0
      %993 = vmatpush1.bf16.msra.mxu0 0
      %994 = vmatprep.subr.bf16.mxu0 0
      %995 = vmatpush1.bf16.msra.mxu0 0
      %996 = vmatprep.subr.bf16.mxu0 0
      %997 = vmatpush1.bf16.msra.mxu0 0
      %998 = vmatprep.subr.bf16.mxu0 0
      %999 = vmatpush1.bf16.msra.mxu0 0
      %1000 = vmatprep.subr.bf16.mxu0 0
      %1001 = vmatpush1.bf16.msra.mxu0 0
      %1002 = vmatprep.subr.bf16.mxu0 0
      %1003 = vmatpush1.bf16.msra.mxu0 0
      %1004 = vmatprep.subr.bf16.mxu0 0
      %1005 = vmatpush1.bf16.msra.mxu0 0
      %1006 = vmatprep.subr.bf16.mxu0 0
      %1007 = vmatpush1.bf16.msra.mxu0 0
      %1008 = vmatprep.subr.bf16.mxu0 0
      %1009 = vmatpush1.bf16.msra.mxu0 0
      %1010 = vmatprep.subr.bf16.mxu0 0
      %1011 = vmatpush1.bf16.msra.mxu0 0
      %1012 = vmatprep.subr.bf16.mxu0 0
      %1013 = vmatpush1.bf16.msra.mxu0 0
      %1014 = vmatprep.subr.bf16.mxu0 0
      %1015 = vmatpush1.bf16.msra.mxu0 0
      %1016 = vmatprep.mubr.bf16.mxu0 0
      %1017 = vmatmul.mubr.bf16.gmra.mrb[0].mxu0 %v958
      %v1018 = vpop.f32.mrb[0].mxu0
      %v1019 = vadd.f32 %v871, %v1018
      %v1020 = vpop.f32.mrb[0].mxu0
      %v1021 = vpop.f32.mrb[0].mxu0
      %v1022 = vadd.f32 %v874, %v1021
      %v1023 = vpop.f32.mrb[0].mxu0
      %1024 = vmatprep.mubr.bf16.mxu0 0
      %1025 = vmatmul.mubr.bf16.gmra.mrb[0].mxu0 %v961
      %v1026 = vpop.f32.mrb[0].mxu0
      %v1027 = vadd.f32 %v879, %v1026
      %v1028 = vpop.f32.mrb[0].mxu0
      %v1029 = vpop.f32.mrb[0].mxu0
      %v1030 = vadd.f32 %v882, %v1029
      %v1031 = vpop.f32.mrb[0].mxu0
      %1032 = vmatprep.mubr.bf16.mxu0 0
      %1033 = vmatmul.mubr.bf16.gmra.mrb[0].mxu0 %v964
      %v1034 = vpop.f32.mrb[0].mxu0
      %v1035 = vadd.f32 %v887, %v1034
      %v1036 = vpop.f32.mrb[0].mxu0
      %v1037 = vpop.f32.mrb[0].mxu0
      %v1038 = vadd.f32 %v890, %v1037
      %v1039 = vpop.f32.mrb[0].mxu0
      %1040 = vmatprep.mubr.bf16.mxu0 0
      %1041 = vmatmul.mubr.bf16.gmra.mrb[0].mxu0 %v967
      %v1042 = vpop.f32.mrb[0].mxu0
      %v1043 = vadd.f32 %v895, %v1042
      %v1044 = vpop.f32.mrb[0].mxu0
      %v1045 = vpop.f32.mrb[0].mxu0
      %v1046 = vadd.f32 %v898, %v1045
      %v1047 = vpop.f32.mrb[0].mxu0
      %1048 = vmatprep.mubr.bf16.mxu0 0
      %1049 = vmatmul.mubr.bf16.gmra.mrb[0].mxu0 %v970
      %v1050 = vpop.f32.mrb[0].mxu0
      %v1051 = vadd.f32 %v903, %v1050
      %v1052 = vpop.f32.mrb[0].mxu0
      %v1053 = vpop.f32.mrb[0].mxu0
      %v1054 = vadd.f32 %v906, %v1053
      %v1055 = vpop.f32.mrb[0].mxu0
      %1056 = vmatprep.mubr.bf16.mxu0 0
      %1057 = vmatmul.mubr.bf16.gmra.mrb[0].mxu0 %v973
      %v1058 = vpop.f32.mrb[0].mxu0
      %v1059 = vadd.f32 %v911, %v1058
      %v1060 = vpop.f32.mrb[0].mxu0
      %v1061 = vpop.f32.mrb[0].mxu0
      %v1062 = vadd.f32 %v914, %v1061
      %v1063 = vpop.f32.mrb[0].mxu0
      %1064 = vmatprep.mubr.bf16.mxu0 0
      %1065 = vmatmul.mubr.bf16.gmra.mrb[0].mxu0 %v976
      %v1066 = vpop.f32.mrb[0].mxu0
      %v1067 = vadd.f32 %v919, %v1066
      %v1068 = vpop.f32.mrb[0].mxu0
      %v1069 = vpop.f32.mrb[0].mxu0
      %v1070 = vadd.f32 %v922, %v1069
      %v1071 = vpop.f32.mrb[0].mxu0
      %1072 = vmatprep.mubr.bf16.mxu0 0
      %1073 = vmatmul.mubr.bf16.gmra.mrb[0].mxu0 %v979
      %v1074 = vpop.f32.mrb[0].mxu0
      %v1075 = vadd.f32 %v927, %v1074
      %v1076 = vpop.f32.mrb[0].mxu0
      %v1077 = vpop.f32.mrb[0].mxu0
      %v1078 = vadd.f32 %v930, %v1077
      %v1079 = vpop.f32.mrb[0].mxu0
      %1080 = vdwg.mxu0
      %s1081 = scalar_lea.vmem %s1, 4
      %v1082 = vld [vmem:[%s1081] sm:$0xf]
      %s1083 = scalar_lea.vmem %s1, 28
      %v1084 = vld [vmem:[%s1083] sm:$0xf]
      %v1086 = vsel %vm728, %v1084, 0
      %1088 = vmatprep.subr.bf16.mxu0 0
      %1089 = vmatpush1.bf16.msra.mxu0 %v1086
      %1090 = vmatprep.subr.bf16.mxu0 0
      %1091 = vmatpush1.bf16.msra.mxu0 0
      %1092 = vmatprep.subr.bf16.mxu0 0
      %1093 = vmatpush1.bf16.msra.mxu0 0
      %1094 = vmatprep.subr.bf16.mxu0 0
      %1095 = vmatpush1.bf16.msra.mxu0 0
      %1096 = vmatprep.subr.bf16.mxu0 0
      %1097 = vmatpush1.bf16.msra.mxu0 0
      %1098 = vmatprep.subr.bf16.mxu0 0
      %1099 = vmatpush1.bf16.msra.mxu0 0
      %1100 = vmatprep.subr.bf16.mxu0 0
      %1101 = vmatpush1.bf16.msra.mxu0 0
      %1102 = vmatprep.subr.bf16.mxu0 0
      %1103 = vmatpush1.bf16.msra.mxu0 0
      %1104 = vmatprep.subr.bf16.mxu0 0
      %1105 = vmatpush1.bf16.msra.mxu0 0
      %1106 = vmatprep.subr.bf16.mxu0 0
      %1107 = vmatpush1.bf16.msra.mxu0 0
      %1108 = vmatprep.subr.bf16.mxu0 0
      %1109 = vmatpush1.bf16.msra.mxu0 0
      %1110 = vmatprep.subr.bf16.mxu0 0
      %1111 = vmatpush1.bf16.msra.mxu0 0
      %1112 = vmatprep.subr.bf16.mxu0 0
      %1113 = vmatpush1.bf16.msra.mxu0 0
      %1114 = vmatprep.subr.bf16.mxu0 0
      %1115 = vmatpush1.bf16.msra.mxu0 0
      %1116 = vmatprep.subr.bf16.mxu0 0
      %1117 = vmatpush1.bf16.msra.mxu0 0
      %1118 = vmatprep.subr.bf16.mxu0 0
      %1119 = vmatpush1.bf16.msra.mxu0 0
      %1120 = vmatprep.mubr.bf16.mxu0 0
      %1121 = vmatmul.mubr.bf16.gmra.mrb[0].mxu0 %v705
      %v1122 = vpop.f32.mrb[0].mxu0
      %v1123 = vadd.f32 0.0, %v1122
      %v1124 = vpop.f32.mrb[0].mxu0
      %v1125 = vpop.f32.mrb[0].mxu0
      %v1126 = vadd.f32 0.0, %v1125
      %v1127 = vpop.f32.mrb[0].mxu0
      %1128 = vmatprep.mubr.bf16.mxu0 0
      %1129 = vmatmul.mubr.bf16.gmra.mrb[0].mxu0 %v708
      %v1130 = vpop.f32.mrb[0].mxu0
      %v1131 = vadd.f32 0.0, %v1130
      %v1132 = vpop.f32.mrb[0].mxu0
      %v1133 = vpop.f32.mrb[0].mxu0
      %v1134 = vadd.f32 0.0, %v1133
      %v1135 = vpop.f32.mrb[0].mxu0
      %1136 = vmatprep.mubr.bf16.mxu0 0
      %1137 = vmatmul.mubr.bf16.gmra.mrb[0].mxu0 %v711
      %v1138 = vpop.f32.mrb[0].mxu0
      %v1139 = vadd.f32 0.0, %v1138
      %v1140 = vpop.f32.mrb[0].mxu0
      %v1141 = vpop.f32.mrb[0].mxu0
      %v1142 = vadd.f32 0.0, %v1141
      %v1143 = vpop.f32.mrb[0].mxu0
      %1144 = vmatprep.mubr.bf16.mxu0 0
      %1145 = vmatmul.mubr.bf16.gmra.mrb[0].mxu0 %v714
      %v1146 = vpop.f32.mrb[0].mxu0
      %v1147 = vadd.f32 0.0, %v1146
      %v1148 = vpop.f32.mrb[0].mxu0
      %v1149 = vpop.f32.mrb[0].mxu0
      %v1150 = vadd.f32 0.0, %v1149
      %v1151 = vpop.f32.mrb[0].mxu0
      %1152 = vmatprep.mubr.bf16.mxu0 0
      %1153 = vmatmul.mubr.bf16.gmra.mrb[0].mxu0 %v717
      %v1154 = vpop.f32.mrb[0].mxu0
      %v1155 = vadd.f32 0.0, %v1154
      %v1156 = vpop.f32.mrb[0].mxu0
      %v1157 = vpop.f32.mrb[0].mxu0
      %v1158 = vadd.f32 0.0, %v1157
      %v1159 = vpop.f32.mrb[0].mxu0
      %1160 = vmatprep.mubr.bf16.mxu0 0
      %1161 = vmatmul.mubr.bf16.gmra.mrb[0].mxu0 %v720
      %v1162 = vpop.f32.mrb[0].mxu0
      %v1163 = vadd.f32 0.0, %v1162
      %v1164 = vpop.f32.mrb[0].mxu0
      %v1165 = vpop.f32.mrb[0].mxu0
      %v1166 = vadd.f32 0.0, %v1165
      %v1167 = vpop.f32.mrb[0].mxu0
      %1168 = vmatprep.mubr.bf16.mxu0 0
      %1169 = vmatmul.mubr.bf16.gmra.mrb[0].mxu0 %v723
      %v1170 = vpop.f32.mrb[0].mxu0
      %v1171 = vadd.f32 0.0, %v1170
      %v1172 = vpop.f32.mrb[0].mxu0
      %v1173 = vpop.f32.mrb[0].mxu0
      %v1174 = vadd.f32 0.0, %v1173
      %v1175 = vpop.f32.mrb[0].mxu0
      %1176 = vmatprep.mubr.bf16.mxu0 0
      %1177 = vmatmul.mubr.bf16.gmra.mrb[0].mxu0 %v726
      %v1178 = vpop.f32.mrb[0].mxu0
      %v1179 = vadd.f32 0.0, %v1178
      %v1180 = vpop.f32.mrb[0].mxu0
      %v1181 = vpop.f32.mrb[0].mxu0
      %v1182 = vadd.f32 0.0, %v1181
      %v1183 = vpop.f32.mrb[0].mxu0
      %1184 = vdwg.mxu0
      %v1201 = vunpack.c.l.b16 %v445
      %v1202 = vunpack.c.l.b16 %v446
      %v1203 = vunpack.c.l.b16 %v447
      %v1204 = vunpack.c.l.b16 %v448
      %v1205 = vunpack.c.l.b16 %v449
      %v1206 = vunpack.c.l.b16 %v450
      %v1207 = vunpack.c.l.b16 %v451
      %v1208 = vunpack.c.l.b16 %v452
      %v1209 = vunpack.c.l.b16 %v453
      %v1210 = vunpack.c.l.b16 %v454
      %v1211 = vunpack.c.l.b16 %v455
      %v1212 = vunpack.c.l.b16 %v456
      %v1213 = vunpack.c.l.b16 %v457
      %v1214 = vunpack.c.l.b16 %v458
      %v1215 = vunpack.c.l.b16 %v459
      %v1216 = vunpack.c.l.b16 %v460
      %v1217 = vpack.c.b16 %v1202, %v1201
      %v1218 = vpack.c.b16 %v1204, %v1203
      %v1219 = vpack.c.b16 %v1206, %v1205
      %v1220 = vpack.c.b16 %v1208, %v1207
      %v1221 = vpack.c.b16 %v1210, %v1209
      %v1222 = vpack.c.b16 %v1212, %v1211
      %v1223 = vpack.c.b16 %v1214, %v1213
      %v1224 = vpack.c.b16 %v1216, %v1215
      %v1226 = vsel %vm703, %v1217, 0
      %v1229 = vsel %vm703, %v1218, 0
      %v1232 = vsel %vm703, %v1219, 0
      %v1235 = vsel %vm703, %v1220, 0
      %v1238 = vsel %vm703, %v1221, 0
      %v1241 = vsel %vm703, %v1222, 0
      %v1244 = vsel %vm703, %v1223, 0
      %v1247 = vsel %vm703, %v1224, 0
      %v1250 = vsel %vm728, %v1082, 0
      %1252 = vmatprep.subr.bf16.mxu0 0
      %1253 = vmatpush1.bf16.msra.mxu0 %v1250
      %1254 = vmatprep.subr.bf16.mxu0 0
      %1255 = vmatpush1.bf16.msra.mxu0 0
      %1256 = vmatprep.subr.bf16.mxu0 0
      %1257 = vmatpush1.bf16.msra.mxu0 0
      %1258 = vmatprep.subr.bf16.mxu0 0
      %1259 = vmatpush1.bf16.msra.mxu0 0
      %1260 = vmatprep.subr.bf16.mxu0 0
      %1261 = vmatpush1.bf16.msra.mxu0 0
      %1262 = vmatprep.subr.bf16.mxu0 0
      %1263 = vmatpush1.bf16.msra.mxu0 0
      %1264 = vmatprep.subr.bf16.mxu0 0
      %1265 = vmatpush1.bf16.msra.mxu0 0
      %1266 = vmatprep.subr.bf16.mxu0 0
      %1267 = vmatpush1.bf16.msra.mxu0 0
      %1268 = vmatprep.subr.bf16.mxu0 0
      %1269 = vmatpush1.bf16.msra.mxu0 0
      %1270 = vmatprep.subr.bf16.mxu0 0
      %1271 = vmatpush1.bf16.msra.mxu0 0
      %1272 = vmatprep.subr.bf16.mxu0 0
      %1273 = vmatpush1.bf16.msra.mxu0 0
      %1274 = vmatprep.subr.bf16.mxu0 0
      %1275 = vmatpush1.bf16.msra.mxu0 0
      %1276 = vmatprep.subr.bf16.mxu0 0
      %1277 = vmatpush1.bf16.msra.mxu0 0
      %1278 = vmatprep.subr.bf16.mxu0 0
      %1279 = vmatpush1.bf16.msra.mxu0 0
      %1280 = vmatprep.subr.bf16.mxu0 0
      %1281 = vmatpush1.bf16.msra.mxu0 0
      %1282 = vmatprep.subr.bf16.mxu0 0
      %1283 = vmatpush1.bf16.msra.mxu0 0
      %1284 = vmatprep.mubr.bf16.mxu0 0
      %1285 = vmatmul.mubr.bf16.gmra.mrb[0].mxu0 %v1226
      %v1286 = vpop.f32.mrb[0].mxu0
      %v1287 = vadd.f32 %v1123, %v1286
      %v1288 = vpop.f32.mrb[0].mxu0
      %v1289 = vpop.f32.mrb[0].mxu0
      %v1290 = vadd.f32 %v1126, %v1289
      %v1291 = vpop.f32.mrb[0].mxu0
      %1292 = vmatprep.mubr.bf16.mxu0 0
      %1293 = vmatmul.mubr.bf16.gmra.mrb[0].mxu0 %v1229
      %v1294 = vpop.f32.mrb[0].mxu0
      %v1295 = vadd.f32 %v1131, %v1294
      %v1296 = vpop.f32.mrb[0].mxu0
      %v1297 = vpop.f32.mrb[0].mxu0
      %v1298 = vadd.f32 %v1134, %v1297
      %v1299 = vpop.f32.mrb[0].mxu0
      %1300 = vmatprep.mubr.bf16.mxu0 0
      %1301 = vmatmul.mubr.bf16.gmra.mrb[0].mxu0 %v1232
      %v1302 = vpop.f32.mrb[0].mxu0
      %v1303 = vadd.f32 %v1139, %v1302
      %v1304 = vpop.f32.mrb[0].mxu0
      %v1305 = vpop.f32.mrb[0].mxu0
      %v1306 = vadd.f32 %v1142, %v1305
      %v1307 = vpop.f32.mrb[0].mxu0
      %1308 = vmatprep.mubr.bf16.mxu0 0
      %1309 = vmatmul.mubr.bf16.gmra.mrb[0].mxu0 %v1235
      %v1310 = vpop.f32.mrb[0].mxu0
      %v1311 = vadd.f32 %v1147, %v1310
      %v1312 = vpop.f32.mrb[0].mxu0
      %v1313 = vpop.f32.mrb[0].mxu0
      %v1314 = vadd.f32 %v1150, %v1313
      %v1315 = vpop.f32.mrb[0].mxu0
      %1316 = vmatprep.mubr.bf16.mxu0 0
      %1317 = vmatmul.mubr.bf16.gmra.mrb[0].mxu0 %v1238
      %v1318 = vpop.f32.mrb[0].mxu0
      %v1319 = vadd.f32 %v1155, %v1318
      %v1320 = vpop.f32.mrb[0].mxu0
      %v1321 = vpop.f32.mrb[0].mxu0
      %v1322 = vadd.f32 %v1158, %v1321
      %v1323 = vpop.f32.mrb[0].mxu0
      %1324 = vmatprep.mubr.bf16.mxu0 0
      %1325 = vmatmul.mubr.bf16.gmra.mrb[0].mxu0 %v1241
      %v1326 = vpop.f32.mrb[0].mxu0
      %v1327 = vadd.f32 %v1163, %v1326
      %v1328 = vpop.f32.mrb[0].mxu0
      %v1329 = vpop.f32.mrb[0].mxu0
      %v1330 = vadd.f32 %v1166, %v1329
      %v1331 = vpop.f32.mrb[0].mxu0
      %1332 = vmatprep.mubr.bf16.mxu0 0
      %1333 = vmatmul.mubr.bf16.gmra.mrb[0].mxu0 %v1244
      %v1334 = vpop.f32.mrb[0].mxu0
      %v1335 = vadd.f32 %v1171, %v1334
      %v1336 = vpop.f32.mrb[0].mxu0
      %v1337 = vpop.f32.mrb[0].mxu0
      %v1338 = vadd.f32 %v1174, %v1337
      %v1339 = vpop.f32.mrb[0].mxu0
      %1340 = vmatprep.mubr.bf16.mxu0 0
      %1341 = vmatmul.mubr.bf16.gmra.mrb[0].mxu0 %v1247
      %v1342 = vpop.f32.mrb[0].mxu0
      %v1343 = vadd.f32 %v1179, %v1342
      %v1344 = vpop.f32.mrb[0].mxu0
      %v1345 = vpop.f32.mrb[0].mxu0
      %v1346 = vadd.f32 %v1182, %v1345
      %v1347 = vpop.f32.mrb[0].mxu0
      %1348 = vdwg.mxu0
      %v1349 = vld [vmem:[%s1] sm:$0xf]
      %s1350 = scalar_lea.vmem %s1, 8
      %v1351 = vld [vmem:[%s1350] sm:$0xf]
      %v1353 = vsel %vm728, %v1351, 0
      %1355 = vmatprep.subr.bf16.mxu0 0
      %1356 = vmatpush1.bf16.msra.mxu0 %v1353
      %1357 = vmatprep.subr.bf16.mxu0 0
      %1358 = vmatpush1.bf16.msra.mxu0 0
      %1359 = vmatprep.subr.bf16.mxu0 0
      %1360 = vmatpush1.bf16.msra.mxu0 0
      %1361 = vmatprep.subr.bf16.mxu0 0
      %1362 = vmatpush1.bf16.msra.mxu0 0
      %1363 = vmatprep.subr.bf16.mxu0 0
      %1364 = vmatpush1.bf16.msra.mxu0 0
      %1365 = vmatprep.subr.bf16.mxu0 0
      %1366 = vmatpush1.bf16.msra.mxu0 0
      %1367 = vmatprep.subr.bf16.mxu0 0
      %1368 = vmatpush1.bf16.msra.mxu0 0
      %1369 = vmatprep.subr.bf16.mxu0 0
      %1370 = vmatpush1.bf16.msra.mxu0 0
      %1371 = vmatprep.subr.bf16.mxu0 0
      %1372 = vmatpush1.bf16.msra.mxu0 0
      %1373 = vmatprep.subr.bf16.mxu0 0
      %1374 = vmatpush1.bf16.msra.mxu0 0
      %1375 = vmatprep.subr.bf16.mxu0 0
      %1376 = vmatpush1.bf16.msra.mxu0 0
      %1377 = vmatprep.subr.bf16.mxu0 0
      %1378 = vmatpush1.bf16.msra.mxu0 0
      %1379 = vmatprep.subr.bf16.mxu0 0
      %1380 = vmatpush1.bf16.msra.mxu0 0
      %1381 = vmatprep.subr.bf16.mxu0 0
      %1382 = vmatpush1.bf16.msra.mxu0 0
      %1383 = vmatprep.subr.bf16.mxu0 0
      %1384 = vmatpush1.bf16.msra.mxu0 0
      %1385 = vmatprep.subr.bf16.mxu0 0
      %1386 = vmatpush1.bf16.msra.mxu0 0
      %1387 = vmatprep.mubr.bf16.mxu0 0
      %1388 = vmatmul.mubr.bf16.gmra.mrb[0].mxu0 %v1226
      %v1389 = vpop.f32.mrb[0].mxu0
      %v1390 = vadd.f32 0.0, %v1389
      %v1391 = vpop.f32.mrb[0].mxu0
      %v1392 = vpop.f32.mrb[0].mxu0
      %v1393 = vadd.f32 0.0, %v1392
      %v1394 = vpop.f32.mrb[0].mxu0
      %1395 = vmatprep.mubr.bf16.mxu0 0
      %1396 = vmatmul.mubr.bf16.gmra.mrb[0].mxu0 %v1229
      %v1397 = vpop.f32.mrb[0].mxu0
      %v1398 = vadd.f32 0.0, %v1397
      %v1399 = vpop.f32.mrb[0].mxu0
      %v1400 = vpop.f32.mrb[0].mxu0
      %v1401 = vadd.f32 0.0, %v1400
      %v1402 = vpop.f32.mrb[0].mxu0
      %1403 = vmatprep.mubr.bf16.mxu0 0
      %1404 = vmatmul.mubr.bf16.gmra.mrb[0].mxu0 %v1232
      %v1405 = vpop.f32.mrb[0].mxu0
      %v1406 = vadd.f32 0.0, %v1405
      %v1407 = vpop.f32.mrb[0].mxu0
      %v1408 = vpop.f32.mrb[0].mxu0
      %v1409 = vadd.f32 0.0, %v1408
      %v1410 = vpop.f32.mrb[0].mxu0
      %1411 = vmatprep.mubr.bf16.mxu0 0
      %1412 = vmatmul.mubr.bf16.gmra.mrb[0].mxu0 %v1235
      %v1413 = vpop.f32.mrb[0].mxu0
      %v1414 = vadd.f32 0.0, %v1413
      %v1415 = vpop.f32.mrb[0].mxu0
      %v1416 = vpop.f32.mrb[0].mxu0
      %v1417 = vadd.f32 0.0, %v1416
      %v1418 = vpop.f32.mrb[0].mxu0
      %1419 = vmatprep.mubr.bf16.mxu0 0
      %1420 = vmatmul.mubr.bf16.gmra.mrb[0].mxu0 %v1238
      %v1421 = vpop.f32.mrb[0].mxu0
      %v1422 = vadd.f32 0.0, %v1421
      %v1423 = vpop.f32.mrb[0].mxu0
      %v1424 = vpop.f32.mrb[0].mxu0
      %v1425 = vadd.f32 0.0, %v1424
      %v1426 = vpop.f32.mrb[0].mxu0
      %1427 = vmatprep.mubr.bf16.mxu0 0
      %1428 = vmatmul.mubr.bf16.gmra.mrb[0].mxu0 %v1241
      %v1429 = vpop.f32.mrb[0].mxu0
      %v1430 = vadd.f32 0.0, %v1429
      %v1431 = vpop.f32.mrb[0].mxu0
      %v1432 = vpop.f32.mrb[0].mxu0
      %v1433 = vadd.f32 0.0, %v1432
      %v1434 = vpop.f32.mrb[0].mxu0
      %1435 = vmatprep.mubr.bf16.mxu0 0
      %1436 = vmatmul.mubr.bf16.gmra.mrb[0].mxu0 %v1244
      %v1437 = vpop.f32.mrb[0].mxu0
      %v1438 = vadd.f32 0.0, %v1437
      %v1439 = vpop.f32.mrb[0].mxu0
      %v1440 = vpop.f32.mrb[0].mxu0
      %v1441 = vadd.f32 0.0, %v1440
      %v1442 = vpop.f32.mrb[0].mxu0
      %1443 = vmatprep.mubr.bf16.mxu0 0
      %1444 = vmatmul.mubr.bf16.gmra.mrb[0].mxu0 %v1247
      %v1445 = vpop.f32.mrb[0].mxu0
      %v1446 = vadd.f32 0.0, %v1445
      %v1447 = vpop.f32.mrb[0].mxu0
      %v1448 = vpop.f32.mrb[0].mxu0
      %v1449 = vadd.f32 0.0, %v1448
      %v1450 = vpop.f32.mrb[0].mxu0
      %1451 = vdwg.mxu0
      %v1452 = vunpack.c.l.b16 %v482
      %v1453 = vunpack.c.l.b16 %v492
      %v1454 = vunpack.c.l.b16 %v506
      %v1455 = vunpack.c.l.b16 %v516
      %v1456 = vunpack.c.l.b16 %v530
      %v1457 = vunpack.c.l.b16 %v540
      %v1458 = vunpack.c.l.b16 %v554
      %v1459 = vunpack.c.l.b16 %v564
      %v1460 = vunpack.c.l.b16 %v578
      %v1461 = vunpack.c.l.b16 %v588
      %v1462 = vunpack.c.l.b16 %v602
      %v1463 = vunpack.c.l.b16 %v612
      %v1464 = vunpack.c.l.b16 %v626
      %v1465 = vunpack.c.l.b16 %v636
      %v1466 = vunpack.c.l.b16 %v650
      %v1467 = vunpack.c.l.b16 %v660
      %v1468 = vpack.c.b16 %v1453, %v1452
      %v1469 = vpack.c.b16 %v1455, %v1454
      %v1470 = vpack.c.b16 %v1457, %v1456
      %v1471 = vpack.c.b16 %v1459, %v1458
      %v1472 = vpack.c.b16 %v1461, %v1460
      %v1473 = vpack.c.b16 %v1463, %v1462
      %v1474 = vpack.c.b16 %v1465, %v1464
      %v1475 = vpack.c.b16 %v1467, %v1466
      %v1477 = vsel %vm703, %v1468, 0
      %v1480 = vsel %vm703, %v1469, 0
      %v1483 = vsel %vm703, %v1470, 0
      %v1486 = vsel %vm703, %v1471, 0
      %v1489 = vsel %vm703, %v1472, 0
      %v1492 = vsel %vm703, %v1473, 0
      %v1495 = vsel %vm703, %v1474, 0
      %v1498 = vsel %vm703, %v1475, 0
      %v1501 = vsel %vm728, %v1349, 0
      %1503 = vmatprep.subr.bf16.mxu0 0
      %1504 = vmatpush1.bf16.msra.mxu0 %v1501
      %1505 = vmatprep.subr.bf16.mxu0 0
      %1506 = vmatpush1.bf16.msra.mxu0 0
      %1507 = vmatprep.subr.bf16.mxu0 0
      %1508 = vmatpush1.bf16.msra.mxu0 0
      %1509 = vmatprep.subr.bf16.mxu0 0
      %1510 = vmatpush1.bf16.msra.mxu0 0
      %1511 = vmatprep.subr.bf16.mxu0 0
      %1512 = vmatpush1.bf16.msra.mxu0 0
      %1513 = vmatprep.subr.bf16.mxu0 0
      %1514 = vmatpush1.bf16.msra.mxu0 0
      %1515 = vmatprep.subr.bf16.mxu0 0
      %1516 = vmatpush1.bf16.msra.mxu0 0
      %1517 = vmatprep.subr.bf16.mxu0 0
      %1518 = vmatpush1.bf16.msra.mxu0 0
      %1519 = vmatprep.subr.bf16.mxu0 0
      %1520 = vmatpush1.bf16.msra.mxu0 0
      %1521 = vmatprep.subr.bf16.mxu0 0
      %1522 = vmatpush1.bf16.msra.mxu0 0
      %1523 = vmatprep.subr.bf16.mxu0 0
      %1524 = vmatpush1.bf16.msra.mxu0 0
      %1525 = vmatprep.subr.bf16.mxu0 0
      %1526 = vmatpush1.bf16.msra.mxu0 0
      %1527 = vmatprep.subr.bf16.mxu0 0
      %1528 = vmatpush1.bf16.msra.mxu0 0
      %1529 = vmatprep.subr.bf16.mxu0 0
      %1530 = vmatpush1.bf16.msra.mxu0 0
      %1531 = vmatprep.subr.bf16.mxu0 0
      %1532 = vmatpush1.bf16.msra.mxu0 0
      %1533 = vmatprep.subr.bf16.mxu0 0
      %1534 = vmatpush1.bf16.msra.mxu0 0
      %1535 = vmatprep.mubr.bf16.mxu0 0
      %1536 = vmatmul.mubr.bf16.gmra.mrb[0].mxu0 %v1477
      %v1537 = vpop.f32.mrb[0].mxu0
      %v1538 = vadd.f32 %v1390, %v1537
      %v1539 = vpop.f32.mrb[0].mxu0
      %v1540 = vpop.f32.mrb[0].mxu0
      %v1541 = vadd.f32 %v1393, %v1540
      %v1542 = vpop.f32.mrb[0].mxu0
      %1543 = vmatprep.mubr.bf16.mxu0 0
      %1544 = vmatmul.mubr.bf16.gmra.mrb[0].mxu0 %v1480
      %v1545 = vpop.f32.mrb[0].mxu0
      %v1546 = vadd.f32 %v1398, %v1545
      %v1547 = vpop.f32.mrb[0].mxu0
      %v1548 = vpop.f32.mrb[0].mxu0
      %v1549 = vadd.f32 %v1401, %v1548
      %v1550 = vpop.f32.mrb[0].mxu0
      %1551 = vmatprep.mubr.bf16.mxu0 0
      %1552 = vmatmul.mubr.bf16.gmra.mrb[0].mxu0 %v1483
      %v1553 = vpop.f32.mrb[0].mxu0
      %v1554 = vadd.f32 %v1406, %v1553
      %v1555 = vpop.f32.mrb[0].mxu0
      %v1556 = vpop.f32.mrb[0].mxu0
      %v1557 = vadd.f32 %v1409, %v1556
      %v1558 = vpop.f32.mrb[0].mxu0
      %1559 = vmatprep.mubr.bf16.mxu0 0
      %1560 = vmatmul.mubr.bf16.gmra.mrb[0].mxu0 %v1486
      %v1561 = vpop.f32.mrb[0].mxu0
      %v1562 = vadd.f32 %v1414, %v1561
      %v1563 = vpop.f32.mrb[0].mxu0
      %v1564 = vpop.f32.mrb[0].mxu0
      %v1565 = vadd.f32 %v1417, %v1564
      %v1566 = vpop.f32.mrb[0].mxu0
      %1567 = vmatprep.mubr.bf16.mxu0 0
      %1568 = vmatmul.mubr.bf16.gmra.mrb[0].mxu0 %v1489
      %v1569 = vpop.f32.mrb[0].mxu0
      %v1570 = vadd.f32 %v1422, %v1569
      %v1571 = vpop.f32.mrb[0].mxu0
      %v1572 = vpop.f32.mrb[0].mxu0
      %v1573 = vadd.f32 %v1425, %v1572
      %v1574 = vpop.f32.mrb[0].mxu0
      %1575 = vmatprep.mubr.bf16.mxu0 0
      %1576 = vmatmul.mubr.bf16.gmra.mrb[0].mxu0 %v1492
      %v1577 = vpop.f32.mrb[0].mxu0
      %v1578 = vadd.f32 %v1430, %v1577
      %v1579 = vpop.f32.mrb[0].mxu0
      %v1580 = vpop.f32.mrb[0].mxu0
      %v1581 = vadd.f32 %v1433, %v1580
      %v1582 = vpop.f32.mrb[0].mxu0
      %1583 = vmatprep.mubr.bf16.mxu0 0
      %1584 = vmatmul.mubr.bf16.gmra.mrb[0].mxu0 %v1495
      %v1585 = vpop.f32.mrb[0].mxu0
      %v1586 = vadd.f32 %v1438, %v1585
      %v1587 = vpop.f32.mrb[0].mxu0
      %v1588 = vpop.f32.mrb[0].mxu0
      %v1589 = vadd.f32 %v1441, %v1588
      %v1590 = vpop.f32.mrb[0].mxu0
      %1591 = vmatprep.mubr.bf16.mxu0 0
      %1592 = vmatmul.mubr.bf16.gmra.mrb[0].mxu0 %v1498
      %v1593 = vpop.f32.mrb[0].mxu0
      %v1594 = vadd.f32 %v1446, %v1593
      %v1595 = vpop.f32.mrb[0].mxu0
      %v1596 = vpop.f32.mrb[0].mxu0
      %v1597 = vadd.f32 %v1449, %v1596
      %v1598 = vpop.f32.mrb[0].mxu0
      %1599 = vdwg.mxu0
      %s1600 = scalar_lea.vmem %s1, 24
      %v1601 = vld [vmem:[%s1600] sm:$0xf]
      %v1603 = vsel %vm728, %v1601, 0
      %1605 = vmatprep.subr.bf16.mxu0 0
      %1606 = vmatpush1.bf16.msra.mxu0 %v1603
      %1607 = vmatprep.subr.bf16.mxu0 0
      %1608 = vmatpush1.bf16.msra.mxu0 0
      %1609 = vmatprep.subr.bf16.mxu0 0
      %1610 = vmatpush1.bf16.msra.mxu0 0
      %1611 = vmatprep.subr.bf16.mxu0 0
      %1612 = vmatpush1.bf16.msra.mxu0 0
      %1613 = vmatprep.subr.bf16.mxu0 0
      %1614 = vmatpush1.bf16.msra.mxu0 0
      %1615 = vmatprep.subr.bf16.mxu0 0
      %1616 = vmatpush1.bf16.msra.mxu0 0
      %1617 = vmatprep.subr.bf16.mxu0 0
      %1618 = vmatpush1.bf16.msra.mxu0 0
      %1619 = vmatprep.subr.bf16.mxu0 0
      %1620 = vmatpush1.bf16.msra.mxu0 0
      %1621 = vmatprep.subr.bf16.mxu0 0
      %1622 = vmatpush1.bf16.msra.mxu0 0
      %1623 = vmatprep.subr.bf16.mxu0 0
      %1624 = vmatpush1.bf16.msra.mxu0 0
      %1625 = vmatprep.subr.bf16.mxu0 0
      %1626 = vmatpush1.bf16.msra.mxu0 0
      %1627 = vmatprep.subr.bf16.mxu0 0
      %1628 = vmatpush1.bf16.msra.mxu0 0
      %1629 = vmatprep.subr.bf16.mxu0 0
      %1630 = vmatpush1.bf16.msra.mxu0 0
      %1631 = vmatprep.subr.bf16.mxu0 0
      %1632 = vmatpush1.bf16.msra.mxu0 0
      %1633 = vmatprep.subr.bf16.mxu0 0
      %1634 = vmatpush1.bf16.msra.mxu0 0
      %1635 = vmatprep.subr.bf16.mxu0 0
      %1636 = vmatpush1.bf16.msra.mxu0 0
      %1637 = vmatprep.mubr.bf16.mxu0 0
      %1638 = vmatmul.mubr.bf16.gmra.mrb[0].mxu0 %v958
      %v1639 = vpop.f32.mrb[0].mxu0
      %v1640 = vadd.f32 0.0, %v1639
      %v1641 = vpop.f32.mrb[0].mxu0
      %v1642 = vpop.f32.mrb[0].mxu0
      %v1643 = vadd.f32 0.0, %v1642
      %v1644 = vpop.f32.mrb[0].mxu0
      %1645 = vmatprep.mubr.bf16.mxu0 0
      %1646 = vmatmul.mubr.bf16.gmra.mrb[0].mxu0 %v961
      %v1647 = vpop.f32.mrb[0].mxu0
      %v1648 = vadd.f32 0.0, %v1647
      %v1649 = vpop.f32.mrb[0].mxu0
      %v1650 = vpop.f32.mrb[0].mxu0
      %v1651 = vadd.f32 0.0, %v1650
      %v1652 = vpop.f32.mrb[0].mxu0
      %1653 = vmatprep.mubr.bf16.mxu0 0
      %1654 = vmatmul.mubr.bf16.gmra.mrb[0].mxu0 %v964
      %v1655 = vpop.f32.mrb[0].mxu0
      %v1656 = vadd.f32 0.0, %v1655
      %v1657 = vpop.f32.mrb[0].mxu0
      %v1658 = vpop.f32.mrb[0].mxu0
      %v1659 = vadd.f32 0.0, %v1658
      %v1660 = vpop.f32.mrb[0].mxu0
      %1661 = vmatprep.mubr.bf16.mxu0 0
      %1662 = vmatmul.mubr.bf16.gmra.mrb[0].mxu0 %v967
      %v1663 = vpop.f32.mrb[0].mxu0
      %v1664 = vadd.f32 0.0, %v1663
      %v1665 = vpop.f32.mrb[0].mxu0
      %v1666 = vpop.f32.mrb[0].mxu0
      %v1667 = vadd.f32 0.0, %v1666
      %v1668 = vpop.f32.mrb[0].mxu0
      %1669 = vmatprep.mubr.bf16.mxu0 0
      %1670 = vmatmul.mubr.bf16.gmra.mrb[0].mxu0 %v970
      %v1671 = vpop.f32.mrb[0].mxu0
      %v1672 = vadd.f32 0.0, %v1671
      %v1673 = vpop.f32.mrb[0].mxu0
      %v1674 = vpop.f32.mrb[0].mxu0
      %v1675 = vadd.f32 0.0, %v1674
      %v1676 = vpop.f32.mrb[0].mxu0
      %1677 = vmatprep.mubr.bf16.mxu0 0
      %1678 = vmatmul.mubr.bf16.gmra.mrb[0].mxu0 %v973
      %v1679 = vpop.f32.mrb[0].mxu0
      %v1680 = vadd.f32 0.0, %v1679
      %v1681 = vpop.f32.mrb[0].mxu0
      %v1682 = vpop.f32.mrb[0].mxu0
      %v1683 = vadd.f32 0.0, %v1682
      %v1684 = vpop.f32.mrb[0].mxu0
      %1685 = vmatprep.mubr.bf16.mxu0 0
      %1686 = vmatmul.mubr.bf16.gmra.mrb[0].mxu0 %v976
      %v1687 = vpop.f32.mrb[0].mxu0
      %v1688 = vadd.f32 0.0, %v1687
      %v1689 = vpop.f32.mrb[0].mxu0
      %v1690 = vpop.f32.mrb[0].mxu0
      %v1691 = vadd.f32 0.0, %v1690
      %v1692 = vpop.f32.mrb[0].mxu0
      %1693 = vmatprep.mubr.bf16.mxu0 0
      %1694 = vmatmul.mubr.bf16.gmra.mrb[0].mxu0 %v979
      %v1695 = vpop.f32.mrb[0].mxu0
      %v1696 = vadd.f32 0.0, %v1695
      %v1697 = vpop.f32.mrb[0].mxu0
      %v1698 = vpop.f32.mrb[0].mxu0
      %v1699 = vadd.f32 0.0, %v1698
      %v1700 = vpop.f32.mrb[0].mxu0
      %1701 = vdwg.mxu0
      %v1702 = vadd.f32 %v1538, %v1640
      %v1703 = vadd.f32 %v1541, %v1643
      %v1704 = vadd.f32 %v1546, %v1648
      %v1705 = vadd.f32 %v1549, %v1651
      %v1706 = vadd.f32 %v1554, %v1656
      %v1707 = vadd.f32 %v1557, %v1659
      %v1708 = vadd.f32 %v1562, %v1664
      %v1709 = vadd.f32 %v1565, %v1667
      %v1710 = vadd.f32 %v1570, %v1672
      %v1711 = vadd.f32 %v1573, %v1675
      %v1712 = vadd.f32 %v1578, %v1680
      %v1713 = vadd.f32 %v1581, %v1683
      %v1714 = vadd.f32 %v1586, %v1688
      %v1715 = vadd.f32 %v1589, %v1691
      %v1716 = vadd.f32 %v1594, %v1696
      %v1717 = vadd.f32 %v1597, %v1699
      %s1718 = scalar_lea.vmem %s1, 32
      %v1719 = vld [vmem:[%s1718] sm:$0xf]
      %v1721 = vsel %vm728, %v1719, 0
      %1723 = vmatprep.subr.bf16.mxu0 0
      %1724 = vmatpush1.bf16.msra.mxu0 %v1721
      %1725 = vmatprep.subr.bf16.mxu0 0
      %1726 = vmatpush1.bf16.msra.mxu0 0
      %1727 = vmatprep.subr.bf16.mxu0 0
      %1728 = vmatpush1.bf16.msra.mxu0 0
      %1729 = vmatprep.subr.bf16.mxu0 0
      %1730 = vmatpush1.bf16.msra.mxu0 0
      %1731 = vmatprep.subr.bf16.mxu0 0
      %1732 = vmatpush1.bf16.msra.mxu0 0
      %1733 = vmatprep.subr.bf16.mxu0 0
      %1734 = vmatpush1.bf16.msra.mxu0 0
      %1735 = vmatprep.subr.bf16.mxu0 0
      %1736 = vmatpush1.bf16.msra.mxu0 0
      %1737 = vmatprep.subr.bf16.mxu0 0
      %1738 = vmatpush1.bf16.msra.mxu0 0
      %1739 = vmatprep.subr.bf16.mxu0 0
      %1740 = vmatpush1.bf16.msra.mxu0 0
      %1741 = vmatprep.subr.bf16.mxu0 0
      %1742 = vmatpush1.bf16.msra.mxu0 0
      %1743 = vmatprep.subr.bf16.mxu0 0
      %1744 = vmatpush1.bf16.msra.mxu0 0
      %1745 = vmatprep.subr.bf16.mxu0 0
      %1746 = vmatpush1.bf16.msra.mxu0 0
      %1747 = vmatprep.subr.bf16.mxu0 0
      %1748 = vmatpush1.bf16.msra.mxu0 0
      %1749 = vmatprep.subr.bf16.mxu0 0
      %1750 = vmatpush1.bf16.msra.mxu0 0
      %1751 = vmatprep.subr.bf16.mxu0 0
      %1752 = vmatpush1.bf16.msra.mxu0 0
      %1753 = vmatprep.subr.bf16.mxu0 0
      %1754 = vmatpush1.bf16.msra.mxu0 0
      %1755 = vmatprep.mubr.bf16.mxu0 0
      %1756 = vmatmul.mubr.bf16.gmra.mrb[0].mxu0 %v705
      %v1757 = vpop.f32.mrb[0].mxu0
      %v1758 = vadd.f32 0.0, %v1757
      %v1759 = vpop.f32.mrb[0].mxu0
      %v1760 = vpop.f32.mrb[0].mxu0
      %v1761 = vadd.f32 0.0, %v1760
      %v1762 = vpop.f32.mrb[0].mxu0
      %1763 = vmatprep.mubr.bf16.mxu0 0
      %1764 = vmatmul.mubr.bf16.gmra.mrb[0].mxu0 %v708
      %v1765 = vpop.f32.mrb[0].mxu0
      %v1766 = vadd.f32 0.0, %v1765
      %v1767 = vpop.f32.mrb[0].mxu0
      %v1768 = vpop.f32.mrb[0].mxu0
      %v1769 = vadd.f32 0.0, %v1768
      %v1770 = vpop.f32.mrb[0].mxu0
      %1771 = vmatprep.mubr.bf16.mxu0 0
      %1772 = vmatmul.mubr.bf16.gmra.mrb[0].mxu0 %v711
      %v1773 = vpop.f32.mrb[0].mxu0
      %v1774 = vadd.f32 0.0, %v1773
      %v1775 = vpop.f32.mrb[0].mxu0
      %v1776 = vpop.f32.mrb[0].mxu0
      %v1777 = vadd.f32 0.0, %v1776
      %v1778 = vpop.f32.mrb[0].mxu0
      %1779 = vmatprep.mubr.bf16.mxu0 0
      %1780 = vmatmul.mubr.bf16.gmra.mrb[0].mxu0 %v714
      %v1781 = vpop.f32.mrb[0].mxu0
      %v1782 = vadd.f32 0.0, %v1781
      %v1783 = vpop.f32.mrb[0].mxu0
      %v1784 = vpop.f32.mrb[0].mxu0
      %v1785 = vadd.f32 0.0, %v1784
      %v1786 = vpop.f32.mrb[0].mxu0
      %1787 = vmatprep.mubr.bf16.mxu0 0
      %1788 = vmatmul.mubr.bf16.gmra.mrb[0].mxu0 %v717
      %v1789 = vpop.f32.mrb[0].mxu0
      %v1790 = vadd.f32 0.0, %v1789
      %v1791 = vpop.f32.mrb[0].mxu0
      %v1792 = vpop.f32.mrb[0].mxu0
      %v1793 = vadd.f32 0.0, %v1792
      %v1794 = vpop.f32.mrb[0].mxu0
      %1795 = vmatprep.mubr.bf16.mxu0 0
      %1796 = vmatmul.mubr.bf16.gmra.mrb[0].mxu0 %v720
      %v1797 = vpop.f32.mrb[0].mxu0
      %v1798 = vadd.f32 0.0, %v1797
      %v1799 = vpop.f32.mrb[0].mxu0
      %v1800 = vpop.f32.mrb[0].mxu0
      %v1801 = vadd.f32 0.0, %v1800
      %v1802 = vpop.f32.mrb[0].mxu0
      %1803 = vmatprep.mubr.bf16.mxu0 0
      %1804 = vmatmul.mubr.bf16.gmra.mrb[0].mxu0 %v723
      %v1805 = vpop.f32.mrb[0].mxu0
      %v1806 = vadd.f32 0.0, %v1805
      %v1807 = vpop.f32.mrb[0].mxu0
      %v1808 = vpop.f32.mrb[0].mxu0
      %v1809 = vadd.f32 0.0, %v1808
      %v1810 = vpop.f32.mrb[0].mxu0
      %1811 = vmatprep.mubr.bf16.mxu0 0
      %1812 = vmatmul.mubr.bf16.gmra.mrb[0].mxu0 %v726
      %v1813 = vpop.f32.mrb[0].mxu0
      %v1814 = vadd.f32 0.0, %v1813
      %v1815 = vpop.f32.mrb[0].mxu0
      %v1816 = vpop.f32.mrb[0].mxu0
      %v1817 = vadd.f32 0.0, %v1816
      %v1818 = vpop.f32.mrb[0].mxu0
      %1819 = vdwg.mxu0
      %v1820 = vadd.f32 %v1702, %v1758
      %v1821 = vadd.f32 %v1703, %v1761
      %v1822 = vadd.f32 %v1704, %v1766
      %v1823 = vadd.f32 %v1705, %v1769
      %v1824 = vadd.f32 %v1706, %v1774
      %v1825 = vadd.f32 %v1707, %v1777
      %v1826 = vadd.f32 %v1708, %v1782
      %v1827 = vadd.f32 %v1709, %v1785
      %v1828 = vadd.f32 %v1710, %v1790
      %v1829 = vadd.f32 %v1711, %v1793
      %v1830 = vadd.f32 %v1712, %v1798
      %v1831 = vadd.f32 %v1713, %v1801
      %v1832 = vadd.f32 %v1714, %v1806
      %v1833 = vadd.f32 %v1715, %v1809
      %v1834 = vadd.f32 %v1716, %v1814
      %v1835 = vadd.f32 %v1717, %v1817
      %vm1836 = vcmask 31744
      %v1837 = vsel %vm1836, %v767, 0.0
      %v1838 = vsel %vm1836, %v770, 0.0
      %v1839 = vadd.f32 %v1837, %v1838
      %v1840 = vsel %vm1836, %v775, 0.0
      %v1841 = vadd.f32 %v1839, %v1840
      %v1842 = vsel %vm1836, %v778, 0.0
      %v1843 = vadd.f32 %v1841, %v1842
      %v1844 = vsel %vm1836, %v783, 0.0
      %v1845 = vadd.f32 %v1843, %v1844
      %v1846 = vsel %vm1836, %v786, 0.0
      %v1847 = vadd.f32 %v1845, %v1846
      %v1848 = vsel %vm1836, %v791, 0.0
      %v1849 = vadd.f32 %v1847, %v1848
      %v1850 = vsel %vm1836, %v794, 0.0
      %v1851 = vadd.f32 %v1849, %v1850
      %v1852 = vsel %vm1836, %v799, 0.0
      %v1853 = vadd.f32 %v1851, %v1852
      %v1854 = vsel %vm1836, %v802, 0.0
      %v1855 = vadd.f32 %v1853, %v1854
      %v1856 = vsel %vm1836, %v807, 0.0
      %v1857 = vadd.f32 %v1855, %v1856
      %v1858 = vsel %vm1836, %v810, 0.0
      %v1859 = vadd.f32 %v1857, %v1858
      %v1860 = vsel %vm1836, %v815, 0.0
      %v1861 = vadd.f32 %v1859, %v1860
      %v1862 = vsel %vm1836, %v818, 0.0
      %v1863 = vadd.f32 %v1861, %v1862
      %v1864 = vsel %vm1836, %v823, 0.0
      %v1865 = vadd.f32 %v1863, %v1864
      %v1866 = vsel %vm1836, %v826, 0.0
      %v1867 = vadd.f32 %v1865, %v1866
      %v1868 = vrot.slane %v1867, 4
      %v1869 = vadd.f32 %v1867, %v1868
      %v1870 = vrot.slane %v1869, 2
      %v1871 = vadd.f32 %v1869, %v1870
      %v1872 = vrot.slane %v1871, 1
      %v1873 = vadd.f32 %v1871, %v1872
      %v1874 = vadd.f32 %v1873, 0.0
      %v1875 = vsel %vm1836, %v1019, 0.0
      %v1876 = vsel %vm1836, %v1022, 0.0
      %v1877 = vadd.f32 %v1875, %v1876
      %v1878 = vsel %vm1836, %v1027, 0.0
      %v1879 = vadd.f32 %v1877, %v1878
      %v1880 = vsel %vm1836, %v1030, 0.0
      %v1881 = vadd.f32 %v1879, %v1880
      %v1882 = vsel %vm1836, %v1035, 0.0
      %v1883 = vadd.f32 %v1881, %v1882
      %v1884 = vsel %vm1836, %v1038, 0.0
      %v1885 = vadd.f32 %v1883, %v1884
      %v1886 = vsel %vm1836, %v1043, 0.0
      %v1887 = vadd.f32 %v1885, %v1886
      %v1888 = vsel %vm1836, %v1046, 0.0
      %v1889 = vadd.f32 %v1887, %v1888
      %v1890 = vsel %vm1836, %v1051, 0.0
      %v1891 = vadd.f32 %v1889, %v1890
      %v1892 = vsel %vm1836, %v1054, 0.0
      %v1893 = vadd.f32 %v1891, %v1892
      %v1894 = vsel %vm1836, %v1059, 0.0
      %v1895 = vadd.f32 %v1893, %v1894
      %v1896 = vsel %vm1836, %v1062, 0.0
      %v1897 = vadd.f32 %v1895, %v1896
      %v1898 = vsel %vm1836, %v1067, 0.0
      %v1899 = vadd.f32 %v1897, %v1898
      %v1900 = vsel %vm1836, %v1070, 0.0
      %v1901 = vadd.f32 %v1899, %v1900
      %v1902 = vsel %vm1836, %v1075, 0.0
      %v1903 = vadd.f32 %v1901, %v1902
      %v1904 = vsel %vm1836, %v1078, 0.0
      %v1905 = vadd.f32 %v1903, %v1904
      %v1906 = vrot.slane %v1905, 4
      %v1907 = vadd.f32 %v1905, %v1906
      %v1908 = vrot.slane %v1907, 2
      %v1909 = vadd.f32 %v1907, %v1908
      %v1910 = vrot.slane %v1909, 1
      %v1911 = vadd.f32 %v1909, %v1910
      %v1912 = vadd.f32 %v1874, %v1911
      %v1913 = vsel %vm1836, %v1287, 0.0
      %v1914 = vsel %vm1836, %v1290, 0.0
      %v1915 = vadd.f32 %v1913, %v1914
      %v1916 = vsel %vm1836, %v1295, 0.0
      %v1917 = vadd.f32 %v1915, %v1916
      %v1918 = vsel %vm1836, %v1298, 0.0
      %v1919 = vadd.f32 %v1917, %v1918
      %v1920 = vsel %vm1836, %v1303, 0.0
      %v1921 = vadd.f32 %v1919, %v1920
      %v1922 = vsel %vm1836, %v1306, 0.0
      %v1923 = vadd.f32 %v1921, %v1922
      %v1924 = vsel %vm1836, %v1311, 0.0
      %v1925 = vadd.f32 %v1923, %v1924
      %v1926 = vsel %vm1836, %v1314, 0.0
      %v1927 = vadd.f32 %v1925, %v1926
      %v1928 = vsel %vm1836, %v1319, 0.0
      %v1929 = vadd.f32 %v1927, %v1928
      %v1930 = vsel %vm1836, %v1322, 0.0
      %v1931 = vadd.f32 %v1929, %v1930
      %v1932 = vsel %vm1836, %v1327, 0.0
      %v1933 = vadd.f32 %v1931, %v1932
      %v1934 = vsel %vm1836, %v1330, 0.0
      %v1935 = vadd.f32 %v1933, %v1934
      %v1936 = vsel %vm1836, %v1335, 0.0
      %v1937 = vadd.f32 %v1935, %v1936
      %v1938 = vsel %vm1836, %v1338, 0.0
      %v1939 = vadd.f32 %v1937, %v1938
      %v1940 = vsel %vm1836, %v1343, 0.0
      %v1941 = vadd.f32 %v1939, %v1940
      %v1942 = vsel %vm1836, %v1346, 0.0
      %v1943 = vadd.f32 %v1941, %v1942
      %v1944 = vrot.slane %v1943, 4
      %v1945 = vadd.f32 %v1943, %v1944
      %v1946 = vrot.slane %v1945, 2
      %v1947 = vadd.f32 %v1945, %v1946
      %v1948 = vrot.slane %v1947, 1
      %v1949 = vadd.f32 %v1947, %v1948
      %v1950 = vadd.f32 %v1912, %v1949
      %v1951 = vsel %vm1836, %v1820, 0.0
      %v1952 = vsel %vm1836, %v1821, 0.0
      %v1953 = vadd.f32 %v1951, %v1952
      %v1954 = vsel %vm1836, %v1822, 0.0
      %v1955 = vadd.f32 %v1953, %v1954
      %v1956 = vsel %vm1836, %v1823, 0.0
      %v1957 = vadd.f32 %v1955, %v1956
      %v1958 = vsel %vm1836, %v1824, 0.0
      %v1959 = vadd.f32 %v1957, %v1958
      %v1960 = vsel %vm1836, %v1825, 0.0
      %v1961 = vadd.f32 %v1959, %v1960
      %v1962 = vsel %vm1836, %v1826, 0.0
      %v1963 = vadd.f32 %v1961, %v1962
      %v1964 = vsel %vm1836, %v1827, 0.0
      %v1965 = vadd.f32 %v1963, %v1964
      %v1966 = vsel %vm1836, %v1828, 0.0
      %v1967 = vadd.f32 %v1965, %v1966
      %v1968 = vsel %vm1836, %v1829, 0.0
      %v1969 = vadd.f32 %v1967, %v1968
      %v1970 = vsel %vm1836, %v1830, 0.0
      %v1971 = vadd.f32 %v1969, %v1970
      %v1972 = vsel %vm1836, %v1831, 0.0
      %v1973 = vadd.f32 %v1971, %v1972
      %v1974 = vsel %vm1836, %v1832, 0.0
      %v1975 = vadd.f32 %v1973, %v1974
      %v1976 = vsel %vm1836, %v1833, 0.0
      %v1977 = vadd.f32 %v1975, %v1976
      %v1978 = vsel %vm1836, %v1834, 0.0
      %v1979 = vadd.f32 %v1977, %v1978
      %v1980 = vsel %vm1836, %v1835, 0.0
      %v1981 = vadd.f32 %v1979, %v1980
      %v1982 = vrot.slane %v1981, 4
      %v1983 = vadd.f32 %v1981, %v1982
      %v1984 = vrot.slane %v1983, 2
      %v1985 = vadd.f32 %v1983, %v1984
      %v1986 = vrot.slane %v1985, 1
      %v1987 = vadd.f32 %v1985, %v1986
      %v1988 = vadd.f32 %v1950, %v1987
      %v1989 = vmul.f32 %v767, %v767
      %v1990 = vmul.f32 %v770, %v770
      %v1991 = vmul.f32 %v775, %v775
      %v1992 = vmul.f32 %v778, %v778
      %v1993 = vmul.f32 %v783, %v783
      %v1994 = vmul.f32 %v786, %v786
      %v1995 = vmul.f32 %v791, %v791
      %v1996 = vmul.f32 %v794, %v794
      %v1997 = vmul.f32 %v799, %v799
      %v1998 = vmul.f32 %v802, %v802
      %v1999 = vmul.f32 %v807, %v807
      %v2000 = vmul.f32 %v810, %v810
      %v2001 = vmul.f32 %v815, %v815
      %v2002 = vmul.f32 %v818, %v818
      %v2003 = vmul.f32 %v823, %v823
      %v2004 = vmul.f32 %v826, %v826
      %v2005 = vsel %vm1836, %v1989, 0.0
      %v2006 = vsel %vm1836, %v1990, 0.0
      %v2007 = vadd.f32 %v2005, %v2006
      %v2008 = vsel %vm1836, %v1991, 0.0
      %v2009 = vadd.f32 %v2007, %v2008
      %v2010 = vsel %vm1836, %v1992, 0.0
      %v2011 = vadd.f32 %v2009, %v2010
      %v2012 = vsel %vm1836, %v1993, 0.0
      %v2013 = vadd.f32 %v2011, %v2012
      %v2014 = vsel %vm1836, %v1994, 0.0
      %v2015 = vadd.f32 %v2013, %v2014
      %v2016 = vsel %vm1836, %v1995, 0.0
      %v2017 = vadd.f32 %v2015, %v2016
      %v2018 = vsel %vm1836, %v1996, 0.0
      %v2019 = vadd.f32 %v2017, %v2018
      %v2020 = vsel %vm1836, %v1997, 0.0
      %v2021 = vadd.f32 %v2019, %v2020
      %v2022 = vsel %vm1836, %v1998, 0.0
      %v2023 = vadd.f32 %v2021, %v2022
      %v2024 = vsel %vm1836, %v1999, 0.0
      %v2025 = vadd.f32 %v2023, %v2024
      %v2026 = vsel %vm1836, %v2000, 0.0
      %v2027 = vadd.f32 %v2025, %v2026
      %v2028 = vsel %vm1836, %v2001, 0.0
      %v2029 = vadd.f32 %v2027, %v2028
      %v2030 = vsel %vm1836, %v2002, 0.0
      %v2031 = vadd.f32 %v2029, %v2030
      %v2032 = vsel %vm1836, %v2003, 0.0
      %v2033 = vadd.f32 %v2031, %v2032
      %v2034 = vsel %vm1836, %v2004, 0.0
      %v2035 = vadd.f32 %v2033, %v2034
      %v2036 = vrot.slane %v2035, 4
      %v2037 = vadd.f32 %v2035, %v2036
      %v2038 = vrot.slane %v2037, 2
      %v2039 = vadd.f32 %v2037, %v2038
      %v2040 = vrot.slane %v2039, 1
      %v2041 = vadd.f32 %v2039, %v2040
      %v2042 = vadd.f32 %v2041, 0.0
      %v2043 = vmul.f32 %v1019, %v1019
      %v2044 = vmul.f32 %v1022, %v1022
      %v2045 = vmul.f32 %v1027, %v1027
      %v2046 = vmul.f32 %v1030, %v1030
      %v2047 = vmul.f32 %v1035, %v1035
      %v2048 = vmul.f32 %v1038, %v1038
      %v2049 = vmul.f32 %v1043, %v1043
      %v2050 = vmul.f32 %v1046, %v1046
      %v2051 = vmul.f32 %v1051, %v1051
      %v2052 = vmul.f32 %v1054, %v1054
      %v2053 = vmul.f32 %v1059, %v1059
      %v2054 = vmul.f32 %v1062, %v1062
      %v2055 = vmul.f32 %v1067, %v1067
      %v2056 = vmul.f32 %v1070, %v1070
      %v2057 = vmul.f32 %v1075, %v1075
      %v2058 = vmul.f32 %v1078, %v1078
      %v2059 = vsel %vm1836, %v2043, 0.0
      %v2060 = vsel %vm1836, %v2044, 0.0
      %v2061 = vadd.f32 %v2059, %v2060
      %v2062 = vsel %vm1836, %v2045, 0.0
      %v2063 = vadd.f32 %v2061, %v2062
      %v2064 = vsel %vm1836, %v2046, 0.0
      %v2065 = vadd.f32 %v2063, %v2064
      %v2066 = vsel %vm1836, %v2047, 0.0
      %v2067 = vadd.f32 %v2065, %v2066
      %v2068 = vsel %vm1836, %v2048, 0.0
      %v2069 = vadd.f32 %v2067, %v2068
      %v2070 = vsel %vm1836, %v2049, 0.0
      %v2071 = vadd.f32 %v2069, %v2070
      %v2072 = vsel %vm1836, %v2050, 0.0
      %v2073 = vadd.f32 %v2071, %v2072
      %v2074 = vsel %vm1836, %v2051, 0.0
      %v2075 = vadd.f32 %v2073, %v2074
      %v2076 = vsel %vm1836, %v2052, 0.0
      %v2077 = vadd.f32 %v2075, %v2076
      %v2078 = vsel %vm1836, %v2053, 0.0
      %v2079 = vadd.f32 %v2077, %v2078
      %v2080 = vsel %vm1836, %v2054, 0.0
      %v2081 = vadd.f32 %v2079, %v2080
      %v2082 = vsel %vm1836, %v2055, 0.0
      %v2083 = vadd.f32 %v2081, %v2082
      %v2084 = vsel %vm1836, %v2056, 0.0
      %v2085 = vadd.f32 %v2083, %v2084
      %v2086 = vsel %vm1836, %v2057, 0.0
      %v2087 = vadd.f32 %v2085, %v2086
      %v2088 = vsel %vm1836, %v2058, 0.0
      %v2089 = vadd.f32 %v2087, %v2088
      %v2090 = vrot.slane %v2089, 4
      %v2091 = vadd.f32 %v2089, %v2090
      %v2092 = vrot.slane %v2091, 2
      %v2093 = vadd.f32 %v2091, %v2092
      %v2094 = vrot.slane %v2093, 1
      %v2095 = vadd.f32 %v2093, %v2094
      %v2096 = vadd.f32 %v2042, %v2095
      %v2097 = vmul.f32 %v1287, %v1287
      %v2098 = vmul.f32 %v1290, %v1290
      %v2099 = vmul.f32 %v1295, %v1295
      %v2100 = vmul.f32 %v1298, %v1298
      %v2101 = vmul.f32 %v1303, %v1303
      %v2102 = vmul.f32 %v1306, %v1306
      %v2103 = vmul.f32 %v1311, %v1311
      %v2104 = vmul.f32 %v1314, %v1314
      %v2105 = vmul.f32 %v1319, %v1319
      %v2106 = vmul.f32 %v1322, %v1322
      %v2107 = vmul.f32 %v1327, %v1327
      %v2108 = vmul.f32 %v1330, %v1330
      %v2109 = vmul.f32 %v1335, %v1335
      %v2110 = vmul.f32 %v1338, %v1338
      %v2111 = vmul.f32 %v1343, %v1343
      %v2112 = vmul.f32 %v1346, %v1346
      %v2113 = vsel %vm1836, %v2097, 0.0
      %v2114 = vsel %vm1836, %v2098, 0.0
      %v2115 = vadd.f32 %v2113, %v2114
      %v2116 = vsel %vm1836, %v2099, 0.0
      %v2117 = vadd.f32 %v2115, %v2116
      %v2118 = vsel %vm1836, %v2100, 0.0
      %v2119 = vadd.f32 %v2117, %v2118
      %v2120 = vsel %vm1836, %v2101, 0.0
      %v2121 = vadd.f32 %v2119, %v2120
      %v2122 = vsel %vm1836, %v2102, 0.0
      %v2123 = vadd.f32 %v2121, %v2122
      %v2124 = vsel %vm1836, %v2103, 0.0
      %v2125 = vadd.f32 %v2123, %v2124
      %v2126 = vsel %vm1836, %v2104, 0.0
      %v2127 = vadd.f32 %v2125, %v2126
      %v2128 = vsel %vm1836, %v2105, 0.0
      %v2129 = vadd.f32 %v2127, %v2128
      %v2130 = vsel %vm1836, %v2106, 0.0
      %v2131 = vadd.f32 %v2129, %v2130
      %v2132 = vsel %vm1836, %v2107, 0.0
      %v2133 = vadd.f32 %v2131, %v2132
      %v2134 = vsel %vm1836, %v2108, 0.0
      %v2135 = vadd.f32 %v2133, %v2134
      %v2136 = vsel %vm1836, %v2109, 0.0
      %v2137 = vadd.f32 %v2135, %v2136
      %v2138 = vsel %vm1836, %v2110, 0.0
      %v2139 = vadd.f32 %v2137, %v2138
      %v2140 = vsel %vm1836, %v2111, 0.0
      %v2141 = vadd.f32 %v2139, %v2140
      %v2142 = vsel %vm1836, %v2112, 0.0
      %v2143 = vadd.f32 %v2141, %v2142
      %v2144 = vrot.slane %v2143, 4
      %v2145 = vadd.f32 %v2143, %v2144
      %v2146 = vrot.slane %v2145, 2
      %v2147 = vadd.f32 %v2145, %v2146
      %v2148 = vrot.slane %v2147, 1
      %v2149 = vadd.f32 %v2147, %v2148
      %v2150 = vadd.f32 %v2096, %v2149
      %v2151 = vmul.f32 %v1820, %v1820
      %v2152 = vmul.f32 %v1821, %v1821
      %v2153 = vmul.f32 %v1822, %v1822
      %v2154 = vmul.f32 %v1823, %v1823
      %v2155 = vmul.f32 %v1824, %v1824
      %v2156 = vmul.f32 %v1825, %v1825
      %v2157 = vmul.f32 %v1826, %v1826
      %v2158 = vmul.f32 %v1827, %v1827
      %v2159 = vmul.f32 %v1828, %v1828
      %v2160 = vmul.f32 %v1829, %v1829
      %v2161 = vmul.f32 %v1830, %v1830
      %v2162 = vmul.f32 %v1831, %v1831
      %v2163 = vmul.f32 %v1832, %v1832
      %v2164 = vmul.f32 %v1833, %v1833
      %v2165 = vmul.f32 %v1834, %v1834
      %v2166 = vmul.f32 %v1835, %v1835
      %v2167 = vsel %vm1836, %v2151, 0.0
      %v2168 = vsel %vm1836, %v2152, 0.0
      %v2169 = vadd.f32 %v2167, %v2168
      %v2170 = vsel %vm1836, %v2153, 0.0
      %v2171 = vadd.f32 %v2169, %v2170
      %v2172 = vsel %vm1836, %v2154, 0.0
      %v2173 = vadd.f32 %v2171, %v2172
      %v2174 = vsel %vm1836, %v2155, 0.0
      %v2175 = vadd.f32 %v2173, %v2174
      %v2176 = vsel %vm1836, %v2156, 0.0
      %v2177 = vadd.f32 %v2175, %v2176
      %v2178 = vsel %vm1836, %v2157, 0.0
      %v2179 = vadd.f32 %v2177, %v2178
      %v2180 = vsel %vm1836, %v2158, 0.0
      %v2181 = vadd.f32 %v2179, %v2180
      %v2182 = vsel %vm1836, %v2159, 0.0
      %v2183 = vadd.f32 %v2181, %v2182
      %v2184 = vsel %vm1836, %v2160, 0.0
      %v2185 = vadd.f32 %v2183, %v2184
      %v2186 = vsel %vm1836, %v2161, 0.0
      %v2187 = vadd.f32 %v2185, %v2186
      %v2188 = vsel %vm1836, %v2162, 0.0
      %v2189 = vadd.f32 %v2187, %v2188
      %v2190 = vsel %vm1836, %v2163, 0.0
      %v2191 = vadd.f32 %v2189, %v2190
      %v2192 = vsel %vm1836, %v2164, 0.0
      %v2193 = vadd.f32 %v2191, %v2192
      %v2194 = vsel %vm1836, %v2165, 0.0
      %v2195 = vadd.f32 %v2193, %v2194
      %v2196 = vsel %vm1836, %v2166, 0.0
      %v2197 = vadd.f32 %v2195, %v2196
      %v2198 = vrot.slane %v2197, 4
      %v2199 = vadd.f32 %v2197, %v2198
      %v2200 = vrot.slane %v2199, 2
      %v2201 = vadd.f32 %v2199, %v2200
      %v2202 = vrot.slane %v2201, 1
      %v2203 = vadd.f32 %v2201, %v2202
      %v2204 = vadd.f32 %v2150, %v2203
      %vm2205 = vcmask 1040384
      %v2206 = vsel %vm2205, %v1988, %v2204
      %vm2207 = vcmask 1041408
      %v2208 = vsel %vm2207, %v2206, 0.0
      %2209 = vst.msk [vmem:[%s216] sm:$0xff] %vm1836, %v2208
      %2226 = vrot.lane.b32.xlu0 %v1019, 4
      %v2227 = vpop.permute.xlu0 %2226
      %2228 = vrot.lane.b32.xlu0 %v1022, 4
      %v2229 = vpop.permute.xlu0 %2228
      %2230 = vrot.lane.b32.xlu0 %v1027, 4
      %v2231 = vpop.permute.xlu0 %2230
      %2232 = vrot.lane.b32.xlu0 %v1030, 4
      %v2233 = vpop.permute.xlu0 %2232
      %2234 = vrot.lane.b32.xlu0 %v1035, 4
      %v2235 = vpop.permute.xlu0 %2234
      %2236 = vrot.lane.b32.xlu0 %v1038, 4
      %v2237 = vpop.permute.xlu0 %2236
      %2238 = vrot.lane.b32.xlu0 %v1043, 4
      %v2239 = vpop.permute.xlu0 %2238
      %2240 = vrot.lane.b32.xlu0 %v1046, 4
      %v2241 = vpop.permute.xlu0 %2240
      %2242 = vrot.lane.b32.xlu0 %v1051, 4
      %v2243 = vpop.permute.xlu0 %2242
      %2244 = vrot.lane.b32.xlu0 %v1054, 4
      %v2245 = vpop.permute.xlu0 %2244
      %2246 = vrot.lane.b32.xlu0 %v1059, 4
      %v2247 = vpop.permute.xlu0 %2246
      %2248 = vrot.lane.b32.xlu0 %v1062, 4
      %v2249 = vpop.permute.xlu0 %2248
      %2250 = vrot.lane.b32.xlu0 %v1067, 4
      %v2251 = vpop.permute.xlu0 %2250
      %2252 = vrot.lane.b32.xlu0 %v1070, 4
      %v2253 = vpop.permute.xlu0 %2252
      %2254 = vrot.lane.b32.xlu0 %v1075, 4
      %v2255 = vpop.permute.xlu0 %2254
      %2256 = vrot.lane.b32.xlu0 %v1078, 4
      %v2257 = vpop.permute.xlu0 %2256
      %v2274 = vsel %vm1836, %v767, %v2227
      %v2275 = vsel %vm1836, %v770, %v2229
      %v2276 = vsel %vm1836, %v775, %v2231
      %v2277 = vsel %vm1836, %v778, %v2233
      %v2278 = vsel %vm1836, %v783, %v2235
      %v2279 = vsel %vm1836, %v786, %v2237
      %v2280 = vsel %vm1836, %v791, %v2239
      %v2281 = vsel %vm1836, %v794, %v2241
      %v2282 = vsel %vm1836, %v799, %v2243
      %v2283 = vsel %vm1836, %v802, %v2245
      %v2284 = vsel %vm1836, %v807, %v2247
      %v2285 = vsel %vm1836, %v810, %v2249
      %v2286 = vsel %vm1836, %v815, %v2251
      %v2287 = vsel %vm1836, %v818, %v2253
      %v2288 = vsel %vm1836, %v823, %v2255
      %v2289 = vsel %vm1836, %v826, %v2257
      %2306 = vrot.lane.b32.xlu0 %v1820, 4
      %v2307 = vpop.permute.xlu0 %2306
      %2308 = vrot.lane.b32.xlu0 %v1821, 4
      %v2309 = vpop.permute.xlu0 %2308
      %2310 = vrot.lane.b32.xlu0 %v1822, 4
      %v2311 = vpop.permute.xlu0 %2310
      %2312 = vrot.lane.b32.xlu0 %v1823, 4
      %v2313 = vpop.permute.xlu0 %2312
      %2314 = vrot.lane.b32.xlu0 %v1824, 4
      %v2315 = vpop.permute.xlu0 %2314
      %2316 = vrot.lane.b32.xlu0 %v1825, 4
      %v2317 = vpop.permute.xlu0 %2316
      %2318 = vrot.lane.b32.xlu0 %v1826, 4
      %v2319 = vpop.permute.xlu0 %2318
      %2320 = vrot.lane.b32.xlu0 %v1827, 4
      %v2321 = vpop.permute.xlu0 %2320
      %2322 = vrot.lane.b32.xlu0 %v1828, 4
      %v2323 = vpop.permute.xlu0 %2322
      %2324 = vrot.lane.b32.xlu0 %v1829, 4
      %v2325 = vpop.permute.xlu0 %2324
      %2326 = vrot.lane.b32.xlu0 %v1830, 4
      %v2327 = vpop.permute.xlu0 %2326
      %2328 = vrot.lane.b32.xlu0 %v1831, 4
      %v2329 = vpop.permute.xlu0 %2328
      %2330 = vrot.lane.b32.xlu0 %v1832, 4
      %v2331 = vpop.permute.xlu0 %2330
      %2332 = vrot.lane.b32.xlu0 %v1833, 4
      %v2333 = vpop.permute.xlu0 %2332
      %2334 = vrot.lane.b32.xlu0 %v1834, 4
      %v2335 = vpop.permute.xlu0 %2334
      %2336 = vrot.lane.b32.xlu0 %v1835, 4
      %v2337 = vpop.permute.xlu0 %2336
      %v2354 = vsel %vm1836, %v1287, %v2307
      %v2355 = vsel %vm1836, %v1290, %v2309
      %v2356 = vsel %vm1836, %v1295, %v2311
      %v2357 = vsel %vm1836, %v1298, %v2313
      %v2358 = vsel %vm1836, %v1303, %v2315
      %v2359 = vsel %vm1836, %v1306, %v2317
      %v2360 = vsel %vm1836, %v1311, %v2319
      %v2361 = vsel %vm1836, %v1314, %v2321
      %v2362 = vsel %vm1836, %v1319, %v2323
      %v2363 = vsel %vm1836, %v1322, %v2325
      %v2364 = vsel %vm1836, %v1327, %v2327
      %v2365 = vsel %vm1836, %v1330, %v2329
      %v2366 = vsel %vm1836, %v1335, %v2331
      %v2367 = vsel %vm1836, %v1338, %v2333
      %v2368 = vsel %vm1836, %v1343, %v2335
      %v2369 = vsel %vm1836, %v1346, %v2337
      %v2370 = vpack.c.bf16 %v2275, %v2274
      %v2371 = vpack.c.bf16 %v2355, %v2354
      %v2372 = vpack.c.bf16 %v2277, %v2276
      %v2373 = vpack.c.bf16 %v2357, %v2356
      %v2374 = vpack.c.bf16 %v2279, %v2278
      %v2375 = vpack.c.bf16 %v2359, %v2358
      %v2376 = vpack.c.bf16 %v2281, %v2280
      %v2377 = vpack.c.bf16 %v2361, %v2360
      %v2378 = vpack.c.bf16 %v2283, %v2282
      %v2379 = vpack.c.bf16 %v2363, %v2362
      %v2380 = vpack.c.bf16 %v2285, %v2284
      %v2381 = vpack.c.bf16 %v2365, %v2364
      %v2382 = vpack.c.bf16 %v2287, %v2286
      %v2383 = vpack.c.bf16 %v2367, %v2366
      %v2384 = vpack.c.bf16 %v2289, %v2288
      %v2385 = vpack.c.bf16 %v2369, %v2368
      %v2402 = vunpack.c.l.b16 %v2370
      %v2403 = vunpack.c.h.b16 %v2370
      %v2404 = vunpack.c.l.b16 %v2371
      %v2405 = vunpack.c.h.b16 %v2371
      %v2406 = vunpack.c.l.b16 %v2372
      %v2407 = vunpack.c.h.b16 %v2372
      %v2408 = vunpack.c.l.b16 %v2373
      %v2409 = vunpack.c.h.b16 %v2373
      %v2410 = vunpack.c.l.b16 %v2374
      %v2411 = vunpack.c.h.b16 %v2374
      %v2412 = vunpack.c.l.b16 %v2375
      %v2413 = vunpack.c.h.b16 %v2375
      %v2414 = vunpack.c.l.b16 %v2376
      %v2415 = vunpack.c.h.b16 %v2376
      %v2416 = vunpack.c.l.b16 %v2377
      %v2417 = vunpack.c.h.b16 %v2377
      %v2418 = vunpack.c.l.b16 %v2378
      %v2419 = vunpack.c.h.b16 %v2378
      %v2420 = vunpack.c.l.b16 %v2379
      %v2421 = vunpack.c.h.b16 %v2379
      %v2422 = vunpack.c.l.b16 %v2380
      %v2423 = vunpack.c.h.b16 %v2380
      %v2424 = vunpack.c.l.b16 %v2381
      %v2425 = vunpack.c.h.b16 %v2381
      %v2426 = vunpack.c.l.b16 %v2382
      %v2427 = vunpack.c.h.b16 %v2382
      %v2428 = vunpack.c.l.b16 %v2383
      %v2429 = vunpack.c.h.b16 %v2383
      %v2430 = vunpack.c.l.b16 %v2384
      %v2431 = vunpack.c.h.b16 %v2384
      %v2432 = vunpack.c.l.b16 %v2385
      %v2433 = vunpack.c.h.b16 %v2385
      %v2434 = vpack.c.b16 %v2402, %v2402
      %v2435 = vpack.c.b16 %v2403, %v2403
      %v2436 = vpack.c.b16 %v2404, %v2404
      %v2437 = vpack.c.b16 %v2405, %v2405
      %v2438 = vpack.c.b16 %v2406, %v2406
      %v2439 = vpack.c.b16 %v2407, %v2407
      %v2440 = vpack.c.b16 %v2408, %v2408
      %v2441 = vpack.c.b16 %v2409, %v2409
      %v2442 = vpack.c.b16 %v2410, %v2410
      %v2443 = vpack.c.b16 %v2411, %v2411
      %v2444 = vpack.c.b16 %v2412, %v2412
      %v2445 = vpack.c.b16 %v2413, %v2413
      %v2446 = vpack.c.b16 %v2414, %v2414
      %v2447 = vpack.c.b16 %v2415, %v2415
      %v2448 = vpack.c.b16 %v2416, %v2416
      %v2449 = vpack.c.b16 %v2417, %v2417
      %v2450 = vpack.c.b16 %v2418, %v2418
      %v2451 = vpack.c.b16 %v2419, %v2419
      %v2452 = vpack.c.b16 %v2420, %v2420
      %v2453 = vpack.c.b16 %v2421, %v2421
      %v2454 = vpack.c.b16 %v2422, %v2422
      %v2455 = vpack.c.b16 %v2423, %v2423
      %v2456 = vpack.c.b16 %v2424, %v2424
      %v2457 = vpack.c.b16 %v2425, %v2425
      %v2458 = vpack.c.b16 %v2426, %v2426
      %v2459 = vpack.c.b16 %v2427, %v2427
      %v2460 = vpack.c.b16 %v2428, %v2428
      %v2461 = vpack.c.b16 %v2429, %v2429
      %v2462 = vpack.c.b16 %v2430, %v2430
      %v2463 = vpack.c.b16 %v2431, %v2431
      %v2464 = vpack.c.b16 %v2432, %v2432
      %v2465 = vpack.c.b16 %v2433, %v2433
      %vm2498 = vcmask 60416
      %2499 = vst.msk [vmem:[%s207] sm:$0xf] %vm2498, %v2434
      %2500 = vst.msk [vmem:[%s207 + $0x4] sm:$0xf] %vm2498, %v2435
      %2501 = vst.msk [vmem:[%s207 + $0x8] sm:$0xf] %vm2498, %v2436
      %2502 = vst.msk [vmem:[%s207 + $0xc] sm:$0xf] %vm2498, %v2437
      %2503 = vst.msk [vmem:[%s207 + $0x10] sm:$0xf] %vm2498, %v2438
      %2504 = vst.msk [vmem:[%s207 + $0x14] sm:$0xf] %vm2498, %v2439
      %2505 = vst.msk [vmem:[%s207 + $0x18] sm:$0xf] %vm2498, %v2440
      %2506 = vst.msk [vmem:[%s207 + $0x1c] sm:$0xf] %vm2498, %v2441
      %2507 = vst.msk [vmem:[%s207 + $0x20] sm:$0xf] %vm2498, %v2442
      %2508 = vst.msk [vmem:[%s207 + $0x24] sm:$0xf] %vm2498, %v2443
      %2509 = vst.msk [vmem:[%s207 + $0x28] sm:$0xf] %vm2498, %v2444
      %2510 = vst.msk [vmem:[%s207 + $0x2c] sm:$0xf] %vm2498, %v2445
      %2511 = vst.msk [vmem:[%s207 + $0x30] sm:$0xf] %vm2498, %v2446
      %2512 = vst.msk [vmem:[%s207 + $0x34] sm:$0xf] %vm2498, %v2447
      %2513 = vst.msk [vmem:[%s207 + $0x38] sm:$0xf] %vm2498, %v2448
      %2514 = vst.msk [vmem:[%s207 + $0x3c] sm:$0xf] %vm2498, %v2449
      %2515 = vst.msk [vmem:[%s207 + $0x40] sm:$0xf] %vm2498, %v2450
      %2516 = vst.msk [vmem:[%s207 + $0x44] sm:$0xf] %vm2498, %v2451
      %2517 = vst.msk [vmem:[%s207 + $0x48] sm:$0xf] %vm2498, %v2452
      %2518 = vst.msk [vmem:[%s207 + $0x4c] sm:$0xf] %vm2498, %v2453
      %2519 = vst.msk [vmem:[%s207 + $0x50] sm:$0xf] %vm2498, %v2454
      %2520 = vst.msk [vmem:[%s207 + $0x54] sm:$0xf] %vm2498, %v2455
      %2521 = vst.msk [vmem:[%s207 + $0x58] sm:$0xf] %vm2498, %v2456
      %2522 = vst.msk [vmem:[%s207 + $0x5c] sm:$0xf] %vm2498, %v2457
      %2523 = vst.msk [vmem:[%s207 + $0x60] sm:$0xf] %vm2498, %v2458
      %2524 = vst.msk [vmem:[%s207 + $0x64] sm:$0xf] %vm2498, %v2459
      %2525 = vst.msk [vmem:[%s207 + $0x68] sm:$0xf] %vm2498, %v2460
      %2526 = vst.msk [vmem:[%s207 + $0x6c] sm:$0xf] %vm2498, %v2461
      %2527 = vst.msk [vmem:[%s207 + $0x70] sm:$0xf] %vm2498, %v2462
      %2528 = vst.msk [vmem:[%s207 + $0x74] sm:$0xf] %vm2498, %v2463
      %2529 = vst.msk [vmem:[%s207 + $0x78] sm:$0xf] %vm2498, %v2464
      %2530 = vst.msk [vmem:[%s207 + $0x7c] sm:$0xf] %vm2498, %v2465
      %s2531 = smul.u32 8, %s20
      %p2532 = scmp.lt.s32.totalorder %s19, 1
      %s2533 = scalar_select %p2532, %s19, 1
      %p2534 = scmp.lt.s32.totalorder %s2531, 15
      %s2535 = scalar_select %p2534, %s2531, 15
      %s2536 = smul.addr %s2535, 4
      %s2537 = smul.addr %s2533, 64
      %s2538 = sadd.s32 %s2536, %s2537
      %s2539 = smul.addr %s2538, 4
      %s2540 = scalar_lea.vmem %s2, %s2539
      %p2541 = scmp.lt.s32.totalorder %s19, 1
      %s2542 = scalar_select %p2541, %s19, 1
      %p2543 = scmp.lt.s32.totalorder %s20, 1
      %s2544 = scalar_select %p2543, %s20, 1
      %s2545 = smul.addr %s2542, 2
      %s2546 = sadd.s32 %s2544, %s2545
      %s2547 = smul.addr %s2546, 8
      %s2548 = scalar_lea.vmem %s3, %s2547
      // Predicated region
      $region29: #{_forward.10} parent=27 // pred_check
        %p2549 = pneg %p94
      $region30: #{_forward.10} parent=27 // pred_check_branch
        %2551 = sbr.rel (%p2549) target = $region32
      $region31: #{_forward.10} parent=27 // pred_region
        %s2552 = smul.u32 8, %s20
      $region32: #{_forward.10} parent=27 // pred_fallthru
        _
      // Predicated region
      $region33: #{_forward.10} parent=27 // pred_check
        %p2553 = pneg %p122
      $region34: #{_forward.10} parent=27 // pred_check_branch
        %2555 = sbr.rel (%p2553) target = $region36
      $region35: #{_forward.10} parent=27 // pred_region
        _
      $region36: #{_forward.10} parent=27 // pred_fallthru
        _
    $region28: #{_forward.10} parent=5 // pred_fallthru
      _
    %p2556 = scmp.le.s32.totalorder 2, %s10
    // Predicated region
    $region37: #{_forward.10} parent=5 // pred_check
      %p2557 = pneg %p2556
    $region38: #{_forward.10} parent=5 // pred_check_branch
      %2559 = sbr.rel (%p2557) target = $region40
    $region39: #{_forward.10} parent=5 // pred_region
      %s2560 = ssub.s32 %s10, 2
      // Predicated region
      $region41: #{_forward.10} parent=39 // pred_check
        %p2561 = pneg %p100
      $region42: #{_forward.10} parent=39 // pred_check_branch
        %2563 = sbr.rel (%p2561) target = $region44
      $region43: #{_forward.10} parent=39 // pred_region
        %s2564 = smul.u32 8, %s22
        %p2565 = scmp.lt.s32.totalorder %s21, 1
        %s2566 = scalar_select %p2565, %s21, 1
        %p2567 = scmp.lt.s32.totalorder %s2564, 15
        %s2568 = scalar_select %p2567, %s2564, 15
        %s2569 = smul.addr %s2568, 4
        %s2570 = smul.addr %s2566, 64
        %s2571 = sadd.s32 %s2569, %s2570
        %s2572 = smul.addr %s2571, 4
        %s2573 = scalar_lea.vmem %s2, %s2572
      $region44: #{_forward.10} parent=39 // pred_fallthru
        _
      // Predicated region
      $region45: #{_forward.10} parent=39 // pred_check
        %p2574 = pneg %p128
      $region46: #{_forward.10} parent=39 // pred_check_branch
        %2576 = sbr.rel (%p2574) target = $region48
      $region47: #{_forward.10} parent=39 // pred_region
        %p2577 = scmp.lt.s32.totalorder %s21, 1
        %s2578 = scalar_select %p2577, %s21, 1
        %p2579 = scmp.lt.s32.totalorder %s22, 1
        %s2580 = scalar_select %p2579, %s22, 1
        %s2581 = smul.addr %s2578, 2
        %s2582 = sadd.s32 %s2580, %s2581
        %s2583 = smul.addr %s2582, 8
        %s2584 = scalar_lea.vmem %s3, %s2583
      $region48: #{_forward.10} parent=39 // pred_fallthru
        _
    $region40: #{_forward.10} parent=5 // pred_fallthru
      _
  $region6: #{_forward.10} parent=0 // loop_footer
    %s14 = sadd.s32 1, %s10
  $region7: #{_forward.10} parent=0 // loop_footer_branch
    %9 = sbr.rel target = $region3
  $region8: #{_forward.10} parent=0 // loop_exit
    _

// kernel: _forward.11
$region0: #{_forward.11}
  #allocation0 [shape = 'u32[]', space=smem, size = 0x4, offset = 0x4, fixed_abs, tag = 'smem constant byte address 0x4 - core index']
  #allocation1 [shape = 'u32[144,128]{1,0:T(1,128)}', space=vmem, size = 0x12000, scoped, tag = 'internal scratch']
  %s0 = inlined_call_operand.vmem [shape: bf16[64,128], index: 0, kind: input, shape index: {}]
  %s1 = inlined_call_operand.vmem [shape: f32[1,128], index: 1, kind: input, shape index: {}]
  %s2 = inlined_call_operand.vmem [shape: f32[1,128], index: 2, kind: input, shape index: {}]
  %s3 = inlined_call_operand.vmem [shape: f32[64,128], index: 3, kind: output, shape index: {}]
  %s4 = sld [smem:[#allocation0]]
  $region45: #{_forward.11} parent=0
    _
  %s6 = ssub.s32 1, %s4
  %s7 = scalar_select 0, %s6, %s4
  loop: start=0, step=1, limit=4
  $region2: #{_forward.11} parent=0 // loop_pre_header
    _
  $region3: #{_forward.11} parent=0 // loop_header
    %s9 = sphi 0, %s13
    %p10 = scmp.ge.s32.totalorder %s9, 4
    %s19 = sphi 0, %s21
    %s22 = sphi 0, %s19
    %s23 = sphi 0, %s22
    %s39 = sphi 0, %s23
    %s43 = sphi 0, %s43
    %s45 = sphi 0, %s43
    %s46 = sphi 0, %s45
    %s60 = sphi 0, %s46
    %s64 = sphi 0, %s64
    %s66 = sphi 0, %s64
    %s67 = sphi 0, %s66
    %s81 = sphi 0, %s67
    %s87 = sphi 0, %s89
    %s90 = sphi 0, %s87
    %s91 = sphi 0, %s90
    %s107 = sphi 0, %s91
  $region4: #{_forward.11} parent=0 // loop_header_branch
    %12 = sbr.rel (%p10) target = $region8
  $region5: #{_forward.11} parent=0 // loop_body
    %s14 = ssub.s32 %s9, 1
    %s15 = ssub.s32 %s9, 2
    %s16 = sadd.s32 %s9, 1
    %s17 = ssub.s32 %s9, %s16
    %p18 = scmp.eq.s32.totalorder %s17, 0
    %s20 = sadd.s32 %s19, 1
    %s21 = scalar_select %p18, %s19, %s20
    %p24 = pneg %p18
    %p25 = scmp.eq.s32.totalorder %s9, 1
    %p26 = por %p24, %p25
    %p27 = scmp.ne.s32.totalorder %s19, %s22
    %p28 = scmp.eq.s32.totalorder %s9, 0
    %p29 = por %p27, %p28
    %p30 = scmp.ne.s32.totalorder %s19, %s22
    %p31 = scmp.eq.s32.totalorder %s14, 1
    %p32 = por %p30, %p31
    %p33 = scmp.ne.s32.totalorder %s22, %s23
    %p34 = scmp.eq.s32.totalorder %s14, 0
    %p35 = por %p33, %p34
    %p36 = scmp.ne.s32.totalorder %s22, %s23
    %p37 = scmp.eq.s32.totalorder %s15, 1
    %p38 = por %p36, %p37
    %p40 = scmp.ne.s32.totalorder %s23, %s39
    %p41 = scmp.eq.s32.totalorder %s15, 0
    %p42 = por %p40, %p41
    %s44 = sadd.s32 %s43, 1
    %p47 = scmp.eq.s32.totalorder %s9, 1
    %p48 = scmp.ne.s32.totalorder %s43, %s45
    %p49 = scmp.eq.s32.totalorder %s9, 0
    %p50 = por %p48, %p49
    %p51 = scmp.ne.s32.totalorder %s43, %s45
    %p52 = scmp.eq.s32.totalorder %s14, 1
    %p53 = por %p51, %p52
    %p54 = scmp.ne.s32.totalorder %s45, %s46
    %p55 = scmp.eq.s32.totalorder %s14, 0
    %p56 = por %p54, %p55
    %p57 = scmp.ne.s32.totalorder %s45, %s46
    %p58 = scmp.eq.s32.totalorder %s15, 1
    %p59 = por %p57, %p58
    %p61 = scmp.ne.s32.totalorder %s46, %s60
    %p62 = scmp.eq.s32.totalorder %s15, 0
    %p63 = por %p61, %p62
    %s65 = sadd.s32 %s64, 1
    %p68 = scmp.eq.s32.totalorder %s9, 1
    %p69 = scmp.ne.s32.totalorder %s64, %s66
    %p70 = scmp.eq.s32.totalorder %s9, 0
    %p71 = por %p69, %p70
    %p72 = scmp.ne.s32.totalorder %s64, %s66
    %p73 = scmp.eq.s32.totalorder %s14, 1
    %p74 = por %p72, %p73
    %p75 = scmp.ne.s32.totalorder %s66, %s67
    %p76 = scmp.eq.s32.totalorder %s14, 0
    %p77 = por %p75, %p76
    %p78 = scmp.ne.s32.totalorder %s66, %s67
    %p79 = scmp.eq.s32.totalorder %s15, 1
    %p80 = por %p78, %p79
    %p82 = scmp.ne.s32.totalorder %s67, %s81
    %p83 = scmp.eq.s32.totalorder %s15, 0
    %p84 = por %p82, %p83
    %s85 = ssub.s32 %s9, %s16
    %p86 = scmp.eq.s32.totalorder %s85, 0
    %s88 = sadd.s32 %s87, 1
    %s89 = scalar_select %p86, %s87, %s88
    %p92 = pneg %p86
    %p93 = scmp.eq.s32.totalorder %s9, 1
    %p94 = por %p92, %p93
    %p95 = scmp.ne.s32.totalorder %s87, %s90
    %p96 = scmp.eq.s32.totalorder %s9, 0
    %p97 = por %p95, %p96
    %p98 = scmp.ne.s32.totalorder %s87, %s90
    %p99 = scmp.eq.s32.totalorder %s14, 1
    %p100 = por %p98, %p99
    %p101 = scmp.ne.s32.totalorder %s90, %s91
    %p102 = scmp.eq.s32.totalorder %s14, 0
    %p103 = por %p101, %p102
    %p104 = scmp.ne.s32.totalorder %s90, %s91
    %p105 = scmp.eq.s32.totalorder %s15, 1
    %p106 = por %p104, %p105
    %p108 = scmp.ne.s32.totalorder %s91, %s107
    %p109 = scmp.eq.s32.totalorder %s15, 0
    %p110 = por %p108, %p109
    %p111 = scmp.le.s32.totalorder 1, %s9
    %p112 = scmp.lt.s32.totalorder %s9, 3
    %p113 = pnand %p111, %p112
    %p114 = pneg %p113
    // Predicated region
    $region9: #{_forward.11} parent=5 // pred_check
      _
    $region10: #{_forward.11} parent=5 // pred_check_branch
      %116 = sbr.rel (%p113) target = $region12
    $region11: #{_forward.11} parent=5 // pred_region
      %s117 = ssub.s32 %s9, 1
      // Predicated region
      $region13: #{_forward.11} parent=11 // pred_check
        %p118 = pneg %p56
      $region14: #{_forward.11} parent=11 // pred_check_branch
        %120 = sbr.rel (%p118) target = $region16
      $region15: #{_forward.11} parent=11 // pred_region
        _
      $region16: #{_forward.11} parent=11 // pred_fallthru
        _
      // Predicated region
      $region17: #{_forward.11} parent=11 // pred_check
        %p121 = pneg %p77
      $region18: #{_forward.11} parent=11 // pred_check_branch
        %123 = sbr.rel (%p121) target = $region20
      $region19: #{_forward.11} parent=11 // pred_region
        _
      $region20: #{_forward.11} parent=11 // pred_fallthru
        _
    $region12: #{_forward.11} parent=5 // pred_fallthru
      _
    %p124 = scmp.lt.s32.totalorder %s9, 2
    // Predicated region
    $region21: #{_forward.11} parent=5 // pred_check
      %p125 = pneg %p124
    $region22: #{_forward.11} parent=5 // pred_check_branch
      %127 = sbr.rel (%p125) target = $region24
    $region23: #{_forward.11} parent=5 // pred_region
      // Predicated region
      $region25: #{_forward.11} parent=23 // pred_check
        %p128 = pneg %p29
      $region26: #{_forward.11} parent=23 // pred_check_branch
        %130 = sbr.rel (%p128) target = $region28
      $region27: #{_forward.11} parent=23 // pred_region
        %s131 = smul.u32 4, %s9
        %p132 = scmp.lt.s32.totalorder %s131, 7
        %s133 = scalar_select %p132, %s131, 7
        %s134 = smul.addr %s133, 4
        %s135 = scalar_lea.vmem %s0, %s134
        %s136 = smul.u32 4, %s9
      $region28: #{_forward.11} parent=23 // pred_fallthru
        _
    $region24: #{_forward.11} parent=5 // pred_fallthru
      _
    %p137 = scmp.le.s32.totalorder 1, %s9
    %p138 = scmp.lt.s32.totalorder %s9, 3
    %p139 = pnand %p137, %p138
    %p140 = pneg %p139
    // Predicated region
    $region29: #{_forward.11} parent=5 // pred_check
      _
    $region30: #{_forward.11} parent=5 // pred_check_branch
      %142 = sbr.rel (%p139) target = $region32
    $region31: #{_forward.11} parent=5 // pred_region
      %s143 = ssub.s32 %s9, 1
      %s144 = smul.u32 4, %s14
      %p145 = scmp.lt.s32.totalorder %s144, 7
      %s146 = scalar_select %p145, %s144, 7
      %s147 = smul.addr %s146, 4
      %s148 = scalar_lea.vmem %s0, %s147
      %p149 = pneg %p35
      %p150 = pneg %p32
      %p151 = pneg %p56
      %p152 = pneg %p53
      %p153 = pneg %p77
      %p154 = pneg %p74
      %p155 = pneg %p103
      %p156 = pneg %p100
      %s157 = smul.u32 4, %s14
      %p158 = scmp.lt.s32.totalorder %s157, 7
      %s159 = scalar_select %p158, %s157, 7
      %s160 = smul.addr %s159, 8
      %s161 = scalar_lea.vmem %s3, %s160
      %s162 = smul.u32 4, %s14
      %p163 = scmp.lt.s32.totalorder %s162, 7
      %s164 = scalar_select %p163, %s162, 7
      %s165 = smul.addr %s164, 4
      %s166 = scalar_lea.vmem %s0, %s165
      %s167 = smul.u32 4, %s14
      %s168 = smul.u32 4, %s14
      %p169 = scmp.lt.s32.totalorder %s168, 7
      %s170 = scalar_select %p169, %s168, 7
      %s171 = smul.addr %s170, 8
      %s172 = scalar_lea.vmem %s3, %s171
      %s173 = smul.u32 4, %s14
      %v174 = vld [vmem:[%s166] sm:$0xf]
      %v175 = vld [vmem:[%s166 + $0x4] sm:$0xf]
      %v176 = vld [vmem:[%s166 + $0x8] sm:$0xf]
      %v177 = vld [vmem:[%s166 + $0xc] sm:$0xf]
      %v178 = vunpack.c.l.bf16 %v174
      %v179 = vunpack.c.l.bf16 %v175
      %v180 = vunpack.c.l.bf16 %v176
      %v181 = vunpack.c.l.bf16 %v177
      %v182 = vld [vmem:[%s1] sm:$0x1]
      %v184 = vlaneseq
      %v185 = vshrl.u32 %v184, 7
      %v186 = vsub.s32 0, %v185
      %v187 = vrot.slane %v182, %v186
      %v189 = vmul.f32 %v178, %v187
      %v190 = vmul.f32 %v179, %v187
      %v191 = vmul.f32 %v180, %v187
      %v192 = vmul.f32 %v181, %v187
      %v193 = vld [vmem:[%s2] sm:$0x1]
      %v195 = vlaneseq
      %v196 = vshrl.u32 %v195, 7
      %v197 = vsub.s32 0, %v196
      %v198 = vrot.slane %v193, %v197
      %v200 = vadd.f32 %v189, %v198
      %v201 = vadd.f32 %v190, %v198
      %v202 = vadd.f32 %v191, %v198
      %v203 = vadd.f32 %v192, %v198
      %v204 = vmax.f32 %v200, 0.0
      %v205 = vmax.f32 %v201, 0.0
      %v206 = vmax.f32 %v202, 0.0
      %v207 = vmax.f32 %v203, 0.0
      %208 = vst [vmem:[%s172] sm:$0xff] %v204
      %209 = vst [vmem:[%s172 + $0x8] sm:$0xff] %v205
      %210 = vst [vmem:[%s172 + $0x10] sm:$0xff] %v206
      %211 = vst [vmem:[%s172 + $0x18] sm:$0xff] %v207
      %s212 = smul.u32 4, %s14
      %p213 = scmp.lt.s32.totalorder %s212, 7
      %s214 = scalar_select %p213, %s212, 7
      %s215 = smul.addr %s214, 8
      %s216 = scalar_lea.vmem %s3, %s215
      // Predicated region
      $region33: #{_forward.11} parent=31 // pred_check
        %p217 = pneg %p100
      $region34: #{_forward.11} parent=31 // pred_check_branch
        %219 = sbr.rel (%p217) target = $region36
      $region35: #{_forward.11} parent=31 // pred_region
        %s220 = smul.u32 4, %s14
      $region36: #{_forward.11} parent=31 // pred_fallthru
        _
    $region32: #{_forward.11} parent=5 // pred_fallthru
      _
    %p221 = scmp.le.s32.totalorder 2, %s9
    // Predicated region
    $region37: #{_forward.11} parent=5 // pred_check
      %p222 = pneg %p221
    $region38: #{_forward.11} parent=5 // pred_check_branch
      %224 = sbr.rel (%p222) target = $region40
    $region39: #{_forward.11} parent=5 // pred_region
      %s225 = ssub.s32 %s9, 2
      // Predicated region
      $region41: #{_forward.11} parent=39 // pred_check
        %p226 = pneg %p106
      $region42: #{_forward.11} parent=39 // pred_check_branch
        %228 = sbr.rel (%p226) target = $region44
      $region43: #{_forward.11} parent=39 // pred_region
        %s229 = smul.u32 4, %s15
        %p230 = scmp.lt.s32.totalorder %s229, 7
        %s231 = scalar_select %p230, %s229, 7
        %s232 = smul.addr %s231, 8
        %s233 = scalar_lea.vmem %s3, %s232
      $region44: #{_forward.11} parent=39 // pred_fallthru
        _
    $region40: #{_forward.11} parent=5 // pred_fallthru
      _
  $region6: #{_forward.11} parent=0 // loop_footer
    %s13 = sadd.s32 1, %s9
  $region7: #{_forward.11} parent=0 // loop_footer_branch
    %8 = sbr.rel target = $region3
  $region8: #{_forward.11} parent=0 // loop_exit
    _

</llo_original>
